<compile_context>
chip_gen: v6e
topology: v6e:2x2x1
jax: 0.10.0
libtpu: 0.0.40
codegen_flags: <defaults>
</compile_context>

<pallas_src>
import math

import jax
import jax.numpy as jnp
from jax.experimental import pallas as pl

# ---------------- config (small, synthetic GPT-2) ----------------
BATCH = 2
PREFIX_LENGTH = 8          # <= 40  -> MLP branch of clip_project
PREFIX_SIZE = 32           # "CLIP" feature size
EMB = 64                   # gpt_embedding_size
VOCAB = 128
N_LAYER = 2
N_HEAD = 4
HEAD_DIM = EMB // N_HEAD
MAX_POS = 64
TOK_LEN = 8                # caption token length
SEQ = PREFIX_LENGTH + TOK_LEN
MLP_HID = EMB * PREFIX_LENGTH // 2     # 256

_GELU_C = math.sqrt(2.0 / math.pi)

# ---------------- packed-slab row layout (static constants) ----------------
# width-64 per-layer slab
R_WQ, R_WK, R_WV, R_WPRJ = 0, EMB, 2 * EMB, 3 * EMB
R_WOUT = 4 * EMB                               # [4*EMB, EMB] block: rows 256..512
R_LN1G = 8 * EMB                               # 512
R_LN1B, R_LN2G, R_LN2B = R_LN1G + 1, R_LN1G + 2, R_LN1G + 3
R_BQ, R_BK, R_BV = R_LN1G + 4, R_LN1G + 5, R_LN1G + 6
R_BPRJ, R_BOUT = R_LN1G + 7, R_LN1G + 8
L64_USED = R_BOUT + 1                          # 521
L64_ROWS = ((L64_USED + 7) // 8) * 8           # 528 -> per-layer bases stay 8-aligned
# width-256 per-layer slab
R_WFC, R_BFC = 0, EMB
L256_USED = EMB + 1                            # 65
L256_ROWS = ((L256_USED + 7) // 8) * 8         # 72
# width-64 embedding slab
E_WTE = 0
E_WPE = VOCAB
E_LNFG = VOCAB + BATCH * SEQ
E_LNFB = E_LNFG + 1


# ---------------- in-kernel helpers (pure value math) ----------------
def _layernorm(x, g, b):
    mean = jnp.mean(x, axis=-1, keepdims=True)
    var = jnp.mean((x - mean) ** 2, axis=-1, keepdims=True)
    return (x - mean) * jax.lax.rsqrt(var + 1e-5) * g + b


def _gelu_new(y):
    return 0.5 * y * (1.0 + jnp.tanh(_GELU_C * (y + 0.044715 * y * y * y)))


def _gpt2_block(x2d, lyr64_ref, lyr256_ref, li, causal):
    """One pre-LN GPT-2 block on the flattened [BATCH*SEQ, EMB] activation."""
    b64 = li * L64_ROWS        # static (layer loop is unrolled in Python)
    b256 = li * L256_ROWS

    w_q = lyr64_ref[b64 + R_WQ: b64 + R_WQ + EMB, :]
    w_k = lyr64_ref[b64 + R_WK: b64 + R_WK + EMB, :]
    w_v = lyr64_ref[b64 + R_WV: b64 + R_WV + EMB, :]
    w_proj = lyr64_ref[b64 + R_WPRJ: b64 + R_WPRJ + EMB, :]
    w_out = lyr64_ref[b64 + R_WOUT: b64 + R_WOUT + 4 * EMB, :]
    ln1_g = lyr64_ref[b64 + R_LN1G: b64 + R_LN1G + 1, :]
    ln1_b = lyr64_ref[b64 + R_LN1B: b64 + R_LN1B + 1, :]
    ln2_g = lyr64_ref[b64 + R_LN2G: b64 + R_LN2G + 1, :]
    ln2_b = lyr64_ref[b64 + R_LN2B: b64 + R_LN2B + 1, :]
    b_q = lyr64_ref[b64 + R_BQ: b64 + R_BQ + 1, :]
    b_k = lyr64_ref[b64 + R_BK: b64 + R_BK + 1, :]
    b_v = lyr64_ref[b64 + R_BV: b64 + R_BV + 1, :]
    b_proj = lyr64_ref[b64 + R_BPRJ: b64 + R_BPRJ + 1, :]
    b_out = lyr64_ref[b64 + R_BOUT: b64 + R_BOUT + 1, :]
    w_fc = lyr256_ref[b256 + R_WFC: b256 + R_WFC + EMB, :]
    b_fc = lyr256_ref[b256 + R_BFC: b256 + R_BFC + 1, :]

    # --- causal multi-head self-attention (lane-aligned q/k/v buffers) ---
    h = _layernorm(x2d, ln1_g, ln1_b)
    q = jnp.dot(h, w_q, preferred_element_type=jnp.float32) + b_q
    k = jnp.dot(h, w_k, preferred_element_type=jnp.float32) + b_k
    v = jnp.dot(h, w_v, preferred_element_type=jnp.float32) + b_v

    scale = 1.0 / math.sqrt(HEAD_DIM)
    batch_outs = []
    for b in range(BATCH):
        r0 = b * SEQ
        acc = jnp.zeros((SEQ, EMB), jnp.float32)
        for hh in range(N_HEAD):
            c0 = hh * HEAD_DIM
            qh = q[r0:r0 + SEQ, c0:c0 + HEAD_DIM]
            kh = k[r0:r0 + SEQ, c0:c0 + HEAD_DIM]
            vh = v[r0:r0 + SEQ, c0:c0 + HEAD_DIM]
            s = jnp.dot(qh, kh.T, preferred_element_type=jnp.float32) * scale
            s = jnp.where(causal, s, -1e30)
            m = jnp.max(s, axis=-1, keepdims=True)
            p = jnp.exp(s - m)
            denom = jnp.sum(p, axis=-1, keepdims=True)
            p = p * pl.reciprocal(denom, approx=True)      # EUP slot, off the VALU
            o = jnp.dot(p, vh, preferred_element_type=jnp.float32)        # [SEQ, hd]
            # concat(heads) @ W_proj == sum_h o_h @ W_proj[h*hd:(h+1)*hd, :]
            acc = acc + jnp.dot(o, w_proj[c0:c0 + HEAD_DIM, :],
                                preferred_element_type=jnp.float32)       # [SEQ, EMB]
        batch_outs.append(acc)
    a = jnp.concatenate(batch_outs, axis=0) + b_proj                      # [B*SEQ, EMB]
    x2d = x2d + a

    # --- MLP sub-block ---
    h = _layernorm(x2d, ln2_g, ln2_b)
    h = jnp.dot(h, w_fc, preferred_element_type=jnp.float32) + b_fc
    h = _gelu_new(h)
    h = jnp.dot(h, w_out, preferred_element_type=jnp.float32) + b_out
    return x2d + h


# ---------------- the single fused forward kernel ----------------
def _fused_forward_kernel(tok_ref, prefix_ref, mlp1_ref, mlp2_ref, emb_ref,
                          wte_t_ref, lyr64_ref, lyr256_ref, out_ref):
    # unpack the embedding slab
    wte = emb_ref[E_WTE:E_WTE + VOCAB, :]                  # [VOCAB, EMB]
    wpe = emb_ref[E_WPE:E_WPE + BATCH * SEQ, :]            # [B*SEQ, EMB] (pre-tiled)
    lnf_g = emb_ref[E_LNFG:E_LNFG + 1, :]
    lnf_b = emb_ref[E_LNFB:E_LNFB + 1, :]

    # --- token embeddings: exact gather via one-hot matmul (MXU-friendly) ---
    tok = tok_ref[...]                                     # [B*TOK_LEN, 1] int32
    vocab_iota = jax.lax.broadcasted_iota(jnp.int32, (BATCH * TOK_LEN, VOCAB), 1)
    onehot = (tok == vocab_iota).astype(jnp.float32)
    emb_text = jnp.dot(onehot, wte, preferred_element_type=jnp.float32)   # [B*T, EMB]

    # --- clip_project MLP: Linear -> tanh -> one wide Linear (no scratch, no stores) ---
    w1 = mlp1_ref[0:PREFIX_SIZE, :]
    b1 = mlp1_ref[PREFIX_SIZE:PREFIX_SIZE + 1, :]
    w2 = mlp2_ref[0:MLP_HID, :]
    b2 = mlp2_ref[MLP_HID:MLP_HID + 1, :]
    h1 = jnp.tanh(jnp.dot(prefix_ref[...], w1, preferred_element_type=jnp.float32) + b1)
    proj_flat = jnp.dot(h1, w2, preferred_element_type=jnp.float32) + b2  # [B, PL*EMB]

    # --- assemble [prefix_proj | text_emb] per batch as a value, add position emb ---
    pieces = []
    for b in range(BATCH):
        for p in range(PREFIX_LENGTH):
            pieces.append(proj_flat[b:b + 1, p * EMB:(p + 1) * EMB])      # [1, EMB]
        pieces.append(emb_text[b * TOK_LEN:(b + 1) * TOK_LEN, :])         # [T, EMB]
    x2d = jnp.concatenate(pieces, axis=0) + wpe                           # [B*SEQ, EMB]

    # --- causal mask built ONCE, shared by all layers ---
    rows_i = jax.lax.broadcasted_iota(jnp.int32, (SEQ, SEQ), 0)
    cols_i = jax.lax.broadcasted_iota(jnp.int32, (SEQ, SEQ), 1)
    causal = cols_i <= rows_i

    # --- transformer blocks (fully unrolled; all weights VMEM-resident) ---
    for li in range(N_LAYER):
        x2d = _gpt2_block(x2d, lyr64_ref, lyr256_ref, li, causal)

    # --- final LN + tied lm_head with pre-transposed wte_T (no in-kernel transpose) ---
    x2d = _layernorm(x2d, lnf_g, lnf_b)
    out_ref[...] = jnp.dot(x2d, wte_t_ref[...], preferred_element_type=jnp.float32)
    # TODO(synk): loss path (labels = cat(dummy_token, tokens)) not wired; labels=None here.


# ---------------- wrapper ----------------
def _pack_params(params):
    """Host/XLA-side packing of all weights into a few lane-dense slabs."""
    wpe_full = jnp.tile(params["wpe"][:SEQ], (BATCH, 1))                  # [B*SEQ, EMB]
    emb_pack = jnp.concatenate(
        [params["wte"], wpe_full, params["lnf_g"][None, :], params["lnf_b"][None, :]],
        axis=0)                                                           # [162, 64]
    wte_t = params["wte"].T                                               # [EMB, VOCAB]

    mlp1 = jnp.concatenate([params["mlp_w1"], params["mlp_b1"][None, :]], axis=0)  # [33,256]
    mlp2 = jnp.concatenate([params["mlp_w2"], params["mlp_b2"][None, :]], axis=0)  # [257,512]

    l64, l256 = [], []
    for lp in params["layers"]:
        w_attn, b_attn = lp["w_attn"], lp["b_attn"]
        rows64 = jnp.concatenate(
            [w_attn[:, 0:EMB], w_attn[:, EMB:2 * EMB], w_attn[:, 2 * EMB:3 * EMB],
             lp["w_proj"], lp["w_out"],
             lp["ln1_g"][None, :], lp["ln1_b"][None, :],
             lp["ln2_g"][None, :], lp["ln2_b"][None, :],
             b_attn[None, 0:EMB], b_attn[None, EMB:2 * EMB], b_attn[None, 2 * EMB:3 * EMB],
             lp["b_proj"][None, :], lp["b_out"][None, :]], axis=0)
        rows64 = jnp.pad(rows64, ((0, L64_ROWS - L64_USED), (0, 0)))
        l64.append(rows64)
        rows256 = jnp.concatenate([lp["w_fc"], lp["b_fc"][None, :]], axis=0)
        rows256 = jnp.pad(rows256, ((0, L256_ROWS - L256_USED), (0, 0)))
        l256.append(rows256)
    lyr64 = jnp.concatenate(l64, axis=0)                                  # [N_LAYER*528, 64]
    lyr256 = jnp.concatenate(l256, axis=0)                                # [N_LAYER*72, 256]
    return mlp1, mlp2, emb_pack, wte_t, lyr64, lyr256


@jax.jit
def clip_caption_forward(params, tokens, prefix):
    """tokens: int32 [B, TOK_LEN], prefix: f32 [B, PREFIX_SIZE] -> logits [B, SEQ, VOCAB]."""
    tok2d = tokens.reshape(BATCH * TOK_LEN, 1).astype(jnp.int32)
    mlp1, mlp2, emb_pack, wte_t, lyr64, lyr256 = _pack_params(params)

    logits2d = pl.pallas_call(
        _fused_forward_kernel,
        out_shape=jax.ShapeDtypeStruct((BATCH * SEQ, VOCAB), jnp.float32),
    )(tok2d, prefix, mlp1, mlp2, emb_pack, wte_t, lyr64, lyr256)
    return logits2d.reshape(BATCH, SEQ, VOCAB)


# ---------------- pure-JAX reference (for correctness check) ----------------
def reference_forward(params, tokens, prefix):
    def ln(x, g, b):
        m = jnp.mean(x, -1, keepdims=True)
        v = jnp.mean((x - m) ** 2, -1, keepdims=True)
        return (x - m) * jax.lax.rsqrt(v + 1e-5) * g + b

    emb_text = jnp.take(params["wte"], tokens, axis=0)                    # [B, T, EMB]
    h1 = jnp.tanh(prefix @ params["mlp_w1"] + params["mlp_b1"])
    proj = (h1 @ params["mlp_w2"] + params["mlp_b2"]).reshape(BATCH, PREFIX_LENGTH, EMB)
    x = jnp.concatenate([proj, emb_text], axis=1) + params["wpe"][:SEQ][None]

    for lp in params["layers"]:
        h = ln(x, lp["ln1_g"], lp["ln1_b"])
        qkv = (h @ lp["w_attn"] + lp["b_attn"]).reshape(BATCH, SEQ, 3, N_HEAD, HEAD_DIM)
        q = qkv[:, :, 0].transpose(0, 2, 1, 3)
        k = qkv[:, :, 1].transpose(0, 2, 1, 3)
        v = qkv[:, :, 2].transpose(0, 2, 1, 3)
        s = jnp.einsum("bhqd,bhkd->bhqk", q, k) / math.sqrt(HEAD_DIM)
        mask = jnp.tril(jnp.ones((SEQ, SEQ), bool))
        s = jnp.where(mask, s, -1e30)
        p = jax.nn.softmax(s, axis=-1)
        a = jnp.einsum("bhqk,bhkd->bhqd", p, v).transpose(0, 2, 1, 3).reshape(BATCH, SEQ, EMB)
        x = x + a @ lp["w_proj"] + lp["b_proj"]
        h = ln(x, lp["ln2_g"], lp["ln2_b"])
        h = h @ lp["w_fc"] + lp["b_fc"]
        h = 0.5 * h * (1.0 + jnp.tanh(_GELU_C * (h + 0.044715 * h ** 3)))
        x = x + h @ lp["w_out"] + lp["b_out"]

    x = ln(x, params["lnf_g"], params["lnf_b"])
    return x @ params["wte"].T                                            # [B, SEQ, VOCAB]


# ---------------- deterministic parameter init ----------------
def init_params(key):
    def nrm(k, shape, scale=0.02):
        return scale * jax.random.normal(k, shape, jnp.float32)

    keys = iter(jax.random.split(key, 64))
    params = {
        "wte": nrm(next(keys), (VOCAB, EMB)),
        "wpe": nrm(next(keys), (MAX_POS, EMB), 0.01),
        "lnf_g": jnp.ones((EMB,), jnp.float32),
        "lnf_b": jnp.zeros((EMB,), jnp.float32),
        # clip_project MLP: (prefix_size, emb*prefix_len//2, emb*prefix_len)
        "mlp_w1": nrm(next(keys), (PREFIX_SIZE, MLP_HID)),
        "mlp_b1": jnp.zeros((MLP_HID,), jnp.float32),
        "mlp_w2": nrm(next(keys), (MLP_HID, EMB * PREFIX_LENGTH)),
        "mlp_b2": jnp.zeros((EMB * PREFIX_LENGTH,), jnp.float32),
        "layers": [],
    }
    for _ in range(N_LAYER):
        params["layers"].append({
            "ln1_g": jnp.ones((EMB,), jnp.float32),
            "ln1_b": jnp.zeros((EMB,), jnp.float32),
            "w_attn": nrm(next(keys), (EMB, 3 * EMB)),
            "b_attn": jnp.zeros((3 * EMB,), jnp.float32),
            "w_proj": nrm(next(keys), (EMB, EMB)),
            "b_proj": jnp.zeros((EMB,), jnp.float32),
            "ln2_g": jnp.ones((EMB,), jnp.float32),
            "ln2_b": jnp.zeros((EMB,), jnp.float32),
            "w_fc": nrm(next(keys), (EMB, 4 * EMB)),
            "b_fc": jnp.zeros((4 * EMB,), jnp.float32),
            "w_out": nrm(next(keys), (4 * EMB, EMB)),
            "b_out": jnp.zeros((EMB,), jnp.float32),
        })
    return params


if __name__ == "__main__":
    key = jax.random.PRNGKey(0)
    k_par, k_tok, k_pre = jax.random.split(key, 3)

    params = init_params(k_par)
    tokens = jax.random.randint(k_tok, (BATCH, TOK_LEN), 0, VOCAB, dtype=jnp.int32)
    prefix = jax.random.normal(k_pre, (BATCH, PREFIX_SIZE), jnp.float32)

    logits = clip_caption_forward(params, tokens, prefix)
    logits = jax.block_until_ready(logits)

    expected = (BATCH, SEQ, VOCAB)
    assert logits.shape == expected, (logits.shape, expected)
    assert bool(jnp.all(jnp.isfinite(logits)))

    with jax.default_matmul_precision("float32"):
        ref = reference_forward(params, tokens, prefix)
    max_err = float(jnp.max(jnp.abs(logits - ref)))
    assert bool(jnp.allclose(logits, ref, rtol=2e-2, atol=2e-2)), max_err

    print("KERNEL_OK")
</pallas_src>

<mosaic_0001>
module attributes {stable_mosaic.version = 11 : i64} {
  func.func @_fused_forward_kernel(%arg0: memref<16x1xi32, #tpu.memory_space<vmem>>, %arg1: memref<2x32xf32, #tpu.memory_space<vmem>>, %arg2: memref<33x256xf32, #tpu.memory_space<vmem>>, %arg3: memref<257x512xf32, #tpu.memory_space<vmem>>, %arg4: memref<162x64xf32, #tpu.memory_space<vmem>>, %arg5: memref<64x128xf32, #tpu.memory_space<vmem>>, %arg6: memref<1056x64xf32, #tpu.memory_space<vmem>>, %arg7: memref<144x256xf32, #tpu.memory_space<vmem>>, %arg8: memref<32x128xf32, #tpu.memory_space<vmem>>) attributes {dimension_semantics = [], scalar_prefetch = 0 : i64, scratch_operands = 0 : i64, tpu.core_type = #tpu.core_type<tc>} {
    %c0 = arith.constant 0 : index
    %c0_0 = arith.constant 0 : index
    %0 = vector.load %arg4[%c0, %c0_0] : memref<162x64xf32, #tpu.memory_space<vmem>>, vector<128x64xf32>
    %c128 = arith.constant 128 : index
    %c0_1 = arith.constant 0 : index
    %1 = vector.load %arg4[%c128, %c0_1] : memref<162x64xf32, #tpu.memory_space<vmem>>, vector<32x64xf32>
    %c160 = arith.constant 160 : index
    %c0_2 = arith.constant 0 : index
    %2 = vector.load %arg4[%c160, %c0_2] : memref<162x64xf32, #tpu.memory_space<vmem>>, vector<1x64xf32>
    %c161 = arith.constant 161 : index
    %c0_3 = arith.constant 0 : index
    %3 = vector.load %arg4[%c161, %c0_3] : memref<162x64xf32, #tpu.memory_space<vmem>>, vector<1x64xf32>
    %c0_4 = arith.constant 0 : index
    %c0_5 = arith.constant 0 : index
    %4 = vector.load %arg0[%c0_4, %c0_5] : memref<16x1xi32, #tpu.memory_space<vmem>>, vector<16x1xi32>
    %5 = tpu.iota {dimensions = array<i32: 1>} : vector<16x128xi32>
    %6 = vector.broadcast %4 : vector<16x1xi32> to vector<16x128xi32>
    %7 = arith.cmpi eq, %6, %5 : vector<16x128xi32>
    %8 = arith.extui %7 : vector<16x128xi1> to vector<16x128xi32>
    %9 = arith.sitofp %8 : vector<16x128xi32> to vector<16x128xf32>
    %cst = arith.constant dense<0.000000e+00> : vector<16x64xf32>
    %10 = tpu.matmul %9, %0, %cst {dimension_numbers = #tpu.dot_dimension_numbers<[1], [0], [0], [1], [0, 0, 1, 1], [], []>} : vector<16x128xf32>, vector<128x64xf32>, vector<16x64xf32> -> vector<16x64xf32>
    %c0_6 = arith.constant 0 : index
    %c0_7 = arith.constant 0 : index
    %11 = vector.load %arg2[%c0_6, %c0_7] : memref<33x256xf32, #tpu.memory_space<vmem>>, vector<32x256xf32>
    %c32 = arith.constant 32 : index
    %c0_8 = arith.constant 0 : index
    %12 = vector.load %arg2[%c32, %c0_8] : memref<33x256xf32, #tpu.memory_space<vmem>>, vector<1x256xf32>
    %c0_9 = arith.constant 0 : index
    %c0_10 = arith.constant 0 : index
    %13 = vector.load %arg3[%c0_9, %c0_10] : memref<257x512xf32, #tpu.memory_space<vmem>>, vector<256x512xf32>
    %c256 = arith.constant 256 : index
    %c0_11 = arith.constant 0 : index
    %14 = vector.load %arg3[%c256, %c0_11] : memref<257x512xf32, #tpu.memory_space<vmem>>, vector<1x512xf32>
    %c0_12 = arith.constant 0 : index
    %c0_13 = arith.constant 0 : index
    %15 = vector.load %arg1[%c0_12, %c0_13] : memref<2x32xf32, #tpu.memory_space<vmem>>, vector<2x32xf32>
    %cst_14 = arith.constant dense<0.000000e+00> : vector<2x256xf32>
    %16 = tpu.matmul %15, %11, %cst_14 {dimension_numbers = #tpu.dot_dimension_numbers<[1], [0], [0], [1], [0, 0, 1, 1], [], []>} : vector<2x32xf32>, vector<32x256xf32>, vector<2x256xf32> -> vector<2x256xf32>
    %17 = vector.broadcast %12 : vector<1x256xf32> to vector<2x256xf32>
    %18 = arith.addf %16, %17 : vector<2x256xf32>
    %19 = math.tanh %18 : vector<2x256xf32>
    %cst_15 = arith.constant dense<0.000000e+00> : vector<2x512xf32>
    %20 = tpu.matmul %19, %13, %cst_15 {dimension_numbers = #tpu.dot_dimension_numbers<[1], [0], [0], [1], [0, 0, 1, 1], [], []>} : vector<2x256xf32>, vector<256x512xf32>, vector<2x512xf32> -> vector<2x512xf32>
    %21 = vector.broadcast %14 : vector<1x512xf32> to vector<2x512xf32>
    %22 = arith.addf %20, %21 : vector<2x512xf32>
    %23 = vector.extract_strided_slice %22 {offsets = [0, 0], sizes = [1, 64], strides = [1, 1]} : vector<2x512xf32> to vector<1x64xf32>
    %24 = vector.extract_strided_slice %22 {offsets = [0, 64], sizes = [1, 64], strides = [1, 1]} : vector<2x512xf32> to vector<1x64xf32>
    %25 = vector.extract_strided_slice %22 {offsets = [0, 128], sizes = [1, 64], strides = [1, 1]} : vector<2x512xf32> to vector<1x64xf32>
    %26 = vector.extract_strided_slice %22 {offsets = [0, 192], sizes = [1, 64], strides = [1, 1]} : vector<2x512xf32> to vector<1x64xf32>
    %27 = vector.extract_strided_slice %22 {offsets = [0, 256], sizes = [1, 64], strides = [1, 1]} : vector<2x512xf32> to vector<1x64xf32>
    %28 = vector.extract_strided_slice %22 {offsets = [0, 320], sizes = [1, 64], strides = [1, 1]} : vector<2x512xf32> to vector<1x64xf32>
    %29 = vector.extract_strided_slice %22 {offsets = [0, 384], sizes = [1, 64], strides = [1, 1]} : vector<2x512xf32> to vector<1x64xf32>
    %30 = vector.extract_strided_slice %22 {offsets = [0, 448], sizes = [1, 64], strides = [1, 1]} : vector<2x512xf32> to vector<1x64xf32>
    %31 = vector.extract_strided_slice %10 {offsets = [0, 0], sizes = [8, 64], strides = [1, 1]} : vector<16x64xf32> to vector<8x64xf32>
    %32 = vector.extract_strided_slice %22 {offsets = [1, 0], sizes = [1, 64], strides = [1, 1]} : vector<2x512xf32> to vector<1x64xf32>
    %33 = vector.extract_strided_slice %22 {offsets = [1, 64], sizes = [1, 64], strides = [1, 1]} : vector<2x512xf32> to vector<1x64xf32>
    %34 = vector.extract_strided_slice %22 {offsets = [1, 128], sizes = [1, 64], strides = [1, 1]} : vector<2x512xf32> to vector<1x64xf32>
    %35 = vector.extract_strided_slice %22 {offsets = [1, 192], sizes = [1, 64], strides = [1, 1]} : vector<2x512xf32> to vector<1x64xf32>
    %36 = vector.extract_strided_slice %22 {offsets = [1, 256], sizes = [1, 64], strides = [1, 1]} : vector<2x512xf32> to vector<1x64xf32>
    %37 = vector.extract_strided_slice %22 {offsets = [1, 320], sizes = [1, 64], strides = [1, 1]} : vector<2x512xf32> to vector<1x64xf32>
    %38 = vector.extract_strided_slice %22 {offsets = [1, 384], sizes = [1, 64], strides = [1, 1]} : vector<2x512xf32> to vector<1x64xf32>
    %39 = vector.extract_strided_slice %22 {offsets = [1, 448], sizes = [1, 64], strides = [1, 1]} : vector<2x512xf32> to vector<1x64xf32>
    %40 = vector.extract_strided_slice %10 {offsets = [8, 0], sizes = [8, 64], strides = [1, 1]} : vector<16x64xf32> to vector<8x64xf32>
    %41 = tpu.concatenate %23, %24, %25, %26, %27, %28, %29, %30, %31, %32, %33, %34, %35, %36, %37, %38 in 0 : vector<1x64xf32>, vector<1x64xf32>, vector<1x64xf32>, vector<1x64xf32>, vector<1x64xf32>, vector<1x64xf32>, vector<1x64xf32>, vector<1x64xf32>, vector<8x64xf32>, vector<1x64xf32>, vector<1x64xf32>, vector<1x64xf32>, vector<1x64xf32>, vector<1x64xf32>, vector<1x64xf32>, vector<1x64xf32> -> vector<23x64xf32>
    %42 = tpu.concatenate %39, %40 in 0 : vector<1x64xf32>, vector<8x64xf32> -> vector<9x64xf32>
    %43 = tpu.concatenate %41, %42 in 0 : vector<23x64xf32>, vector<9x64xf32> -> vector<32x64xf32>
    %44 = arith.addf %43, %1 : vector<32x64xf32>
    %45 = tpu.iota {dimensions = array<i32: 0>} : vector<16x16xi32>
    %46 = tpu.iota {dimensions = array<i32: 1>} : vector<16x16xi32>
    %47 = arith.cmpi sle, %46, %45 : vector<16x16xi32>
    %c0_16 = arith.constant 0 : index
    %c0_17 = arith.constant 0 : index
    %48 = vector.load %arg6[%c0_16, %c0_17] : memref<1056x64xf32, #tpu.memory_space<vmem>>, vector<64x64xf32>
    %c64 = arith.constant 64 : index
    %c0_18 = arith.constant 0 : index
    %49 = vector.load %arg6[%c64, %c0_18] : memref<1056x64xf32, #tpu.memory_space<vmem>>, vector<64x64xf32>
    %c128_19 = arith.constant 128 : index
    %c0_20 = arith.constant 0 : index
    %50 = vector.load %arg6[%c128_19, %c0_20] : memref<1056x64xf32, #tpu.memory_space<vmem>>, vector<64x64xf32>
    %c192 = arith.constant 192 : index
    %c0_21 = arith.constant 0 : index
    %51 = vector.load %arg6[%c192, %c0_21] : memref<1056x64xf32, #tpu.memory_space<vmem>>, vector<64x64xf32>
    %c256_22 = arith.constant 256 : index
    %c0_23 = arith.constant 0 : index
    %52 = vector.load %arg6[%c256_22, %c0_23] : memref<1056x64xf32, #tpu.memory_space<vmem>>, vector<256x64xf32>
    %c512 = arith.constant 512 : index
    %c0_24 = arith.constant 0 : index
    %53 = vector.load %arg6[%c512, %c0_24] : memref<1056x64xf32, #tpu.memory_space<vmem>>, vector<1x64xf32>
    %c513 = arith.constant 513 : index
    %c0_25 = arith.constant 0 : index
    %54 = vector.load %arg6[%c513, %c0_25] : memref<1056x64xf32, #tpu.memory_space<vmem>>, vector<1x64xf32>
    %c514 = arith.constant 514 : index
    %c0_26 = arith.constant 0 : index
    %55 = vector.load %arg6[%c514, %c0_26] : memref<1056x64xf32, #tpu.memory_space<vmem>>, vector<1x64xf32>
    %c515 = arith.constant 515 : index
    %c0_27 = arith.constant 0 : index
    %56 = vector.load %arg6[%c515, %c0_27] : memref<1056x64xf32, #tpu.memory_space<vmem>>, vector<1x64xf32>
    %c516 = arith.constant 516 : index
    %c0_28 = arith.constant 0 : index
    %57 = vector.load %arg6[%c516, %c0_28] : memref<1056x64xf32, #tpu.memory_space<vmem>>, vector<1x64xf32>
    %c517 = arith.constant 517 : index
    %c0_29 = arith.constant 0 : index
    %58 = vector.load %arg6[%c517, %c0_29] : memref<1056x64xf32, #tpu.memory_space<vmem>>, vector<1x64xf32>
    %c518 = arith.constant 518 : index
    %c0_30 = arith.constant 0 : index
    %59 = vector.load %arg6[%c518, %c0_30] : memref<1056x64xf32, #tpu.memory_space<vmem>>, vector<1x64xf32>
    %c519 = arith.constant 519 : index
    %c0_31 = arith.constant 0 : index
    %60 = vector.load %arg6[%c519, %c0_31] : memref<1056x64xf32, #tpu.memory_space<vmem>>, vector<1x64xf32>
    %c520 = arith.constant 520 : index
    %c0_32 = arith.constant 0 : index
    %61 = vector.load %arg6[%c520, %c0_32] : memref<1056x64xf32, #tpu.memory_space<vmem>>, vector<1x64xf32>
    %c0_33 = arith.constant 0 : index
    %c0_34 = arith.constant 0 : index
    %62 = vector.load %arg7[%c0_33, %c0_34] : memref<144x256xf32, #tpu.memory_space<vmem>>, vector<64x256xf32>
    %c64_35 = arith.constant 64 : index
    %c0_36 = arith.constant 0 : index
    %63 = vector.load %arg7[%c64_35, %c0_36] : memref<144x256xf32, #tpu.memory_space<vmem>>, vector<1x256xf32>
    %cst_37 = arith.constant dense<0.000000e+00> : vector<32xf32>
    %64 = vector.multi_reduction <add>, %44, %cst_37 [1] : vector<32x64xf32> to vector<32xf32>
    %65 = vector.shape_cast %64 : vector<32xf32> to vector<32x1xf32>
    %cst_38 = arith.constant 6.400000e+01 : f32
    %66 = vector.broadcast %cst_38 : f32 to vector<32x1xf32>
    %67 = arith.divf %65, %66 : vector<32x1xf32>
    %68 = vector.broadcast %67 : vector<32x1xf32> to vector<32x64xf32>
    %69 = arith.subf %44, %68 : vector<32x64xf32>
    %70 = arith.mulf %69, %69 : vector<32x64xf32>
    %cst_39 = arith.constant dense<0.000000e+00> : vector<32xf32>
    %71 = vector.multi_reduction <add>, %70, %cst_39 [1] : vector<32x64xf32> to vector<32xf32>
    %72 = vector.shape_cast %71 : vector<32xf32> to vector<32x1xf32>
    %cst_40 = arith.constant 6.400000e+01 : f32
    %73 = vector.broadcast %cst_40 : f32 to vector<32x1xf32>
    %74 = arith.divf %72, %73 : vector<32x1xf32>
    %75 = vector.broadcast %67 : vector<32x1xf32> to vector<32x64xf32>
    %76 = arith.subf %44, %75 : vector<32x64xf32>
    %cst_41 = arith.constant 9.99999974E-6 : f32
    %77 = vector.broadcast %cst_41 : f32 to vector<32x1xf32>
    %78 = arith.addf %74, %77 : vector<32x1xf32>
    %79 = math.rsqrt %78 : vector<32x1xf32>
    %80 = vector.broadcast %79 : vector<32x1xf32> to vector<32x64xf32>
    %81 = arith.mulf %76, %80 : vector<32x64xf32>
    %82 = vector.broadcast %53 : vector<1x64xf32> to vector<32x64xf32>
    %83 = arith.mulf %81, %82 : vector<32x64xf32>
    %84 = vector.broadcast %54 : vector<1x64xf32> to vector<32x64xf32>
    %85 = arith.addf %83, %84 : vector<32x64xf32>
    %cst_42 = arith.constant dense<0.000000e+00> : vector<32x64xf32>
    %86 = tpu.matmul %85, %48, %cst_42 {dimension_numbers = #tpu.dot_dimension_numbers<[1], [0], [0], [1], [0, 0, 1, 1], [], []>} : vector<32x64xf32>, vector<64x64xf32>, vector<32x64xf32> -> vector<32x64xf32>
    %87 = vector.broadcast %57 : vector<1x64xf32> to vector<32x64xf32>
    %88 = arith.addf %86, %87 : vector<32x64xf32>
    %cst_43 = arith.constant dense<0.000000e+00> : vector<32x64xf32>
    %89 = tpu.matmul %85, %49, %cst_43 {dimension_numbers = #tpu.dot_dimension_numbers<[1], [0], [0], [1], [0, 0, 1, 1], [], []>} : vector<32x64xf32>, vector<64x64xf32>, vector<32x64xf32> -> vector<32x64xf32>
    %90 = vector.broadcast %58 : vector<1x64xf32> to vector<32x64xf32>
    %91 = arith.addf %89, %90 : vector<32x64xf32>
    %cst_44 = arith.constant dense<0.000000e+00> : vector<32x64xf32>
    %92 = tpu.matmul %85, %50, %cst_44 {dimension_numbers = #tpu.dot_dimension_numbers<[1], [0], [0], [1], [0, 0, 1, 1], [], []>} : vector<32x64xf32>, vector<64x64xf32>, vector<32x64xf32> -> vector<32x64xf32>
    %93 = vector.broadcast %59 : vector<1x64xf32> to vector<32x64xf32>
    %94 = arith.addf %92, %93 : vector<32x64xf32>
    %cst_45 = arith.constant 0.000000e+00 : f32
    %95 = vector.broadcast %cst_45 : f32 to vector<16x64xf32>
    %96 = vector.extract_strided_slice %88 {offsets = [0, 0], sizes = [16, 16], strides = [1, 1]} : vector<32x64xf32> to vector<16x16xf32>
    %97 = vector.extract_strided_slice %91 {offsets = [0, 0], sizes = [16, 16], strides = [1, 1]} : vector<32x64xf32> to vector<16x16xf32>
    %98 = vector.extract_strided_slice %94 {offsets = [0, 0], sizes = [16, 16], strides = [1, 1]} : vector<32x64xf32> to vector<16x16xf32>
    %99 = tpu.transpose %97, [1, 0] : vector<16x16xf32> -> vector<16x16xf32>
    %cst_46 = arith.constant dense<0.000000e+00> : vector<16x16xf32>
    %100 = tpu.matmul %96, %99, %cst_46 {dimension_numbers = #tpu.dot_dimension_numbers<[1], [0], [0], [1], [0, 0, 1, 1], [], []>} : vector<16x16xf32>, vector<16x16xf32>, vector<16x16xf32> -> vector<16x16xf32>
    %cst_47 = arith.constant 2.500000e-01 : f32
    %101 = vector.broadcast %cst_47 : f32 to vector<16x16xf32>
    %102 = arith.mulf %100, %101 : vector<16x16xf32>
    %cst_48 = arith.constant -1.000000e+30 : f32
    %103 = vector.broadcast %cst_48 : f32 to vector<16x16xf32>
    %104 = arith.select %47, %102, %103 : vector<16x16xi1>, vector<16x16xf32>
    %cst_49 = arith.constant dense<0xFF800000> : vector<16xf32>
    %105 = vector.multi_reduction <maximumf>, %104, %cst_49 [1] : vector<16x16xf32> to vector<16xf32>
    %106 = vector.shape_cast %105 : vector<16xf32> to vector<16x1xf32>
    %107 = vector.broadcast %106 : vector<16x1xf32> to vector<16x16xf32>
    %108 = arith.subf %104, %107 : vector<16x16xf32>
    %109 = math.exp %108 : vector<16x16xf32>
    %cst_50 = arith.constant dense<0.000000e+00> : vector<16xf32>
    %110 = vector.multi_reduction <add>, %109, %cst_50 [1] : vector<16x16xf32> to vector<16xf32>
    %111 = vector.shape_cast %110 : vector<16xf32> to vector<16x1xf32>
    %112 = tpu.reciprocal %111 {approx = true} : vector<16x1xf32> -> vector<16x1xf32>
    %113 = vector.broadcast %112 : vector<16x1xf32> to vector<16x16xf32>
    %114 = arith.mulf %109, %113 : vector<16x16xf32>
    %cst_51 = arith.constant dense<0.000000e+00> : vector<16x16xf32>
    %115 = tpu.matmul %114, %98, %cst_51 {dimension_numbers = #tpu.dot_dimension_numbers<[1], [0], [0], [1], [0, 0, 1, 1], [], []>} : vector<16x16xf32>, vector<16x16xf32>, vector<16x16xf32> -> vector<16x16xf32>
    %116 = vector.extract_strided_slice %51 {offsets = [0, 0], sizes = [16, 64], strides = [1, 1]} : vector<64x64xf32> to vector<16x64xf32>
    %cst_52 = arith.constant dense<0.000000e+00> : vector<16x64xf32>
    %117 = tpu.matmul %115, %116, %cst_52 {dimension_numbers = #tpu.dot_dimension_numbers<[1], [0], [0], [1], [0, 0, 1, 1], [], []>} : vector<16x16xf32>, vector<16x64xf32>, vector<16x64xf32> -> vector<16x64xf32>
    %118 = arith.addf %95, %117 : vector<16x64xf32>
    %119 = vector.extract_strided_slice %88 {offsets = [0, 16], sizes = [16, 16], strides = [1, 1]} : vector<32x64xf32> to vector<16x16xf32>
    %120 = vector.extract_strided_slice %91 {offsets = [0, 16], sizes = [16, 16], strides = [1, 1]} : vector<32x64xf32> to vector<16x16xf32>
    %121 = vector.extract_strided_slice %94 {offsets = [0, 16], sizes = [16, 16], strides = [1, 1]} : vector<32x64xf32> to vector<16x16xf32>
    %122 = tpu.transpose %120, [1, 0] : vector<16x16xf32> -> vector<16x16xf32>
    %cst_53 = arith.constant dense<0.000000e+00> : vector<16x16xf32>
    %123 = tpu.matmul %119, %122, %cst_53 {dimension_numbers = #tpu.dot_dimension_numbers<[1], [0], [0], [1], [0, 0, 1, 1], [], []>} : vector<16x16xf32>, vector<16x16xf32>, vector<16x16xf32> -> vector<16x16xf32>
    %cst_54 = arith.constant 2.500000e-01 : f32
    %124 = vector.broadcast %cst_54 : f32 to vector<16x16xf32>
    %125 = arith.mulf %123, %124 : vector<16x16xf32>
    %cst_55 = arith.constant -1.000000e+30 : f32
    %126 = vector.broadcast %cst_55 : f32 to vector<16x16xf32>
    %127 = arith.select %47, %125, %126 : vector<16x16xi1>, vector<16x16xf32>
    %cst_56 = arith.constant dense<0xFF800000> : vector<16xf32>
    %128 = vector.multi_reduction <maximumf>, %127, %cst_56 [1] : vector<16x16xf32> to vector<16xf32>
    %129 = vector.shape_cast %128 : vector<16xf32> to vector<16x1xf32>
    %130 = vector.broadcast %129 : vector<16x1xf32> to vector<16x16xf32>
    %131 = arith.subf %127, %130 : vector<16x16xf32>
    %132 = math.exp %131 : vector<16x16xf32>
    %cst_57 = arith.constant dense<0.000000e+00> : vector<16xf32>
    %133 = vector.multi_reduction <add>, %132, %cst_57 [1] : vector<16x16xf32> to vector<16xf32>
    %134 = vector.shape_cast %133 : vector<16xf32> to vector<16x1xf32>
    %135 = tpu.reciprocal %134 {approx = true} : vector<16x1xf32> -> vector<16x1xf32>
    %136 = vector.broadcast %135 : vector<16x1xf32> to vector<16x16xf32>
    %137 = arith.mulf %132, %136 : vector<16x16xf32>
    %cst_58 = arith.constant dense<0.000000e+00> : vector<16x16xf32>
    %138 = tpu.matmul %137, %121, %cst_58 {dimension_numbers = #tpu.dot_dimension_numbers<[1], [0], [0], [1], [0, 0, 1, 1], [], []>} : vector<16x16xf32>, vector<16x16xf32>, vector<16x16xf32> -> vector<16x16xf32>
    %139 = vector.extract_strided_slice %51 {offsets = [16, 0], sizes = [16, 64], strides = [1, 1]} : vector<64x64xf32> to vector<16x64xf32>
    %cst_59 = arith.constant dense<0.000000e+00> : vector<16x64xf32>
    %140 = tpu.matmul %138, %139, %cst_59 {dimension_numbers = #tpu.dot_dimension_numbers<[1], [0], [0], [1], [0, 0, 1, 1], [], []>} : vector<16x16xf32>, vector<16x64xf32>, vector<16x64xf32> -> vector<16x64xf32>
    %141 = arith.addf %118, %140 : vector<16x64xf32>
    %142 = vector.extract_strided_slice %88 {offsets = [0, 32], sizes = [16, 16], strides = [1, 1]} : vector<32x64xf32> to vector<16x16xf32>
    %143 = vector.extract_strided_slice %91 {offsets = [0, 32], sizes = [16, 16], strides = [1, 1]} : vector<32x64xf32> to vector<16x16xf32>
    %144 = vector.extract_strided_slice %94 {offsets = [0, 32], sizes = [16, 16], strides = [1, 1]} : vector<32x64xf32> to vector<16x16xf32>
    %145 = tpu.transpose %143, [1, 0] : vector<16x16xf32> -> vector<16x16xf32>
    %cst_60 = arith.constant dense<0.000000e+00> : vector<16x16xf32>
    %146 = tpu.matmul %142, %145, %cst_60 {dimension_numbers = #tpu.dot_dimension_numbers<[1], [0], [0], [1], [0, 0, 1, 1], [], []>} : vector<16x16xf32>, vector<16x16xf32>, vector<16x16xf32> -> vector<16x16xf32>
    %cst_61 = arith.constant 2.500000e-01 : f32
    %147 = vector.broadcast %cst_61 : f32 to vector<16x16xf32>
    %148 = arith.mulf %146, %147 : vector<16x16xf32>
    %cst_62 = arith.constant -1.000000e+30 : f32
    %149 = vector.broadcast %cst_62 : f32 to vector<16x16xf32>
    %150 = arith.select %47, %148, %149 : vector<16x16xi1>, vector<16x16xf32>
    %cst_63 = arith.constant dense<0xFF800000> : vector<16xf32>
    %151 = vector.multi_reduction <maximumf>, %150, %cst_63 [1] : vector<16x16xf32> to vector<16xf32>
    %152 = vector.shape_cast %151 : vector<16xf32> to vector<16x1xf32>
    %153 = vector.broadcast %152 : vector<16x1xf32> to vector<16x16xf32>
    %154 = arith.subf %150, %153 : vector<16x16xf32>
    %155 = math.exp %154 : vector<16x16xf32>
    %cst_64 = arith.constant dense<0.000000e+00> : vector<16xf32>
    %156 = vector.multi_reduction <add>, %155, %cst_64 [1] : vector<16x16xf32> to vector<16xf32>
    %157 = vector.shape_cast %156 : vector<16xf32> to vector<16x1xf32>
    %158 = tpu.reciprocal %157 {approx = true} : vector<16x1xf32> -> vector<16x1xf32>
    %159 = vector.broadcast %158 : vector<16x1xf32> to vector<16x16xf32>
    %160 = arith.mulf %155, %159 : vector<16x16xf32>
    %cst_65 = arith.constant dense<0.000000e+00> : vector<16x16xf32>
    %161 = tpu.matmul %160, %144, %cst_65 {dimension_numbers = #tpu.dot_dimension_numbers<[1], [0], [0], [1], [0, 0, 1, 1], [], []>} : vector<16x16xf32>, vector<16x16xf32>, vector<16x16xf32> -> vector<16x16xf32>
    %162 = vector.extract_strided_slice %51 {offsets = [32, 0], sizes = [16, 64], strides = [1, 1]} : vector<64x64xf32> to vector<16x64xf32>
    %cst_66 = arith.constant dense<0.000000e+00> : vector<16x64xf32>
    %163 = tpu.matmul %161, %162, %cst_66 {dimension_numbers = #tpu.dot_dimension_numbers<[1], [0], [0], [1], [0, 0, 1, 1], [], []>} : vector<16x16xf32>, vector<16x64xf32>, vector<16x64xf32> -> vector<16x64xf32>
    %164 = arith.addf %141, %163 : vector<16x64xf32>
    %165 = vector.extract_strided_slice %88 {offsets = [0, 48], sizes = [16, 16], strides = [1, 1]} : vector<32x64xf32> to vector<16x16xf32>
    %166 = vector.extract_strided_slice %91 {offsets = [0, 48], sizes = [16, 16], strides = [1, 1]} : vector<32x64xf32> to vector<16x16xf32>
    %167 = vector.extract_strided_slice %94 {offsets = [0, 48], sizes = [16, 16], strides = [1, 1]} : vector<32x64xf32> to vector<16x16xf32>
    %168 = tpu.transpose %166, [1, 0] : vector<16x16xf32> -> vector<16x16xf32>
    %cst_67 = arith.constant dense<0.000000e+00> : vector<16x16xf32>
    %169 = tpu.matmul %165, %168, %cst_67 {dimension_numbers = #tpu.dot_dimension_numbers<[1], [0], [0], [1], [0, 0, 1, 1], [], []>} : vector<16x16xf32>, vector<16x16xf32>, vector<16x16xf32> -> vector<16x16xf32>
    %cst_68 = arith.constant 2.500000e-01 : f32
    %170 = vector.broadcast %cst_68 : f32 to vector<16x16xf32>
    %171 = arith.mulf %169, %170 : vector<16x16xf32>
    %cst_69 = arith.constant -1.000000e+30 : f32
    %172 = vector.broadcast %cst_69 : f32 to vector<16x16xf32>
    %173 = arith.select %47, %171, %172 : vector<16x16xi1>, vector<16x16xf32>
    %cst_70 = arith.constant dense<0xFF800000> : vector<16xf32>
    %174 = vector.multi_reduction <maximumf>, %173, %cst_70 [1] : vector<16x16xf32> to vector<16xf32>
    %175 = vector.shape_cast %174 : vector<16xf32> to vector<16x1xf32>
    %176 = vector.broadcast %175 : vector<16x1xf32> to vector<16x16xf32>
    %177 = arith.subf %173, %176 : vector<16x16xf32>
    %178 = math.exp %177 : vector<16x16xf32>
    %cst_71 = arith.constant dense<0.000000e+00> : vector<16xf32>
    %179 = vector.multi_reduction <add>, %178, %cst_71 [1] : vector<16x16xf32> to vector<16xf32>
    %180 = vector.shape_cast %179 : vector<16xf32> to vector<16x1xf32>
    %181 = tpu.reciprocal %180 {approx = true} : vector<16x1xf32> -> vector<16x1xf32>
    %182 = vector.broadcast %181 : vector<16x1xf32> to vector<16x16xf32>
    %183 = arith.mulf %178, %182 : vector<16x16xf32>
    %cst_72 = arith.constant dense<0.000000e+00> : vector<16x16xf32>
    %184 = tpu.matmul %183, %167, %cst_72 {dimension_numbers = #tpu.dot_dimension_numbers<[1], [0], [0], [1], [0, 0, 1, 1], [], []>} : vector<16x16xf32>, vector<16x16xf32>, vector<16x16xf32> -> vector<16x16xf32>
    %185 = vector.extract_strided_slice %51 {offsets = [48, 0], sizes = [16, 64], strides = [1, 1]} : vector<64x64xf32> to vector<16x64xf32>
    %cst_73 = arith.constant dense<0.000000e+00> : vector<16x64xf32>
    %186 = tpu.matmul %184, %185, %cst_73 {dimension_numbers = #tpu.dot_dimension_numbers<[1], [0], [0], [1], [0, 0, 1, 1], [], []>} : vector<16x16xf32>, vector<16x64xf32>, vector<16x64xf32> -> vector<16x64xf32>
    %187 = arith.addf %164, %186 : vector<16x64xf32>
    %cst_74 = arith.constant 0.000000e+00 : f32
    %188 = vector.broadcast %cst_74 : f32 to vector<16x64xf32>
    %189 = vector.extract_strided_slice %88 {offsets = [16, 0], sizes = [16, 16], strides = [1, 1]} : vector<32x64xf32> to vector<16x16xf32>
    %190 = vector.extract_strided_slice %91 {offsets = [16, 0], sizes = [16, 16], strides = [1, 1]} : vector<32x64xf32> to vector<16x16xf32>
    %191 = vector.extract_strided_slice %94 {offsets = [16, 0], sizes = [16, 16], strides = [1, 1]} : vector<32x64xf32> to vector<16x16xf32>
    %192 = tpu.transpose %190, [1, 0] : vector<16x16xf32> -> vector<16x16xf32>
    %cst_75 = arith.constant dense<0.000000e+00> : vector<16x16xf32>
    %193 = tpu.matmul %189, %192, %cst_75 {dimension_numbers = #tpu.dot_dimension_numbers<[1], [0], [0], [1], [0, 0, 1, 1], [], []>} : vector<16x16xf32>, vector<16x16xf32>, vector<16x16xf32> -> vector<16x16xf32>
    %cst_76 = arith.constant 2.500000e-01 : f32
    %194 = vector.broadcast %cst_76 : f32 to vector<16x16xf32>
    %195 = arith.mulf %193, %194 : vector<16x16xf32>
    %cst_77 = arith.constant -1.000000e+30 : f32
    %196 = vector.broadcast %cst_77 : f32 to vector<16x16xf32>
    %197 = arith.select %47, %195, %196 : vector<16x16xi1>, vector<16x16xf32>
    %cst_78 = arith.constant dense<0xFF800000> : vector<16xf32>
    %198 = vector.multi_reduction <maximumf>, %197, %cst_78 [1] : vector<16x16xf32> to vector<16xf32>
    %199 = vector.shape_cast %198 : vector<16xf32> to vector<16x1xf32>
    %200 = vector.broadcast %199 : vector<16x1xf32> to vector<16x16xf32>
    %201 = arith.subf %197, %200 : vector<16x16xf32>
    %202 = math.exp %201 : vector<16x16xf32>
    %cst_79 = arith.constant dense<0.000000e+00> : vector<16xf32>
    %203 = vector.multi_reduction <add>, %202, %cst_79 [1] : vector<16x16xf32> to vector<16xf32>
    %204 = vector.shape_cast %203 : vector<16xf32> to vector<16x1xf32>
    %205 = tpu.reciprocal %204 {approx = true} : vector<16x1xf32> -> vector<16x1xf32>
    %206 = vector.broadcast %205 : vector<16x1xf32> to vector<16x16xf32>
    %207 = arith.mulf %202, %206 : vector<16x16xf32>
    %cst_80 = arith.constant dense<0.000000e+00> : vector<16x16xf32>
    %208 = tpu.matmul %207, %191, %cst_80 {dimension_numbers = #tpu.dot_dimension_numbers<[1], [0], [0], [1], [0, 0, 1, 1], [], []>} : vector<16x16xf32>, vector<16x16xf32>, vector<16x16xf32> -> vector<16x16xf32>
    %209 = vector.extract_strided_slice %51 {offsets = [0, 0], sizes = [16, 64], strides = [1, 1]} : vector<64x64xf32> to vector<16x64xf32>
    %cst_81 = arith.constant dense<0.000000e+00> : vector<16x64xf32>
    %210 = tpu.matmul %208, %209, %cst_81 {dimension_numbers = #tpu.dot_dimension_numbers<[1], [0], [0], [1], [0, 0, 1, 1], [], []>} : vector<16x16xf32>, vector<16x64xf32>, vector<16x64xf32> -> vector<16x64xf32>
    %211 = arith.addf %188, %210 : vector<16x64xf32>
    %212 = vector.extract_strided_slice %88 {offsets = [16, 16], sizes = [16, 16], strides = [1, 1]} : vector<32x64xf32> to vector<16x16xf32>
    %213 = vector.extract_strided_slice %91 {offsets = [16, 16], sizes = [16, 16], strides = [1, 1]} : vector<32x64xf32> to vector<16x16xf32>
    %214 = vector.extract_strided_slice %94 {offsets = [16, 16], sizes = [16, 16], strides = [1, 1]} : vector<32x64xf32> to vector<16x16xf32>
    %215 = tpu.transpose %213, [1, 0] : vector<16x16xf32> -> vector<16x16xf32>
    %cst_82 = arith.constant dense<0.000000e+00> : vector<16x16xf32>
    %216 = tpu.matmul %212, %215, %cst_82 {dimension_numbers = #tpu.dot_dimension_numbers<[1], [0], [0], [1], [0, 0, 1, 1], [], []>} : vector<16x16xf32>, vector<16x16xf32>, vector<16x16xf32> -> vector<16x16xf32>
    %cst_83 = arith.constant 2.500000e-01 : f32
    %217 = vector.broadcast %cst_83 : f32 to vector<16x16xf32>
    %218 = arith.mulf %216, %217 : vector<16x16xf32>
    %cst_84 = arith.constant -1.000000e+30 : f32
    %219 = vector.broadcast %cst_84 : f32 to vector<16x16xf32>
    %220 = arith.select %47, %218, %219 : vector<16x16xi1>, vector<16x16xf32>
    %cst_85 = arith.constant dense<0xFF800000> : vector<16xf32>
    %221 = vector.multi_reduction <maximumf>, %220, %cst_85 [1] : vector<16x16xf32> to vector<16xf32>
    %222 = vector.shape_cast %221 : vector<16xf32> to vector<16x1xf32>
    %223 = vector.broadcast %222 : vector<16x1xf32> to vector<16x16xf32>
    %224 = arith.subf %220, %223 : vector<16x16xf32>
    %225 = math.exp %224 : vector<16x16xf32>
    %cst_86 = arith.constant dense<0.000000e+00> : vector<16xf32>
    %226 = vector.multi_reduction <add>, %225, %cst_86 [1] : vector<16x16xf32> to vector<16xf32>
    %227 = vector.shape_cast %226 : vector<16xf32> to vector<16x1xf32>
    %228 = tpu.reciprocal %227 {approx = true} : vector<16x1xf32> -> vector<16x1xf32>
    %229 = vector.broadcast %228 : vector<16x1xf32> to vector<16x16xf32>
    %230 = arith.mulf %225, %229 : vector<16x16xf32>
    %cst_87 = arith.constant dense<0.000000e+00> : vector<16x16xf32>
    %231 = tpu.matmul %230, %214, %cst_87 {dimension_numbers = #tpu.dot_dimension_numbers<[1], [0], [0], [1], [0, 0, 1, 1], [], []>} : vector<16x16xf32>, vector<16x16xf32>, vector<16x16xf32> -> vector<16x16xf32>
    %232 = vector.extract_strided_slice %51 {offsets = [16, 0], sizes = [16, 64], strides = [1, 1]} : vector<64x64xf32> to vector<16x64xf32>
    %cst_88 = arith.constant dense<0.000000e+00> : vector<16x64xf32>
    %233 = tpu.matmul %231, %232, %cst_88 {dimension_numbers = #tpu.dot_dimension_numbers<[1], [0], [0], [1], [0, 0, 1, 1], [], []>} : vector<16x16xf32>, vector<16x64xf32>, vector<16x64xf32> -> vector<16x64xf32>
    %234 = arith.addf %211, %233 : vector<16x64xf32>
    %235 = vector.extract_strided_slice %88 {offsets = [16, 32], sizes = [16, 16], strides = [1, 1]} : vector<32x64xf32> to vector<16x16xf32>
    %236 = vector.extract_strided_slice %91 {offsets = [16, 32], sizes = [16, 16], strides = [1, 1]} : vector<32x64xf32> to vector<16x16xf32>
    %237 = vector.extract_strided_slice %94 {offsets = [16, 32], sizes = [16, 16], strides = [1, 1]} : vector<32x64xf32> to vector<16x16xf32>
    %238 = tpu.transpose %236, [1, 0] : vector<16x16xf32> -> vector<16x16xf32>
    %cst_89 = arith.constant dense<0.000000e+00> : vector<16x16xf32>
    %239 = tpu.matmul %235, %238, %cst_89 {dimension_numbers = #tpu.dot_dimension_numbers<[1], [0], [0], [1], [0, 0, 1, 1], [], []>} : vector<16x16xf32>, vector<16x16xf32>, vector<16x16xf32> -> vector<16x16xf32>
    %cst_90 = arith.constant 2.500000e-01 : f32
    %240 = vector.broadcast %cst_90 : f32 to vector<16x16xf32>
    %241 = arith.mulf %239, %240 : vector<16x16xf32>
    %cst_91 = arith.constant -1.000000e+30 : f32
    %242 = vector.broadcast %cst_91 : f32 to vector<16x16xf32>
    %243 = arith.select %47, %241, %242 : vector<16x16xi1>, vector<16x16xf32>
    %cst_92 = arith.constant dense<0xFF800000> : vector<16xf32>
    %244 = vector.multi_reduction <maximumf>, %243, %cst_92 [1] : vector<16x16xf32> to vector<16xf32>
    %245 = vector.shape_cast %244 : vector<16xf32> to vector<16x1xf32>
    %246 = vector.broadcast %245 : vector<16x1xf32> to vector<16x16xf32>
    %247 = arith.subf %243, %246 : vector<16x16xf32>
    %248 = math.exp %247 : vector<16x16xf32>
    %cst_93 = arith.constant dense<0.000000e+00> : vector<16xf32>
    %249 = vector.multi_reduction <add>, %248, %cst_93 [1] : vector<16x16xf32> to vector<16xf32>
    %250 = vector.shape_cast %249 : vector<16xf32> to vector<16x1xf32>
    %251 = tpu.reciprocal %250 {approx = true} : vector<16x1xf32> -> vector<16x1xf32>
    %252 = vector.broadcast %251 : vector<16x1xf32> to vector<16x16xf32>
    %253 = arith.mulf %248, %252 : vector<16x16xf32>
    %cst_94 = arith.constant dense<0.000000e+00> : vector<16x16xf32>
    %254 = tpu.matmul %253, %237, %cst_94 {dimension_numbers = #tpu.dot_dimension_numbers<[1], [0], [0], [1], [0, 0, 1, 1], [], []>} : vector<16x16xf32>, vector<16x16xf32>, vector<16x16xf32> -> vector<16x16xf32>
    %255 = vector.extract_strided_slice %51 {offsets = [32, 0], sizes = [16, 64], strides = [1, 1]} : vector<64x64xf32> to vector<16x64xf32>
    %cst_95 = arith.constant dense<0.000000e+00> : vector<16x64xf32>
    %256 = tpu.matmul %254, %255, %cst_95 {dimension_numbers = #tpu.dot_dimension_numbers<[1], [0], [0], [1], [0, 0, 1, 1], [], []>} : vector<16x16xf32>, vector<16x64xf32>, vector<16x64xf32> -> vector<16x64xf32>
    %257 = arith.addf %234, %256 : vector<16x64xf32>
    %258 = vector.extract_strided_slice %88 {offsets = [16, 48], sizes = [16, 16], strides = [1, 1]} : vector<32x64xf32> to vector<16x16xf32>
    %259 = vector.extract_strided_slice %91 {offsets = [16, 48], sizes = [16, 16], strides = [1, 1]} : vector<32x64xf32> to vector<16x16xf32>
    %260 = vector.extract_strided_slice %94 {offsets = [16, 48], sizes = [16, 16], strides = [1, 1]} : vector<32x64xf32> to vector<16x16xf32>
    %261 = tpu.transpose %259, [1, 0] : vector<16x16xf32> -> vector<16x16xf32>
    %cst_96 = arith.constant dense<0.000000e+00> : vector<16x16xf32>
    %262 = tpu.matmul %258, %261, %cst_96 {dimension_numbers = #tpu.dot_dimension_numbers<[1], [0], [0], [1], [0, 0, 1, 1], [], []>} : vector<16x16xf32>, vector<16x16xf32>, vector<16x16xf32> -> vector<16x16xf32>
    %cst_97 = arith.constant 2.500000e-01 : f32
    %263 = vector.broadcast %cst_97 : f32 to vector<16x16xf32>
    %264 = arith.mulf %262, %263 : vector<16x16xf32>
    %cst_98 = arith.constant -1.000000e+30 : f32
    %265 = vector.broadcast %cst_98 : f32 to vector<16x16xf32>
    %266 = arith.select %47, %264, %265 : vector<16x16xi1>, vector<16x16xf32>
    %cst_99 = arith.constant dense<0xFF800000> : vector<16xf32>
    %267 = vector.multi_reduction <maximumf>, %266, %cst_99 [1] : vector<16x16xf32> to vector<16xf32>
    %268 = vector.shape_cast %267 : vector<16xf32> to vector<16x1xf32>
    %269 = vector.broadcast %268 : vector<16x1xf32> to vector<16x16xf32>
    %270 = arith.subf %266, %269 : vector<16x16xf32>
    %271 = math.exp %270 : vector<16x16xf32>
    %cst_100 = arith.constant dense<0.000000e+00> : vector<16xf32>
    %272 = vector.multi_reduction <add>, %271, %cst_100 [1] : vector<16x16xf32> to vector<16xf32>
    %273 = vector.shape_cast %272 : vector<16xf32> to vector<16x1xf32>
    %274 = tpu.reciprocal %273 {approx = true} : vector<16x1xf32> -> vector<16x1xf32>
    %275 = vector.broadcast %274 : vector<16x1xf32> to vector<16x16xf32>
    %276 = arith.mulf %271, %275 : vector<16x16xf32>
    %cst_101 = arith.constant dense<0.000000e+00> : vector<16x16xf32>
    %277 = tpu.matmul %276, %260, %cst_101 {dimension_numbers = #tpu.dot_dimension_numbers<[1], [0], [0], [1], [0, 0, 1, 1], [], []>} : vector<16x16xf32>, vector<16x16xf32>, vector<16x16xf32> -> vector<16x16xf32>
    %278 = vector.extract_strided_slice %51 {offsets = [48, 0], sizes = [16, 64], strides = [1, 1]} : vector<64x64xf32> to vector<16x64xf32>
    %cst_102 = arith.constant dense<0.000000e+00> : vector<16x64xf32>
    %279 = tpu.matmul %277, %278, %cst_102 {dimension_numbers = #tpu.dot_dimension_numbers<[1], [0], [0], [1], [0, 0, 1, 1], [], []>} : vector<16x16xf32>, vector<16x64xf32>, vector<16x64xf32> -> vector<16x64xf32>
    %280 = arith.addf %257, %279 : vector<16x64xf32>
    %281 = tpu.concatenate %187, %280 in 0 : vector<16x64xf32>, vector<16x64xf32> -> vector<32x64xf32>
    %282 = vector.broadcast %60 : vector<1x64xf32> to vector<32x64xf32>
    %283 = arith.addf %281, %282 : vector<32x64xf32>
    %284 = arith.addf %44, %283 : vector<32x64xf32>
    %cst_103 = arith.constant dense<0.000000e+00> : vector<32xf32>
    %285 = vector.multi_reduction <add>, %284, %cst_103 [1] : vector<32x64xf32> to vector<32xf32>
    %286 = vector.shape_cast %285 : vector<32xf32> to vector<32x1xf32>
    %cst_104 = arith.constant 6.400000e+01 : f32
    %287 = vector.broadcast %cst_104 : f32 to vector<32x1xf32>
    %288 = arith.divf %286, %287 : vector<32x1xf32>
    %289 = vector.broadcast %288 : vector<32x1xf32> to vector<32x64xf32>
    %290 = arith.subf %284, %289 : vector<32x64xf32>
    %291 = arith.mulf %290, %290 : vector<32x64xf32>
    %cst_105 = arith.constant dense<0.000000e+00> : vector<32xf32>
    %292 = vector.multi_reduction <add>, %291, %cst_105 [1] : vector<32x64xf32> to vector<32xf32>
    %293 = vector.shape_cast %292 : vector<32xf32> to vector<32x1xf32>
    %cst_106 = arith.constant 6.400000e+01 : f32
    %294 = vector.broadcast %cst_106 : f32 to vector<32x1xf32>
    %295 = arith.divf %293, %294 : vector<32x1xf32>
    %296 = vector.broadcast %288 : vector<32x1xf32> to vector<32x64xf32>
    %297 = arith.subf %284, %296 : vector<32x64xf32>
    %cst_107 = arith.constant 9.99999974E-6 : f32
    %298 = vector.broadcast %cst_107 : f32 to vector<32x1xf32>
    %299 = arith.addf %295, %298 : vector<32x1xf32>
    %300 = math.rsqrt %299 : vector<32x1xf32>
    %301 = vector.broadcast %300 : vector<32x1xf32> to vector<32x64xf32>
    %302 = arith.mulf %297, %301 : vector<32x64xf32>
    %303 = vector.broadcast %55 : vector<1x64xf32> to vector<32x64xf32>
    %304 = arith.mulf %302, %303 : vector<32x64xf32>
    %305 = vector.broadcast %56 : vector<1x64xf32> to vector<32x64xf32>
    %306 = arith.addf %304, %305 : vector<32x64xf32>
    %cst_108 = arith.constant dense<0.000000e+00> : vector<32x256xf32>
    %307 = tpu.matmul %306, %62, %cst_108 {dimension_numbers = #tpu.dot_dimension_numbers<[1], [0], [0], [1], [0, 0, 1, 1], [], []>} : vector<32x64xf32>, vector<64x256xf32>, vector<32x256xf32> -> vector<32x256xf32>
    %308 = vector.broadcast %63 : vector<1x256xf32> to vector<32x256xf32>
    %309 = arith.addf %307, %308 : vector<32x256xf32>
    %cst_109 = arith.constant 5.000000e-01 : f32
    %310 = vector.broadcast %cst_109 : f32 to vector<32x256xf32>
    %311 = arith.mulf %310, %309 : vector<32x256xf32>
    %cst_110 = arith.constant 4.471500e-02 : f32
    %312 = vector.broadcast %cst_110 : f32 to vector<32x256xf32>
    %313 = arith.mulf %312, %309 : vector<32x256xf32>
    %314 = arith.mulf %313, %309 : vector<32x256xf32>
    %315 = arith.mulf %314, %309 : vector<32x256xf32>
    %316 = arith.addf %309, %315 : vector<32x256xf32>
    %cst_111 = arith.constant 0.797884583 : f32
    %317 = vector.broadcast %cst_111 : f32 to vector<32x256xf32>
    %318 = arith.mulf %317, %316 : vector<32x256xf32>
    %319 = math.tanh %318 : vector<32x256xf32>
    %cst_112 = arith.constant 1.000000e+00 : f32
    %320 = vector.broadcast %cst_112 : f32 to vector<32x256xf32>
    %321 = arith.addf %320, %319 : vector<32x256xf32>
    %322 = arith.mulf %311, %321 : vector<32x256xf32>
    %cst_113 = arith.constant dense<0.000000e+00> : vector<32x64xf32>
    %323 = tpu.matmul %322, %52, %cst_113 {dimension_numbers = #tpu.dot_dimension_numbers<[1], [0], [0], [1], [0, 0, 1, 1], [], []>} : vector<32x256xf32>, vector<256x64xf32>, vector<32x64xf32> -> vector<32x64xf32>
    %324 = vector.broadcast %61 : vector<1x64xf32> to vector<32x64xf32>
    %325 = arith.addf %323, %324 : vector<32x64xf32>
    %326 = arith.addf %284, %325 : vector<32x64xf32>
    %c528 = arith.constant 528 : index
    %c0_114 = arith.constant 0 : index
    %327 = vector.load %arg6[%c528, %c0_114] : memref<1056x64xf32, #tpu.memory_space<vmem>>, vector<64x64xf32>
    %c592 = arith.constant 592 : index
    %c0_115 = arith.constant 0 : index
    %328 = vector.load %arg6[%c592, %c0_115] : memref<1056x64xf32, #tpu.memory_space<vmem>>, vector<64x64xf32>
    %c656 = arith.constant 656 : index
    %c0_116 = arith.constant 0 : index
    %329 = vector.load %arg6[%c656, %c0_116] : memref<1056x64xf32, #tpu.memory_space<vmem>>, vector<64x64xf32>
    %c720 = arith.constant 720 : index
    %c0_117 = arith.constant 0 : index
    %330 = vector.load %arg6[%c720, %c0_117] : memref<1056x64xf32, #tpu.memory_space<vmem>>, vector<64x64xf32>
    %c784 = arith.constant 784 : index
    %c0_118 = arith.constant 0 : index
    %331 = vector.load %arg6[%c784, %c0_118] : memref<1056x64xf32, #tpu.memory_space<vmem>>, vector<256x64xf32>
    %c1040 = arith.constant 1040 : index
    %c0_119 = arith.constant 0 : index
    %332 = vector.load %arg6[%c1040, %c0_119] : memref<1056x64xf32, #tpu.memory_space<vmem>>, vector<1x64xf32>
    %c1041 = arith.constant 1041 : index
    %c0_120 = arith.constant 0 : index
    %333 = vector.load %arg6[%c1041, %c0_120] : memref<1056x64xf32, #tpu.memory_space<vmem>>, vector<1x64xf32>
    %c1042 = arith.constant 1042 : index
    %c0_121 = arith.constant 0 : index
    %334 = vector.load %arg6[%c1042, %c0_121] : memref<1056x64xf32, #tpu.memory_space<vmem>>, vector<1x64xf32>
    %c1043 = arith.constant 1043 : index
    %c0_122 = arith.constant 0 : index
    %335 = vector.load %arg6[%c1043, %c0_122] : memref<1056x64xf32, #tpu.memory_space<vmem>>, vector<1x64xf32>
    %c1044 = arith.constant 1044 : index
    %c0_123 = arith.constant 0 : index
    %336 = vector.load %arg6[%c1044, %c0_123] : memref<1056x64xf32, #tpu.memory_space<vmem>>, vector<1x64xf32>
    %c1045 = arith.constant 1045 : index
    %c0_124 = arith.constant 0 : index
    %337 = vector.load %arg6[%c1045, %c0_124] : memref<1056x64xf32, #tpu.memory_space<vmem>>, vector<1x64xf32>
    %c1046 = arith.constant 1046 : index
    %c0_125 = arith.constant 0 : index
    %338 = vector.load %arg6[%c1046, %c0_125] : memref<1056x64xf32, #tpu.memory_space<vmem>>, vector<1x64xf32>
    %c1047 = arith.constant 1047 : index
    %c0_126 = arith.constant 0 : index
    %339 = vector.load %arg6[%c1047, %c0_126] : memref<1056x64xf32, #tpu.memory_space<vmem>>, vector<1x64xf32>
    %c1048 = arith.constant 1048 : index
    %c0_127 = arith.constant 0 : index
    %340 = vector.load %arg6[%c1048, %c0_127] : memref<1056x64xf32, #tpu.memory_space<vmem>>, vector<1x64xf32>
    %c72 = arith.constant 72 : index
    %c0_128 = arith.constant 0 : index
    %341 = vector.load %arg7[%c72, %c0_128] : memref<144x256xf32, #tpu.memory_space<vmem>>, vector<64x256xf32>
    %c136 = arith.constant 136 : index
    %c0_129 = arith.constant 0 : index
    %342 = vector.load %arg7[%c136, %c0_129] : memref<144x256xf32, #tpu.memory_space<vmem>>, vector<1x256xf32>
    %cst_130 = arith.constant dense<0.000000e+00> : vector<32xf32>
    %343 = vector.multi_reduction <add>, %326, %cst_130 [1] : vector<32x64xf32> to vector<32xf32>
    %344 = vector.shape_cast %343 : vector<32xf32> to vector<32x1xf32>
    %cst_131 = arith.constant 6.400000e+01 : f32
    %345 = vector.broadcast %cst_131 : f32 to vector<32x1xf32>
    %346 = arith.divf %344, %345 : vector<32x1xf32>
    %347 = vector.broadcast %346 : vector<32x1xf32> to vector<32x64xf32>
    %348 = arith.subf %326, %347 : vector<32x64xf32>
    %349 = arith.mulf %348, %348 : vector<32x64xf32>
    %cst_132 = arith.constant dense<0.000000e+00> : vector<32xf32>
    %350 = vector.multi_reduction <add>, %349, %cst_132 [1] : vector<32x64xf32> to vector<32xf32>
    %351 = vector.shape_cast %350 : vector<32xf32> to vector<32x1xf32>
    %cst_133 = arith.constant 6.400000e+01 : f32
    %352 = vector.broadcast %cst_133 : f32 to vector<32x1xf32>
    %353 = arith.divf %351, %352 : vector<32x1xf32>
    %354 = vector.broadcast %346 : vector<32x1xf32> to vector<32x64xf32>
    %355 = arith.subf %326, %354 : vector<32x64xf32>
    %cst_134 = arith.constant 9.99999974E-6 : f32
    %356 = vector.broadcast %cst_134 : f32 to vector<32x1xf32>
    %357 = arith.addf %353, %356 : vector<32x1xf32>
    %358 = math.rsqrt %357 : vector<32x1xf32>
    %359 = vector.broadcast %358 : vector<32x1xf32> to vector<32x64xf32>
    %360 = arith.mulf %355, %359 : vector<32x64xf32>
    %361 = vector.broadcast %332 : vector<1x64xf32> to vector<32x64xf32>
    %362 = arith.mulf %360, %361 : vector<32x64xf32>
    %363 = vector.broadcast %333 : vector<1x64xf32> to vector<32x64xf32>
    %364 = arith.addf %362, %363 : vector<32x64xf32>
    %cst_135 = arith.constant dense<0.000000e+00> : vector<32x64xf32>
    %365 = tpu.matmul %364, %327, %cst_135 {dimension_numbers = #tpu.dot_dimension_numbers<[1], [0], [0], [1], [0, 0, 1, 1], [], []>} : vector<32x64xf32>, vector<64x64xf32>, vector<32x64xf32> -> vector<32x64xf32>
    %366 = vector.broadcast %336 : vector<1x64xf32> to vector<32x64xf32>
    %367 = arith.addf %365, %366 : vector<32x64xf32>
    %cst_136 = arith.constant dense<0.000000e+00> : vector<32x64xf32>
    %368 = tpu.matmul %364, %328, %cst_136 {dimension_numbers = #tpu.dot_dimension_numbers<[1], [0], [0], [1], [0, 0, 1, 1], [], []>} : vector<32x64xf32>, vector<64x64xf32>, vector<32x64xf32> -> vector<32x64xf32>
    %369 = vector.broadcast %337 : vector<1x64xf32> to vector<32x64xf32>
    %370 = arith.addf %368, %369 : vector<32x64xf32>
    %cst_137 = arith.constant dense<0.000000e+00> : vector<32x64xf32>
    %371 = tpu.matmul %364, %329, %cst_137 {dimension_numbers = #tpu.dot_dimension_numbers<[1], [0], [0], [1], [0, 0, 1, 1], [], []>} : vector<32x64xf32>, vector<64x64xf32>, vector<32x64xf32> -> vector<32x64xf32>
    %372 = vector.broadcast %338 : vector<1x64xf32> to vector<32x64xf32>
    %373 = arith.addf %371, %372 : vector<32x64xf32>
    %cst_138 = arith.constant 0.000000e+00 : f32
    %374 = vector.broadcast %cst_138 : f32 to vector<16x64xf32>
    %375 = vector.extract_strided_slice %367 {offsets = [0, 0], sizes = [16, 16], strides = [1, 1]} : vector<32x64xf32> to vector<16x16xf32>
    %376 = vector.extract_strided_slice %370 {offsets = [0, 0], sizes = [16, 16], strides = [1, 1]} : vector<32x64xf32> to vector<16x16xf32>
    %377 = vector.extract_strided_slice %373 {offsets = [0, 0], sizes = [16, 16], strides = [1, 1]} : vector<32x64xf32> to vector<16x16xf32>
    %378 = tpu.transpose %376, [1, 0] : vector<16x16xf32> -> vector<16x16xf32>
    %cst_139 = arith.constant dense<0.000000e+00> : vector<16x16xf32>
    %379 = tpu.matmul %375, %378, %cst_139 {dimension_numbers = #tpu.dot_dimension_numbers<[1], [0], [0], [1], [0, 0, 1, 1], [], []>} : vector<16x16xf32>, vector<16x16xf32>, vector<16x16xf32> -> vector<16x16xf32>
    %cst_140 = arith.constant 2.500000e-01 : f32
    %380 = vector.broadcast %cst_140 : f32 to vector<16x16xf32>
    %381 = arith.mulf %379, %380 : vector<16x16xf32>
    %cst_141 = arith.constant -1.000000e+30 : f32
    %382 = vector.broadcast %cst_141 : f32 to vector<16x16xf32>
    %383 = arith.select %47, %381, %382 : vector<16x16xi1>, vector<16x16xf32>
    %cst_142 = arith.constant dense<0xFF800000> : vector<16xf32>
    %384 = vector.multi_reduction <maximumf>, %383, %cst_142 [1] : vector<16x16xf32> to vector<16xf32>
    %385 = vector.shape_cast %384 : vector<16xf32> to vector<16x1xf32>
    %386 = vector.broadcast %385 : vector<16x1xf32> to vector<16x16xf32>
    %387 = arith.subf %383, %386 : vector<16x16xf32>
    %388 = math.exp %387 : vector<16x16xf32>
    %cst_143 = arith.constant dense<0.000000e+00> : vector<16xf32>
    %389 = vector.multi_reduction <add>, %388, %cst_143 [1] : vector<16x16xf32> to vector<16xf32>
    %390 = vector.shape_cast %389 : vector<16xf32> to vector<16x1xf32>
    %391 = tpu.reciprocal %390 {approx = true} : vector<16x1xf32> -> vector<16x1xf32>
    %392 = vector.broadcast %391 : vector<16x1xf32> to vector<16x16xf32>
    %393 = arith.mulf %388, %392 : vector<16x16xf32>
    %cst_144 = arith.constant dense<0.000000e+00> : vector<16x16xf32>
    %394 = tpu.matmul %393, %377, %cst_144 {dimension_numbers = #tpu.dot_dimension_numbers<[1], [0], [0], [1], [0, 0, 1, 1], [], []>} : vector<16x16xf32>, vector<16x16xf32>, vector<16x16xf32> -> vector<16x16xf32>
    %395 = vector.extract_strided_slice %330 {offsets = [0, 0], sizes = [16, 64], strides = [1, 1]} : vector<64x64xf32> to vector<16x64xf32>
    %cst_145 = arith.constant dense<0.000000e+00> : vector<16x64xf32>
    %396 = tpu.matmul %394, %395, %cst_145 {dimension_numbers = #tpu.dot_dimension_numbers<[1], [0], [0], [1], [0, 0, 1, 1], [], []>} : vector<16x16xf32>, vector<16x64xf32>, vector<16x64xf32> -> vector<16x64xf32>
    %397 = arith.addf %374, %396 : vector<16x64xf32>
    %398 = vector.extract_strided_slice %367 {offsets = [0, 16], sizes = [16, 16], strides = [1, 1]} : vector<32x64xf32> to vector<16x16xf32>
    %399 = vector.extract_strided_slice %370 {offsets = [0, 16], sizes = [16, 16], strides = [1, 1]} : vector<32x64xf32> to vector<16x16xf32>
    %400 = vector.extract_strided_slice %373 {offsets = [0, 16], sizes = [16, 16], strides = [1, 1]} : vector<32x64xf32> to vector<16x16xf32>
    %401 = tpu.transpose %399, [1, 0] : vector<16x16xf32> -> vector<16x16xf32>
    %cst_146 = arith.constant dense<0.000000e+00> : vector<16x16xf32>
    %402 = tpu.matmul %398, %401, %cst_146 {dimension_numbers = #tpu.dot_dimension_numbers<[1], [0], [0], [1], [0, 0, 1, 1], [], []>} : vector<16x16xf32>, vector<16x16xf32>, vector<16x16xf32> -> vector<16x16xf32>
    %cst_147 = arith.constant 2.500000e-01 : f32
    %403 = vector.broadcast %cst_147 : f32 to vector<16x16xf32>
    %404 = arith.mulf %402, %403 : vector<16x16xf32>
    %cst_148 = arith.constant -1.000000e+30 : f32
    %405 = vector.broadcast %cst_148 : f32 to vector<16x16xf32>
    %406 = arith.select %47, %404, %405 : vector<16x16xi1>, vector<16x16xf32>
    %cst_149 = arith.constant dense<0xFF800000> : vector<16xf32>
    %407 = vector.multi_reduction <maximumf>, %406, %cst_149 [1] : vector<16x16xf32> to vector<16xf32>
    %408 = vector.shape_cast %407 : vector<16xf32> to vector<16x1xf32>
    %409 = vector.broadcast %408 : vector<16x1xf32> to vector<16x16xf32>
    %410 = arith.subf %406, %409 : vector<16x16xf32>
    %411 = math.exp %410 : vector<16x16xf32>
    %cst_150 = arith.constant dense<0.000000e+00> : vector<16xf32>
    %412 = vector.multi_reduction <add>, %411, %cst_150 [1] : vector<16x16xf32> to vector<16xf32>
    %413 = vector.shape_cast %412 : vector<16xf32> to vector<16x1xf32>
    %414 = tpu.reciprocal %413 {approx = true} : vector<16x1xf32> -> vector<16x1xf32>
    %415 = vector.broadcast %414 : vector<16x1xf32> to vector<16x16xf32>
    %416 = arith.mulf %411, %415 : vector<16x16xf32>
    %cst_151 = arith.constant dense<0.000000e+00> : vector<16x16xf32>
    %417 = tpu.matmul %416, %400, %cst_151 {dimension_numbers = #tpu.dot_dimension_numbers<[1], [0], [0], [1], [0, 0, 1, 1], [], []>} : vector<16x16xf32>, vector<16x16xf32>, vector<16x16xf32> -> vector<16x16xf32>
    %418 = vector.extract_strided_slice %330 {offsets = [16, 0], sizes = [16, 64], strides = [1, 1]} : vector<64x64xf32> to vector<16x64xf32>
    %cst_152 = arith.constant dense<0.000000e+00> : vector<16x64xf32>
    %419 = tpu.matmul %417, %418, %cst_152 {dimension_numbers = #tpu.dot_dimension_numbers<[1], [0], [0], [1], [0, 0, 1, 1], [], []>} : vector<16x16xf32>, vector<16x64xf32>, vector<16x64xf32> -> vector<16x64xf32>
    %420 = arith.addf %397, %419 : vector<16x64xf32>
    %421 = vector.extract_strided_slice %367 {offsets = [0, 32], sizes = [16, 16], strides = [1, 1]} : vector<32x64xf32> to vector<16x16xf32>
    %422 = vector.extract_strided_slice %370 {offsets = [0, 32], sizes = [16, 16], strides = [1, 1]} : vector<32x64xf32> to vector<16x16xf32>
    %423 = vector.extract_strided_slice %373 {offsets = [0, 32], sizes = [16, 16], strides = [1, 1]} : vector<32x64xf32> to vector<16x16xf32>
    %424 = tpu.transpose %422, [1, 0] : vector<16x16xf32> -> vector<16x16xf32>
    %cst_153 = arith.constant dense<0.000000e+00> : vector<16x16xf32>
    %425 = tpu.matmul %421, %424, %cst_153 {dimension_numbers = #tpu.dot_dimension_numbers<[1], [0], [0], [1], [0, 0, 1, 1], [], []>} : vector<16x16xf32>, vector<16x16xf32>, vector<16x16xf32> -> vector<16x16xf32>
    %cst_154 = arith.constant 2.500000e-01 : f32
    %426 = vector.broadcast %cst_154 : f32 to vector<16x16xf32>
    %427 = arith.mulf %425, %426 : vector<16x16xf32>
    %cst_155 = arith.constant -1.000000e+30 : f32
    %428 = vector.broadcast %cst_155 : f32 to vector<16x16xf32>
    %429 = arith.select %47, %427, %428 : vector<16x16xi1>, vector<16x16xf32>
    %cst_156 = arith.constant dense<0xFF800000> : vector<16xf32>
    %430 = vector.multi_reduction <maximumf>, %429, %cst_156 [1] : vector<16x16xf32> to vector<16xf32>
    %431 = vector.shape_cast %430 : vector<16xf32> to vector<16x1xf32>
    %432 = vector.broadcast %431 : vector<16x1xf32> to vector<16x16xf32>
    %433 = arith.subf %429, %432 : vector<16x16xf32>
    %434 = math.exp %433 : vector<16x16xf32>
    %cst_157 = arith.constant dense<0.000000e+00> : vector<16xf32>
    %435 = vector.multi_reduction <add>, %434, %cst_157 [1] : vector<16x16xf32> to vector<16xf32>
    %436 = vector.shape_cast %435 : vector<16xf32> to vector<16x1xf32>
    %437 = tpu.reciprocal %436 {approx = true} : vector<16x1xf32> -> vector<16x1xf32>
    %438 = vector.broadcast %437 : vector<16x1xf32> to vector<16x16xf32>
    %439 = arith.mulf %434, %438 : vector<16x16xf32>
    %cst_158 = arith.constant dense<0.000000e+00> : vector<16x16xf32>
    %440 = tpu.matmul %439, %423, %cst_158 {dimension_numbers = #tpu.dot_dimension_numbers<[1], [0], [0], [1], [0, 0, 1, 1], [], []>} : vector<16x16xf32>, vector<16x16xf32>, vector<16x16xf32> -> vector<16x16xf32>
    %441 = vector.extract_strided_slice %330 {offsets = [32, 0], sizes = [16, 64], strides = [1, 1]} : vector<64x64xf32> to vector<16x64xf32>
    %cst_159 = arith.constant dense<0.000000e+00> : vector<16x64xf32>
    %442 = tpu.matmul %440, %441, %cst_159 {dimension_numbers = #tpu.dot_dimension_numbers<[1], [0], [0], [1], [0, 0, 1, 1], [], []>} : vector<16x16xf32>, vector<16x64xf32>, vector<16x64xf32> -> vector<16x64xf32>
    %443 = arith.addf %420, %442 : vector<16x64xf32>
    %444 = vector.extract_strided_slice %367 {offsets = [0, 48], sizes = [16, 16], strides = [1, 1]} : vector<32x64xf32> to vector<16x16xf32>
    %445 = vector.extract_strided_slice %370 {offsets = [0, 48], sizes = [16, 16], strides = [1, 1]} : vector<32x64xf32> to vector<16x16xf32>
    %446 = vector.extract_strided_slice %373 {offsets = [0, 48], sizes = [16, 16], strides = [1, 1]} : vector<32x64xf32> to vector<16x16xf32>
    %447 = tpu.transpose %445, [1, 0] : vector<16x16xf32> -> vector<16x16xf32>
    %cst_160 = arith.constant dense<0.000000e+00> : vector<16x16xf32>
    %448 = tpu.matmul %444, %447, %cst_160 {dimension_numbers = #tpu.dot_dimension_numbers<[1], [0], [0], [1], [0, 0, 1, 1], [], []>} : vector<16x16xf32>, vector<16x16xf32>, vector<16x16xf32> -> vector<16x16xf32>
    %cst_161 = arith.constant 2.500000e-01 : f32
    %449 = vector.broadcast %cst_161 : f32 to vector<16x16xf32>
    %450 = arith.mulf %448, %449 : vector<16x16xf32>
    %cst_162 = arith.constant -1.000000e+30 : f32
    %451 = vector.broadcast %cst_162 : f32 to vector<16x16xf32>
    %452 = arith.select %47, %450, %451 : vector<16x16xi1>, vector<16x16xf32>
    %cst_163 = arith.constant dense<0xFF800000> : vector<16xf32>
    %453 = vector.multi_reduction <maximumf>, %452, %cst_163 [1] : vector<16x16xf32> to vector<16xf32>
    %454 = vector.shape_cast %453 : vector<16xf32> to vector<16x1xf32>
    %455 = vector.broadcast %454 : vector<16x1xf32> to vector<16x16xf32>
    %456 = arith.subf %452, %455 : vector<16x16xf32>
    %457 = math.exp %456 : vector<16x16xf32>
    %cst_164 = arith.constant dense<0.000000e+00> : vector<16xf32>
    %458 = vector.multi_reduction <add>, %457, %cst_164 [1] : vector<16x16xf32> to vector<16xf32>
    %459 = vector.shape_cast %458 : vector<16xf32> to vector<16x1xf32>
    %460 = tpu.reciprocal %459 {approx = true} : vector<16x1xf32> -> vector<16x1xf32>
    %461 = vector.broadcast %460 : vector<16x1xf32> to vector<16x16xf32>
    %462 = arith.mulf %457, %461 : vector<16x16xf32>
    %cst_165 = arith.constant dense<0.000000e+00> : vector<16x16xf32>
    %463 = tpu.matmul %462, %446, %cst_165 {dimension_numbers = #tpu.dot_dimension_numbers<[1], [0], [0], [1], [0, 0, 1, 1], [], []>} : vector<16x16xf32>, vector<16x16xf32>, vector<16x16xf32> -> vector<16x16xf32>
    %464 = vector.extract_strided_slice %330 {offsets = [48, 0], sizes = [16, 64], strides = [1, 1]} : vector<64x64xf32> to vector<16x64xf32>
    %cst_166 = arith.constant dense<0.000000e+00> : vector<16x64xf32>
    %465 = tpu.matmul %463, %464, %cst_166 {dimension_numbers = #tpu.dot_dimension_numbers<[1], [0], [0], [1], [0, 0, 1, 1], [], []>} : vector<16x16xf32>, vector<16x64xf32>, vector<16x64xf32> -> vector<16x64xf32>
    %466 = arith.addf %443, %465 : vector<16x64xf32>
    %cst_167 = arith.constant 0.000000e+00 : f32
    %467 = vector.broadcast %cst_167 : f32 to vector<16x64xf32>
    %468 = vector.extract_strided_slice %367 {offsets = [16, 0], sizes = [16, 16], strides = [1, 1]} : vector<32x64xf32> to vector<16x16xf32>
    %469 = vector.extract_strided_slice %370 {offsets = [16, 0], sizes = [16, 16], strides = [1, 1]} : vector<32x64xf32> to vector<16x16xf32>
    %470 = vector.extract_strided_slice %373 {offsets = [16, 0], sizes = [16, 16], strides = [1, 1]} : vector<32x64xf32> to vector<16x16xf32>
    %471 = tpu.transpose %469, [1, 0] : vector<16x16xf32> -> vector<16x16xf32>
    %cst_168 = arith.constant dense<0.000000e+00> : vector<16x16xf32>
    %472 = tpu.matmul %468, %471, %cst_168 {dimension_numbers = #tpu.dot_dimension_numbers<[1], [0], [0], [1], [0, 0, 1, 1], [], []>} : vector<16x16xf32>, vector<16x16xf32>, vector<16x16xf32> -> vector<16x16xf32>
    %cst_169 = arith.constant 2.500000e-01 : f32
    %473 = vector.broadcast %cst_169 : f32 to vector<16x16xf32>
    %474 = arith.mulf %472, %473 : vector<16x16xf32>
    %cst_170 = arith.constant -1.000000e+30 : f32
    %475 = vector.broadcast %cst_170 : f32 to vector<16x16xf32>
    %476 = arith.select %47, %474, %475 : vector<16x16xi1>, vector<16x16xf32>
    %cst_171 = arith.constant dense<0xFF800000> : vector<16xf32>
    %477 = vector.multi_reduction <maximumf>, %476, %cst_171 [1] : vector<16x16xf32> to vector<16xf32>
    %478 = vector.shape_cast %477 : vector<16xf32> to vector<16x1xf32>
    %479 = vector.broadcast %478 : vector<16x1xf32> to vector<16x16xf32>
    %480 = arith.subf %476, %479 : vector<16x16xf32>
    %481 = math.exp %480 : vector<16x16xf32>
    %cst_172 = arith.constant dense<0.000000e+00> : vector<16xf32>
    %482 = vector.multi_reduction <add>, %481, %cst_172 [1] : vector<16x16xf32> to vector<16xf32>
    %483 = vector.shape_cast %482 : vector<16xf32> to vector<16x1xf32>
    %484 = tpu.reciprocal %483 {approx = true} : vector<16x1xf32> -> vector<16x1xf32>
    %485 = vector.broadcast %484 : vector<16x1xf32> to vector<16x16xf32>
    %486 = arith.mulf %481, %485 : vector<16x16xf32>
    %cst_173 = arith.constant dense<0.000000e+00> : vector<16x16xf32>
    %487 = tpu.matmul %486, %470, %cst_173 {dimension_numbers = #tpu.dot_dimension_numbers<[1], [0], [0], [1], [0, 0, 1, 1], [], []>} : vector<16x16xf32>, vector<16x16xf32>, vector<16x16xf32> -> vector<16x16xf32>
    %488 = vector.extract_strided_slice %330 {offsets = [0, 0], sizes = [16, 64], strides = [1, 1]} : vector<64x64xf32> to vector<16x64xf32>
    %cst_174 = arith.constant dense<0.000000e+00> : vector<16x64xf32>
    %489 = tpu.matmul %487, %488, %cst_174 {dimension_numbers = #tpu.dot_dimension_numbers<[1], [0], [0], [1], [0, 0, 1, 1], [], []>} : vector<16x16xf32>, vector<16x64xf32>, vector<16x64xf32> -> vector<16x64xf32>
    %490 = arith.addf %467, %489 : vector<16x64xf32>
    %491 = vector.extract_strided_slice %367 {offsets = [16, 16], sizes = [16, 16], strides = [1, 1]} : vector<32x64xf32> to vector<16x16xf32>
    %492 = vector.extract_strided_slice %370 {offsets = [16, 16], sizes = [16, 16], strides = [1, 1]} : vector<32x64xf32> to vector<16x16xf32>
    %493 = vector.extract_strided_slice %373 {offsets = [16, 16], sizes = [16, 16], strides = [1, 1]} : vector<32x64xf32> to vector<16x16xf32>
    %494 = tpu.transpose %492, [1, 0] : vector<16x16xf32> -> vector<16x16xf32>
    %cst_175 = arith.constant dense<0.000000e+00> : vector<16x16xf32>
    %495 = tpu.matmul %491, %494, %cst_175 {dimension_numbers = #tpu.dot_dimension_numbers<[1], [0], [0], [1], [0, 0, 1, 1], [], []>} : vector<16x16xf32>, vector<16x16xf32>, vector<16x16xf32> -> vector<16x16xf32>
    %cst_176 = arith.constant 2.500000e-01 : f32
    %496 = vector.broadcast %cst_176 : f32 to vector<16x16xf32>
    %497 = arith.mulf %495, %496 : vector<16x16xf32>
    %cst_177 = arith.constant -1.000000e+30 : f32
    %498 = vector.broadcast %cst_177 : f32 to vector<16x16xf32>
    %499 = arith.select %47, %497, %498 : vector<16x16xi1>, vector<16x16xf32>
    %cst_178 = arith.constant dense<0xFF800000> : vector<16xf32>
    %500 = vector.multi_reduction <maximumf>, %499, %cst_178 [1] : vector<16x16xf32> to vector<16xf32>
    %501 = vector.shape_cast %500 : vector<16xf32> to vector<16x1xf32>
    %502 = vector.broadcast %501 : vector<16x1xf32> to vector<16x16xf32>
    %503 = arith.subf %499, %502 : vector<16x16xf32>
    %504 = math.exp %503 : vector<16x16xf32>
    %cst_179 = arith.constant dense<0.000000e+00> : vector<16xf32>
    %505 = vector.multi_reduction <add>, %504, %cst_179 [1] : vector<16x16xf32> to vector<16xf32>
    %506 = vector.shape_cast %505 : vector<16xf32> to vector<16x1xf32>
    %507 = tpu.reciprocal %506 {approx = true} : vector<16x1xf32> -> vector<16x1xf32>
    %508 = vector.broadcast %507 : vector<16x1xf32> to vector<16x16xf32>
    %509 = arith.mulf %504, %508 : vector<16x16xf32>
    %cst_180 = arith.constant dense<0.000000e+00> : vector<16x16xf32>
    %510 = tpu.matmul %509, %493, %cst_180 {dimension_numbers = #tpu.dot_dimension_numbers<[1], [0], [0], [1], [0, 0, 1, 1], [], []>} : vector<16x16xf32>, vector<16x16xf32>, vector<16x16xf32> -> vector<16x16xf32>
    %511 = vector.extract_strided_slice %330 {offsets = [16, 0], sizes = [16, 64], strides = [1, 1]} : vector<64x64xf32> to vector<16x64xf32>
    %cst_181 = arith.constant dense<0.000000e+00> : vector<16x64xf32>
    %512 = tpu.matmul %510, %511, %cst_181 {dimension_numbers = #tpu.dot_dimension_numbers<[1], [0], [0], [1], [0, 0, 1, 1], [], []>} : vector<16x16xf32>, vector<16x64xf32>, vector<16x64xf32> -> vector<16x64xf32>
    %513 = arith.addf %490, %512 : vector<16x64xf32>
    %514 = vector.extract_strided_slice %367 {offsets = [16, 32], sizes = [16, 16], strides = [1, 1]} : vector<32x64xf32> to vector<16x16xf32>
    %515 = vector.extract_strided_slice %370 {offsets = [16, 32], sizes = [16, 16], strides = [1, 1]} : vector<32x64xf32> to vector<16x16xf32>
    %516 = vector.extract_strided_slice %373 {offsets = [16, 32], sizes = [16, 16], strides = [1, 1]} : vector<32x64xf32> to vector<16x16xf32>
    %517 = tpu.transpose %515, [1, 0] : vector<16x16xf32> -> vector<16x16xf32>
    %cst_182 = arith.constant dense<0.000000e+00> : vector<16x16xf32>
    %518 = tpu.matmul %514, %517, %cst_182 {dimension_numbers = #tpu.dot_dimension_numbers<[1], [0], [0], [1], [0, 0, 1, 1], [], []>} : vector<16x16xf32>, vector<16x16xf32>, vector<16x16xf32> -> vector<16x16xf32>
    %cst_183 = arith.constant 2.500000e-01 : f32
    %519 = vector.broadcast %cst_183 : f32 to vector<16x16xf32>
    %520 = arith.mulf %518, %519 : vector<16x16xf32>
    %cst_184 = arith.constant -1.000000e+30 : f32
    %521 = vector.broadcast %cst_184 : f32 to vector<16x16xf32>
    %522 = arith.select %47, %520, %521 : vector<16x16xi1>, vector<16x16xf32>
    %cst_185 = arith.constant dense<0xFF800000> : vector<16xf32>
    %523 = vector.multi_reduction <maximumf>, %522, %cst_185 [1] : vector<16x16xf32> to vector<16xf32>
    %524 = vector.shape_cast %523 : vector<16xf32> to vector<16x1xf32>
    %525 = vector.broadcast %524 : vector<16x1xf32> to vector<16x16xf32>
    %526 = arith.subf %522, %525 : vector<16x16xf32>
    %527 = math.exp %526 : vector<16x16xf32>
    %cst_186 = arith.constant dense<0.000000e+00> : vector<16xf32>
    %528 = vector.multi_reduction <add>, %527, %cst_186 [1] : vector<16x16xf32> to vector<16xf32>
    %529 = vector.shape_cast %528 : vector<16xf32> to vector<16x1xf32>
    %530 = tpu.reciprocal %529 {approx = true} : vector<16x1xf32> -> vector<16x1xf32>
    %531 = vector.broadcast %530 : vector<16x1xf32> to vector<16x16xf32>
    %532 = arith.mulf %527, %531 : vector<16x16xf32>
    %cst_187 = arith.constant dense<0.000000e+00> : vector<16x16xf32>
    %533 = tpu.matmul %532, %516, %cst_187 {dimension_numbers = #tpu.dot_dimension_numbers<[1], [0], [0], [1], [0, 0, 1, 1], [], []>} : vector<16x16xf32>, vector<16x16xf32>, vector<16x16xf32> -> vector<16x16xf32>
    %534 = vector.extract_strided_slice %330 {offsets = [32, 0], sizes = [16, 64], strides = [1, 1]} : vector<64x64xf32> to vector<16x64xf32>
    %cst_188 = arith.constant dense<0.000000e+00> : vector<16x64xf32>
    %535 = tpu.matmul %533, %534, %cst_188 {dimension_numbers = #tpu.dot_dimension_numbers<[1], [0], [0], [1], [0, 0, 1, 1], [], []>} : vector<16x16xf32>, vector<16x64xf32>, vector<16x64xf32> -> vector<16x64xf32>
    %536 = arith.addf %513, %535 : vector<16x64xf32>
    %537 = vector.extract_strided_slice %367 {offsets = [16, 48], sizes = [16, 16], strides = [1, 1]} : vector<32x64xf32> to vector<16x16xf32>
    %538 = vector.extract_strided_slice %370 {offsets = [16, 48], sizes = [16, 16], strides = [1, 1]} : vector<32x64xf32> to vector<16x16xf32>
    %539 = vector.extract_strided_slice %373 {offsets = [16, 48], sizes = [16, 16], strides = [1, 1]} : vector<32x64xf32> to vector<16x16xf32>
    %540 = tpu.transpose %538, [1, 0] : vector<16x16xf32> -> vector<16x16xf32>
    %cst_189 = arith.constant dense<0.000000e+00> : vector<16x16xf32>
    %541 = tpu.matmul %537, %540, %cst_189 {dimension_numbers = #tpu.dot_dimension_numbers<[1], [0], [0], [1], [0, 0, 1, 1], [], []>} : vector<16x16xf32>, vector<16x16xf32>, vector<16x16xf32> -> vector<16x16xf32>
    %cst_190 = arith.constant 2.500000e-01 : f32
    %542 = vector.broadcast %cst_190 : f32 to vector<16x16xf32>
    %543 = arith.mulf %541, %542 : vector<16x16xf32>
    %cst_191 = arith.constant -1.000000e+30 : f32
    %544 = vector.broadcast %cst_191 : f32 to vector<16x16xf32>
    %545 = arith.select %47, %543, %544 : vector<16x16xi1>, vector<16x16xf32>
    %cst_192 = arith.constant dense<0xFF800000> : vector<16xf32>
    %546 = vector.multi_reduction <maximumf>, %545, %cst_192 [1] : vector<16x16xf32> to vector<16xf32>
    %547 = vector.shape_cast %546 : vector<16xf32> to vector<16x1xf32>
    %548 = vector.broadcast %547 : vector<16x1xf32> to vector<16x16xf32>
    %549 = arith.subf %545, %548 : vector<16x16xf32>
    %550 = math.exp %549 : vector<16x16xf32>
    %cst_193 = arith.constant dense<0.000000e+00> : vector<16xf32>
    %551 = vector.multi_reduction <add>, %550, %cst_193 [1] : vector<16x16xf32> to vector<16xf32>
    %552 = vector.shape_cast %551 : vector<16xf32> to vector<16x1xf32>
    %553 = tpu.reciprocal %552 {approx = true} : vector<16x1xf32> -> vector<16x1xf32>
    %554 = vector.broadcast %553 : vector<16x1xf32> to vector<16x16xf32>
    %555 = arith.mulf %550, %554 : vector<16x16xf32>
    %cst_194 = arith.constant dense<0.000000e+00> : vector<16x16xf32>
    %556 = tpu.matmul %555, %539, %cst_194 {dimension_numbers = #tpu.dot_dimension_numbers<[1], [0], [0], [1], [0, 0, 1, 1], [], []>} : vector<16x16xf32>, vector<16x16xf32>, vector<16x16xf32> -> vector<16x16xf32>
    %557 = vector.extract_strided_slice %330 {offsets = [48, 0], sizes = [16, 64], strides = [1, 1]} : vector<64x64xf32> to vector<16x64xf32>
    %cst_195 = arith.constant dense<0.000000e+00> : vector<16x64xf32>
    %558 = tpu.matmul %556, %557, %cst_195 {dimension_numbers = #tpu.dot_dimension_numbers<[1], [0], [0], [1], [0, 0, 1, 1], [], []>} : vector<16x16xf32>, vector<16x64xf32>, vector<16x64xf32> -> vector<16x64xf32>
    %559 = arith.addf %536, %558 : vector<16x64xf32>
    %560 = tpu.concatenate %466, %559 in 0 : vector<16x64xf32>, vector<16x64xf32> -> vector<32x64xf32>
    %561 = vector.broadcast %339 : vector<1x64xf32> to vector<32x64xf32>
    %562 = arith.addf %560, %561 : vector<32x64xf32>
    %563 = arith.addf %326, %562 : vector<32x64xf32>
    %cst_196 = arith.constant dense<0.000000e+00> : vector<32xf32>
    %564 = vector.multi_reduction <add>, %563, %cst_196 [1] : vector<32x64xf32> to vector<32xf32>
    %565 = vector.shape_cast %564 : vector<32xf32> to vector<32x1xf32>
    %cst_197 = arith.constant 6.400000e+01 : f32
    %566 = vector.broadcast %cst_197 : f32 to vector<32x1xf32>
    %567 = arith.divf %565, %566 : vector<32x1xf32>
    %568 = vector.broadcast %567 : vector<32x1xf32> to vector<32x64xf32>
    %569 = arith.subf %563, %568 : vector<32x64xf32>
    %570 = arith.mulf %569, %569 : vector<32x64xf32>
    %cst_198 = arith.constant dense<0.000000e+00> : vector<32xf32>
    %571 = vector.multi_reduction <add>, %570, %cst_198 [1] : vector<32x64xf32> to vector<32xf32>
    %572 = vector.shape_cast %571 : vector<32xf32> to vector<32x1xf32>
    %cst_199 = arith.constant 6.400000e+01 : f32
    %573 = vector.broadcast %cst_199 : f32 to vector<32x1xf32>
    %574 = arith.divf %572, %573 : vector<32x1xf32>
    %575 = vector.broadcast %567 : vector<32x1xf32> to vector<32x64xf32>
    %576 = arith.subf %563, %575 : vector<32x64xf32>
    %cst_200 = arith.constant 9.99999974E-6 : f32
    %577 = vector.broadcast %cst_200 : f32 to vector<32x1xf32>
    %578 = arith.addf %574, %577 : vector<32x1xf32>
    %579 = math.rsqrt %578 : vector<32x1xf32>
    %580 = vector.broadcast %579 : vector<32x1xf32> to vector<32x64xf32>
    %581 = arith.mulf %576, %580 : vector<32x64xf32>
    %582 = vector.broadcast %334 : vector<1x64xf32> to vector<32x64xf32>
    %583 = arith.mulf %581, %582 : vector<32x64xf32>
    %584 = vector.broadcast %335 : vector<1x64xf32> to vector<32x64xf32>
    %585 = arith.addf %583, %584 : vector<32x64xf32>
    %cst_201 = arith.constant dense<0.000000e+00> : vector<32x256xf32>
    %586 = tpu.matmul %585, %341, %cst_201 {dimension_numbers = #tpu.dot_dimension_numbers<[1], [0], [0], [1], [0, 0, 1, 1], [], []>} : vector<32x64xf32>, vector<64x256xf32>, vector<32x256xf32> -> vector<32x256xf32>
    %587 = vector.broadcast %342 : vector<1x256xf32> to vector<32x256xf32>
    %588 = arith.addf %586, %587 : vector<32x256xf32>
    %cst_202 = arith.constant 5.000000e-01 : f32
    %589 = vector.broadcast %cst_202 : f32 to vector<32x256xf32>
    %590 = arith.mulf %589, %588 : vector<32x256xf32>
    %cst_203 = arith.constant 4.471500e-02 : f32
    %591 = vector.broadcast %cst_203 : f32 to vector<32x256xf32>
    %592 = arith.mulf %591, %588 : vector<32x256xf32>
    %593 = arith.mulf %592, %588 : vector<32x256xf32>
    %594 = arith.mulf %593, %588 : vector<32x256xf32>
    %595 = arith.addf %588, %594 : vector<32x256xf32>
    %cst_204 = arith.constant 0.797884583 : f32
    %596 = vector.broadcast %cst_204 : f32 to vector<32x256xf32>
    %597 = arith.mulf %596, %595 : vector<32x256xf32>
    %598 = math.tanh %597 : vector<32x256xf32>
    %cst_205 = arith.constant 1.000000e+00 : f32
    %599 = vector.broadcast %cst_205 : f32 to vector<32x256xf32>
    %600 = arith.addf %599, %598 : vector<32x256xf32>
    %601 = arith.mulf %590, %600 : vector<32x256xf32>
    %cst_206 = arith.constant dense<0.000000e+00> : vector<32x64xf32>
    %602 = tpu.matmul %601, %331, %cst_206 {dimension_numbers = #tpu.dot_dimension_numbers<[1], [0], [0], [1], [0, 0, 1, 1], [], []>} : vector<32x256xf32>, vector<256x64xf32>, vector<32x64xf32> -> vector<32x64xf32>
    %603 = vector.broadcast %340 : vector<1x64xf32> to vector<32x64xf32>
    %604 = arith.addf %602, %603 : vector<32x64xf32>
    %605 = arith.addf %563, %604 : vector<32x64xf32>
    %cst_207 = arith.constant dense<0.000000e+00> : vector<32xf32>
    %606 = vector.multi_reduction <add>, %605, %cst_207 [1] : vector<32x64xf32> to vector<32xf32>
    %607 = vector.shape_cast %606 : vector<32xf32> to vector<32x1xf32>
    %cst_208 = arith.constant 6.400000e+01 : f32
    %608 = vector.broadcast %cst_208 : f32 to vector<32x1xf32>
    %609 = arith.divf %607, %608 : vector<32x1xf32>
    %610 = vector.broadcast %609 : vector<32x1xf32> to vector<32x64xf32>
    %611 = arith.subf %605, %610 : vector<32x64xf32>
    %612 = arith.mulf %611, %611 : vector<32x64xf32>
    %cst_209 = arith.constant dense<0.000000e+00> : vector<32xf32>
    %613 = vector.multi_reduction <add>, %612, %cst_209 [1] : vector<32x64xf32> to vector<32xf32>
    %614 = vector.shape_cast %613 : vector<32xf32> to vector<32x1xf32>
    %cst_210 = arith.constant 6.400000e+01 : f32
    %615 = vector.broadcast %cst_210 : f32 to vector<32x1xf32>
    %616 = arith.divf %614, %615 : vector<32x1xf32>
    %617 = vector.broadcast %609 : vector<32x1xf32> to vector<32x64xf32>
    %618 = arith.subf %605, %617 : vector<32x64xf32>
    %cst_211 = arith.constant 9.99999974E-6 : f32
    %619 = vector.broadcast %cst_211 : f32 to vector<32x1xf32>
    %620 = arith.addf %616, %619 : vector<32x1xf32>
    %621 = math.rsqrt %620 : vector<32x1xf32>
    %622 = vector.broadcast %621 : vector<32x1xf32> to vector<32x64xf32>
    %623 = arith.mulf %618, %622 : vector<32x64xf32>
    %624 = vector.broadcast %2 : vector<1x64xf32> to vector<32x64xf32>
    %625 = arith.mulf %623, %624 : vector<32x64xf32>
    %626 = vector.broadcast %3 : vector<1x64xf32> to vector<32x64xf32>
    %627 = arith.addf %625, %626 : vector<32x64xf32>
    %c0_212 = arith.constant 0 : index
    %c0_213 = arith.constant 0 : index
    %628 = vector.load %arg5[%c0_212, %c0_213] : memref<64x128xf32, #tpu.memory_space<vmem>>, vector<64x128xf32>
    %cst_214 = arith.constant dense<0.000000e+00> : vector<32x128xf32>
    %629 = tpu.matmul %627, %628, %cst_214 {dimension_numbers = #tpu.dot_dimension_numbers<[1], [0], [0], [1], [0, 0, 1, 1], [], []>} : vector<32x64xf32>, vector<64x128xf32>, vector<32x128xf32> -> vector<32x128xf32>
    %c0_215 = arith.constant 0 : index
    %c0_216 = arith.constant 0 : index
    %630 = vector.load %arg8[%c0_215, %c0_216] : memref<32x128xf32, #tpu.memory_space<vmem>>, vector<32x128xf32>
    tpu.vector_store %arg8[%c0_215, %c0_216], %629 {strides = array<i32>} : memref<32x128xf32, #tpu.memory_space<vmem>>, vector<32x128xf32>,
    return
  }
}

</mosaic_0001>

<llo_original>
// kernel: clip_caption_forward.1
$region0: #{clip_caption_forward.1}
  #allocation0 [shape = 'u32[]', space=smem, size = 0x4, offset = 0x4, fixed_abs, tag = 'smem constant byte address 0x4 - core index']
  #allocation1 [shape = 'u32[144,128]{1,0:T(1,128)}', space=vmem, size = 0x12000, scoped, tag = 'internal scratch']
  %s0 = inlined_call_operand.vmem [shape: s32[16,1], index: 0, kind: input, shape index: {}]
  %s1 = inlined_call_operand.vmem [shape: f32[2,32], index: 1, kind: input, shape index: {}]
  %s2 = inlined_call_operand.vmem [shape: f32[33,256], index: 2, kind: input, shape index: {}]
  %s3 = inlined_call_operand.vmem [shape: f32[257,512], index: 3, kind: input, shape index: {}]
  %s4 = inlined_call_operand.vmem [shape: f32[162,64], index: 4, kind: input, shape index: {}]
  %s5 = inlined_call_operand.vmem [shape: f32[64,128], index: 5, kind: input, shape index: {}]
  %s6 = inlined_call_operand.vmem [shape: f32[1056,64], index: 6, kind: input, shape index: {}]
  %s7 = inlined_call_operand.vmem [shape: f32[144,256], index: 7, kind: input, shape index: {}]
  %s8 = inlined_call_operand.hbm [shape: f32[32,128], index: 8, kind: output, shape index: {}]
  %s9 = sld [smem:[#allocation0]]
  $region42: #{clip_caption_forward.1} parent=0
    _
  %s11 = ssub.s32 1, %s9
  %s12 = scalar_select 0, %s11, %s9
  $region1: #{clip_caption_forward.1} parent=0
    #allocation2 [shape = 'u8[16384]{0}', space=vmem, size = 0x4000, scoped, tag = 'output window, operand 0, single buffered']
    #allocation3 [shape = 's32[1]{0}', space=sflag, size = 0x4, scoped, tag = 'scoped memory for clip_caption_forward.1']
    %13 = vsyncpa [#allocation3], 0
    // Predicated region
    $region2: #{clip_caption_forward.1} parent=1 // pred_check
      _
    $region3: #{clip_caption_forward.1} parent=1 // pred_check_branch
      %15 = sbr.rel (0) target = $region5
    $region4: #{clip_caption_forward.1} parent=1 // pred_region
      _
    $region5: #{clip_caption_forward.1} parent=1 // pred_fallthru
      _
    // Predicated region
    $region6: #{clip_caption_forward.1} parent=1 // pred_check
      _
    $region7: #{clip_caption_forward.1} parent=1 // pred_check_branch
      %17 = sbr.rel (0) target = $region9
    $region8: #{clip_caption_forward.1} parent=1 // pred_region
      _
    $region9: #{clip_caption_forward.1} parent=1 // pred_fallthru
      _
    // Predicated region
    $region10: #{clip_caption_forward.1} parent=1 // pred_check
      _
    $region11: #{clip_caption_forward.1} parent=1 // pred_check_branch
      %19 = sbr.rel (0) target = $region13
    $region12: #{clip_caption_forward.1} parent=1 // pred_region
      _
    $region13: #{clip_caption_forward.1} parent=1 // pred_fallthru
      _
    // Predicated region
    $region14: #{clip_caption_forward.1} parent=1 // pred_check
      _
    $region15: #{clip_caption_forward.1} parent=1 // pred_check_branch
      %21 = sbr.rel (0) target = $region17
    $region16: #{clip_caption_forward.1} parent=1 // pred_region
      _
    $region17: #{clip_caption_forward.1} parent=1 // pred_fallthru
      _
    // Predicated region
    $region18: #{clip_caption_forward.1} parent=1 // pred_check
      _
    $region19: #{clip_caption_forward.1} parent=1 // pred_check_branch
      %23 = sbr.rel (0) target = $region21
    $region20: #{clip_caption_forward.1} parent=1 // pred_region
      _
    $region21: #{clip_caption_forward.1} parent=1 // pred_fallthru
      _
    // Predicated region
    $region22: #{clip_caption_forward.1} parent=1 // pred_check
      _
    $region23: #{clip_caption_forward.1} parent=1 // pred_check_branch
      %25 = sbr.rel (0) target = $region25
    $region24: #{clip_caption_forward.1} parent=1 // pred_region
      _
    $region25: #{clip_caption_forward.1} parent=1 // pred_fallthru
      _
    // Predicated region
    $region26: #{clip_caption_forward.1} parent=1 // pred_check
      _
    $region27: #{clip_caption_forward.1} parent=1 // pred_check_branch
      %27 = sbr.rel (0) target = $region29
    $region28: #{clip_caption_forward.1} parent=1 // pred_region
      _
    $region29: #{clip_caption_forward.1} parent=1 // pred_fallthru
      _
    // Predicated region
    $region30: #{clip_caption_forward.1} parent=1 // pred_check
      _
    $region31: #{clip_caption_forward.1} parent=1 // pred_check_branch
      %29 = sbr.rel (0) target = $region33
    $region32: #{clip_caption_forward.1} parent=1 // pred_region
      _
    $region33: #{clip_caption_forward.1} parent=1 // pred_fallthru
      _
    %v30 = vld [vmem:[%s4] sm:$0xff]
    %v31 = vld [vmem:[%s4 + $0x8] sm:$0xff]
    %v32 = vld [vmem:[%s4 + $0x10] sm:$0xff]
    %v33 = vld [vmem:[%s4 + $0x18] sm:$0xff]
    %v34 = vld [vmem:[%s4 + $0x20] sm:$0xff]
    %v35 = vld [vmem:[%s4 + $0x28] sm:$0xff]
    %v36 = vld [vmem:[%s4 + $0x30] sm:$0xff]
    %v37 = vld [vmem:[%s4 + $0x38] sm:$0xff]
    %v38 = vld [vmem:[%s4 + $0x40] sm:$0xff]
    %v39 = vld [vmem:[%s4 + $0x48] sm:$0xff]
    %v40 = vld [vmem:[%s4 + $0x50] sm:$0xff]
    %v41 = vld [vmem:[%s4 + $0x58] sm:$0xff]
    %v42 = vld [vmem:[%s4 + $0x60] sm:$0xff]
    %v43 = vld [vmem:[%s4 + $0x68] sm:$0xff]
    %v44 = vld [vmem:[%s4 + $0x70] sm:$0xff]
    %v45 = vld [vmem:[%s4 + $0x78] sm:$0xff]
    %v46 = vld [vmem:[%s4 + $0x80] sm:$0xff]
    %v47 = vld [vmem:[%s4 + $0x88] sm:$0xff]
    %v48 = vld [vmem:[%s4 + $0x90] sm:$0xff]
    %v49 = vld [vmem:[%s4 + $0x98] sm:$0xff]
    %v50 = vld [vmem:[%s4 + $0xa0] sm:$0x1]
    %v51 = vld [vmem:[%s4 + $0xa1] sm:$0x1]
    %v52 = vld [vmem:[%s0] sm:$0xff]
    %v53 = vld [vmem:[%s0 + $0x8] sm:$0xff]
    %v54 = vlaneseq
    %v55 = vand.u32 %v54, 127
    %56 = vset.pattern.permute.xlu0 0
    %57 = vperm.xlu0 %56, %v52
    %v58 = vpop.permute.xlu0 %57
    %59 = vset.pattern.permute.xlu0 0
    %60 = vperm.xlu0 %59, %v53
    %v61 = vpop.permute.xlu0 %60
    %vm62 = vcmp.eq.s32.totalorder %v58, %v55
    %vm63 = vcmp.eq.s32.totalorder %v61, %v55
    %v64 = vsel %vm62, 1, 0
    %v65 = vsel %vm63, 1, 0
    %v66 = vcvt.s32.f32 %v64
    %v67 = vcvt.s32.f32 %v65
    %68 = vmatprep.subr.mxu0 0.0
    %69 = vmatpush1.msra.mxu0 %v45
    %70 = vmatprep.subr.mxu0 0.0
    %71 = vmatpush1.msra.mxu0 %v44
    %72 = vmatprep.subr.mxu0 0.0
    %73 = vmatpush1.msra.mxu0 %v43
    %74 = vmatprep.subr.mxu0 0.0
    %75 = vmatpush1.msra.mxu0 %v42
    %76 = vmatprep.subr.mxu0 0.0
    %77 = vmatpush1.msra.mxu0 %v41
    %78 = vmatprep.subr.mxu0 0.0
    %79 = vmatpush1.msra.mxu0 %v40
    %80 = vmatprep.subr.mxu0 0.0
    %81 = vmatpush1.msra.mxu0 %v39
    %82 = vmatprep.subr.mxu0 0.0
    %83 = vmatpush1.msra.mxu0 %v38
    %84 = vmatprep.subr.mxu0 0.0
    %85 = vmatpush1.msra.mxu0 %v37
    %86 = vmatprep.subr.mxu0 0.0
    %87 = vmatpush1.msra.mxu0 %v36
    %88 = vmatprep.subr.mxu0 0.0
    %89 = vmatpush1.msra.mxu0 %v35
    %90 = vmatprep.subr.mxu0 0.0
    %91 = vmatpush1.msra.mxu0 %v34
    %92 = vmatprep.subr.mxu0 0.0
    %93 = vmatpush1.msra.mxu0 %v33
    %94 = vmatprep.subr.mxu0 0.0
    %95 = vmatpush1.msra.mxu0 %v32
    %96 = vmatprep.subr.mxu0 0.0
    %97 = vmatpush1.msra.mxu0 %v31
    %98 = vmatprep.subr.mxu0 0.0
    %99 = vmatpush1.msra.mxu0 %v30
    %100 = vmatprep.subr.mxu0 0.0
    %101 = vmatpush2.msra.mxu0 0.0
    %102 = vmatprep.subr.mxu0 0.0
    %103 = vmatpush2.msra.mxu0 0.0
    %104 = vmatprep.subr.mxu0 0.0
    %105 = vmatpush2.msra.mxu0 0.0
    %106 = vmatprep.subr.mxu0 0.0
    %107 = vmatpush2.msra.mxu0 0.0
    %108 = vmatprep.subr.mxu0 0.0
    %109 = vmatpush2.msra.mxu0 0.0
    %110 = vmatprep.subr.mxu0 0.0
    %111 = vmatpush2.msra.mxu0 0.0
    %112 = vmatprep.subr.mxu0 0.0
    %113 = vmatpush2.msra.mxu0 0.0
    %114 = vmatprep.subr.mxu0 0.0
    %115 = vmatpush2.msra.mxu0 0.0
    %116 = vmatprep.subr.mxu0 0.0
    %117 = vmatpush2.msra.mxu0 0.0
    %118 = vmatprep.subr.mxu0 0.0
    %119 = vmatpush2.msra.mxu0 0.0
    %120 = vmatprep.subr.mxu0 0.0
    %121 = vmatpush2.msra.mxu0 0.0
    %122 = vmatprep.subr.mxu0 0.0
    %123 = vmatpush2.msra.mxu0 0.0
    %124 = vmatprep.subr.mxu0 0.0
    %125 = vmatpush2.msra.mxu0 0.0
    %126 = vmatprep.subr.mxu0 0.0
    %127 = vmatpush2.msra.mxu0 0.0
    %128 = vmatprep.subr.mxu0 0.0
    %129 = vmatpush2.msra.mxu0 0.0
    %130 = vmatprep.subr.mxu0 0.0
    %131 = vmatpush2.msra.mxu0 0.0
    %132 = vmatprep.mubr.f32.mxu0 0.0
    %133 = vmatmul.mubr.f32.gmra.mxu0 %v66
    %v134 = vpop.f32.mrf.mxu0
    %v135 = vadd.f32 0.0, %v134
    %v136 = vpop.f32.mrf.mxu0
    %137 = vmatprep.mubr.f32.mxu0 0.0
    %138 = vmatmul.mubr.f32.gmra.mxu0 %v67
    %v139 = vpop.f32.mrf.mxu0
    %v140 = vadd.f32 0.0, %v139
    %v141 = vpop.f32.mrf.mxu0
    %142 = vdwg.mxu0
    %v143 = vld [vmem:[%s2] sm:$0xff]
    %v144 = vld [vmem:[%s2 + $0x8] sm:$0xff]
    %v145 = vld [vmem:[%s2 + $0x10] sm:$0xff]
    %v146 = vld [vmem:[%s2 + $0x18] sm:$0xff]
    %v147 = vld [vmem:[%s2 + $0x20] sm:$0xff]
    %v148 = vld [vmem:[%s2 + $0x28] sm:$0xff]
    %v149 = vld [vmem:[%s2 + $0x30] sm:$0xff]
    %v150 = vld [vmem:[%s2 + $0x38] sm:$0xff]
    %s151 = scalar_lea.vmem %s2, 64
    %v152 = vld [vmem:[%s151] ss:$8 sm:$0x3]
    %v153 = vld [vmem:[%s3] sm:$0xff]
    %v154 = vld [vmem:[%s3 + $0x8] sm:$0xff]
    %v155 = vld [vmem:[%s3 + $0x10] sm:$0xff]
    %v156 = vld [vmem:[%s3 + $0x18] sm:$0xff]
    %v157 = vld [vmem:[%s3 + $0x20] sm:$0xff]
    %v158 = vld [vmem:[%s3 + $0x28] sm:$0xff]
    %v159 = vld [vmem:[%s3 + $0x30] sm:$0xff]
    %v160 = vld [vmem:[%s3 + $0x38] sm:$0xff]
    %v161 = vld [vmem:[%s3 + $0x40] sm:$0xff]
    %v162 = vld [vmem:[%s3 + $0x48] sm:$0xff]
    %v163 = vld [vmem:[%s3 + $0x50] sm:$0xff]
    %v164 = vld [vmem:[%s3 + $0x58] sm:$0xff]
    %v165 = vld [vmem:[%s3 + $0x60] sm:$0xff]
    %v166 = vld [vmem:[%s3 + $0x68] sm:$0xff]
    %v167 = vld [vmem:[%s3 + $0x70] sm:$0xff]
    %v168 = vld [vmem:[%s3 + $0x78] sm:$0xff]
    %v169 = vld [vmem:[%s3 + $0x80] sm:$0xff]
    %v170 = vld [vmem:[%s3 + $0x88] sm:$0xff]
    %v171 = vld [vmem:[%s3 + $0x90] sm:$0xff]
    %v172 = vld [vmem:[%s3 + $0x98] sm:$0xff]
    %v173 = vld [vmem:[%s3 + $0xa0] sm:$0xff]
    %v174 = vld [vmem:[%s3 + $0xa8] sm:$0xff]
    %v175 = vld [vmem:[%s3 + $0xb0] sm:$0xff]
    %v176 = vld [vmem:[%s3 + $0xb8] sm:$0xff]
    %v177 = vld [vmem:[%s3 + $0xc0] sm:$0xff]
    %v178 = vld [vmem:[%s3 + $0xc8] sm:$0xff]
    %v179 = vld [vmem:[%s3 + $0xd0] sm:$0xff]
    %v180 = vld [vmem:[%s3 + $0xd8] sm:$0xff]
    %v181 = vld [vmem:[%s3 + $0xe0] sm:$0xff]
    %v182 = vld [vmem:[%s3 + $0xe8] sm:$0xff]
    %v183 = vld [vmem:[%s3 + $0xf0] sm:$0xff]
    %v184 = vld [vmem:[%s3 + $0xf8] sm:$0xff]
    %v185 = vld [vmem:[%s3 + $0x100] sm:$0xff]
    %v186 = vld [vmem:[%s3 + $0x108] sm:$0xff]
    %v187 = vld [vmem:[%s3 + $0x110] sm:$0xff]
    %v188 = vld [vmem:[%s3 + $0x118] sm:$0xff]
    %v189 = vld [vmem:[%s3 + $0x120] sm:$0xff]
    %v190 = vld [vmem:[%s3 + $0x128] sm:$0xff]
    %v191 = vld [vmem:[%s3 + $0x130] sm:$0xff]
    %v192 = vld [vmem:[%s3 + $0x138] sm:$0xff]
    %v193 = vld [vmem:[%s3 + $0x140] sm:$0xff]
    %v194 = vld [vmem:[%s3 + $0x148] sm:$0xff]
    %v195 = vld [vmem:[%s3 + $0x150] sm:$0xff]
    %v196 = vld [vmem:[%s3 + $0x158] sm:$0xff]
    %v197 = vld [vmem:[%s3 + $0x160] sm:$0xff]
    %v198 = vld [vmem:[%s3 + $0x168] sm:$0xff]
    %v199 = vld [vmem:[%s3 + $0x170] sm:$0xff]
    %v200 = vld [vmem:[%s3 + $0x178] sm:$0xff]
    %v201 = vld [vmem:[%s3 + $0x180] sm:$0xff]
    %v202 = vld [vmem:[%s3 + $0x188] sm:$0xff]
    %v203 = vld [vmem:[%s3 + $0x190] sm:$0xff]
    %v204 = vld [vmem:[%s3 + $0x198] sm:$0xff]
    %v205 = vld [vmem:[%s3 + $0x1a0] sm:$0xff]
    %v206 = vld [vmem:[%s3 + $0x1a8] sm:$0xff]
    %v207 = vld [vmem:[%s3 + $0x1b0] sm:$0xff]
    %v208 = vld [vmem:[%s3 + $0x1b8] sm:$0xff]
    %v209 = vld [vmem:[%s3 + $0x1c0] sm:$0xff]
    %v210 = vld [vmem:[%s3 + $0x1c8] sm:$0xff]
    %v211 = vld [vmem:[%s3 + $0x1d0] sm:$0xff]
    %v212 = vld [vmem:[%s3 + $0x1d8] sm:$0xff]
    %v213 = vld [vmem:[%s3 + $0x1e0] sm:$0xff]
    %v214 = vld [vmem:[%s3 + $0x1e8] sm:$0xff]
    %v215 = vld [vmem:[%s3 + $0x1f0] sm:$0xff]
    %v216 = vld [vmem:[%s3 + $0x1f8] sm:$0xff]
    %v217 = vld [vmem:[%s3 + $0x200] sm:$0xff]
    %v218 = vld [vmem:[%s3 + $0x208] sm:$0xff]
    %v219 = vld [vmem:[%s3 + $0x210] sm:$0xff]
    %v220 = vld [vmem:[%s3 + $0x218] sm:$0xff]
    %v221 = vld [vmem:[%s3 + $0x220] sm:$0xff]
    %v222 = vld [vmem:[%s3 + $0x228] sm:$0xff]
    %v223 = vld [vmem:[%s3 + $0x230] sm:$0xff]
    %v224 = vld [vmem:[%s3 + $0x238] sm:$0xff]
    %v225 = vld [vmem:[%s3 + $0x240] sm:$0xff]
    %v226 = vld [vmem:[%s3 + $0x248] sm:$0xff]
    %v227 = vld [vmem:[%s3 + $0x250] sm:$0xff]
    %v228 = vld [vmem:[%s3 + $0x258] sm:$0xff]
    %v229 = vld [vmem:[%s3 + $0x260] sm:$0xff]
    %v230 = vld [vmem:[%s3 + $0x268] sm:$0xff]
    %v231 = vld [vmem:[%s3 + $0x270] sm:$0xff]
    %v232 = vld [vmem:[%s3 + $0x278] sm:$0xff]
    %v233 = vld [vmem:[%s3 + $0x280] sm:$0xff]
    %v234 = vld [vmem:[%s3 + $0x288] sm:$0xff]
    %v235 = vld [vmem:[%s3 + $0x290] sm:$0xff]
    %v236 = vld [vmem:[%s3 + $0x298] sm:$0xff]
    %v237 = vld [vmem:[%s3 + $0x2a0] sm:$0xff]
    %v238 = vld [vmem:[%s3 + $0x2a8] sm:$0xff]
    %v239 = vld [vmem:[%s3 + $0x2b0] sm:$0xff]
    %v240 = vld [vmem:[%s3 + $0x2b8] sm:$0xff]
    %v241 = vld [vmem:[%s3 + $0x2c0] sm:$0xff]
    %v242 = vld [vmem:[%s3 + $0x2c8] sm:$0xff]
    %v243 = vld [vmem:[%s3 + $0x2d0] sm:$0xff]
    %v244 = vld [vmem:[%s3 + $0x2d8] sm:$0xff]
    %v245 = vld [vmem:[%s3 + $0x2e0] sm:$0xff]
    %v246 = vld [vmem:[%s3 + $0x2e8] sm:$0xff]
    %v247 = vld [vmem:[%s3 + $0x2f0] sm:$0xff]
    %v248 = vld [vmem:[%s3 + $0x2f8] sm:$0xff]
    %v249 = vld [vmem:[%s3 + $0x300] sm:$0xff]
    %v250 = vld [vmem:[%s3 + $0x308] sm:$0xff]
    %v251 = vld [vmem:[%s3 + $0x310] sm:$0xff]
    %v252 = vld [vmem:[%s3 + $0x318] sm:$0xff]
    %v253 = vld [vmem:[%s3 + $0x320] sm:$0xff]
    %v254 = vld [vmem:[%s3 + $0x328] sm:$0xff]
    %v255 = vld [vmem:[%s3 + $0x330] sm:$0xff]
    %v256 = vld [vmem:[%s3 + $0x338] sm:$0xff]
    %v257 = vld [vmem:[%s3 + $0x340] sm:$0xff]
    %v258 = vld [vmem:[%s3 + $0x348] sm:$0xff]
    %v259 = vld [vmem:[%s3 + $0x350] sm:$0xff]
    %v260 = vld [vmem:[%s3 + $0x358] sm:$0xff]
    %v261 = vld [vmem:[%s3 + $0x360] sm:$0xff]
    %v262 = vld [vmem:[%s3 + $0x368] sm:$0xff]
    %v263 = vld [vmem:[%s3 + $0x370] sm:$0xff]
    %v264 = vld [vmem:[%s3 + $0x378] sm:$0xff]
    %v265 = vld [vmem:[%s3 + $0x380] sm:$0xff]
    %v266 = vld [vmem:[%s3 + $0x388] sm:$0xff]
    %v267 = vld [vmem:[%s3 + $0x390] sm:$0xff]
    %v268 = vld [vmem:[%s3 + $0x398] sm:$0xff]
    %v269 = vld [vmem:[%s3 + $0x3a0] sm:$0xff]
    %v270 = vld [vmem:[%s3 + $0x3a8] sm:$0xff]
    %v271 = vld [vmem:[%s3 + $0x3b0] sm:$0xff]
    %v272 = vld [vmem:[%s3 + $0x3b8] sm:$0xff]
    %v273 = vld [vmem:[%s3 + $0x3c0] sm:$0xff]
    %v274 = vld [vmem:[%s3 + $0x3c8] sm:$0xff]
    %v275 = vld [vmem:[%s3 + $0x3d0] sm:$0xff]
    %v276 = vld [vmem:[%s3 + $0x3d8] sm:$0xff]
    %v277 = vld [vmem:[%s3 + $0x3e0] sm:$0xff]
    %v278 = vld [vmem:[%s3 + $0x3e8] sm:$0xff]
    %v279 = vld [vmem:[%s3 + $0x3f0] sm:$0xff]
    %v280 = vld [vmem:[%s3 + $0x3f8] sm:$0xff]
    %s281 = scalar_lea.vmem %s3, 1024
    %v282 = vld [vmem:[%s281] ss:$8 sm:$0xf]
    %v283 = vld [vmem:[%s1] sm:$0x3]
    %v285 = vlaneseq
    %v286 = vshrl.u32 %v285, 7
    %v287 = vsub.s32 0, %v286
    %v288 = vrot.slane %v152, %v287
    %v289 = vlaneseq
    %v290 = vshrl.u32 %v289, 7
    %v291 = vsub.s32 1, %v290
    %v292 = vrot.slane %v152, %v291
    %vm295 = vcmask 261120
    %v297 = vsel %vm295, %v283, 0
    %299 = vmatprep.subr.mxu0 0.0
    %300 = vmatpush1.msra.mxu0 0.0
    %301 = vmatprep.subr.mxu0 0.0
    %302 = vmatpush1.msra.mxu0 0.0
    %303 = vmatprep.subr.mxu0 0.0
    %304 = vmatpush1.msra.mxu0 0.0
    %305 = vmatprep.subr.mxu0 0.0
    %306 = vmatpush1.msra.mxu0 0.0
    %307 = vmatprep.subr.mxu0 0.0
    %308 = vmatpush1.msra.mxu0 0.0
    %309 = vmatprep.subr.mxu0 0.0
    %310 = vmatpush1.msra.mxu0 0.0
    %311 = vmatprep.subr.mxu0 0.0
    %312 = vmatpush1.msra.mxu0 0.0
    %313 = vmatprep.subr.mxu0 0.0
    %314 = vmatpush1.msra.mxu0 0.0
    %315 = vmatprep.subr.mxu0 0.0
    %316 = vmatpush1.msra.mxu0 0.0
    %317 = vmatprep.subr.mxu0 0.0
    %318 = vmatpush1.msra.mxu0 0.0
    %319 = vmatprep.subr.mxu0 0.0
    %320 = vmatpush1.msra.mxu0 0.0
    %321 = vmatprep.subr.mxu0 0.0
    %322 = vmatpush1.msra.mxu0 0.0
    %323 = vmatprep.subr.mxu0 %v150
    %324 = vmatpush1.msra.mxu0 %v149
    %325 = vmatprep.subr.mxu0 %v148
    %326 = vmatpush1.msra.mxu0 %v147
    %327 = vmatprep.subr.mxu0 %v146
    %328 = vmatpush1.msra.mxu0 %v145
    %329 = vmatprep.subr.mxu0 %v144
    %330 = vmatpush1.msra.mxu0 %v143
    %331 = vmatprep.subr.mxu0 0.0
    %332 = vmatpush2.msra.mxu0 0.0
    %333 = vmatprep.subr.mxu0 0.0
    %334 = vmatpush2.msra.mxu0 0.0
    %335 = vmatprep.subr.mxu0 0.0
    %336 = vmatpush2.msra.mxu0 0.0
    %337 = vmatprep.subr.mxu0 0.0
    %338 = vmatpush2.msra.mxu0 0.0
    %339 = vmatprep.subr.mxu0 0.0
    %340 = vmatpush2.msra.mxu0 0.0
    %341 = vmatprep.subr.mxu0 0.0
    %342 = vmatpush2.msra.mxu0 0.0
    %343 = vmatprep.subr.mxu0 0.0
    %344 = vmatpush2.msra.mxu0 0.0
    %345 = vmatprep.subr.mxu0 0.0
    %346 = vmatpush2.msra.mxu0 0.0
    %347 = vmatprep.subr.mxu0 0.0
    %348 = vmatpush2.msra.mxu0 0.0
    %349 = vmatprep.subr.mxu0 0.0
    %350 = vmatpush2.msra.mxu0 0.0
    %351 = vmatprep.subr.mxu0 0.0
    %352 = vmatpush2.msra.mxu0 0.0
    %353 = vmatprep.subr.mxu0 0.0
    %354 = vmatpush2.msra.mxu0 0.0
    %355 = vmatprep.subr.mxu0 0.0
    %356 = vmatpush2.msra.mxu0 0.0
    %357 = vmatprep.subr.mxu0 0.0
    %358 = vmatpush2.msra.mxu0 0.0
    %359 = vmatprep.subr.mxu0 0.0
    %360 = vmatpush2.msra.mxu0 0.0
    %361 = vmatprep.subr.mxu0 0.0
    %362 = vmatpush2.msra.mxu0 0.0
    %363 = vmatprep.mubr.f32.mxu0 0.0
    %364 = vmatmul.mubr.f32.gmra.mxu0 %v297
    %v365 = vpop.f32.mrf.mxu0
    %v366 = vadd.f32 %v288, %v365
    %v367 = vpop.f32.mrf.mxu0
    %v368 = vadd.f32 %v292, %v367
    %369 = vdwg.mxu0
    %v370 = vtanh.pop %v366
    %v371 = vtanh.pop %v368
    %v373 = vlaneseq
    %v374 = vshrl.u32 %v373, 7
    %v375 = vsub.s32 0, %v374
    %v376 = vrot.slane %v282, %v375
    %v377 = vlaneseq
    %v378 = vshrl.u32 %v377, 7
    %v379 = vsub.s32 1, %v378
    %v380 = vrot.slane %v282, %v379
    %v381 = vlaneseq
    %v382 = vshrl.u32 %v381, 7
    %v383 = vsub.s32 2, %v382
    %v384 = vrot.slane %v282, %v383
    %v385 = vlaneseq
    %v386 = vshrl.u32 %v385, 7
    %v387 = vsub.s32 3, %v386
    %v388 = vrot.slane %v282, %v387
    %393 = vmatprep.subr.mxu0 %v214
    %394 = vmatpush1.msra.mxu0 %v213
    %395 = vmatprep.subr.mxu0 %v210
    %396 = vmatpush1.msra.mxu0 %v209
    %397 = vmatprep.subr.mxu0 %v206
    %398 = vmatpush1.msra.mxu0 %v205
    %399 = vmatprep.subr.mxu0 %v202
    %400 = vmatpush1.msra.mxu0 %v201
    %401 = vmatprep.subr.mxu0 %v198
    %402 = vmatpush1.msra.mxu0 %v197
    %403 = vmatprep.subr.mxu0 %v194
    %404 = vmatpush1.msra.mxu0 %v193
    %405 = vmatprep.subr.mxu0 %v190
    %406 = vmatpush1.msra.mxu0 %v189
    %407 = vmatprep.subr.mxu0 %v186
    %408 = vmatpush1.msra.mxu0 %v185
    %409 = vmatprep.subr.mxu0 %v182
    %410 = vmatpush1.msra.mxu0 %v181
    %411 = vmatprep.subr.mxu0 %v178
    %412 = vmatpush1.msra.mxu0 %v177
    %413 = vmatprep.subr.mxu0 %v174
    %414 = vmatpush1.msra.mxu0 %v173
    %415 = vmatprep.subr.mxu0 %v170
    %416 = vmatpush1.msra.mxu0 %v169
    %417 = vmatprep.subr.mxu0 %v166
    %418 = vmatpush1.msra.mxu0 %v165
    %419 = vmatprep.subr.mxu0 %v162
    %420 = vmatpush1.msra.mxu0 %v161
    %421 = vmatprep.subr.mxu0 %v158
    %422 = vmatpush1.msra.mxu0 %v157
    %423 = vmatprep.subr.mxu0 %v154
    %424 = vmatpush1.msra.mxu0 %v153
    %425 = vmatprep.subr.mxu0 %v278
    %426 = vmatpush2.msra.mxu0 %v277
    %427 = vmatprep.subr.mxu0 %v274
    %428 = vmatpush2.msra.mxu0 %v273
    %429 = vmatprep.subr.mxu0 %v270
    %430 = vmatpush2.msra.mxu0 %v269
    %431 = vmatprep.subr.mxu0 %v266
    %432 = vmatpush2.msra.mxu0 %v265
    %433 = vmatprep.subr.mxu0 %v262
    %434 = vmatpush2.msra.mxu0 %v261
    %435 = vmatprep.subr.mxu0 %v258
    %436 = vmatpush2.msra.mxu0 %v257
    %437 = vmatprep.subr.mxu0 %v254
    %438 = vmatpush2.msra.mxu0 %v253
    %439 = vmatprep.subr.mxu0 %v250
    %440 = vmatpush2.msra.mxu0 %v249
    %441 = vmatprep.subr.mxu0 %v246
    %442 = vmatpush2.msra.mxu0 %v245
    %443 = vmatprep.subr.mxu0 %v242
    %444 = vmatpush2.msra.mxu0 %v241
    %445 = vmatprep.subr.mxu0 %v238
    %446 = vmatpush2.msra.mxu0 %v237
    %447 = vmatprep.subr.mxu0 %v234
    %448 = vmatpush2.msra.mxu0 %v233
    %449 = vmatprep.subr.mxu0 %v230
    %450 = vmatpush2.msra.mxu0 %v229
    %451 = vmatprep.subr.mxu0 %v226
    %452 = vmatpush2.msra.mxu0 %v225
    %453 = vmatprep.subr.mxu0 %v222
    %454 = vmatpush2.msra.mxu0 %v221
    %455 = vmatprep.subr.mxu0 %v218
    %456 = vmatpush2.msra.mxu0 %v217
    %457 = vmatprep.mubr.f32.mxu0 %v371
    %458 = vmatmul.mubr.f32.gmra.mxu0 %v370
    %v459 = vpop.f32.mrf.mxu0
    %v460 = vadd.f32 %v376, %v459
    %v461 = vpop.f32.mrf.mxu0
    %v462 = vadd.f32 %v380, %v461
    %463 = vdwg.mxu0
    %464 = vmatprep.subr.mxu0 %v216
    %465 = vmatpush1.msra.mxu0 %v215
    %466 = vmatprep.subr.mxu0 %v212
    %467 = vmatpush1.msra.mxu0 %v211
    %468 = vmatprep.subr.mxu0 %v208
    %469 = vmatpush1.msra.mxu0 %v207
    %470 = vmatprep.subr.mxu0 %v204
    %471 = vmatpush1.msra.mxu0 %v203
    %472 = vmatprep.subr.mxu0 %v200
    %473 = vmatpush1.msra.mxu0 %v199
    %474 = vmatprep.subr.mxu0 %v196
    %475 = vmatpush1.msra.mxu0 %v195
    %476 = vmatprep.subr.mxu0 %v192
    %477 = vmatpush1.msra.mxu0 %v191
    %478 = vmatprep.subr.mxu0 %v188
    %479 = vmatpush1.msra.mxu0 %v187
    %480 = vmatprep.subr.mxu0 %v184
    %481 = vmatpush1.msra.mxu0 %v183
    %482 = vmatprep.subr.mxu0 %v180
    %483 = vmatpush1.msra.mxu0 %v179
    %484 = vmatprep.subr.mxu0 %v176
    %485 = vmatpush1.msra.mxu0 %v175
    %486 = vmatprep.subr.mxu0 %v172
    %487 = vmatpush1.msra.mxu0 %v171
    %488 = vmatprep.subr.mxu0 %v168
    %489 = vmatpush1.msra.mxu0 %v167
    %490 = vmatprep.subr.mxu0 %v164
    %491 = vmatpush1.msra.mxu0 %v163
    %492 = vmatprep.subr.mxu0 %v160
    %493 = vmatpush1.msra.mxu0 %v159
    %494 = vmatprep.subr.mxu0 %v156
    %495 = vmatpush1.msra.mxu0 %v155
    %496 = vmatprep.subr.mxu0 %v280
    %497 = vmatpush2.msra.mxu0 %v279
    %498 = vmatprep.subr.mxu0 %v276
    %499 = vmatpush2.msra.mxu0 %v275
    %500 = vmatprep.subr.mxu0 %v272
    %501 = vmatpush2.msra.mxu0 %v271
    %502 = vmatprep.subr.mxu0 %v268
    %503 = vmatpush2.msra.mxu0 %v267
    %504 = vmatprep.subr.mxu0 %v264
    %505 = vmatpush2.msra.mxu0 %v263
    %506 = vmatprep.subr.mxu0 %v260
    %507 = vmatpush2.msra.mxu0 %v259
    %508 = vmatprep.subr.mxu0 %v256
    %509 = vmatpush2.msra.mxu0 %v255
    %510 = vmatprep.subr.mxu0 %v252
    %511 = vmatpush2.msra.mxu0 %v251
    %512 = vmatprep.subr.mxu0 %v248
    %513 = vmatpush2.msra.mxu0 %v247
    %514 = vmatprep.subr.mxu0 %v244
    %515 = vmatpush2.msra.mxu0 %v243
    %516 = vmatprep.subr.mxu0 %v240
    %517 = vmatpush2.msra.mxu0 %v239
    %518 = vmatprep.subr.mxu0 %v236
    %519 = vmatpush2.msra.mxu0 %v235
    %520 = vmatprep.subr.mxu0 %v232
    %521 = vmatpush2.msra.mxu0 %v231
    %522 = vmatprep.subr.mxu0 %v228
    %523 = vmatpush2.msra.mxu0 %v227
    %524 = vmatprep.subr.mxu0 %v224
    %525 = vmatpush2.msra.mxu0 %v223
    %526 = vmatprep.subr.mxu0 %v220
    %527 = vmatpush2.msra.mxu0 %v219
    %528 = vmatprep.mubr.f32.mxu0 %v371
    %529 = vmatmul.mubr.f32.gmra.mxu0 %v370
    %v530 = vpop.f32.mrf.mxu0
    %v531 = vadd.f32 %v384, %v530
    %v532 = vpop.f32.mrf.mxu0
    %v533 = vadd.f32 %v388, %v532
    %534 = vdwg.mxu0
    %v536 = vrot.slane %v460, 7
    %537 = vrot.lane.b32.xlu0 %v536, 64
    %v538 = vpop.permute.xlu0 %537
    %v541 = vrot.slane %v462, 6
    %v543 = vrot.slane %v462, 5
    %544 = vrot.lane.b32.xlu0 %v543, 64
    %v545 = vpop.permute.xlu0 %544
    %v548 = vrot.slane %v531, 4
    %v550 = vrot.slane %v531, 3
    %551 = vrot.lane.b32.xlu0 %v550, 64
    %v552 = vpop.permute.xlu0 %551
    %v555 = vrot.slane %v533, 2
    %v557 = vrot.slane %v533, 1
    %558 = vrot.lane.b32.xlu0 %v557, 64
    %v559 = vpop.permute.xlu0 %558
    %v561 = vrot.slane %v460, 1
    %563 = vrot.lane.b32.xlu0 %v460, 64
    %v564 = vpop.permute.xlu0 %563
    %v566 = vrot.slane %v462, 7
    %568 = vrot.lane.b32.xlu0 %v541, 64
    %v569 = vpop.permute.xlu0 %568
    %v571 = vrot.slane %v531, 5
    %573 = vrot.lane.b32.xlu0 %v548, 64
    %v574 = vpop.permute.xlu0 %573
    %v576 = vrot.slane %v533, 3
    %vm578 = vcmask 1040384
    %v579 = vsel %vm578, %v460, %v538
    %vm580 = vcmask 1041408
    %v581 = vsel %vm580, %v579, %v541
    %vm582 = vcmask 1042432
    %v583 = vsel %vm582, %v581, %v545
    %vm584 = vcmask 1043456
    %v585 = vsel %vm584, %v583, %v548
    %vm586 = vcmask 1044480
    %v587 = vsel %vm586, %v585, %v552
    %vm588 = vcmask 1045504
    %v589 = vsel %vm588, %v587, %v555
    %vm590 = vcmask 1046528
    %v591 = vsel %vm590, %v589, %v559
    %v592 = vsel %vm578, %v561, %v564
    %v593 = vsel %vm580, %v592, %v566
    %v594 = vsel %vm582, %v593, %v569
    %v595 = vsel %vm584, %v594, %v571
    %v596 = vsel %vm586, %v595, %v574
    %v597 = vsel %vm588, %v596, %v576
    %v600 = vrot.slane %v140, 7
    %601 = vrot.lane.b32.xlu0 %v600, 64
    %v602 = vpop.permute.xlu0 %601
    %v604 = vsel %vm578, %v557, %v602
    %v606 = vrot.slane %v604, 1
    %v607 = vrot.slane %v602, 1
    %v608 = vsel %vm590, %v606, %v607
    %609 = vrot.lane.b32.xlu0 %v606, 64
    %v610 = vpop.permute.xlu0 %609
    %611 = vrot.lane.b32.xlu0 %v608, 64
    %v612 = vpop.permute.xlu0 %611
    %v615 = vsel %vm590, %v597, %v610
    %v616 = vadd.f32 %v591, %v46
    %v617 = vadd.f32 %v135, %v47
    %v618 = vadd.f32 %v615, %v48
    %v619 = vadd.f32 %v612, %v49
    %v620 = vlaneseq
    %v621 = vshrl.u32 %v620, 7
    %v622 = vadd.s32 %v621, 8
    %vm623 = vcmp.le.s32.totalorder %v55, %v621
    %vm624 = vcmp.le.s32.totalorder %v55, %v622
    %v625 = vld [vmem:[%s6] sm:$0xff]
    %v626 = vld [vmem:[%s6 + $0x8] sm:$0xff]
    %v627 = vld [vmem:[%s6 + $0x10] sm:$0xff]
    %v628 = vld [vmem:[%s6 + $0x18] sm:$0xff]
    %v629 = vld [vmem:[%s6 + $0x20] sm:$0xff]
    %v630 = vld [vmem:[%s6 + $0x28] sm:$0xff]
    %v631 = vld [vmem:[%s6 + $0x30] sm:$0xff]
    %v632 = vld [vmem:[%s6 + $0x38] sm:$0xff]
    %v633 = vld [vmem:[%s6 + $0x40] sm:$0xff]
    %v634 = vld [vmem:[%s6 + $0x48] sm:$0xff]
    %v635 = vld [vmem:[%s6 + $0x50] sm:$0xff]
    %v636 = vld [vmem:[%s6 + $0x58] sm:$0xff]
    %v637 = vld [vmem:[%s6 + $0x60] sm:$0xff]
    %v638 = vld [vmem:[%s6 + $0x68] sm:$0xff]
    %v639 = vld [vmem:[%s6 + $0x70] sm:$0xff]
    %v640 = vld [vmem:[%s6 + $0x78] sm:$0xff]
    %v641 = vld [vmem:[%s6 + $0x80] sm:$0xff]
    %v642 = vld [vmem:[%s6 + $0x88] sm:$0xff]
    %v643 = vld [vmem:[%s6 + $0x90] sm:$0xff]
    %v644 = vld [vmem:[%s6 + $0x98] sm:$0xff]
    %v645 = vld [vmem:[%s6 + $0xa0] sm:$0xff]
    %v646 = vld [vmem:[%s6 + $0xa8] sm:$0xff]
    %v647 = vld [vmem:[%s6 + $0xb0] sm:$0xff]
    %v648 = vld [vmem:[%s6 + $0xb8] sm:$0xff]
    %v649 = vld [vmem:[%s6 + $0xc0] sm:$0xff]
    %v650 = vld [vmem:[%s6 + $0xc8] sm:$0xff]
    %v651 = vld [vmem:[%s6 + $0xd0] sm:$0xff]
    %v652 = vld [vmem:[%s6 + $0xd8] sm:$0xff]
    %v653 = vld [vmem:[%s6 + $0xe0] sm:$0xff]
    %v654 = vld [vmem:[%s6 + $0xe8] sm:$0xff]
    %v655 = vld [vmem:[%s6 + $0xf0] sm:$0xff]
    %v656 = vld [vmem:[%s6 + $0xf8] sm:$0xff]
    %v657 = vld [vmem:[%s6 + $0x100] sm:$0xff]
    %v658 = vld [vmem:[%s6 + $0x108] sm:$0xff]
    %v659 = vld [vmem:[%s6 + $0x110] sm:$0xff]
    %v660 = vld [vmem:[%s6 + $0x118] sm:$0xff]
    %v661 = vld [vmem:[%s6 + $0x120] sm:$0xff]
    %v662 = vld [vmem:[%s6 + $0x128] sm:$0xff]
    %v663 = vld [vmem:[%s6 + $0x130] sm:$0xff]
    %v664 = vld [vmem:[%s6 + $0x138] sm:$0xff]
    %v665 = vld [vmem:[%s6 + $0x140] sm:$0xff]
    %v666 = vld [vmem:[%s6 + $0x148] sm:$0xff]
    %v667 = vld [vmem:[%s6 + $0x150] sm:$0xff]
    %v668 = vld [vmem:[%s6 + $0x158] sm:$0xff]
    %v669 = vld [vmem:[%s6 + $0x160] sm:$0xff]
    %v670 = vld [vmem:[%s6 + $0x168] sm:$0xff]
    %v671 = vld [vmem:[%s6 + $0x170] sm:$0xff]
    %v672 = vld [vmem:[%s6 + $0x178] sm:$0xff]
    %v673 = vld [vmem:[%s6 + $0x180] sm:$0xff]
    %v674 = vld [vmem:[%s6 + $0x188] sm:$0xff]
    %v675 = vld [vmem:[%s6 + $0x190] sm:$0xff]
    %v676 = vld [vmem:[%s6 + $0x198] sm:$0xff]
    %v677 = vld [vmem:[%s6 + $0x1a0] sm:$0xff]
    %v678 = vld [vmem:[%s6 + $0x1a8] sm:$0xff]
    %v679 = vld [vmem:[%s6 + $0x1b0] sm:$0xff]
    %v680 = vld [vmem:[%s6 + $0x1b8] sm:$0xff]
    %v681 = vld [vmem:[%s6 + $0x1c0] sm:$0xff]
    %v682 = vld [vmem:[%s6 + $0x1c8] sm:$0xff]
    %v683 = vld [vmem:[%s6 + $0x1d0] sm:$0xff]
    %v684 = vld [vmem:[%s6 + $0x1d8] sm:$0xff]
    %v685 = vld [vmem:[%s6 + $0x1e0] sm:$0xff]
    %v686 = vld [vmem:[%s6 + $0x1e8] sm:$0xff]
    %v687 = vld [vmem:[%s6 + $0x1f0] sm:$0xff]
    %v688 = vld [vmem:[%s6 + $0x1f8] sm:$0xff]
    %v689 = vld [vmem:[%s6 + $0x200] sm:$0x1]
    %v690 = vld [vmem:[%s6 + $0x201] sm:$0x1]
    %v691 = vld [vmem:[%s6 + $0x202] sm:$0x1]
    %v692 = vld [vmem:[%s6 + $0x203] sm:$0x1]
    %v693 = vld [vmem:[%s6 + $0x204] sm:$0x1]
    %v694 = vld [vmem:[%s6 + $0x205] sm:$0x1]
    %v695 = vld [vmem:[%s6 + $0x206] sm:$0x1]
    %v696 = vld [vmem:[%s6 + $0x207] sm:$0x1]
    %v697 = vld [vmem:[%s6 + $0x208] sm:$0x1]
    %v698 = vld [vmem:[%s7] sm:$0xff]
    %v699 = vld [vmem:[%s7 + $0x8] sm:$0xff]
    %v700 = vld [vmem:[%s7 + $0x10] sm:$0xff]
    %v701 = vld [vmem:[%s7 + $0x18] sm:$0xff]
    %v702 = vld [vmem:[%s7 + $0x20] sm:$0xff]
    %v703 = vld [vmem:[%s7 + $0x28] sm:$0xff]
    %v704 = vld [vmem:[%s7 + $0x30] sm:$0xff]
    %v705 = vld [vmem:[%s7 + $0x38] sm:$0xff]
    %v706 = vld [vmem:[%s7 + $0x40] sm:$0xff]
    %v707 = vld [vmem:[%s7 + $0x48] sm:$0xff]
    %v708 = vld [vmem:[%s7 + $0x50] sm:$0xff]
    %v709 = vld [vmem:[%s7 + $0x58] sm:$0xff]
    %v710 = vld [vmem:[%s7 + $0x60] sm:$0xff]
    %v711 = vld [vmem:[%s7 + $0x68] sm:$0xff]
    %v712 = vld [vmem:[%s7 + $0x70] sm:$0xff]
    %v713 = vld [vmem:[%s7 + $0x78] sm:$0xff]
    %s714 = scalar_lea.vmem %s7, 128
    %v715 = vld [vmem:[%s714] ss:$8 sm:$0x3]
    %vm716 = vcmask 523264
    %v717 = vsel %vm716, %v616, 0.0
    %718 = vadd.xlane.f32.xlu0 %v717
    %v719 = vpop.xlane.xlu0 %718
    %v720 = vsel %vm716, %v617, 0.0
    %721 = vadd.xlane.f32.xlu0 %v720
    %v722 = vpop.xlane.xlu0 %721
    %v723 = vsel %vm716, %v618, 0.0
    %724 = vadd.xlane.f32.xlu0 %v723
    %v725 = vpop.xlane.xlu0 %724
    %v726 = vsel %vm716, %v619, 0.0
    %727 = vadd.xlane.f32.xlu0 %v726
    %v728 = vpop.xlane.xlu0 %727
    %v729 = vrcp.pop 64.0
    %v730 = vmul.f32 %v719, %v729
    %v731 = vmul.f32 %v722, %v729
    %v732 = vmul.f32 %v725, %v729
    %v733 = vmul.f32 %v728, %v729
    %v734 = vsub.f32 %v616, %v730
    %v735 = vsub.f32 %v617, %v731
    %v736 = vsub.f32 %v618, %v732
    %v737 = vsub.f32 %v619, %v733
    %v738 = vmul.f32 %v734, %v734
    %v739 = vmul.f32 %v735, %v735
    %v740 = vmul.f32 %v736, %v736
    %v741 = vmul.f32 %v737, %v737
    %v742 = vsel %vm716, %v738, 0.0
    %743 = vadd.xlane.f32.xlu0 %v742
    %v744 = vpop.xlane.xlu0 %743
    %v745 = vsel %vm716, %v739, 0.0
    %746 = vadd.xlane.f32.xlu0 %v745
    %v747 = vpop.xlane.xlu0 %746
    %v748 = vsel %vm716, %v740, 0.0
    %749 = vadd.xlane.f32.xlu0 %v748
    %v750 = vpop.xlane.xlu0 %749
    %v751 = vsel %vm716, %v741, 0.0
    %752 = vadd.xlane.f32.xlu0 %v751
    %v753 = vpop.xlane.xlu0 %752
    %v754 = vmul.f32 %v744, %v729
    %v755 = vmul.f32 %v747, %v729
    %v756 = vmul.f32 %v750, %v729
    %v757 = vmul.f32 %v753, %v729
    %v758 = vadd.f32 %v754, 1e-05
    %v759 = vadd.f32 %v755, 1e-05
    %v760 = vadd.f32 %v756, 1e-05
    %v761 = vadd.f32 %v757, 1e-05
    %v762 = vrsqrt.pop %v758
    %v763 = vrsqrt.pop %v759
    %v764 = vrsqrt.pop %v760
    %v765 = vrsqrt.pop %v761
    %v766 = vmul.f32 %v734, %v762
    %v767 = vmul.f32 %v735, %v763
    %v768 = vmul.f32 %v736, %v764
    %v769 = vmul.f32 %v737, %v765
    %v770 = vlaneseq
    %v771 = vshrl.u32 %v770, 7
    %v772 = vsub.s32 0, %v771
    %v773 = vrot.slane %v689, %v772
    %v774 = vmul.f32 %v766, %v773
    %v775 = vmul.f32 %v767, %v773
    %v776 = vmul.f32 %v768, %v773
    %v777 = vmul.f32 %v769, %v773
    %v778 = vlaneseq
    %v779 = vshrl.u32 %v778, 7
    %v780 = vsub.s32 0, %v779
    %v781 = vrot.slane %v690, %v780
    %v782 = vadd.f32 %v774, %v781
    %v783 = vadd.f32 %v775, %v781
    %v784 = vadd.f32 %v776, %v781
    %v785 = vadd.f32 %v777, %v781
    %v786 = vlaneseq
    %v787 = vshrl.u32 %v786, 7
    %v788 = vsub.s32 0, %v787
    %v789 = vrot.slane %v693, %v788
    %v791 = vsel %vm716, %v782, 0
    %v794 = vsel %vm716, %v783, 0
    %v797 = vsel %vm716, %v784, 0
    %v800 = vsel %vm716, %v785, 0
    %802 = vmatprep.subr.mxu0 0.0
    %803 = vmatpush1.msra.mxu0 0.0
    %804 = vmatprep.subr.mxu0 0.0
    %805 = vmatpush1.msra.mxu0 0.0
    %806 = vmatprep.subr.mxu0 0.0
    %807 = vmatpush1.msra.mxu0 0.0
    %808 = vmatprep.subr.mxu0 0.0
    %809 = vmatpush1.msra.mxu0 0.0
    %810 = vmatprep.subr.mxu0 0.0
    %811 = vmatpush1.msra.mxu0 0.0
    %812 = vmatprep.subr.mxu0 0.0
    %813 = vmatpush1.msra.mxu0 0.0
    %814 = vmatprep.subr.mxu0 0.0
    %815 = vmatpush1.msra.mxu0 0.0
    %816 = vmatprep.subr.mxu0 0.0
    %817 = vmatpush1.msra.mxu0 0.0
    %818 = vmatprep.subr.mxu0 0.0
    %819 = vmatpush1.msra.mxu0 %v632
    %820 = vmatprep.subr.mxu0 0.0
    %821 = vmatpush1.msra.mxu0 %v631
    %822 = vmatprep.subr.mxu0 0.0
    %823 = vmatpush1.msra.mxu0 %v630
    %824 = vmatprep.subr.mxu0 0.0
    %825 = vmatpush1.msra.mxu0 %v629
    %826 = vmatprep.subr.mxu0 0.0
    %827 = vmatpush1.msra.mxu0 %v628
    %828 = vmatprep.subr.mxu0 0.0
    %829 = vmatpush1.msra.mxu0 %v627
    %830 = vmatprep.subr.mxu0 0.0
    %831 = vmatpush1.msra.mxu0 %v626
    %832 = vmatprep.subr.mxu0 0.0
    %833 = vmatpush1.msra.mxu0 %v625
    %834 = vmatprep.subr.mxu0 0.0
    %835 = vmatpush2.msra.mxu0 0.0
    %836 = vmatprep.subr.mxu0 0.0
    %837 = vmatpush2.msra.mxu0 0.0
    %838 = vmatprep.subr.mxu0 0.0
    %839 = vmatpush2.msra.mxu0 0.0
    %840 = vmatprep.subr.mxu0 0.0
    %841 = vmatpush2.msra.mxu0 0.0
    %842 = vmatprep.subr.mxu0 0.0
    %843 = vmatpush2.msra.mxu0 0.0
    %844 = vmatprep.subr.mxu0 0.0
    %845 = vmatpush2.msra.mxu0 0.0
    %846 = vmatprep.subr.mxu0 0.0
    %847 = vmatpush2.msra.mxu0 0.0
    %848 = vmatprep.subr.mxu0 0.0
    %849 = vmatpush2.msra.mxu0 0.0
    %850 = vmatprep.subr.mxu0 0.0
    %851 = vmatpush2.msra.mxu0 0.0
    %852 = vmatprep.subr.mxu0 0.0
    %853 = vmatpush2.msra.mxu0 0.0
    %854 = vmatprep.subr.mxu0 0.0
    %855 = vmatpush2.msra.mxu0 0.0
    %856 = vmatprep.subr.mxu0 0.0
    %857 = vmatpush2.msra.mxu0 0.0
    %858 = vmatprep.subr.mxu0 0.0
    %859 = vmatpush2.msra.mxu0 0.0
    %860 = vmatprep.subr.mxu0 0.0
    %861 = vmatpush2.msra.mxu0 0.0
    %862 = vmatprep.subr.mxu0 0.0
    %863 = vmatpush2.msra.mxu0 0.0
    %864 = vmatprep.subr.mxu0 0.0
    %865 = vmatpush2.msra.mxu0 0.0
    %866 = vmatprep.mubr.f32.mxu0 0.0
    %867 = vmatmul.mubr.f32.gmra.mxu0 %v791
    %v868 = vpop.f32.mrf.mxu0
    %v869 = vadd.f32 %v789, %v868
    %v870 = vpop.f32.mrf.mxu0
    %871 = vmatprep.mubr.f32.mxu0 0.0
    %872 = vmatmul.mubr.f32.gmra.mxu0 %v794
    %v873 = vpop.f32.mrf.mxu0
    %v874 = vadd.f32 %v789, %v873
    %v875 = vpop.f32.mrf.mxu0
    %876 = vmatprep.mubr.f32.mxu0 0.0
    %877 = vmatmul.mubr.f32.gmra.mxu0 %v797
    %v878 = vpop.f32.mrf.mxu0
    %v879 = vadd.f32 %v789, %v878
    %v880 = vpop.f32.mrf.mxu0
    %881 = vmatprep.mubr.f32.mxu0 0.0
    %882 = vmatmul.mubr.f32.gmra.mxu0 %v800
    %v883 = vpop.f32.mrf.mxu0
    %v884 = vadd.f32 %v789, %v883
    %v885 = vpop.f32.mrf.mxu0
    %886 = vdwg.mxu0
    %v887 = vlaneseq
    %v888 = vshrl.u32 %v887, 7
    %v889 = vsub.s32 0, %v888
    %v890 = vrot.slane %v694, %v889
    %891 = vmatprep.subr.mxu0 0.0
    %892 = vmatpush1.msra.mxu0 0.0
    %893 = vmatprep.subr.mxu0 0.0
    %894 = vmatpush1.msra.mxu0 0.0
    %895 = vmatprep.subr.mxu0 0.0
    %896 = vmatpush1.msra.mxu0 0.0
    %897 = vmatprep.subr.mxu0 0.0
    %898 = vmatpush1.msra.mxu0 0.0
    %899 = vmatprep.subr.mxu0 0.0
    %900 = vmatpush1.msra.mxu0 0.0
    %901 = vmatprep.subr.mxu0 0.0
    %902 = vmatpush1.msra.mxu0 0.0
    %903 = vmatprep.subr.mxu0 0.0
    %904 = vmatpush1.msra.mxu0 0.0
    %905 = vmatprep.subr.mxu0 0.0
    %906 = vmatpush1.msra.mxu0 0.0
    %907 = vmatprep.subr.mxu0 0.0
    %908 = vmatpush1.msra.mxu0 %v640
    %909 = vmatprep.subr.mxu0 0.0
    %910 = vmatpush1.msra.mxu0 %v639
    %911 = vmatprep.subr.mxu0 0.0
    %912 = vmatpush1.msra.mxu0 %v638
    %913 = vmatprep.subr.mxu0 0.0
    %914 = vmatpush1.msra.mxu0 %v637
    %915 = vmatprep.subr.mxu0 0.0
    %916 = vmatpush1.msra.mxu0 %v636
    %917 = vmatprep.subr.mxu0 0.0
    %918 = vmatpush1.msra.mxu0 %v635
    %919 = vmatprep.subr.mxu0 0.0
    %920 = vmatpush1.msra.mxu0 %v634
    %921 = vmatprep.subr.mxu0 0.0
    %922 = vmatpush1.msra.mxu0 %v633
    %923 = vmatprep.subr.mxu0 0.0
    %924 = vmatpush2.msra.mxu0 0.0
    %925 = vmatprep.subr.mxu0 0.0
    %926 = vmatpush2.msra.mxu0 0.0
    %927 = vmatprep.subr.mxu0 0.0
    %928 = vmatpush2.msra.mxu0 0.0
    %929 = vmatprep.subr.mxu0 0.0
    %930 = vmatpush2.msra.mxu0 0.0
    %931 = vmatprep.subr.mxu0 0.0
    %932 = vmatpush2.msra.mxu0 0.0
    %933 = vmatprep.subr.mxu0 0.0
    %934 = vmatpush2.msra.mxu0 0.0
    %935 = vmatprep.subr.mxu0 0.0
    %936 = vmatpush2.msra.mxu0 0.0
    %937 = vmatprep.subr.mxu0 0.0
    %938 = vmatpush2.msra.mxu0 0.0
    %939 = vmatprep.subr.mxu0 0.0
    %940 = vmatpush2.msra.mxu0 0.0
    %941 = vmatprep.subr.mxu0 0.0
    %942 = vmatpush2.msra.mxu0 0.0
    %943 = vmatprep.subr.mxu0 0.0
    %944 = vmatpush2.msra.mxu0 0.0
    %945 = vmatprep.subr.mxu0 0.0
    %946 = vmatpush2.msra.mxu0 0.0
    %947 = vmatprep.subr.mxu0 0.0
    %948 = vmatpush2.msra.mxu0 0.0
    %949 = vmatprep.subr.mxu0 0.0
    %950 = vmatpush2.msra.mxu0 0.0
    %951 = vmatprep.subr.mxu0 0.0
    %952 = vmatpush2.msra.mxu0 0.0
    %953 = vmatprep.subr.mxu0 0.0
    %954 = vmatpush2.msra.mxu0 0.0
    %955 = vmatprep.mubr.f32.mxu0 0.0
    %956 = vmatmul.mubr.f32.gmra.mxu0 %v791
    %v957 = vpop.f32.mrf.mxu0
    %v958 = vadd.f32 %v890, %v957
    %v959 = vpop.f32.mrf.mxu0
    %960 = vmatprep.mubr.f32.mxu0 0.0
    %961 = vmatmul.mubr.f32.gmra.mxu0 %v794
    %v962 = vpop.f32.mrf.mxu0
    %v963 = vadd.f32 %v890, %v962
    %v964 = vpop.f32.mrf.mxu0
    %965 = vmatprep.mubr.f32.mxu0 0.0
    %966 = vmatmul.mubr.f32.gmra.mxu0 %v797
    %v967 = vpop.f32.mrf.mxu0
    %v968 = vadd.f32 %v890, %v967
    %v969 = vpop.f32.mrf.mxu0
    %970 = vmatprep.mubr.f32.mxu0 0.0
    %971 = vmatmul.mubr.f32.gmra.mxu0 %v800
    %v972 = vpop.f32.mrf.mxu0
    %v973 = vadd.f32 %v890, %v972
    %v974 = vpop.f32.mrf.mxu0
    %975 = vdwg.mxu0
    %v976 = vlaneseq
    %v977 = vshrl.u32 %v976, 7
    %v978 = vsub.s32 0, %v977
    %v979 = vrot.slane %v695, %v978
    %980 = vmatprep.subr.mxu0 0.0
    %981 = vmatpush1.msra.mxu0 0.0
    %982 = vmatprep.subr.mxu0 0.0
    %983 = vmatpush1.msra.mxu0 0.0
    %984 = vmatprep.subr.mxu0 0.0
    %985 = vmatpush1.msra.mxu0 0.0
    %986 = vmatprep.subr.mxu0 0.0
    %987 = vmatpush1.msra.mxu0 0.0
    %988 = vmatprep.subr.mxu0 0.0
    %989 = vmatpush1.msra.mxu0 0.0
    %990 = vmatprep.subr.mxu0 0.0
    %991 = vmatpush1.msra.mxu0 0.0
    %992 = vmatprep.subr.mxu0 0.0
    %993 = vmatpush1.msra.mxu0 0.0
    %994 = vmatprep.subr.mxu0 0.0
    %995 = vmatpush1.msra.mxu0 0.0
    %996 = vmatprep.subr.mxu0 0.0
    %997 = vmatpush1.msra.mxu0 %v648
    %998 = vmatprep.subr.mxu0 0.0
    %999 = vmatpush1.msra.mxu0 %v647
    %1000 = vmatprep.subr.mxu0 0.0
    %1001 = vmatpush1.msra.mxu0 %v646
    %1002 = vmatprep.subr.mxu0 0.0
    %1003 = vmatpush1.msra.mxu0 %v645
    %1004 = vmatprep.subr.mxu0 0.0
    %1005 = vmatpush1.msra.mxu0 %v644
    %1006 = vmatprep.subr.mxu0 0.0
    %1007 = vmatpush1.msra.mxu0 %v643
    %1008 = vmatprep.subr.mxu0 0.0
    %1009 = vmatpush1.msra.mxu0 %v642
    %1010 = vmatprep.subr.mxu0 0.0
    %1011 = vmatpush1.msra.mxu0 %v641
    %1012 = vmatprep.subr.mxu0 0.0
    %1013 = vmatpush2.msra.mxu0 0.0
    %1014 = vmatprep.subr.mxu0 0.0
    %1015 = vmatpush2.msra.mxu0 0.0
    %1016 = vmatprep.subr.mxu0 0.0
    %1017 = vmatpush2.msra.mxu0 0.0
    %1018 = vmatprep.subr.mxu0 0.0
    %1019 = vmatpush2.msra.mxu0 0.0
    %1020 = vmatprep.subr.mxu0 0.0
    %1021 = vmatpush2.msra.mxu0 0.0
    %1022 = vmatprep.subr.mxu0 0.0
    %1023 = vmatpush2.msra.mxu0 0.0
    %1024 = vmatprep.subr.mxu0 0.0
    %1025 = vmatpush2.msra.mxu0 0.0
    %1026 = vmatprep.subr.mxu0 0.0
    %1027 = vmatpush2.msra.mxu0 0.0
    %1028 = vmatprep.subr.mxu0 0.0
    %1029 = vmatpush2.msra.mxu0 0.0
    %1030 = vmatprep.subr.mxu0 0.0
    %1031 = vmatpush2.msra.mxu0 0.0
    %1032 = vmatprep.subr.mxu0 0.0
    %1033 = vmatpush2.msra.mxu0 0.0
    %1034 = vmatprep.subr.mxu0 0.0
    %1035 = vmatpush2.msra.mxu0 0.0
    %1036 = vmatprep.subr.mxu0 0.0
    %1037 = vmatpush2.msra.mxu0 0.0
    %1038 = vmatprep.subr.mxu0 0.0
    %1039 = vmatpush2.msra.mxu0 0.0
    %1040 = vmatprep.subr.mxu0 0.0
    %1041 = vmatpush2.msra.mxu0 0.0
    %1042 = vmatprep.subr.mxu0 0.0
    %1043 = vmatpush2.msra.mxu0 0.0
    %1044 = vmatprep.mubr.f32.mxu0 0.0
    %1045 = vmatmul.mubr.f32.gmra.mxu0 %v791
    %v1046 = vpop.f32.mrf.mxu0
    %v1047 = vadd.f32 %v979, %v1046
    %v1048 = vpop.f32.mrf.mxu0
    %1049 = vmatprep.mubr.f32.mxu0 0.0
    %1050 = vmatmul.mubr.f32.gmra.mxu0 %v794
    %v1051 = vpop.f32.mrf.mxu0
    %v1052 = vadd.f32 %v979, %v1051
    %v1053 = vpop.f32.mrf.mxu0
    %1054 = vmatprep.mubr.f32.mxu0 0.0
    %1055 = vmatmul.mubr.f32.gmra.mxu0 %v797
    %v1056 = vpop.f32.mrf.mxu0
    %v1057 = vadd.f32 %v979, %v1056
    %v1058 = vpop.f32.mrf.mxu0
    %1059 = vmatprep.mubr.f32.mxu0 0.0
    %1060 = vmatmul.mubr.f32.gmra.mxu0 %v800
    %v1061 = vpop.f32.mrf.mxu0
    %v1062 = vadd.f32 %v979, %v1061
    %v1063 = vpop.f32.mrf.mxu0
    %1064 = vdwg.mxu0
    %vm1065 = vcmask 130048
    %v1067 = vsel %vm1065, %v869, 0
    %v1070 = vsel %vm1065, %v874, 0
    %v1073 = vsel %vm1065, %v958, 0
    %v1076 = vsel %vm1065, %v963, 0
    %1078 = vmatprep.subr.mxu0 0.0
    %1079 = vmatpush1.xpose.msra.mxu0 0.0
    %1080 = vmatprep.subr.mxu0 0.0
    %1081 = vmatpush1.xpose.msra.mxu0 0.0
    %1082 = vmatprep.subr.mxu0 0.0
    %1083 = vmatpush1.xpose.msra.mxu0 0.0
    %1084 = vmatprep.subr.mxu0 0.0
    %1085 = vmatpush1.xpose.msra.mxu0 0.0
    %1086 = vmatprep.subr.mxu0 0.0
    %1087 = vmatpush1.xpose.msra.mxu0 0.0
    %1088 = vmatprep.subr.mxu0 0.0
    %1089 = vmatpush1.xpose.msra.mxu0 0.0
    %1090 = vmatprep.subr.mxu0 0.0
    %1091 = vmatpush1.xpose.msra.mxu0 0.0
    %1092 = vmatprep.subr.mxu0 0.0
    %1093 = vmatpush1.xpose.msra.mxu0 0.0
    %1094 = vmatprep.subr.mxu0 0.0
    %1095 = vmatpush1.xpose.msra.mxu0 0.0
    %1096 = vmatprep.subr.mxu0 0.0
    %1097 = vmatpush1.xpose.msra.mxu0 0.0
    %1098 = vmatprep.subr.mxu0 0.0
    %1099 = vmatpush1.xpose.msra.mxu0 0.0
    %1100 = vmatprep.subr.mxu0 0.0
    %1101 = vmatpush1.xpose.msra.mxu0 0.0
    %1102 = vmatprep.subr.mxu0 0.0
    %1103 = vmatpush1.xpose.msra.mxu0 0.0
    %1104 = vmatprep.subr.mxu0 0.0
    %1105 = vmatpush1.xpose.msra.mxu0 0.0
    %1106 = vmatprep.subr.mxu0 0.0
    %1107 = vmatpush1.xpose.msra.mxu0 %v1076
    %1108 = vmatprep.subr.mxu0 0.0
    %1109 = vmatpush1.xpose.msra.mxu0 %v1073
    %1110 = vmatprep.subr.mxu0 0.0
    %1111 = vmatpush2.xpose.msra.mxu0 0.0
    %1112 = vmatprep.subr.mxu0 0.0
    %1113 = vmatpush2.xpose.msra.mxu0 0.0
    %1114 = vmatprep.subr.mxu0 0.0
    %1115 = vmatpush2.xpose.msra.mxu0 0.0
    %1116 = vmatprep.subr.mxu0 0.0
    %1117 = vmatpush2.xpose.msra.mxu0 0.0
    %1118 = vmatprep.subr.mxu0 0.0
    %1119 = vmatpush2.xpose.msra.mxu0 0.0
    %1120 = vmatprep.subr.mxu0 0.0
    %1121 = vmatpush2.xpose.msra.mxu0 0.0
    %1122 = vmatprep.subr.mxu0 0.0
    %1123 = vmatpush2.xpose.msra.mxu0 0.0
    %1124 = vmatprep.subr.mxu0 0.0
    %1125 = vmatpush2.xpose.msra.mxu0 0.0
    %1126 = vmatprep.subr.mxu0 0.0
    %1127 = vmatpush2.xpose.msra.mxu0 0.0
    %1128 = vmatprep.subr.mxu0 0.0
    %1129 = vmatpush2.xpose.msra.mxu0 0.0
    %1130 = vmatprep.subr.mxu0 0.0
    %1131 = vmatpush2.xpose.msra.mxu0 0.0
    %1132 = vmatprep.subr.mxu0 0.0
    %1133 = vmatpush2.xpose.msra.mxu0 0.0
    %1134 = vmatprep.subr.mxu0 0.0
    %1135 = vmatpush2.xpose.msra.mxu0 0.0
    %1136 = vmatprep.subr.mxu0 0.0
    %1137 = vmatpush2.xpose.msra.mxu0 0.0
    %1138 = vmatprep.subr.mxu0 0.0
    %1139 = vmatpush2.xpose.msra.mxu0 0.0
    %1140 = vmatprep.subr.mxu0 0.0
    %1141 = vmatpush2.xpose.msra.mxu0 0.0
    %1142 = vmatprep.mubr.f32.mxu0 0.0
    %1143 = vmatmul.mubr.f32.gmra.mxu0 %v1067
    %v1144 = vpop.f32.mrf.mxu0
    %v1145 = vadd.f32 0.0, %v1144
    %v1146 = vpop.f32.mrf.mxu0
    %1147 = vmatprep.mubr.f32.mxu0 0.0
    %1148 = vmatmul.mubr.f32.gmra.mxu0 %v1070
    %v1149 = vpop.f32.mrf.mxu0
    %v1150 = vadd.f32 0.0, %v1149
    %v1151 = vpop.f32.mrf.mxu0
    %1152 = vdwg.mxu0
    %v1153 = vmul.f32 %v1145, 0.25
    %v1154 = vmul.f32 %v1150, 0.25
    %v1155 = vsel %vm623, %v1153, -1e+30
    %v1156 = vsel %vm624, %v1154, -1e+30
    %v1157 = vsel %vm1065, %v1155, -inf
    %1158 = vmax.xlane.f32.xlu0 %v1157
    %v1159 = vpop.xlane.xlu0 %1158
    %v1160 = vsel %vm1065, %v1156, -inf
    %1161 = vmax.xlane.f32.xlu0 %v1160
    %v1162 = vpop.xlane.xlu0 %1161
    %v1163 = vsub.f32 %v1155, %v1159
    %v1164 = vsub.f32 %v1156, %v1162
    %v1165 = vmul.f32 %v1163, 1.442695
    %v1166 = vpow.pop %v1165
    %v1167 = vmul.f32 %v1164, 1.442695
    %v1168 = vpow.pop %v1167
    %v1169 = vsel %vm1065, %v1166, 0.0
    %1170 = vadd.xlane.f32.xlu0 %v1169
    %v1171 = vpop.xlane.xlu0 %1170
    %v1172 = vsel %vm1065, %v1168, 0.0
    %1173 = vadd.xlane.f32.xlu0 %v1172
    %v1174 = vpop.xlane.xlu0 %1173
    %v1175 = vrcp.pop %v1171
    %v1176 = vrcp.pop %v1174
    %v1177 = vmul.f32 %v1166, %v1175
    %v1178 = vmul.f32 %v1168, %v1176
    %v1180 = vsel %vm1065, %v1177, 0
    %v1183 = vsel %vm1065, %v1178, 0
    %1185 = vmatprep.subr.mxu0 0.0
    %1186 = vmatpush1.msra.mxu0 0.0
    %1187 = vmatprep.subr.mxu0 0.0
    %1188 = vmatpush1.msra.mxu0 0.0
    %1189 = vmatprep.subr.mxu0 0.0
    %1190 = vmatpush1.msra.mxu0 0.0
    %1191 = vmatprep.subr.mxu0 0.0
    %1192 = vmatpush1.msra.mxu0 0.0
    %1193 = vmatprep.subr.mxu0 0.0
    %1194 = vmatpush1.msra.mxu0 0.0
    %1195 = vmatprep.subr.mxu0 0.0
    %1196 = vmatpush1.msra.mxu0 0.0
    %1197 = vmatprep.subr.mxu0 0.0
    %1198 = vmatpush1.msra.mxu0 0.0
    %1199 = vmatprep.subr.mxu0 0.0
    %1200 = vmatpush1.msra.mxu0 0.0
    %1201 = vmatprep.subr.mxu0 0.0
    %1202 = vmatpush1.msra.mxu0 0.0
    %1203 = vmatprep.subr.mxu0 0.0
    %1204 = vmatpush1.msra.mxu0 0.0
    %1205 = vmatprep.subr.mxu0 0.0
    %1206 = vmatpush1.msra.mxu0 0.0
    %1207 = vmatprep.subr.mxu0 0.0
    %1208 = vmatpush1.msra.mxu0 0.0
    %1209 = vmatprep.subr.mxu0 0.0
    %1210 = vmatpush1.msra.mxu0 0.0
    %1211 = vmatprep.subr.mxu0 0.0
    %1212 = vmatpush1.msra.mxu0 0.0
    %1213 = vmatprep.subr.mxu0 0.0
    %1214 = vmatpush1.msra.mxu0 %v1052
    %1215 = vmatprep.subr.mxu0 0.0
    %1216 = vmatpush1.msra.mxu0 %v1047
    %1217 = vmatprep.subr.mxu0 0.0
    %1218 = vmatpush2.msra.mxu0 0.0
    %1219 = vmatprep.subr.mxu0 0.0
    %1220 = vmatpush2.msra.mxu0 0.0
    %1221 = vmatprep.subr.mxu0 0.0
    %1222 = vmatpush2.msra.mxu0 0.0
    %1223 = vmatprep.subr.mxu0 0.0
    %1224 = vmatpush2.msra.mxu0 0.0
    %1225 = vmatprep.subr.mxu0 0.0
    %1226 = vmatpush2.msra.mxu0 0.0
    %1227 = vmatprep.subr.mxu0 0.0
    %1228 = vmatpush2.msra.mxu0 0.0
    %1229 = vmatprep.subr.mxu0 0.0
    %1230 = vmatpush2.msra.mxu0 0.0
    %1231 = vmatprep.subr.mxu0 0.0
    %1232 = vmatpush2.msra.mxu0 0.0
    %1233 = vmatprep.subr.mxu0 0.0
    %1234 = vmatpush2.msra.mxu0 0.0
    %1235 = vmatprep.subr.mxu0 0.0
    %1236 = vmatpush2.msra.mxu0 0.0
    %1237 = vmatprep.subr.mxu0 0.0
    %1238 = vmatpush2.msra.mxu0 0.0
    %1239 = vmatprep.subr.mxu0 0.0
    %1240 = vmatpush2.msra.mxu0 0.0
    %1241 = vmatprep.subr.mxu0 0.0
    %1242 = vmatpush2.msra.mxu0 0.0
    %1243 = vmatprep.subr.mxu0 0.0
    %1244 = vmatpush2.msra.mxu0 0.0
    %1245 = vmatprep.subr.mxu0 0.0
    %1246 = vmatpush2.msra.mxu0 0.0
    %1247 = vmatprep.subr.mxu0 0.0
    %1248 = vmatpush2.msra.mxu0 0.0
    %1249 = vmatprep.mubr.f32.mxu0 0.0
    %1250 = vmatmul.mubr.f32.gmra.mxu0 %v1180
    %v1251 = vpop.f32.mrf.mxu0
    %v1252 = vadd.f32 0.0, %v1251
    %v1253 = vpop.f32.mrf.mxu0
    %1254 = vmatprep.mubr.f32.mxu0 0.0
    %1255 = vmatmul.mubr.f32.gmra.mxu0 %v1183
    %v1256 = vpop.f32.mrf.mxu0
    %v1257 = vadd.f32 0.0, %v1256
    %v1258 = vpop.f32.mrf.mxu0
    %1259 = vdwg.mxu0
    %1260 = vrot.lane.b32.xlu0 %v869, 112
    %v1261 = vpop.permute.xlu0 %1260
    %1262 = vrot.lane.b32.xlu0 %v874, 112
    %v1263 = vpop.permute.xlu0 %1262
    %1264 = vrot.lane.b32.xlu0 %v958, 112
    %v1265 = vpop.permute.xlu0 %1264
    %1266 = vrot.lane.b32.xlu0 %v963, 112
    %v1267 = vpop.permute.xlu0 %1266
    %v1268 = vsel %vm1065, %v1261, 0
    %v1270 = vsel %vm1065, %v1263, 0
    %v1272 = vsel %vm1065, %v1265, 0
    %v1274 = vsel %vm1065, %v1267, 0
    %1276 = vmatprep.subr.mxu0 0.0
    %1277 = vmatpush1.xpose.msra.mxu0 0.0
    %1278 = vmatprep.subr.mxu0 0.0
    %1279 = vmatpush1.xpose.msra.mxu0 0.0
    %1280 = vmatprep.subr.mxu0 0.0
    %1281 = vmatpush1.xpose.msra.mxu0 0.0
    %1282 = vmatprep.subr.mxu0 0.0
    %1283 = vmatpush1.xpose.msra.mxu0 0.0
    %1284 = vmatprep.subr.mxu0 0.0
    %1285 = vmatpush1.xpose.msra.mxu0 0.0
    %1286 = vmatprep.subr.mxu0 0.0
    %1287 = vmatpush1.xpose.msra.mxu0 0.0
    %1288 = vmatprep.subr.mxu0 0.0
    %1289 = vmatpush1.xpose.msra.mxu0 0.0
    %1290 = vmatprep.subr.mxu0 0.0
    %1291 = vmatpush1.xpose.msra.mxu0 0.0
    %1292 = vmatprep.subr.mxu0 0.0
    %1293 = vmatpush1.xpose.msra.mxu0 0.0
    %1294 = vmatprep.subr.mxu0 0.0
    %1295 = vmatpush1.xpose.msra.mxu0 0.0
    %1296 = vmatprep.subr.mxu0 0.0
    %1297 = vmatpush1.xpose.msra.mxu0 0.0
    %1298 = vmatprep.subr.mxu0 0.0
    %1299 = vmatpush1.xpose.msra.mxu0 0.0
    %1300 = vmatprep.subr.mxu0 0.0
    %1301 = vmatpush1.xpose.msra.mxu0 0.0
    %1302 = vmatprep.subr.mxu0 0.0
    %1303 = vmatpush1.xpose.msra.mxu0 0.0
    %1304 = vmatprep.subr.mxu0 0.0
    %1305 = vmatpush1.xpose.msra.mxu0 %v1274
    %1306 = vmatprep.subr.mxu0 0.0
    %1307 = vmatpush1.xpose.msra.mxu0 %v1272
    %1308 = vmatprep.subr.mxu0 0.0
    %1309 = vmatpush2.xpose.msra.mxu0 0.0
    %1310 = vmatprep.subr.mxu0 0.0
    %1311 = vmatpush2.xpose.msra.mxu0 0.0
    %1312 = vmatprep.subr.mxu0 0.0
    %1313 = vmatpush2.xpose.msra.mxu0 0.0
    %1314 = vmatprep.subr.mxu0 0.0
    %1315 = vmatpush2.xpose.msra.mxu0 0.0
    %1316 = vmatprep.subr.mxu0 0.0
    %1317 = vmatpush2.xpose.msra.mxu0 0.0
    %1318 = vmatprep.subr.mxu0 0.0
    %1319 = vmatpush2.xpose.msra.mxu0 0.0
    %1320 = vmatprep.subr.mxu0 0.0
    %1321 = vmatpush2.xpose.msra.mxu0 0.0
    %1322 = vmatprep.subr.mxu0 0.0
    %1323 = vmatpush2.xpose.msra.mxu0 0.0
    %1324 = vmatprep.subr.mxu0 0.0
    %1325 = vmatpush2.xpose.msra.mxu0 0.0
    %1326 = vmatprep.subr.mxu0 0.0
    %1327 = vmatpush2.xpose.msra.mxu0 0.0
    %1328 = vmatprep.subr.mxu0 0.0
    %1329 = vmatpush2.xpose.msra.mxu0 0.0
    %1330 = vmatprep.subr.mxu0 0.0
    %1331 = vmatpush2.xpose.msra.mxu0 0.0
    %1332 = vmatprep.subr.mxu0 0.0
    %1333 = vmatpush2.xpose.msra.mxu0 0.0
    %1334 = vmatprep.subr.mxu0 0.0
    %1335 = vmatpush2.xpose.msra.mxu0 0.0
    %1336 = vmatprep.subr.mxu0 0.0
    %1337 = vmatpush2.xpose.msra.mxu0 0.0
    %1338 = vmatprep.subr.mxu0 0.0
    %1339 = vmatpush2.xpose.msra.mxu0 0.0
    %1340 = vmatprep.mubr.f32.mxu0 0.0
    %1341 = vmatmul.mubr.f32.gmra.mxu0 %v1268
    %v1342 = vpop.f32.mrf.mxu0
    %v1343 = vadd.f32 0.0, %v1342
    %v1344 = vpop.f32.mrf.mxu0
    %1345 = vmatprep.mubr.f32.mxu0 0.0
    %1346 = vmatmul.mubr.f32.gmra.mxu0 %v1270
    %v1347 = vpop.f32.mrf.mxu0
    %v1348 = vadd.f32 0.0, %v1347
    %v1349 = vpop.f32.mrf.mxu0
    %1350 = vdwg.mxu0
    %v1351 = vmul.f32 %v1343, 0.25
    %v1352 = vmul.f32 %v1348, 0.25
    %v1353 = vsel %vm623, %v1351, -1e+30
    %v1354 = vsel %vm624, %v1352, -1e+30
    %v1355 = vsel %vm1065, %v1353, -inf
    %1356 = vmax.xlane.f32.xlu0 %v1355
    %v1357 = vpop.xlane.xlu0 %1356
    %v1358 = vsel %vm1065, %v1354, -inf
    %1359 = vmax.xlane.f32.xlu0 %v1358
    %v1360 = vpop.xlane.xlu0 %1359
    %v1361 = vsub.f32 %v1353, %v1357
    %v1362 = vsub.f32 %v1354, %v1360
    %v1363 = vmul.f32 %v1361, 1.442695
    %v1364 = vpow.pop %v1363
    %v1365 = vmul.f32 %v1362, 1.442695
    %v1366 = vpow.pop %v1365
    %v1367 = vsel %vm1065, %v1364, 0.0
    %1368 = vadd.xlane.f32.xlu0 %v1367
    %v1369 = vpop.xlane.xlu0 %1368
    %v1370 = vsel %vm1065, %v1366, 0.0
    %1371 = vadd.xlane.f32.xlu0 %v1370
    %v1372 = vpop.xlane.xlu0 %1371
    %v1373 = vrcp.pop %v1369
    %v1374 = vrcp.pop %v1372
    %v1375 = vmul.f32 %v1364, %v1373
    %v1376 = vmul.f32 %v1366, %v1374
    %1379 = vrot.lane.b32.xlu0 %v1047, 112
    %v1380 = vpop.permute.xlu0 %1379
    %1381 = vrot.lane.b32.xlu0 %v1052, 112
    %v1382 = vpop.permute.xlu0 %1381
    %v1386 = vsel %vm1065, %v1375, 0
    %v1389 = vsel %vm1065, %v1376, 0
    %1391 = vmatprep.subr.mxu0 0.0
    %1392 = vmatpush1.msra.mxu0 0.0
    %1393 = vmatprep.subr.mxu0 0.0
    %1394 = vmatpush1.msra.mxu0 0.0
    %1395 = vmatprep.subr.mxu0 0.0
    %1396 = vmatpush1.msra.mxu0 0.0
    %1397 = vmatprep.subr.mxu0 0.0
    %1398 = vmatpush1.msra.mxu0 0.0
    %1399 = vmatprep.subr.mxu0 0.0
    %1400 = vmatpush1.msra.mxu0 0.0
    %1401 = vmatprep.subr.mxu0 0.0
    %1402 = vmatpush1.msra.mxu0 0.0
    %1403 = vmatprep.subr.mxu0 0.0
    %1404 = vmatpush1.msra.mxu0 0.0
    %1405 = vmatprep.subr.mxu0 0.0
    %1406 = vmatpush1.msra.mxu0 0.0
    %1407 = vmatprep.subr.mxu0 0.0
    %1408 = vmatpush1.msra.mxu0 0.0
    %1409 = vmatprep.subr.mxu0 0.0
    %1410 = vmatpush1.msra.mxu0 0.0
    %1411 = vmatprep.subr.mxu0 0.0
    %1412 = vmatpush1.msra.mxu0 0.0
    %1413 = vmatprep.subr.mxu0 0.0
    %1414 = vmatpush1.msra.mxu0 0.0
    %1415 = vmatprep.subr.mxu0 0.0
    %1416 = vmatpush1.msra.mxu0 0.0
    %1417 = vmatprep.subr.mxu0 0.0
    %1418 = vmatpush1.msra.mxu0 0.0
    %1419 = vmatprep.subr.mxu0 0.0
    %1420 = vmatpush1.msra.mxu0 %v1382
    %1421 = vmatprep.subr.mxu0 0.0
    %1422 = vmatpush1.msra.mxu0 %v1380
    %1423 = vmatprep.subr.mxu0 0.0
    %1424 = vmatpush2.msra.mxu0 0.0
    %1425 = vmatprep.subr.mxu0 0.0
    %1426 = vmatpush2.msra.mxu0 0.0
    %1427 = vmatprep.subr.mxu0 0.0
    %1428 = vmatpush2.msra.mxu0 0.0
    %1429 = vmatprep.subr.mxu0 0.0
    %1430 = vmatpush2.msra.mxu0 0.0
    %1431 = vmatprep.subr.mxu0 0.0
    %1432 = vmatpush2.msra.mxu0 0.0
    %1433 = vmatprep.subr.mxu0 0.0
    %1434 = vmatpush2.msra.mxu0 0.0
    %1435 = vmatprep.subr.mxu0 0.0
    %1436 = vmatpush2.msra.mxu0 0.0
    %1437 = vmatprep.subr.mxu0 0.0
    %1438 = vmatpush2.msra.mxu0 0.0
    %1439 = vmatprep.subr.mxu0 0.0
    %1440 = vmatpush2.msra.mxu0 0.0
    %1441 = vmatprep.subr.mxu0 0.0
    %1442 = vmatpush2.msra.mxu0 0.0
    %1443 = vmatprep.subr.mxu0 0.0
    %1444 = vmatpush2.msra.mxu0 0.0
    %1445 = vmatprep.subr.mxu0 0.0
    %1446 = vmatpush2.msra.mxu0 0.0
    %1447 = vmatprep.subr.mxu0 0.0
    %1448 = vmatpush2.msra.mxu0 0.0
    %1449 = vmatprep.subr.mxu0 0.0
    %1450 = vmatpush2.msra.mxu0 0.0
    %1451 = vmatprep.subr.mxu0 0.0
    %1452 = vmatpush2.msra.mxu0 0.0
    %1453 = vmatprep.subr.mxu0 0.0
    %1454 = vmatpush2.msra.mxu0 0.0
    %1455 = vmatprep.mubr.f32.mxu0 0.0
    %1456 = vmatmul.mubr.f32.gmra.mxu0 %v1386
    %v1457 = vpop.f32.mrf.mxu0
    %v1458 = vadd.f32 0.0, %v1457
    %v1459 = vpop.f32.mrf.mxu0
    %1460 = vmatprep.mubr.f32.mxu0 0.0
    %1461 = vmatmul.mubr.f32.gmra.mxu0 %v1389
    %v1462 = vpop.f32.mrf.mxu0
    %v1463 = vadd.f32 0.0, %v1462
    %v1464 = vpop.f32.mrf.mxu0
    %1465 = vdwg.mxu0
    %v1467 = vsel %vm1065, %v1458, 0
    %v1470 = vsel %vm1065, %v1463, 0
    %1472 = vmatprep.subr.mxu0 0.0
    %1473 = vmatpush1.msra.mxu0 0.0
    %1474 = vmatprep.subr.mxu0 0.0
    %1475 = vmatpush1.msra.mxu0 0.0
    %1476 = vmatprep.subr.mxu0 0.0
    %1477 = vmatpush1.msra.mxu0 0.0
    %1478 = vmatprep.subr.mxu0 0.0
    %1479 = vmatpush1.msra.mxu0 0.0
    %1480 = vmatprep.subr.mxu0 0.0
    %1481 = vmatpush1.msra.mxu0 0.0
    %1482 = vmatprep.subr.mxu0 0.0
    %1483 = vmatpush1.msra.mxu0 0.0
    %1484 = vmatprep.subr.mxu0 0.0
    %1485 = vmatpush1.msra.mxu0 0.0
    %1486 = vmatprep.subr.mxu0 0.0
    %1487 = vmatpush1.msra.mxu0 0.0
    %1488 = vmatprep.subr.mxu0 0.0
    %1489 = vmatpush1.msra.mxu0 0.0
    %1490 = vmatprep.subr.mxu0 0.0
    %1491 = vmatpush1.msra.mxu0 0.0
    %1492 = vmatprep.subr.mxu0 0.0
    %1493 = vmatpush1.msra.mxu0 0.0
    %1494 = vmatprep.subr.mxu0 0.0
    %1495 = vmatpush1.msra.mxu0 0.0
    %1496 = vmatprep.subr.mxu0 0.0
    %1497 = vmatpush1.msra.mxu0 0.0
    %1498 = vmatprep.subr.mxu0 0.0
    %1499 = vmatpush1.msra.mxu0 0.0
    %1500 = vmatprep.subr.mxu0 0.0
    %1501 = vmatpush1.msra.mxu0 %v652
    %1502 = vmatprep.subr.mxu0 0.0
    %1503 = vmatpush1.msra.mxu0 %v651
    %1504 = vmatprep.subr.mxu0 0.0
    %1505 = vmatpush2.msra.mxu0 0.0
    %1506 = vmatprep.subr.mxu0 0.0
    %1507 = vmatpush2.msra.mxu0 0.0
    %1508 = vmatprep.subr.mxu0 0.0
    %1509 = vmatpush2.msra.mxu0 0.0
    %1510 = vmatprep.subr.mxu0 0.0
    %1511 = vmatpush2.msra.mxu0 0.0
    %1512 = vmatprep.subr.mxu0 0.0
    %1513 = vmatpush2.msra.mxu0 0.0
    %1514 = vmatprep.subr.mxu0 0.0
    %1515 = vmatpush2.msra.mxu0 0.0
    %1516 = vmatprep.subr.mxu0 0.0
    %1517 = vmatpush2.msra.mxu0 0.0
    %1518 = vmatprep.subr.mxu0 0.0
    %1519 = vmatpush2.msra.mxu0 0.0
    %1520 = vmatprep.subr.mxu0 0.0
    %1521 = vmatpush2.msra.mxu0 0.0
    %1522 = vmatprep.subr.mxu0 0.0
    %1523 = vmatpush2.msra.mxu0 0.0
    %1524 = vmatprep.subr.mxu0 0.0
    %1525 = vmatpush2.msra.mxu0 0.0
    %1526 = vmatprep.subr.mxu0 0.0
    %1527 = vmatpush2.msra.mxu0 0.0
    %1528 = vmatprep.subr.mxu0 0.0
    %1529 = vmatpush2.msra.mxu0 0.0
    %1530 = vmatprep.subr.mxu0 0.0
    %1531 = vmatpush2.msra.mxu0 0.0
    %1532 = vmatprep.subr.mxu0 0.0
    %1533 = vmatpush2.msra.mxu0 0.0
    %1534 = vmatprep.subr.mxu0 0.0
    %1535 = vmatpush2.msra.mxu0 0.0
    %1536 = vmatprep.mubr.f32.mxu0 0.0
    %1537 = vmatmul.mubr.f32.gmra.mxu0 %v1467
    %v1538 = vpop.f32.mrf.mxu0
    %v1539 = vadd.f32 0.0, %v1538
    %v1540 = vpop.f32.mrf.mxu0
    %1541 = vmatprep.mubr.f32.mxu0 0.0
    %1542 = vmatmul.mubr.f32.gmra.mxu0 %v1470
    %v1543 = vpop.f32.mrf.mxu0
    %v1544 = vadd.f32 0.0, %v1543
    %v1545 = vpop.f32.mrf.mxu0
    %1546 = vdwg.mxu0
    %v1548 = vsel %vm1065, %v1252, 0
    %v1551 = vsel %vm1065, %v1257, 0
    %1553 = vmatprep.subr.mxu0 0.0
    %1554 = vmatpush1.msra.mxu0 0.0
    %1555 = vmatprep.subr.mxu0 0.0
    %1556 = vmatpush1.msra.mxu0 0.0
    %1557 = vmatprep.subr.mxu0 0.0
    %1558 = vmatpush1.msra.mxu0 0.0
    %1559 = vmatprep.subr.mxu0 0.0
    %1560 = vmatpush1.msra.mxu0 0.0
    %1561 = vmatprep.subr.mxu0 0.0
    %1562 = vmatpush1.msra.mxu0 0.0
    %1563 = vmatprep.subr.mxu0 0.0
    %1564 = vmatpush1.msra.mxu0 0.0
    %1565 = vmatprep.subr.mxu0 0.0
    %1566 = vmatpush1.msra.mxu0 0.0
    %1567 = vmatprep.subr.mxu0 0.0
    %1568 = vmatpush1.msra.mxu0 0.0
    %1569 = vmatprep.subr.mxu0 0.0
    %1570 = vmatpush1.msra.mxu0 0.0
    %1571 = vmatprep.subr.mxu0 0.0
    %1572 = vmatpush1.msra.mxu0 0.0
    %1573 = vmatprep.subr.mxu0 0.0
    %1574 = vmatpush1.msra.mxu0 0.0
    %1575 = vmatprep.subr.mxu0 0.0
    %1576 = vmatpush1.msra.mxu0 0.0
    %1577 = vmatprep.subr.mxu0 0.0
    %1578 = vmatpush1.msra.mxu0 0.0
    %1579 = vmatprep.subr.mxu0 0.0
    %1580 = vmatpush1.msra.mxu0 0.0
    %1581 = vmatprep.subr.mxu0 0.0
    %1582 = vmatpush1.msra.mxu0 %v650
    %1583 = vmatprep.subr.mxu0 0.0
    %1584 = vmatpush1.msra.mxu0 %v649
    %1585 = vmatprep.subr.mxu0 0.0
    %1586 = vmatpush2.msra.mxu0 0.0
    %1587 = vmatprep.subr.mxu0 0.0
    %1588 = vmatpush2.msra.mxu0 0.0
    %1589 = vmatprep.subr.mxu0 0.0
    %1590 = vmatpush2.msra.mxu0 0.0
    %1591 = vmatprep.subr.mxu0 0.0
    %1592 = vmatpush2.msra.mxu0 0.0
    %1593 = vmatprep.subr.mxu0 0.0
    %1594 = vmatpush2.msra.mxu0 0.0
    %1595 = vmatprep.subr.mxu0 0.0
    %1596 = vmatpush2.msra.mxu0 0.0
    %1597 = vmatprep.subr.mxu0 0.0
    %1598 = vmatpush2.msra.mxu0 0.0
    %1599 = vmatprep.subr.mxu0 0.0
    %1600 = vmatpush2.msra.mxu0 0.0
    %1601 = vmatprep.subr.mxu0 0.0
    %1602 = vmatpush2.msra.mxu0 0.0
    %1603 = vmatprep.subr.mxu0 0.0
    %1604 = vmatpush2.msra.mxu0 0.0
    %1605 = vmatprep.subr.mxu0 0.0
    %1606 = vmatpush2.msra.mxu0 0.0
    %1607 = vmatprep.subr.mxu0 0.0
    %1608 = vmatpush2.msra.mxu0 0.0
    %1609 = vmatprep.subr.mxu0 0.0
    %1610 = vmatpush2.msra.mxu0 0.0
    %1611 = vmatprep.subr.mxu0 0.0
    %1612 = vmatpush2.msra.mxu0 0.0
    %1613 = vmatprep.subr.mxu0 0.0
    %1614 = vmatpush2.msra.mxu0 0.0
    %1615 = vmatprep.subr.mxu0 0.0
    %1616 = vmatpush2.msra.mxu0 0.0
    %1617 = vmatprep.mubr.f32.mxu0 0.0
    %1618 = vmatmul.mubr.f32.gmra.mxu0 %v1548
    %v1619 = vpop.f32.mrf.mxu0
    %v1620 = vadd.f32 %v1539, %v1619
    %v1621 = vpop.f32.mrf.mxu0
    %1622 = vmatprep.mubr.f32.mxu0 0.0
    %1623 = vmatmul.mubr.f32.gmra.mxu0 %v1551
    %v1624 = vpop.f32.mrf.mxu0
    %v1625 = vadd.f32 %v1544, %v1624
    %v1626 = vpop.f32.mrf.mxu0
    %1627 = vdwg.mxu0
    %1628 = vrot.lane.b32.xlu0 %v869, 96
    %v1629 = vpop.permute.xlu0 %1628
    %1630 = vrot.lane.b32.xlu0 %v874, 96
    %v1631 = vpop.permute.xlu0 %1630
    %1632 = vrot.lane.b32.xlu0 %v958, 96
    %v1633 = vpop.permute.xlu0 %1632
    %1634 = vrot.lane.b32.xlu0 %v963, 96
    %v1635 = vpop.permute.xlu0 %1634
    %v1636 = vsel %vm1065, %v1629, 0
    %v1638 = vsel %vm1065, %v1631, 0
    %v1640 = vsel %vm1065, %v1633, 0
    %v1642 = vsel %vm1065, %v1635, 0
    %1644 = vmatprep.subr.mxu0 0.0
    %1645 = vmatpush1.xpose.msra.mxu0 0.0
    %1646 = vmatprep.subr.mxu0 0.0
    %1647 = vmatpush1.xpose.msra.mxu0 0.0
    %1648 = vmatprep.subr.mxu0 0.0
    %1649 = vmatpush1.xpose.msra.mxu0 0.0
    %1650 = vmatprep.subr.mxu0 0.0
    %1651 = vmatpush1.xpose.msra.mxu0 0.0
    %1652 = vmatprep.subr.mxu0 0.0
    %1653 = vmatpush1.xpose.msra.mxu0 0.0
    %1654 = vmatprep.subr.mxu0 0.0
    %1655 = vmatpush1.xpose.msra.mxu0 0.0
    %1656 = vmatprep.subr.mxu0 0.0
    %1657 = vmatpush1.xpose.msra.mxu0 0.0
    %1658 = vmatprep.subr.mxu0 0.0
    %1659 = vmatpush1.xpose.msra.mxu0 0.0
    %1660 = vmatprep.subr.mxu0 0.0
    %1661 = vmatpush1.xpose.msra.mxu0 0.0
    %1662 = vmatprep.subr.mxu0 0.0
    %1663 = vmatpush1.xpose.msra.mxu0 0.0
    %1664 = vmatprep.subr.mxu0 0.0
    %1665 = vmatpush1.xpose.msra.mxu0 0.0
    %1666 = vmatprep.subr.mxu0 0.0
    %1667 = vmatpush1.xpose.msra.mxu0 0.0
    %1668 = vmatprep.subr.mxu0 0.0
    %1669 = vmatpush1.xpose.msra.mxu0 0.0
    %1670 = vmatprep.subr.mxu0 0.0
    %1671 = vmatpush1.xpose.msra.mxu0 0.0
    %1672 = vmatprep.subr.mxu0 0.0
    %1673 = vmatpush1.xpose.msra.mxu0 %v1642
    %1674 = vmatprep.subr.mxu0 0.0
    %1675 = vmatpush1.xpose.msra.mxu0 %v1640
    %1676 = vmatprep.subr.mxu0 0.0
    %1677 = vmatpush2.xpose.msra.mxu0 0.0
    %1678 = vmatprep.subr.mxu0 0.0
    %1679 = vmatpush2.xpose.msra.mxu0 0.0
    %1680 = vmatprep.subr.mxu0 0.0
    %1681 = vmatpush2.xpose.msra.mxu0 0.0
    %1682 = vmatprep.subr.mxu0 0.0
    %1683 = vmatpush2.xpose.msra.mxu0 0.0
    %1684 = vmatprep.subr.mxu0 0.0
    %1685 = vmatpush2.xpose.msra.mxu0 0.0
    %1686 = vmatprep.subr.mxu0 0.0
    %1687 = vmatpush2.xpose.msra.mxu0 0.0
    %1688 = vmatprep.subr.mxu0 0.0
    %1689 = vmatpush2.xpose.msra.mxu0 0.0
    %1690 = vmatprep.subr.mxu0 0.0
    %1691 = vmatpush2.xpose.msra.mxu0 0.0
    %1692 = vmatprep.subr.mxu0 0.0
    %1693 = vmatpush2.xpose.msra.mxu0 0.0
    %1694 = vmatprep.subr.mxu0 0.0
    %1695 = vmatpush2.xpose.msra.mxu0 0.0
    %1696 = vmatprep.subr.mxu0 0.0
    %1697 = vmatpush2.xpose.msra.mxu0 0.0
    %1698 = vmatprep.subr.mxu0 0.0
    %1699 = vmatpush2.xpose.msra.mxu0 0.0
    %1700 = vmatprep.subr.mxu0 0.0
    %1701 = vmatpush2.xpose.msra.mxu0 0.0
    %1702 = vmatprep.subr.mxu0 0.0
    %1703 = vmatpush2.xpose.msra.mxu0 0.0
    %1704 = vmatprep.subr.mxu0 0.0
    %1705 = vmatpush2.xpose.msra.mxu0 0.0
    %1706 = vmatprep.subr.mxu0 0.0
    %1707 = vmatpush2.xpose.msra.mxu0 0.0
    %1708 = vmatprep.mubr.f32.mxu0 0.0
    %1709 = vmatmul.mubr.f32.gmra.mxu0 %v1636
    %v1710 = vpop.f32.mrf.mxu0
    %v1711 = vadd.f32 0.0, %v1710
    %v1712 = vpop.f32.mrf.mxu0
    %1713 = vmatprep.mubr.f32.mxu0 0.0
    %1714 = vmatmul.mubr.f32.gmra.mxu0 %v1638
    %v1715 = vpop.f32.mrf.mxu0
    %v1716 = vadd.f32 0.0, %v1715
    %v1717 = vpop.f32.mrf.mxu0
    %1718 = vdwg.mxu0
    %v1719 = vmul.f32 %v1711, 0.25
    %v1720 = vmul.f32 %v1716, 0.25
    %v1721 = vsel %vm623, %v1719, -1e+30
    %v1722 = vsel %vm624, %v1720, -1e+30
    %v1723 = vsel %vm1065, %v1721, -inf
    %1724 = vmax.xlane.f32.xlu0 %v1723
    %v1725 = vpop.xlane.xlu0 %1724
    %v1726 = vsel %vm1065, %v1722, -inf
    %1727 = vmax.xlane.f32.xlu0 %v1726
    %v1728 = vpop.xlane.xlu0 %1727
    %v1729 = vsub.f32 %v1721, %v1725
    %v1730 = vsub.f32 %v1722, %v1728
    %v1731 = vmul.f32 %v1729, 1.442695
    %v1732 = vpow.pop %v1731
    %v1733 = vmul.f32 %v1730, 1.442695
    %v1734 = vpow.pop %v1733
    %v1735 = vsel %vm1065, %v1732, 0.0
    %1736 = vadd.xlane.f32.xlu0 %v1735
    %v1737 = vpop.xlane.xlu0 %1736
    %v1738 = vsel %vm1065, %v1734, 0.0
    %1739 = vadd.xlane.f32.xlu0 %v1738
    %v1740 = vpop.xlane.xlu0 %1739
    %v1741 = vrcp.pop %v1737
    %v1742 = vrcp.pop %v1740
    %v1743 = vmul.f32 %v1732, %v1741
    %v1744 = vmul.f32 %v1734, %v1742
    %1745 = vrot.lane.b32.xlu0 %v1047, 96
    %v1746 = vpop.permute.xlu0 %1745
    %1747 = vrot.lane.b32.xlu0 %v1052, 96
    %v1748 = vpop.permute.xlu0 %1747
    %v1752 = vsel %vm1065, %v1743, 0
    %v1755 = vsel %vm1065, %v1744, 0
    %1757 = vmatprep.subr.mxu0 0.0
    %1758 = vmatpush1.msra.mxu0 0.0
    %1759 = vmatprep.subr.mxu0 0.0
    %1760 = vmatpush1.msra.mxu0 0.0
    %1761 = vmatprep.subr.mxu0 0.0
    %1762 = vmatpush1.msra.mxu0 0.0
    %1763 = vmatprep.subr.mxu0 0.0
    %1764 = vmatpush1.msra.mxu0 0.0
    %1765 = vmatprep.subr.mxu0 0.0
    %1766 = vmatpush1.msra.mxu0 0.0
    %1767 = vmatprep.subr.mxu0 0.0
    %1768 = vmatpush1.msra.mxu0 0.0
    %1769 = vmatprep.subr.mxu0 0.0
    %1770 = vmatpush1.msra.mxu0 0.0
    %1771 = vmatprep.subr.mxu0 0.0
    %1772 = vmatpush1.msra.mxu0 0.0
    %1773 = vmatprep.subr.mxu0 0.0
    %1774 = vmatpush1.msra.mxu0 0.0
    %1775 = vmatprep.subr.mxu0 0.0
    %1776 = vmatpush1.msra.mxu0 0.0
    %1777 = vmatprep.subr.mxu0 0.0
    %1778 = vmatpush1.msra.mxu0 0.0
    %1779 = vmatprep.subr.mxu0 0.0
    %1780 = vmatpush1.msra.mxu0 0.0
    %1781 = vmatprep.subr.mxu0 0.0
    %1782 = vmatpush1.msra.mxu0 0.0
    %1783 = vmatprep.subr.mxu0 0.0
    %1784 = vmatpush1.msra.mxu0 0.0
    %1785 = vmatprep.subr.mxu0 0.0
    %1786 = vmatpush1.msra.mxu0 %v1748
    %1787 = vmatprep.subr.mxu0 0.0
    %1788 = vmatpush1.msra.mxu0 %v1746
    %1789 = vmatprep.subr.mxu0 0.0
    %1790 = vmatpush2.msra.mxu0 0.0
    %1791 = vmatprep.subr.mxu0 0.0
    %1792 = vmatpush2.msra.mxu0 0.0
    %1793 = vmatprep.subr.mxu0 0.0
    %1794 = vmatpush2.msra.mxu0 0.0
    %1795 = vmatprep.subr.mxu0 0.0
    %1796 = vmatpush2.msra.mxu0 0.0
    %1797 = vmatprep.subr.mxu0 0.0
    %1798 = vmatpush2.msra.mxu0 0.0
    %1799 = vmatprep.subr.mxu0 0.0
    %1800 = vmatpush2.msra.mxu0 0.0
    %1801 = vmatprep.subr.mxu0 0.0
    %1802 = vmatpush2.msra.mxu0 0.0
    %1803 = vmatprep.subr.mxu0 0.0
    %1804 = vmatpush2.msra.mxu0 0.0
    %1805 = vmatprep.subr.mxu0 0.0
    %1806 = vmatpush2.msra.mxu0 0.0
    %1807 = vmatprep.subr.mxu0 0.0
    %1808 = vmatpush2.msra.mxu0 0.0
    %1809 = vmatprep.subr.mxu0 0.0
    %1810 = vmatpush2.msra.mxu0 0.0
    %1811 = vmatprep.subr.mxu0 0.0
    %1812 = vmatpush2.msra.mxu0 0.0
    %1813 = vmatprep.subr.mxu0 0.0
    %1814 = vmatpush2.msra.mxu0 0.0
    %1815 = vmatprep.subr.mxu0 0.0
    %1816 = vmatpush2.msra.mxu0 0.0
    %1817 = vmatprep.subr.mxu0 0.0
    %1818 = vmatpush2.msra.mxu0 0.0
    %1819 = vmatprep.subr.mxu0 0.0
    %1820 = vmatpush2.msra.mxu0 0.0
    %1821 = vmatprep.mubr.f32.mxu0 0.0
    %1822 = vmatmul.mubr.f32.gmra.mxu0 %v1752
    %v1823 = vpop.f32.mrf.mxu0
    %v1824 = vadd.f32 0.0, %v1823
    %v1825 = vpop.f32.mrf.mxu0
    %1826 = vmatprep.mubr.f32.mxu0 0.0
    %1827 = vmatmul.mubr.f32.gmra.mxu0 %v1755
    %v1828 = vpop.f32.mrf.mxu0
    %v1829 = vadd.f32 0.0, %v1828
    %v1830 = vpop.f32.mrf.mxu0
    %1831 = vdwg.mxu0
    %v1833 = vsel %vm1065, %v1824, 0
    %v1836 = vsel %vm1065, %v1829, 0
    %1838 = vmatprep.subr.mxu0 0.0
    %1839 = vmatpush1.msra.mxu0 0.0
    %1840 = vmatprep.subr.mxu0 0.0
    %1841 = vmatpush1.msra.mxu0 0.0
    %1842 = vmatprep.subr.mxu0 0.0
    %1843 = vmatpush1.msra.mxu0 0.0
    %1844 = vmatprep.subr.mxu0 0.0
    %1845 = vmatpush1.msra.mxu0 0.0
    %1846 = vmatprep.subr.mxu0 0.0
    %1847 = vmatpush1.msra.mxu0 0.0
    %1848 = vmatprep.subr.mxu0 0.0
    %1849 = vmatpush1.msra.mxu0 0.0
    %1850 = vmatprep.subr.mxu0 0.0
    %1851 = vmatpush1.msra.mxu0 0.0
    %1852 = vmatprep.subr.mxu0 0.0
    %1853 = vmatpush1.msra.mxu0 0.0
    %1854 = vmatprep.subr.mxu0 0.0
    %1855 = vmatpush1.msra.mxu0 0.0
    %1856 = vmatprep.subr.mxu0 0.0
    %1857 = vmatpush1.msra.mxu0 0.0
    %1858 = vmatprep.subr.mxu0 0.0
    %1859 = vmatpush1.msra.mxu0 0.0
    %1860 = vmatprep.subr.mxu0 0.0
    %1861 = vmatpush1.msra.mxu0 0.0
    %1862 = vmatprep.subr.mxu0 0.0
    %1863 = vmatpush1.msra.mxu0 0.0
    %1864 = vmatprep.subr.mxu0 0.0
    %1865 = vmatpush1.msra.mxu0 0.0
    %1866 = vmatprep.subr.mxu0 0.0
    %1867 = vmatpush1.msra.mxu0 %v654
    %1868 = vmatprep.subr.mxu0 0.0
    %1869 = vmatpush1.msra.mxu0 %v653
    %1870 = vmatprep.subr.mxu0 0.0
    %1871 = vmatpush2.msra.mxu0 0.0
    %1872 = vmatprep.subr.mxu0 0.0
    %1873 = vmatpush2.msra.mxu0 0.0
    %1874 = vmatprep.subr.mxu0 0.0
    %1875 = vmatpush2.msra.mxu0 0.0
    %1876 = vmatprep.subr.mxu0 0.0
    %1877 = vmatpush2.msra.mxu0 0.0
    %1878 = vmatprep.subr.mxu0 0.0
    %1879 = vmatpush2.msra.mxu0 0.0
    %1880 = vmatprep.subr.mxu0 0.0
    %1881 = vmatpush2.msra.mxu0 0.0
    %1882 = vmatprep.subr.mxu0 0.0
    %1883 = vmatpush2.msra.mxu0 0.0
    %1884 = vmatprep.subr.mxu0 0.0
    %1885 = vmatpush2.msra.mxu0 0.0
    %1886 = vmatprep.subr.mxu0 0.0
    %1887 = vmatpush2.msra.mxu0 0.0
    %1888 = vmatprep.subr.mxu0 0.0
    %1889 = vmatpush2.msra.mxu0 0.0
    %1890 = vmatprep.subr.mxu0 0.0
    %1891 = vmatpush2.msra.mxu0 0.0
    %1892 = vmatprep.subr.mxu0 0.0
    %1893 = vmatpush2.msra.mxu0 0.0
    %1894 = vmatprep.subr.mxu0 0.0
    %1895 = vmatpush2.msra.mxu0 0.0
    %1896 = vmatprep.subr.mxu0 0.0
    %1897 = vmatpush2.msra.mxu0 0.0
    %1898 = vmatprep.subr.mxu0 0.0
    %1899 = vmatpush2.msra.mxu0 0.0
    %1900 = vmatprep.subr.mxu0 0.0
    %1901 = vmatpush2.msra.mxu0 0.0
    %1902 = vmatprep.mubr.f32.mxu0 0.0
    %1903 = vmatmul.mubr.f32.gmra.mxu0 %v1833
    %v1904 = vpop.f32.mrf.mxu0
    %v1905 = vadd.f32 0.0, %v1904
    %v1906 = vpop.f32.mrf.mxu0
    %1907 = vmatprep.mubr.f32.mxu0 0.0
    %1908 = vmatmul.mubr.f32.gmra.mxu0 %v1836
    %v1909 = vpop.f32.mrf.mxu0
    %v1910 = vadd.f32 0.0, %v1909
    %v1911 = vpop.f32.mrf.mxu0
    %1912 = vdwg.mxu0
    %v1913 = vadd.f32 %v1620, %v1905
    %v1914 = vadd.f32 %v1625, %v1910
    %1915 = vrot.lane.b32.xlu0 %v869, 80
    %v1916 = vpop.permute.xlu0 %1915
    %1917 = vrot.lane.b32.xlu0 %v874, 80
    %v1918 = vpop.permute.xlu0 %1917
    %1919 = vrot.lane.b32.xlu0 %v958, 80
    %v1920 = vpop.permute.xlu0 %1919
    %1921 = vrot.lane.b32.xlu0 %v963, 80
    %v1922 = vpop.permute.xlu0 %1921
    %v1923 = vsel %vm1065, %v1916, 0
    %v1925 = vsel %vm1065, %v1918, 0
    %v1927 = vsel %vm1065, %v1920, 0
    %v1929 = vsel %vm1065, %v1922, 0
    %1931 = vmatprep.subr.mxu0 0.0
    %1932 = vmatpush1.xpose.msra.mxu0 0.0
    %1933 = vmatprep.subr.mxu0 0.0
    %1934 = vmatpush1.xpose.msra.mxu0 0.0
    %1935 = vmatprep.subr.mxu0 0.0
    %1936 = vmatpush1.xpose.msra.mxu0 0.0
    %1937 = vmatprep.subr.mxu0 0.0
    %1938 = vmatpush1.xpose.msra.mxu0 0.0
    %1939 = vmatprep.subr.mxu0 0.0
    %1940 = vmatpush1.xpose.msra.mxu0 0.0
    %1941 = vmatprep.subr.mxu0 0.0
    %1942 = vmatpush1.xpose.msra.mxu0 0.0
    %1943 = vmatprep.subr.mxu0 0.0
    %1944 = vmatpush1.xpose.msra.mxu0 0.0
    %1945 = vmatprep.subr.mxu0 0.0
    %1946 = vmatpush1.xpose.msra.mxu0 0.0
    %1947 = vmatprep.subr.mxu0 0.0
    %1948 = vmatpush1.xpose.msra.mxu0 0.0
    %1949 = vmatprep.subr.mxu0 0.0
    %1950 = vmatpush1.xpose.msra.mxu0 0.0
    %1951 = vmatprep.subr.mxu0 0.0
    %1952 = vmatpush1.xpose.msra.mxu0 0.0
    %1953 = vmatprep.subr.mxu0 0.0
    %1954 = vmatpush1.xpose.msra.mxu0 0.0
    %1955 = vmatprep.subr.mxu0 0.0
    %1956 = vmatpush1.xpose.msra.mxu0 0.0
    %1957 = vmatprep.subr.mxu0 0.0
    %1958 = vmatpush1.xpose.msra.mxu0 0.0
    %1959 = vmatprep.subr.mxu0 0.0
    %1960 = vmatpush1.xpose.msra.mxu0 %v1929
    %1961 = vmatprep.subr.mxu0 0.0
    %1962 = vmatpush1.xpose.msra.mxu0 %v1927
    %1963 = vmatprep.subr.mxu0 0.0
    %1964 = vmatpush2.xpose.msra.mxu0 0.0
    %1965 = vmatprep.subr.mxu0 0.0
    %1966 = vmatpush2.xpose.msra.mxu0 0.0
    %1967 = vmatprep.subr.mxu0 0.0
    %1968 = vmatpush2.xpose.msra.mxu0 0.0
    %1969 = vmatprep.subr.mxu0 0.0
    %1970 = vmatpush2.xpose.msra.mxu0 0.0
    %1971 = vmatprep.subr.mxu0 0.0
    %1972 = vmatpush2.xpose.msra.mxu0 0.0
    %1973 = vmatprep.subr.mxu0 0.0
    %1974 = vmatpush2.xpose.msra.mxu0 0.0
    %1975 = vmatprep.subr.mxu0 0.0
    %1976 = vmatpush2.xpose.msra.mxu0 0.0
    %1977 = vmatprep.subr.mxu0 0.0
    %1978 = vmatpush2.xpose.msra.mxu0 0.0
    %1979 = vmatprep.subr.mxu0 0.0
    %1980 = vmatpush2.xpose.msra.mxu0 0.0
    %1981 = vmatprep.subr.mxu0 0.0
    %1982 = vmatpush2.xpose.msra.mxu0 0.0
    %1983 = vmatprep.subr.mxu0 0.0
    %1984 = vmatpush2.xpose.msra.mxu0 0.0
    %1985 = vmatprep.subr.mxu0 0.0
    %1986 = vmatpush2.xpose.msra.mxu0 0.0
    %1987 = vmatprep.subr.mxu0 0.0
    %1988 = vmatpush2.xpose.msra.mxu0 0.0
    %1989 = vmatprep.subr.mxu0 0.0
    %1990 = vmatpush2.xpose.msra.mxu0 0.0
    %1991 = vmatprep.subr.mxu0 0.0
    %1992 = vmatpush2.xpose.msra.mxu0 0.0
    %1993 = vmatprep.subr.mxu0 0.0
    %1994 = vmatpush2.xpose.msra.mxu0 0.0
    %1995 = vmatprep.mubr.f32.mxu0 0.0
    %1996 = vmatmul.mubr.f32.gmra.mxu0 %v1923
    %v1997 = vpop.f32.mrf.mxu0
    %v1998 = vadd.f32 0.0, %v1997
    %v1999 = vpop.f32.mrf.mxu0
    %2000 = vmatprep.mubr.f32.mxu0 0.0
    %2001 = vmatmul.mubr.f32.gmra.mxu0 %v1925
    %v2002 = vpop.f32.mrf.mxu0
    %v2003 = vadd.f32 0.0, %v2002
    %v2004 = vpop.f32.mrf.mxu0
    %2005 = vdwg.mxu0
    %v2006 = vmul.f32 %v1998, 0.25
    %v2007 = vmul.f32 %v2003, 0.25
    %v2008 = vsel %vm623, %v2006, -1e+30
    %v2009 = vsel %vm624, %v2007, -1e+30
    %v2010 = vsel %vm1065, %v2008, -inf
    %2011 = vmax.xlane.f32.xlu0 %v2010
    %v2012 = vpop.xlane.xlu0 %2011
    %v2013 = vsel %vm1065, %v2009, -inf
    %2014 = vmax.xlane.f32.xlu0 %v2013
    %v2015 = vpop.xlane.xlu0 %2014
    %v2016 = vsub.f32 %v2008, %v2012
    %v2017 = vsub.f32 %v2009, %v2015
    %v2018 = vmul.f32 %v2016, 1.442695
    %v2019 = vpow.pop %v2018
    %v2020 = vmul.f32 %v2017, 1.442695
    %v2021 = vpow.pop %v2020
    %v2022 = vsel %vm1065, %v2019, 0.0
    %2023 = vadd.xlane.f32.xlu0 %v2022
    %v2024 = vpop.xlane.xlu0 %2023
    %v2025 = vsel %vm1065, %v2021, 0.0
    %2026 = vadd.xlane.f32.xlu0 %v2025
    %v2027 = vpop.xlane.xlu0 %2026
    %v2028 = vrcp.pop %v2024
    %v2029 = vrcp.pop %v2027
    %v2030 = vmul.f32 %v2019, %v2028
    %v2031 = vmul.f32 %v2021, %v2029
    %2032 = vrot.lane.b32.xlu0 %v1047, 80
    %v2033 = vpop.permute.xlu0 %2032
    %2034 = vrot.lane.b32.xlu0 %v1052, 80
    %v2035 = vpop.permute.xlu0 %2034
    %v2039 = vsel %vm1065, %v2030, 0
    %v2042 = vsel %vm1065, %v2031, 0
    %2044 = vmatprep.subr.mxu0 0.0
    %2045 = vmatpush1.msra.mxu0 0.0
    %2046 = vmatprep.subr.mxu0 0.0
    %2047 = vmatpush1.msra.mxu0 0.0
    %2048 = vmatprep.subr.mxu0 0.0
    %2049 = vmatpush1.msra.mxu0 0.0
    %2050 = vmatprep.subr.mxu0 0.0
    %2051 = vmatpush1.msra.mxu0 0.0
    %2052 = vmatprep.subr.mxu0 0.0
    %2053 = vmatpush1.msra.mxu0 0.0
    %2054 = vmatprep.subr.mxu0 0.0
    %2055 = vmatpush1.msra.mxu0 0.0
    %2056 = vmatprep.subr.mxu0 0.0
    %2057 = vmatpush1.msra.mxu0 0.0
    %2058 = vmatprep.subr.mxu0 0.0
    %2059 = vmatpush1.msra.mxu0 0.0
    %2060 = vmatprep.subr.mxu0 0.0
    %2061 = vmatpush1.msra.mxu0 0.0
    %2062 = vmatprep.subr.mxu0 0.0
    %2063 = vmatpush1.msra.mxu0 0.0
    %2064 = vmatprep.subr.mxu0 0.0
    %2065 = vmatpush1.msra.mxu0 0.0
    %2066 = vmatprep.subr.mxu0 0.0
    %2067 = vmatpush1.msra.mxu0 0.0
    %2068 = vmatprep.subr.mxu0 0.0
    %2069 = vmatpush1.msra.mxu0 0.0
    %2070 = vmatprep.subr.mxu0 0.0
    %2071 = vmatpush1.msra.mxu0 0.0
    %2072 = vmatprep.subr.mxu0 0.0
    %2073 = vmatpush1.msra.mxu0 %v2035
    %2074 = vmatprep.subr.mxu0 0.0
    %2075 = vmatpush1.msra.mxu0 %v2033
    %2076 = vmatprep.subr.mxu0 0.0
    %2077 = vmatpush2.msra.mxu0 0.0
    %2078 = vmatprep.subr.mxu0 0.0
    %2079 = vmatpush2.msra.mxu0 0.0
    %2080 = vmatprep.subr.mxu0 0.0
    %2081 = vmatpush2.msra.mxu0 0.0
    %2082 = vmatprep.subr.mxu0 0.0
    %2083 = vmatpush2.msra.mxu0 0.0
    %2084 = vmatprep.subr.mxu0 0.0
    %2085 = vmatpush2.msra.mxu0 0.0
    %2086 = vmatprep.subr.mxu0 0.0
    %2087 = vmatpush2.msra.mxu0 0.0
    %2088 = vmatprep.subr.mxu0 0.0
    %2089 = vmatpush2.msra.mxu0 0.0
    %2090 = vmatprep.subr.mxu0 0.0
    %2091 = vmatpush2.msra.mxu0 0.0
    %2092 = vmatprep.subr.mxu0 0.0
    %2093 = vmatpush2.msra.mxu0 0.0
    %2094 = vmatprep.subr.mxu0 0.0
    %2095 = vmatpush2.msra.mxu0 0.0
    %2096 = vmatprep.subr.mxu0 0.0
    %2097 = vmatpush2.msra.mxu0 0.0
    %2098 = vmatprep.subr.mxu0 0.0
    %2099 = vmatpush2.msra.mxu0 0.0
    %2100 = vmatprep.subr.mxu0 0.0
    %2101 = vmatpush2.msra.mxu0 0.0
    %2102 = vmatprep.subr.mxu0 0.0
    %2103 = vmatpush2.msra.mxu0 0.0
    %2104 = vmatprep.subr.mxu0 0.0
    %2105 = vmatpush2.msra.mxu0 0.0
    %2106 = vmatprep.subr.mxu0 0.0
    %2107 = vmatpush2.msra.mxu0 0.0
    %2108 = vmatprep.mubr.f32.mxu0 0.0
    %2109 = vmatmul.mubr.f32.gmra.mxu0 %v2039
    %v2110 = vpop.f32.mrf.mxu0
    %v2111 = vadd.f32 0.0, %v2110
    %v2112 = vpop.f32.mrf.mxu0
    %2113 = vmatprep.mubr.f32.mxu0 0.0
    %2114 = vmatmul.mubr.f32.gmra.mxu0 %v2042
    %v2115 = vpop.f32.mrf.mxu0
    %v2116 = vadd.f32 0.0, %v2115
    %v2117 = vpop.f32.mrf.mxu0
    %2118 = vdwg.mxu0
    %v2120 = vsel %vm1065, %v2111, 0
    %v2123 = vsel %vm1065, %v2116, 0
    %2125 = vmatprep.subr.mxu0 0.0
    %2126 = vmatpush1.msra.mxu0 0.0
    %2127 = vmatprep.subr.mxu0 0.0
    %2128 = vmatpush1.msra.mxu0 0.0
    %2129 = vmatprep.subr.mxu0 0.0
    %2130 = vmatpush1.msra.mxu0 0.0
    %2131 = vmatprep.subr.mxu0 0.0
    %2132 = vmatpush1.msra.mxu0 0.0
    %2133 = vmatprep.subr.mxu0 0.0
    %2134 = vmatpush1.msra.mxu0 0.0
    %2135 = vmatprep.subr.mxu0 0.0
    %2136 = vmatpush1.msra.mxu0 0.0
    %2137 = vmatprep.subr.mxu0 0.0
    %2138 = vmatpush1.msra.mxu0 0.0
    %2139 = vmatprep.subr.mxu0 0.0
    %2140 = vmatpush1.msra.mxu0 0.0
    %2141 = vmatprep.subr.mxu0 0.0
    %2142 = vmatpush1.msra.mxu0 0.0
    %2143 = vmatprep.subr.mxu0 0.0
    %2144 = vmatpush1.msra.mxu0 0.0
    %2145 = vmatprep.subr.mxu0 0.0
    %2146 = vmatpush1.msra.mxu0 0.0
    %2147 = vmatprep.subr.mxu0 0.0
    %2148 = vmatpush1.msra.mxu0 0.0
    %2149 = vmatprep.subr.mxu0 0.0
    %2150 = vmatpush1.msra.mxu0 0.0
    %2151 = vmatprep.subr.mxu0 0.0
    %2152 = vmatpush1.msra.mxu0 0.0
    %2153 = vmatprep.subr.mxu0 0.0
    %2154 = vmatpush1.msra.mxu0 %v656
    %2155 = vmatprep.subr.mxu0 0.0
    %2156 = vmatpush1.msra.mxu0 %v655
    %2157 = vmatprep.subr.mxu0 0.0
    %2158 = vmatpush2.msra.mxu0 0.0
    %2159 = vmatprep.subr.mxu0 0.0
    %2160 = vmatpush2.msra.mxu0 0.0
    %2161 = vmatprep.subr.mxu0 0.0
    %2162 = vmatpush2.msra.mxu0 0.0
    %2163 = vmatprep.subr.mxu0 0.0
    %2164 = vmatpush2.msra.mxu0 0.0
    %2165 = vmatprep.subr.mxu0 0.0
    %2166 = vmatpush2.msra.mxu0 0.0
    %2167 = vmatprep.subr.mxu0 0.0
    %2168 = vmatpush2.msra.mxu0 0.0
    %2169 = vmatprep.subr.mxu0 0.0
    %2170 = vmatpush2.msra.mxu0 0.0
    %2171 = vmatprep.subr.mxu0 0.0
    %2172 = vmatpush2.msra.mxu0 0.0
    %2173 = vmatprep.subr.mxu0 0.0
    %2174 = vmatpush2.msra.mxu0 0.0
    %2175 = vmatprep.subr.mxu0 0.0
    %2176 = vmatpush2.msra.mxu0 0.0
    %2177 = vmatprep.subr.mxu0 0.0
    %2178 = vmatpush2.msra.mxu0 0.0
    %2179 = vmatprep.subr.mxu0 0.0
    %2180 = vmatpush2.msra.mxu0 0.0
    %2181 = vmatprep.subr.mxu0 0.0
    %2182 = vmatpush2.msra.mxu0 0.0
    %2183 = vmatprep.subr.mxu0 0.0
    %2184 = vmatpush2.msra.mxu0 0.0
    %2185 = vmatprep.subr.mxu0 0.0
    %2186 = vmatpush2.msra.mxu0 0.0
    %2187 = vmatprep.subr.mxu0 0.0
    %2188 = vmatpush2.msra.mxu0 0.0
    %2189 = vmatprep.mubr.f32.mxu0 0.0
    %2190 = vmatmul.mubr.f32.gmra.mxu0 %v2120
    %v2191 = vpop.f32.mrf.mxu0
    %v2192 = vadd.f32 0.0, %v2191
    %v2193 = vpop.f32.mrf.mxu0
    %2194 = vmatprep.mubr.f32.mxu0 0.0
    %2195 = vmatmul.mubr.f32.gmra.mxu0 %v2123
    %v2196 = vpop.f32.mrf.mxu0
    %v2197 = vadd.f32 0.0, %v2196
    %v2198 = vpop.f32.mrf.mxu0
    %2199 = vdwg.mxu0
    %v2200 = vadd.f32 %v1913, %v2192
    %v2201 = vadd.f32 %v1914, %v2197
    %v2203 = vsel %vm1065, %v879, 0
    %v2206 = vsel %vm1065, %v884, 0
    %v2209 = vsel %vm1065, %v968, 0
    %v2212 = vsel %vm1065, %v973, 0
    %2214 = vmatprep.subr.mxu0 0.0
    %2215 = vmatpush1.xpose.msra.mxu0 0.0
    %2216 = vmatprep.subr.mxu0 0.0
    %2217 = vmatpush1.xpose.msra.mxu0 0.0
    %2218 = vmatprep.subr.mxu0 0.0
    %2219 = vmatpush1.xpose.msra.mxu0 0.0
    %2220 = vmatprep.subr.mxu0 0.0
    %2221 = vmatpush1.xpose.msra.mxu0 0.0
    %2222 = vmatprep.subr.mxu0 0.0
    %2223 = vmatpush1.xpose.msra.mxu0 0.0
    %2224 = vmatprep.subr.mxu0 0.0
    %2225 = vmatpush1.xpose.msra.mxu0 0.0
    %2226 = vmatprep.subr.mxu0 0.0
    %2227 = vmatpush1.xpose.msra.mxu0 0.0
    %2228 = vmatprep.subr.mxu0 0.0
    %2229 = vmatpush1.xpose.msra.mxu0 0.0
    %2230 = vmatprep.subr.mxu0 0.0
    %2231 = vmatpush1.xpose.msra.mxu0 0.0
    %2232 = vmatprep.subr.mxu0 0.0
    %2233 = vmatpush1.xpose.msra.mxu0 0.0
    %2234 = vmatprep.subr.mxu0 0.0
    %2235 = vmatpush1.xpose.msra.mxu0 0.0
    %2236 = vmatprep.subr.mxu0 0.0
    %2237 = vmatpush1.xpose.msra.mxu0 0.0
    %2238 = vmatprep.subr.mxu0 0.0
    %2239 = vmatpush1.xpose.msra.mxu0 0.0
    %2240 = vmatprep.subr.mxu0 0.0
    %2241 = vmatpush1.xpose.msra.mxu0 0.0
    %2242 = vmatprep.subr.mxu0 0.0
    %2243 = vmatpush1.xpose.msra.mxu0 %v2212
    %2244 = vmatprep.subr.mxu0 0.0
    %2245 = vmatpush1.xpose.msra.mxu0 %v2209
    %2246 = vmatprep.subr.mxu0 0.0
    %2247 = vmatpush2.xpose.msra.mxu0 0.0
    %2248 = vmatprep.subr.mxu0 0.0
    %2249 = vmatpush2.xpose.msra.mxu0 0.0
    %2250 = vmatprep.subr.mxu0 0.0
    %2251 = vmatpush2.xpose.msra.mxu0 0.0
    %2252 = vmatprep.subr.mxu0 0.0
    %2253 = vmatpush2.xpose.msra.mxu0 0.0
    %2254 = vmatprep.subr.mxu0 0.0
    %2255 = vmatpush2.xpose.msra.mxu0 0.0
    %2256 = vmatprep.subr.mxu0 0.0
    %2257 = vmatpush2.xpose.msra.mxu0 0.0
    %2258 = vmatprep.subr.mxu0 0.0
    %2259 = vmatpush2.xpose.msra.mxu0 0.0
    %2260 = vmatprep.subr.mxu0 0.0
    %2261 = vmatpush2.xpose.msra.mxu0 0.0
    %2262 = vmatprep.subr.mxu0 0.0
    %2263 = vmatpush2.xpose.msra.mxu0 0.0
    %2264 = vmatprep.subr.mxu0 0.0
    %2265 = vmatpush2.xpose.msra.mxu0 0.0
    %2266 = vmatprep.subr.mxu0 0.0
    %2267 = vmatpush2.xpose.msra.mxu0 0.0
    %2268 = vmatprep.subr.mxu0 0.0
    %2269 = vmatpush2.xpose.msra.mxu0 0.0
    %2270 = vmatprep.subr.mxu0 0.0
    %2271 = vmatpush2.xpose.msra.mxu0 0.0
    %2272 = vmatprep.subr.mxu0 0.0
    %2273 = vmatpush2.xpose.msra.mxu0 0.0
    %2274 = vmatprep.subr.mxu0 0.0
    %2275 = vmatpush2.xpose.msra.mxu0 0.0
    %2276 = vmatprep.subr.mxu0 0.0
    %2277 = vmatpush2.xpose.msra.mxu0 0.0
    %2278 = vmatprep.mubr.f32.mxu0 0.0
    %2279 = vmatmul.mubr.f32.gmra.mxu0 %v2203
    %v2280 = vpop.f32.mrf.mxu0
    %v2281 = vadd.f32 0.0, %v2280
    %v2282 = vpop.f32.mrf.mxu0
    %2283 = vmatprep.mubr.f32.mxu0 0.0
    %2284 = vmatmul.mubr.f32.gmra.mxu0 %v2206
    %v2285 = vpop.f32.mrf.mxu0
    %v2286 = vadd.f32 0.0, %v2285
    %v2287 = vpop.f32.mrf.mxu0
    %2288 = vdwg.mxu0
    %v2289 = vmul.f32 %v2281, 0.25
    %v2290 = vmul.f32 %v2286, 0.25
    %v2291 = vsel %vm623, %v2289, -1e+30
    %v2292 = vsel %vm624, %v2290, -1e+30
    %v2293 = vsel %vm1065, %v2291, -inf
    %2294 = vmax.xlane.f32.xlu0 %v2293
    %v2295 = vpop.xlane.xlu0 %2294
    %v2296 = vsel %vm1065, %v2292, -inf
    %2297 = vmax.xlane.f32.xlu0 %v2296
    %v2298 = vpop.xlane.xlu0 %2297
    %v2299 = vsub.f32 %v2291, %v2295
    %v2300 = vsub.f32 %v2292, %v2298
    %v2301 = vmul.f32 %v2299, 1.442695
    %v2302 = vpow.pop %v2301
    %v2303 = vmul.f32 %v2300, 1.442695
    %v2304 = vpow.pop %v2303
    %v2305 = vsel %vm1065, %v2302, 0.0
    %2306 = vadd.xlane.f32.xlu0 %v2305
    %v2307 = vpop.xlane.xlu0 %2306
    %v2308 = vsel %vm1065, %v2304, 0.0
    %2309 = vadd.xlane.f32.xlu0 %v2308
    %v2310 = vpop.xlane.xlu0 %2309
    %v2311 = vrcp.pop %v2307
    %v2312 = vrcp.pop %v2310
    %v2313 = vmul.f32 %v2302, %v2311
    %v2314 = vmul.f32 %v2304, %v2312
    %v2316 = vsel %vm1065, %v2313, 0
    %v2319 = vsel %vm1065, %v2314, 0
    %2321 = vmatprep.subr.mxu0 0.0
    %2322 = vmatpush1.msra.mxu0 0.0
    %2323 = vmatprep.subr.mxu0 0.0
    %2324 = vmatpush1.msra.mxu0 0.0
    %2325 = vmatprep.subr.mxu0 0.0
    %2326 = vmatpush1.msra.mxu0 0.0
    %2327 = vmatprep.subr.mxu0 0.0
    %2328 = vmatpush1.msra.mxu0 0.0
    %2329 = vmatprep.subr.mxu0 0.0
    %2330 = vmatpush1.msra.mxu0 0.0
    %2331 = vmatprep.subr.mxu0 0.0
    %2332 = vmatpush1.msra.mxu0 0.0
    %2333 = vmatprep.subr.mxu0 0.0
    %2334 = vmatpush1.msra.mxu0 0.0
    %2335 = vmatprep.subr.mxu0 0.0
    %2336 = vmatpush1.msra.mxu0 0.0
    %2337 = vmatprep.subr.mxu0 0.0
    %2338 = vmatpush1.msra.mxu0 0.0
    %2339 = vmatprep.subr.mxu0 0.0
    %2340 = vmatpush1.msra.mxu0 0.0
    %2341 = vmatprep.subr.mxu0 0.0
    %2342 = vmatpush1.msra.mxu0 0.0
    %2343 = vmatprep.subr.mxu0 0.0
    %2344 = vmatpush1.msra.mxu0 0.0
    %2345 = vmatprep.subr.mxu0 0.0
    %2346 = vmatpush1.msra.mxu0 0.0
    %2347 = vmatprep.subr.mxu0 0.0
    %2348 = vmatpush1.msra.mxu0 0.0
    %2349 = vmatprep.subr.mxu0 0.0
    %2350 = vmatpush1.msra.mxu0 %v1062
    %2351 = vmatprep.subr.mxu0 0.0
    %2352 = vmatpush1.msra.mxu0 %v1057
    %2353 = vmatprep.subr.mxu0 0.0
    %2354 = vmatpush2.msra.mxu0 0.0
    %2355 = vmatprep.subr.mxu0 0.0
    %2356 = vmatpush2.msra.mxu0 0.0
    %2357 = vmatprep.subr.mxu0 0.0
    %2358 = vmatpush2.msra.mxu0 0.0
    %2359 = vmatprep.subr.mxu0 0.0
    %2360 = vmatpush2.msra.mxu0 0.0
    %2361 = vmatprep.subr.mxu0 0.0
    %2362 = vmatpush2.msra.mxu0 0.0
    %2363 = vmatprep.subr.mxu0 0.0
    %2364 = vmatpush2.msra.mxu0 0.0
    %2365 = vmatprep.subr.mxu0 0.0
    %2366 = vmatpush2.msra.mxu0 0.0
    %2367 = vmatprep.subr.mxu0 0.0
    %2368 = vmatpush2.msra.mxu0 0.0
    %2369 = vmatprep.subr.mxu0 0.0
    %2370 = vmatpush2.msra.mxu0 0.0
    %2371 = vmatprep.subr.mxu0 0.0
    %2372 = vmatpush2.msra.mxu0 0.0
    %2373 = vmatprep.subr.mxu0 0.0
    %2374 = vmatpush2.msra.mxu0 0.0
    %2375 = vmatprep.subr.mxu0 0.0
    %2376 = vmatpush2.msra.mxu0 0.0
    %2377 = vmatprep.subr.mxu0 0.0
    %2378 = vmatpush2.msra.mxu0 0.0
    %2379 = vmatprep.subr.mxu0 0.0
    %2380 = vmatpush2.msra.mxu0 0.0
    %2381 = vmatprep.subr.mxu0 0.0
    %2382 = vmatpush2.msra.mxu0 0.0
    %2383 = vmatprep.subr.mxu0 0.0
    %2384 = vmatpush2.msra.mxu0 0.0
    %2385 = vmatprep.mubr.f32.mxu0 0.0
    %2386 = vmatmul.mubr.f32.gmra.mxu0 %v2316
    %v2387 = vpop.f32.mrf.mxu0
    %v2388 = vadd.f32 0.0, %v2387
    %v2389 = vpop.f32.mrf.mxu0
    %2390 = vmatprep.mubr.f32.mxu0 0.0
    %2391 = vmatmul.mubr.f32.gmra.mxu0 %v2319
    %v2392 = vpop.f32.mrf.mxu0
    %v2393 = vadd.f32 0.0, %v2392
    %v2394 = vpop.f32.mrf.mxu0
    %2395 = vdwg.mxu0
    %2396 = vrot.lane.b32.xlu0 %v879, 112
    %v2397 = vpop.permute.xlu0 %2396
    %2398 = vrot.lane.b32.xlu0 %v884, 112
    %v2399 = vpop.permute.xlu0 %2398
    %2400 = vrot.lane.b32.xlu0 %v968, 112
    %v2401 = vpop.permute.xlu0 %2400
    %2402 = vrot.lane.b32.xlu0 %v973, 112
    %v2403 = vpop.permute.xlu0 %2402
    %v2404 = vsel %vm1065, %v2397, 0
    %v2406 = vsel %vm1065, %v2399, 0
    %v2408 = vsel %vm1065, %v2401, 0
    %v2410 = vsel %vm1065, %v2403, 0
    %2412 = vmatprep.subr.mxu0 0.0
    %2413 = vmatpush1.xpose.msra.mxu0 0.0
    %2414 = vmatprep.subr.mxu0 0.0
    %2415 = vmatpush1.xpose.msra.mxu0 0.0
    %2416 = vmatprep.subr.mxu0 0.0
    %2417 = vmatpush1.xpose.msra.mxu0 0.0
    %2418 = vmatprep.subr.mxu0 0.0
    %2419 = vmatpush1.xpose.msra.mxu0 0.0
    %2420 = vmatprep.subr.mxu0 0.0
    %2421 = vmatpush1.xpose.msra.mxu0 0.0
    %2422 = vmatprep.subr.mxu0 0.0
    %2423 = vmatpush1.xpose.msra.mxu0 0.0
    %2424 = vmatprep.subr.mxu0 0.0
    %2425 = vmatpush1.xpose.msra.mxu0 0.0
    %2426 = vmatprep.subr.mxu0 0.0
    %2427 = vmatpush1.xpose.msra.mxu0 0.0
    %2428 = vmatprep.subr.mxu0 0.0
    %2429 = vmatpush1.xpose.msra.mxu0 0.0
    %2430 = vmatprep.subr.mxu0 0.0
    %2431 = vmatpush1.xpose.msra.mxu0 0.0
    %2432 = vmatprep.subr.mxu0 0.0
    %2433 = vmatpush1.xpose.msra.mxu0 0.0
    %2434 = vmatprep.subr.mxu0 0.0
    %2435 = vmatpush1.xpose.msra.mxu0 0.0
    %2436 = vmatprep.subr.mxu0 0.0
    %2437 = vmatpush1.xpose.msra.mxu0 0.0
    %2438 = vmatprep.subr.mxu0 0.0
    %2439 = vmatpush1.xpose.msra.mxu0 0.0
    %2440 = vmatprep.subr.mxu0 0.0
    %2441 = vmatpush1.xpose.msra.mxu0 %v2410
    %2442 = vmatprep.subr.mxu0 0.0
    %2443 = vmatpush1.xpose.msra.mxu0 %v2408
    %2444 = vmatprep.subr.mxu0 0.0
    %2445 = vmatpush2.xpose.msra.mxu0 0.0
    %2446 = vmatprep.subr.mxu0 0.0
    %2447 = vmatpush2.xpose.msra.mxu0 0.0
    %2448 = vmatprep.subr.mxu0 0.0
    %2449 = vmatpush2.xpose.msra.mxu0 0.0
    %2450 = vmatprep.subr.mxu0 0.0
    %2451 = vmatpush2.xpose.msra.mxu0 0.0
    %2452 = vmatprep.subr.mxu0 0.0
    %2453 = vmatpush2.xpose.msra.mxu0 0.0
    %2454 = vmatprep.subr.mxu0 0.0
    %2455 = vmatpush2.xpose.msra.mxu0 0.0
    %2456 = vmatprep.subr.mxu0 0.0
    %2457 = vmatpush2.xpose.msra.mxu0 0.0
    %2458 = vmatprep.subr.mxu0 0.0
    %2459 = vmatpush2.xpose.msra.mxu0 0.0
    %2460 = vmatprep.subr.mxu0 0.0
    %2461 = vmatpush2.xpose.msra.mxu0 0.0
    %2462 = vmatprep.subr.mxu0 0.0
    %2463 = vmatpush2.xpose.msra.mxu0 0.0
    %2464 = vmatprep.subr.mxu0 0.0
    %2465 = vmatpush2.xpose.msra.mxu0 0.0
    %2466 = vmatprep.subr.mxu0 0.0
    %2467 = vmatpush2.xpose.msra.mxu0 0.0
    %2468 = vmatprep.subr.mxu0 0.0
    %2469 = vmatpush2.xpose.msra.mxu0 0.0
    %2470 = vmatprep.subr.mxu0 0.0
    %2471 = vmatpush2.xpose.msra.mxu0 0.0
    %2472 = vmatprep.subr.mxu0 0.0
    %2473 = vmatpush2.xpose.msra.mxu0 0.0
    %2474 = vmatprep.subr.mxu0 0.0
    %2475 = vmatpush2.xpose.msra.mxu0 0.0
    %2476 = vmatprep.mubr.f32.mxu0 0.0
    %2477 = vmatmul.mubr.f32.gmra.mxu0 %v2404
    %v2478 = vpop.f32.mrf.mxu0
    %v2479 = vadd.f32 0.0, %v2478
    %v2480 = vpop.f32.mrf.mxu0
    %2481 = vmatprep.mubr.f32.mxu0 0.0
    %2482 = vmatmul.mubr.f32.gmra.mxu0 %v2406
    %v2483 = vpop.f32.mrf.mxu0
    %v2484 = vadd.f32 0.0, %v2483
    %v2485 = vpop.f32.mrf.mxu0
    %2486 = vdwg.mxu0
    %v2487 = vmul.f32 %v2479, 0.25
    %v2488 = vmul.f32 %v2484, 0.25
    %v2489 = vsel %vm623, %v2487, -1e+30
    %v2490 = vsel %vm624, %v2488, -1e+30
    %v2491 = vsel %vm1065, %v2489, -inf
    %2492 = vmax.xlane.f32.xlu0 %v2491
    %v2493 = vpop.xlane.xlu0 %2492
    %v2494 = vsel %vm1065, %v2490, -inf
    %2495 = vmax.xlane.f32.xlu0 %v2494
    %v2496 = vpop.xlane.xlu0 %2495
    %v2497 = vsub.f32 %v2489, %v2493
    %v2498 = vsub.f32 %v2490, %v2496
    %v2499 = vmul.f32 %v2497, 1.442695
    %v2500 = vpow.pop %v2499
    %v2501 = vmul.f32 %v2498, 1.442695
    %v2502 = vpow.pop %v2501
    %v2503 = vsel %vm1065, %v2500, 0.0
    %2504 = vadd.xlane.f32.xlu0 %v2503
    %v2505 = vpop.xlane.xlu0 %2504
    %v2506 = vsel %vm1065, %v2502, 0.0
    %2507 = vadd.xlane.f32.xlu0 %v2506
    %v2508 = vpop.xlane.xlu0 %2507
    %v2509 = vrcp.pop %v2505
    %v2510 = vrcp.pop %v2508
    %v2511 = vmul.f32 %v2500, %v2509
    %v2512 = vmul.f32 %v2502, %v2510
    %2515 = vrot.lane.b32.xlu0 %v1057, 112
    %v2516 = vpop.permute.xlu0 %2515
    %2517 = vrot.lane.b32.xlu0 %v1062, 112
    %v2518 = vpop.permute.xlu0 %2517
    %v2522 = vsel %vm1065, %v2511, 0
    %v2525 = vsel %vm1065, %v2512, 0
    %2527 = vmatprep.subr.mxu0 0.0
    %2528 = vmatpush1.msra.mxu0 0.0
    %2529 = vmatprep.subr.mxu0 0.0
    %2530 = vmatpush1.msra.mxu0 0.0
    %2531 = vmatprep.subr.mxu0 0.0
    %2532 = vmatpush1.msra.mxu0 0.0
    %2533 = vmatprep.subr.mxu0 0.0
    %2534 = vmatpush1.msra.mxu0 0.0
    %2535 = vmatprep.subr.mxu0 0.0
    %2536 = vmatpush1.msra.mxu0 0.0
    %2537 = vmatprep.subr.mxu0 0.0
    %2538 = vmatpush1.msra.mxu0 0.0
    %2539 = vmatprep.subr.mxu0 0.0
    %2540 = vmatpush1.msra.mxu0 0.0
    %2541 = vmatprep.subr.mxu0 0.0
    %2542 = vmatpush1.msra.mxu0 0.0
    %2543 = vmatprep.subr.mxu0 0.0
    %2544 = vmatpush1.msra.mxu0 0.0
    %2545 = vmatprep.subr.mxu0 0.0
    %2546 = vmatpush1.msra.mxu0 0.0
    %2547 = vmatprep.subr.mxu0 0.0
    %2548 = vmatpush1.msra.mxu0 0.0
    %2549 = vmatprep.subr.mxu0 0.0
    %2550 = vmatpush1.msra.mxu0 0.0
    %2551 = vmatprep.subr.mxu0 0.0
    %2552 = vmatpush1.msra.mxu0 0.0
    %2553 = vmatprep.subr.mxu0 0.0
    %2554 = vmatpush1.msra.mxu0 0.0
    %2555 = vmatprep.subr.mxu0 0.0
    %2556 = vmatpush1.msra.mxu0 %v2518
    %2557 = vmatprep.subr.mxu0 0.0
    %2558 = vmatpush1.msra.mxu0 %v2516
    %2559 = vmatprep.subr.mxu0 0.0
    %2560 = vmatpush2.msra.mxu0 0.0
    %2561 = vmatprep.subr.mxu0 0.0
    %2562 = vmatpush2.msra.mxu0 0.0
    %2563 = vmatprep.subr.mxu0 0.0
    %2564 = vmatpush2.msra.mxu0 0.0
    %2565 = vmatprep.subr.mxu0 0.0
    %2566 = vmatpush2.msra.mxu0 0.0
    %2567 = vmatprep.subr.mxu0 0.0
    %2568 = vmatpush2.msra.mxu0 0.0
    %2569 = vmatprep.subr.mxu0 0.0
    %2570 = vmatpush2.msra.mxu0 0.0
    %2571 = vmatprep.subr.mxu0 0.0
    %2572 = vmatpush2.msra.mxu0 0.0
    %2573 = vmatprep.subr.mxu0 0.0
    %2574 = vmatpush2.msra.mxu0 0.0
    %2575 = vmatprep.subr.mxu0 0.0
    %2576 = vmatpush2.msra.mxu0 0.0
    %2577 = vmatprep.subr.mxu0 0.0
    %2578 = vmatpush2.msra.mxu0 0.0
    %2579 = vmatprep.subr.mxu0 0.0
    %2580 = vmatpush2.msra.mxu0 0.0
    %2581 = vmatprep.subr.mxu0 0.0
    %2582 = vmatpush2.msra.mxu0 0.0
    %2583 = vmatprep.subr.mxu0 0.0
    %2584 = vmatpush2.msra.mxu0 0.0
    %2585 = vmatprep.subr.mxu0 0.0
    %2586 = vmatpush2.msra.mxu0 0.0
    %2587 = vmatprep.subr.mxu0 0.0
    %2588 = vmatpush2.msra.mxu0 0.0
    %2589 = vmatprep.subr.mxu0 0.0
    %2590 = vmatpush2.msra.mxu0 0.0
    %2591 = vmatprep.mubr.f32.mxu0 0.0
    %2592 = vmatmul.mubr.f32.gmra.mxu0 %v2522
    %v2593 = vpop.f32.mrf.mxu0
    %v2594 = vadd.f32 0.0, %v2593
    %v2595 = vpop.f32.mrf.mxu0
    %2596 = vmatprep.mubr.f32.mxu0 0.0
    %2597 = vmatmul.mubr.f32.gmra.mxu0 %v2525
    %v2598 = vpop.f32.mrf.mxu0
    %v2599 = vadd.f32 0.0, %v2598
    %v2600 = vpop.f32.mrf.mxu0
    %2601 = vdwg.mxu0
    %v2603 = vsel %vm1065, %v2594, 0
    %v2606 = vsel %vm1065, %v2599, 0
    %2608 = vmatprep.subr.mxu0 0.0
    %2609 = vmatpush1.msra.mxu0 0.0
    %2610 = vmatprep.subr.mxu0 0.0
    %2611 = vmatpush1.msra.mxu0 0.0
    %2612 = vmatprep.subr.mxu0 0.0
    %2613 = vmatpush1.msra.mxu0 0.0
    %2614 = vmatprep.subr.mxu0 0.0
    %2615 = vmatpush1.msra.mxu0 0.0
    %2616 = vmatprep.subr.mxu0 0.0
    %2617 = vmatpush1.msra.mxu0 0.0
    %2618 = vmatprep.subr.mxu0 0.0
    %2619 = vmatpush1.msra.mxu0 0.0
    %2620 = vmatprep.subr.mxu0 0.0
    %2621 = vmatpush1.msra.mxu0 0.0
    %2622 = vmatprep.subr.mxu0 0.0
    %2623 = vmatpush1.msra.mxu0 0.0
    %2624 = vmatprep.subr.mxu0 0.0
    %2625 = vmatpush1.msra.mxu0 0.0
    %2626 = vmatprep.subr.mxu0 0.0
    %2627 = vmatpush1.msra.mxu0 0.0
    %2628 = vmatprep.subr.mxu0 0.0
    %2629 = vmatpush1.msra.mxu0 0.0
    %2630 = vmatprep.subr.mxu0 0.0
    %2631 = vmatpush1.msra.mxu0 0.0
    %2632 = vmatprep.subr.mxu0 0.0
    %2633 = vmatpush1.msra.mxu0 0.0
    %2634 = vmatprep.subr.mxu0 0.0
    %2635 = vmatpush1.msra.mxu0 0.0
    %2636 = vmatprep.subr.mxu0 0.0
    %2637 = vmatpush1.msra.mxu0 %v652
    %2638 = vmatprep.subr.mxu0 0.0
    %2639 = vmatpush1.msra.mxu0 %v651
    %2640 = vmatprep.subr.mxu0 0.0
    %2641 = vmatpush2.msra.mxu0 0.0
    %2642 = vmatprep.subr.mxu0 0.0
    %2643 = vmatpush2.msra.mxu0 0.0
    %2644 = vmatprep.subr.mxu0 0.0
    %2645 = vmatpush2.msra.mxu0 0.0
    %2646 = vmatprep.subr.mxu0 0.0
    %2647 = vmatpush2.msra.mxu0 0.0
    %2648 = vmatprep.subr.mxu0 0.0
    %2649 = vmatpush2.msra.mxu0 0.0
    %2650 = vmatprep.subr.mxu0 0.0
    %2651 = vmatpush2.msra.mxu0 0.0
    %2652 = vmatprep.subr.mxu0 0.0
    %2653 = vmatpush2.msra.mxu0 0.0
    %2654 = vmatprep.subr.mxu0 0.0
    %2655 = vmatpush2.msra.mxu0 0.0
    %2656 = vmatprep.subr.mxu0 0.0
    %2657 = vmatpush2.msra.mxu0 0.0
    %2658 = vmatprep.subr.mxu0 0.0
    %2659 = vmatpush2.msra.mxu0 0.0
    %2660 = vmatprep.subr.mxu0 0.0
    %2661 = vmatpush2.msra.mxu0 0.0
    %2662 = vmatprep.subr.mxu0 0.0
    %2663 = vmatpush2.msra.mxu0 0.0
    %2664 = vmatprep.subr.mxu0 0.0
    %2665 = vmatpush2.msra.mxu0 0.0
    %2666 = vmatprep.subr.mxu0 0.0
    %2667 = vmatpush2.msra.mxu0 0.0
    %2668 = vmatprep.subr.mxu0 0.0
    %2669 = vmatpush2.msra.mxu0 0.0
    %2670 = vmatprep.subr.mxu0 0.0
    %2671 = vmatpush2.msra.mxu0 0.0
    %2672 = vmatprep.mubr.f32.mxu0 0.0
    %2673 = vmatmul.mubr.f32.gmra.mxu0 %v2603
    %v2674 = vpop.f32.mrf.mxu0
    %v2675 = vadd.f32 0.0, %v2674
    %v2676 = vpop.f32.mrf.mxu0
    %2677 = vmatprep.mubr.f32.mxu0 0.0
    %2678 = vmatmul.mubr.f32.gmra.mxu0 %v2606
    %v2679 = vpop.f32.mrf.mxu0
    %v2680 = vadd.f32 0.0, %v2679
    %v2681 = vpop.f32.mrf.mxu0
    %2682 = vdwg.mxu0
    %v2684 = vsel %vm1065, %v2388, 0
    %v2687 = vsel %vm1065, %v2393, 0
    %2689 = vmatprep.subr.mxu0 0.0
    %2690 = vmatpush1.msra.mxu0 0.0
    %2691 = vmatprep.subr.mxu0 0.0
    %2692 = vmatpush1.msra.mxu0 0.0
    %2693 = vmatprep.subr.mxu0 0.0
    %2694 = vmatpush1.msra.mxu0 0.0
    %2695 = vmatprep.subr.mxu0 0.0
    %2696 = vmatpush1.msra.mxu0 0.0
    %2697 = vmatprep.subr.mxu0 0.0
    %2698 = vmatpush1.msra.mxu0 0.0
    %2699 = vmatprep.subr.mxu0 0.0
    %2700 = vmatpush1.msra.mxu0 0.0
    %2701 = vmatprep.subr.mxu0 0.0
    %2702 = vmatpush1.msra.mxu0 0.0
    %2703 = vmatprep.subr.mxu0 0.0
    %2704 = vmatpush1.msra.mxu0 0.0
    %2705 = vmatprep.subr.mxu0 0.0
    %2706 = vmatpush1.msra.mxu0 0.0
    %2707 = vmatprep.subr.mxu0 0.0
    %2708 = vmatpush1.msra.mxu0 0.0
    %2709 = vmatprep.subr.mxu0 0.0
    %2710 = vmatpush1.msra.mxu0 0.0
    %2711 = vmatprep.subr.mxu0 0.0
    %2712 = vmatpush1.msra.mxu0 0.0
    %2713 = vmatprep.subr.mxu0 0.0
    %2714 = vmatpush1.msra.mxu0 0.0
    %2715 = vmatprep.subr.mxu0 0.0
    %2716 = vmatpush1.msra.mxu0 0.0
    %2717 = vmatprep.subr.mxu0 0.0
    %2718 = vmatpush1.msra.mxu0 %v650
    %2719 = vmatprep.subr.mxu0 0.0
    %2720 = vmatpush1.msra.mxu0 %v649
    %2721 = vmatprep.subr.mxu0 0.0
    %2722 = vmatpush2.msra.mxu0 0.0
    %2723 = vmatprep.subr.mxu0 0.0
    %2724 = vmatpush2.msra.mxu0 0.0
    %2725 = vmatprep.subr.mxu0 0.0
    %2726 = vmatpush2.msra.mxu0 0.0
    %2727 = vmatprep.subr.mxu0 0.0
    %2728 = vmatpush2.msra.mxu0 0.0
    %2729 = vmatprep.subr.mxu0 0.0
    %2730 = vmatpush2.msra.mxu0 0.0
    %2731 = vmatprep.subr.mxu0 0.0
    %2732 = vmatpush2.msra.mxu0 0.0
    %2733 = vmatprep.subr.mxu0 0.0
    %2734 = vmatpush2.msra.mxu0 0.0
    %2735 = vmatprep.subr.mxu0 0.0
    %2736 = vmatpush2.msra.mxu0 0.0
    %2737 = vmatprep.subr.mxu0 0.0
    %2738 = vmatpush2.msra.mxu0 0.0
    %2739 = vmatprep.subr.mxu0 0.0
    %2740 = vmatpush2.msra.mxu0 0.0
    %2741 = vmatprep.subr.mxu0 0.0
    %2742 = vmatpush2.msra.mxu0 0.0
    %2743 = vmatprep.subr.mxu0 0.0
    %2744 = vmatpush2.msra.mxu0 0.0
    %2745 = vmatprep.subr.mxu0 0.0
    %2746 = vmatpush2.msra.mxu0 0.0
    %2747 = vmatprep.subr.mxu0 0.0
    %2748 = vmatpush2.msra.mxu0 0.0
    %2749 = vmatprep.subr.mxu0 0.0
    %2750 = vmatpush2.msra.mxu0 0.0
    %2751 = vmatprep.subr.mxu0 0.0
    %2752 = vmatpush2.msra.mxu0 0.0
    %2753 = vmatprep.mubr.f32.mxu0 0.0
    %2754 = vmatmul.mubr.f32.gmra.mxu0 %v2684
    %v2755 = vpop.f32.mrf.mxu0
    %v2756 = vadd.f32 %v2675, %v2755
    %v2757 = vpop.f32.mrf.mxu0
    %2758 = vmatprep.mubr.f32.mxu0 0.0
    %2759 = vmatmul.mubr.f32.gmra.mxu0 %v2687
    %v2760 = vpop.f32.mrf.mxu0
    %v2761 = vadd.f32 %v2680, %v2760
    %v2762 = vpop.f32.mrf.mxu0
    %2763 = vdwg.mxu0
    %2764 = vrot.lane.b32.xlu0 %v879, 96
    %v2765 = vpop.permute.xlu0 %2764
    %2766 = vrot.lane.b32.xlu0 %v884, 96
    %v2767 = vpop.permute.xlu0 %2766
    %2768 = vrot.lane.b32.xlu0 %v968, 96
    %v2769 = vpop.permute.xlu0 %2768
    %2770 = vrot.lane.b32.xlu0 %v973, 96
    %v2771 = vpop.permute.xlu0 %2770
    %v2772 = vsel %vm1065, %v2765, 0
    %v2774 = vsel %vm1065, %v2767, 0
    %v2776 = vsel %vm1065, %v2769, 0
    %v2778 = vsel %vm1065, %v2771, 0
    %2780 = vmatprep.subr.mxu0 0.0
    %2781 = vmatpush1.xpose.msra.mxu0 0.0
    %2782 = vmatprep.subr.mxu0 0.0
    %2783 = vmatpush1.xpose.msra.mxu0 0.0
    %2784 = vmatprep.subr.mxu0 0.0
    %2785 = vmatpush1.xpose.msra.mxu0 0.0
    %2786 = vmatprep.subr.mxu0 0.0
    %2787 = vmatpush1.xpose.msra.mxu0 0.0
    %2788 = vmatprep.subr.mxu0 0.0
    %2789 = vmatpush1.xpose.msra.mxu0 0.0
    %2790 = vmatprep.subr.mxu0 0.0
    %2791 = vmatpush1.xpose.msra.mxu0 0.0
    %2792 = vmatprep.subr.mxu0 0.0
    %2793 = vmatpush1.xpose.msra.mxu0 0.0
    %2794 = vmatprep.subr.mxu0 0.0
    %2795 = vmatpush1.xpose.msra.mxu0 0.0
    %2796 = vmatprep.subr.mxu0 0.0
    %2797 = vmatpush1.xpose.msra.mxu0 0.0
    %2798 = vmatprep.subr.mxu0 0.0
    %2799 = vmatpush1.xpose.msra.mxu0 0.0
    %2800 = vmatprep.subr.mxu0 0.0
    %2801 = vmatpush1.xpose.msra.mxu0 0.0
    %2802 = vmatprep.subr.mxu0 0.0
    %2803 = vmatpush1.xpose.msra.mxu0 0.0
    %2804 = vmatprep.subr.mxu0 0.0
    %2805 = vmatpush1.xpose.msra.mxu0 0.0
    %2806 = vmatprep.subr.mxu0 0.0
    %2807 = vmatpush1.xpose.msra.mxu0 0.0
    %2808 = vmatprep.subr.mxu0 0.0
    %2809 = vmatpush1.xpose.msra.mxu0 %v2778
    %2810 = vmatprep.subr.mxu0 0.0
    %2811 = vmatpush1.xpose.msra.mxu0 %v2776
    %2812 = vmatprep.subr.mxu0 0.0
    %2813 = vmatpush2.xpose.msra.mxu0 0.0
    %2814 = vmatprep.subr.mxu0 0.0
    %2815 = vmatpush2.xpose.msra.mxu0 0.0
    %2816 = vmatprep.subr.mxu0 0.0
    %2817 = vmatpush2.xpose.msra.mxu0 0.0
    %2818 = vmatprep.subr.mxu0 0.0
    %2819 = vmatpush2.xpose.msra.mxu0 0.0
    %2820 = vmatprep.subr.mxu0 0.0
    %2821 = vmatpush2.xpose.msra.mxu0 0.0
    %2822 = vmatprep.subr.mxu0 0.0
    %2823 = vmatpush2.xpose.msra.mxu0 0.0
    %2824 = vmatprep.subr.mxu0 0.0
    %2825 = vmatpush2.xpose.msra.mxu0 0.0
    %2826 = vmatprep.subr.mxu0 0.0
    %2827 = vmatpush2.xpose.msra.mxu0 0.0
    %2828 = vmatprep.subr.mxu0 0.0
    %2829 = vmatpush2.xpose.msra.mxu0 0.0
    %2830 = vmatprep.subr.mxu0 0.0
    %2831 = vmatpush2.xpose.msra.mxu0 0.0
    %2832 = vmatprep.subr.mxu0 0.0
    %2833 = vmatpush2.xpose.msra.mxu0 0.0
    %2834 = vmatprep.subr.mxu0 0.0
    %2835 = vmatpush2.xpose.msra.mxu0 0.0
    %2836 = vmatprep.subr.mxu0 0.0
    %2837 = vmatpush2.xpose.msra.mxu0 0.0
    %2838 = vmatprep.subr.mxu0 0.0
    %2839 = vmatpush2.xpose.msra.mxu0 0.0
    %2840 = vmatprep.subr.mxu0 0.0
    %2841 = vmatpush2.xpose.msra.mxu0 0.0
    %2842 = vmatprep.subr.mxu0 0.0
    %2843 = vmatpush2.xpose.msra.mxu0 0.0
    %2844 = vmatprep.mubr.f32.mxu0 0.0
    %2845 = vmatmul.mubr.f32.gmra.mxu0 %v2772
    %v2846 = vpop.f32.mrf.mxu0
    %v2847 = vadd.f32 0.0, %v2846
    %v2848 = vpop.f32.mrf.mxu0
    %2849 = vmatprep.mubr.f32.mxu0 0.0
    %2850 = vmatmul.mubr.f32.gmra.mxu0 %v2774
    %v2851 = vpop.f32.mrf.mxu0
    %v2852 = vadd.f32 0.0, %v2851
    %v2853 = vpop.f32.mrf.mxu0
    %2854 = vdwg.mxu0
    %v2855 = vmul.f32 %v2847, 0.25
    %v2856 = vmul.f32 %v2852, 0.25
    %v2857 = vsel %vm623, %v2855, -1e+30
    %v2858 = vsel %vm624, %v2856, -1e+30
    %v2859 = vsel %vm1065, %v2857, -inf
    %2860 = vmax.xlane.f32.xlu0 %v2859
    %v2861 = vpop.xlane.xlu0 %2860
    %v2862 = vsel %vm1065, %v2858, -inf
    %2863 = vmax.xlane.f32.xlu0 %v2862
    %v2864 = vpop.xlane.xlu0 %2863
    %v2865 = vsub.f32 %v2857, %v2861
    %v2866 = vsub.f32 %v2858, %v2864
    %v2867 = vmul.f32 %v2865, 1.442695
    %v2868 = vpow.pop %v2867
    %v2869 = vmul.f32 %v2866, 1.442695
    %v2870 = vpow.pop %v2869
    %v2871 = vsel %vm1065, %v2868, 0.0
    %2872 = vadd.xlane.f32.xlu0 %v2871
    %v2873 = vpop.xlane.xlu0 %2872
    %v2874 = vsel %vm1065, %v2870, 0.0
    %2875 = vadd.xlane.f32.xlu0 %v2874
    %v2876 = vpop.xlane.xlu0 %2875
    %v2877 = vrcp.pop %v2873
    %v2878 = vrcp.pop %v2876
    %v2879 = vmul.f32 %v2868, %v2877
    %v2880 = vmul.f32 %v2870, %v2878
    %2881 = vrot.lane.b32.xlu0 %v1057, 96
    %v2882 = vpop.permute.xlu0 %2881
    %2883 = vrot.lane.b32.xlu0 %v1062, 96
    %v2884 = vpop.permute.xlu0 %2883
    %v2888 = vsel %vm1065, %v2879, 0
    %v2891 = vsel %vm1065, %v2880, 0
    %2893 = vmatprep.subr.mxu0 0.0
    %2894 = vmatpush1.msra.mxu0 0.0
    %2895 = vmatprep.subr.mxu0 0.0
    %2896 = vmatpush1.msra.mxu0 0.0
    %2897 = vmatprep.subr.mxu0 0.0
    %2898 = vmatpush1.msra.mxu0 0.0
    %2899 = vmatprep.subr.mxu0 0.0
    %2900 = vmatpush1.msra.mxu0 0.0
    %2901 = vmatprep.subr.mxu0 0.0
    %2902 = vmatpush1.msra.mxu0 0.0
    %2903 = vmatprep.subr.mxu0 0.0
    %2904 = vmatpush1.msra.mxu0 0.0
    %2905 = vmatprep.subr.mxu0 0.0
    %2906 = vmatpush1.msra.mxu0 0.0
    %2907 = vmatprep.subr.mxu0 0.0
    %2908 = vmatpush1.msra.mxu0 0.0
    %2909 = vmatprep.subr.mxu0 0.0
    %2910 = vmatpush1.msra.mxu0 0.0
    %2911 = vmatprep.subr.mxu0 0.0
    %2912 = vmatpush1.msra.mxu0 0.0
    %2913 = vmatprep.subr.mxu0 0.0
    %2914 = vmatpush1.msra.mxu0 0.0
    %2915 = vmatprep.subr.mxu0 0.0
    %2916 = vmatpush1.msra.mxu0 0.0
    %2917 = vmatprep.subr.mxu0 0.0
    %2918 = vmatpush1.msra.mxu0 0.0
    %2919 = vmatprep.subr.mxu0 0.0
    %2920 = vmatpush1.msra.mxu0 0.0
    %2921 = vmatprep.subr.mxu0 0.0
    %2922 = vmatpush1.msra.mxu0 %v2884
    %2923 = vmatprep.subr.mxu0 0.0
    %2924 = vmatpush1.msra.mxu0 %v2882
    %2925 = vmatprep.subr.mxu0 0.0
    %2926 = vmatpush2.msra.mxu0 0.0
    %2927 = vmatprep.subr.mxu0 0.0
    %2928 = vmatpush2.msra.mxu0 0.0
    %2929 = vmatprep.subr.mxu0 0.0
    %2930 = vmatpush2.msra.mxu0 0.0
    %2931 = vmatprep.subr.mxu0 0.0
    %2932 = vmatpush2.msra.mxu0 0.0
    %2933 = vmatprep.subr.mxu0 0.0
    %2934 = vmatpush2.msra.mxu0 0.0
    %2935 = vmatprep.subr.mxu0 0.0
    %2936 = vmatpush2.msra.mxu0 0.0
    %2937 = vmatprep.subr.mxu0 0.0
    %2938 = vmatpush2.msra.mxu0 0.0
    %2939 = vmatprep.subr.mxu0 0.0
    %2940 = vmatpush2.msra.mxu0 0.0
    %2941 = vmatprep.subr.mxu0 0.0
    %2942 = vmatpush2.msra.mxu0 0.0
    %2943 = vmatprep.subr.mxu0 0.0
    %2944 = vmatpush2.msra.mxu0 0.0
    %2945 = vmatprep.subr.mxu0 0.0
    %2946 = vmatpush2.msra.mxu0 0.0
    %2947 = vmatprep.subr.mxu0 0.0
    %2948 = vmatpush2.msra.mxu0 0.0
    %2949 = vmatprep.subr.mxu0 0.0
    %2950 = vmatpush2.msra.mxu0 0.0
    %2951 = vmatprep.subr.mxu0 0.0
    %2952 = vmatpush2.msra.mxu0 0.0
    %2953 = vmatprep.subr.mxu0 0.0
    %2954 = vmatpush2.msra.mxu0 0.0
    %2955 = vmatprep.subr.mxu0 0.0
    %2956 = vmatpush2.msra.mxu0 0.0
    %2957 = vmatprep.mubr.f32.mxu0 0.0
    %2958 = vmatmul.mubr.f32.gmra.mxu0 %v2888
    %v2959 = vpop.f32.mrf.mxu0
    %v2960 = vadd.f32 0.0, %v2959
    %v2961 = vpop.f32.mrf.mxu0
    %2962 = vmatprep.mubr.f32.mxu0 0.0
    %2963 = vmatmul.mubr.f32.gmra.mxu0 %v2891
    %v2964 = vpop.f32.mrf.mxu0
    %v2965 = vadd.f32 0.0, %v2964
    %v2966 = vpop.f32.mrf.mxu0
    %2967 = vdwg.mxu0
    %v2969 = vsel %vm1065, %v2960, 0
    %v2972 = vsel %vm1065, %v2965, 0
    %2974 = vmatprep.subr.mxu0 0.0
    %2975 = vmatpush1.msra.mxu0 0.0
    %2976 = vmatprep.subr.mxu0 0.0
    %2977 = vmatpush1.msra.mxu0 0.0
    %2978 = vmatprep.subr.mxu0 0.0
    %2979 = vmatpush1.msra.mxu0 0.0
    %2980 = vmatprep.subr.mxu0 0.0
    %2981 = vmatpush1.msra.mxu0 0.0
    %2982 = vmatprep.subr.mxu0 0.0
    %2983 = vmatpush1.msra.mxu0 0.0
    %2984 = vmatprep.subr.mxu0 0.0
    %2985 = vmatpush1.msra.mxu0 0.0
    %2986 = vmatprep.subr.mxu0 0.0
    %2987 = vmatpush1.msra.mxu0 0.0
    %2988 = vmatprep.subr.mxu0 0.0
    %2989 = vmatpush1.msra.mxu0 0.0
    %2990 = vmatprep.subr.mxu0 0.0
    %2991 = vmatpush1.msra.mxu0 0.0
    %2992 = vmatprep.subr.mxu0 0.0
    %2993 = vmatpush1.msra.mxu0 0.0
    %2994 = vmatprep.subr.mxu0 0.0
    %2995 = vmatpush1.msra.mxu0 0.0
    %2996 = vmatprep.subr.mxu0 0.0
    %2997 = vmatpush1.msra.mxu0 0.0
    %2998 = vmatprep.subr.mxu0 0.0
    %2999 = vmatpush1.msra.mxu0 0.0
    %3000 = vmatprep.subr.mxu0 0.0
    %3001 = vmatpush1.msra.mxu0 0.0
    %3002 = vmatprep.subr.mxu0 0.0
    %3003 = vmatpush1.msra.mxu0 %v654
    %3004 = vmatprep.subr.mxu0 0.0
    %3005 = vmatpush1.msra.mxu0 %v653
    %3006 = vmatprep.subr.mxu0 0.0
    %3007 = vmatpush2.msra.mxu0 0.0
    %3008 = vmatprep.subr.mxu0 0.0
    %3009 = vmatpush2.msra.mxu0 0.0
    %3010 = vmatprep.subr.mxu0 0.0
    %3011 = vmatpush2.msra.mxu0 0.0
    %3012 = vmatprep.subr.mxu0 0.0
    %3013 = vmatpush2.msra.mxu0 0.0
    %3014 = vmatprep.subr.mxu0 0.0
    %3015 = vmatpush2.msra.mxu0 0.0
    %3016 = vmatprep.subr.mxu0 0.0
    %3017 = vmatpush2.msra.mxu0 0.0
    %3018 = vmatprep.subr.mxu0 0.0
    %3019 = vmatpush2.msra.mxu0 0.0
    %3020 = vmatprep.subr.mxu0 0.0
    %3021 = vmatpush2.msra.mxu0 0.0
    %3022 = vmatprep.subr.mxu0 0.0
    %3023 = vmatpush2.msra.mxu0 0.0
    %3024 = vmatprep.subr.mxu0 0.0
    %3025 = vmatpush2.msra.mxu0 0.0
    %3026 = vmatprep.subr.mxu0 0.0
    %3027 = vmatpush2.msra.mxu0 0.0
    %3028 = vmatprep.subr.mxu0 0.0
    %3029 = vmatpush2.msra.mxu0 0.0
    %3030 = vmatprep.subr.mxu0 0.0
    %3031 = vmatpush2.msra.mxu0 0.0
    %3032 = vmatprep.subr.mxu0 0.0
    %3033 = vmatpush2.msra.mxu0 0.0
    %3034 = vmatprep.subr.mxu0 0.0
    %3035 = vmatpush2.msra.mxu0 0.0
    %3036 = vmatprep.subr.mxu0 0.0
    %3037 = vmatpush2.msra.mxu0 0.0
    %3038 = vmatprep.mubr.f32.mxu0 0.0
    %3039 = vmatmul.mubr.f32.gmra.mxu0 %v2969
    %v3040 = vpop.f32.mrf.mxu0
    %v3041 = vadd.f32 0.0, %v3040
    %v3042 = vpop.f32.mrf.mxu0
    %3043 = vmatprep.mubr.f32.mxu0 0.0
    %3044 = vmatmul.mubr.f32.gmra.mxu0 %v2972
    %v3045 = vpop.f32.mrf.mxu0
    %v3046 = vadd.f32 0.0, %v3045
    %v3047 = vpop.f32.mrf.mxu0
    %3048 = vdwg.mxu0
    %v3049 = vadd.f32 %v2756, %v3041
    %v3050 = vadd.f32 %v2761, %v3046
    %3051 = vrot.lane.b32.xlu0 %v879, 80
    %v3052 = vpop.permute.xlu0 %3051
    %3053 = vrot.lane.b32.xlu0 %v884, 80
    %v3054 = vpop.permute.xlu0 %3053
    %3055 = vrot.lane.b32.xlu0 %v968, 80
    %v3056 = vpop.permute.xlu0 %3055
    %3057 = vrot.lane.b32.xlu0 %v973, 80
    %v3058 = vpop.permute.xlu0 %3057
    %v3059 = vsel %vm1065, %v3052, 0
    %v3061 = vsel %vm1065, %v3054, 0
    %v3063 = vsel %vm1065, %v3056, 0
    %v3065 = vsel %vm1065, %v3058, 0
    %3067 = vmatprep.subr.mxu0 0.0
    %3068 = vmatpush1.xpose.msra.mxu0 0.0
    %3069 = vmatprep.subr.mxu0 0.0
    %3070 = vmatpush1.xpose.msra.mxu0 0.0
    %3071 = vmatprep.subr.mxu0 0.0
    %3072 = vmatpush1.xpose.msra.mxu0 0.0
    %3073 = vmatprep.subr.mxu0 0.0
    %3074 = vmatpush1.xpose.msra.mxu0 0.0
    %3075 = vmatprep.subr.mxu0 0.0
    %3076 = vmatpush1.xpose.msra.mxu0 0.0
    %3077 = vmatprep.subr.mxu0 0.0
    %3078 = vmatpush1.xpose.msra.mxu0 0.0
    %3079 = vmatprep.subr.mxu0 0.0
    %3080 = vmatpush1.xpose.msra.mxu0 0.0
    %3081 = vmatprep.subr.mxu0 0.0
    %3082 = vmatpush1.xpose.msra.mxu0 0.0
    %3083 = vmatprep.subr.mxu0 0.0
    %3084 = vmatpush1.xpose.msra.mxu0 0.0
    %3085 = vmatprep.subr.mxu0 0.0
    %3086 = vmatpush1.xpose.msra.mxu0 0.0
    %3087 = vmatprep.subr.mxu0 0.0
    %3088 = vmatpush1.xpose.msra.mxu0 0.0
    %3089 = vmatprep.subr.mxu0 0.0
    %3090 = vmatpush1.xpose.msra.mxu0 0.0
    %3091 = vmatprep.subr.mxu0 0.0
    %3092 = vmatpush1.xpose.msra.mxu0 0.0
    %3093 = vmatprep.subr.mxu0 0.0
    %3094 = vmatpush1.xpose.msra.mxu0 0.0
    %3095 = vmatprep.subr.mxu0 0.0
    %3096 = vmatpush1.xpose.msra.mxu0 %v3065
    %3097 = vmatprep.subr.mxu0 0.0
    %3098 = vmatpush1.xpose.msra.mxu0 %v3063
    %3099 = vmatprep.subr.mxu0 0.0
    %3100 = vmatpush2.xpose.msra.mxu0 0.0
    %3101 = vmatprep.subr.mxu0 0.0
    %3102 = vmatpush2.xpose.msra.mxu0 0.0
    %3103 = vmatprep.subr.mxu0 0.0
    %3104 = vmatpush2.xpose.msra.mxu0 0.0
    %3105 = vmatprep.subr.mxu0 0.0
    %3106 = vmatpush2.xpose.msra.mxu0 0.0
    %3107 = vmatprep.subr.mxu0 0.0
    %3108 = vmatpush2.xpose.msra.mxu0 0.0
    %3109 = vmatprep.subr.mxu0 0.0
    %3110 = vmatpush2.xpose.msra.mxu0 0.0
    %3111 = vmatprep.subr.mxu0 0.0
    %3112 = vmatpush2.xpose.msra.mxu0 0.0
    %3113 = vmatprep.subr.mxu0 0.0
    %3114 = vmatpush2.xpose.msra.mxu0 0.0
    %3115 = vmatprep.subr.mxu0 0.0
    %3116 = vmatpush2.xpose.msra.mxu0 0.0
    %3117 = vmatprep.subr.mxu0 0.0
    %3118 = vmatpush2.xpose.msra.mxu0 0.0
    %3119 = vmatprep.subr.mxu0 0.0
    %3120 = vmatpush2.xpose.msra.mxu0 0.0
    %3121 = vmatprep.subr.mxu0 0.0
    %3122 = vmatpush2.xpose.msra.mxu0 0.0
    %3123 = vmatprep.subr.mxu0 0.0
    %3124 = vmatpush2.xpose.msra.mxu0 0.0
    %3125 = vmatprep.subr.mxu0 0.0
    %3126 = vmatpush2.xpose.msra.mxu0 0.0
    %3127 = vmatprep.subr.mxu0 0.0
    %3128 = vmatpush2.xpose.msra.mxu0 0.0
    %3129 = vmatprep.subr.mxu0 0.0
    %3130 = vmatpush2.xpose.msra.mxu0 0.0
    %3131 = vmatprep.mubr.f32.mxu0 0.0
    %3132 = vmatmul.mubr.f32.gmra.mxu0 %v3059
    %v3133 = vpop.f32.mrf.mxu0
    %v3134 = vadd.f32 0.0, %v3133
    %v3135 = vpop.f32.mrf.mxu0
    %3136 = vmatprep.mubr.f32.mxu0 0.0
    %3137 = vmatmul.mubr.f32.gmra.mxu0 %v3061
    %v3138 = vpop.f32.mrf.mxu0
    %v3139 = vadd.f32 0.0, %v3138
    %v3140 = vpop.f32.mrf.mxu0
    %3141 = vdwg.mxu0
    %v3142 = vmul.f32 %v3134, 0.25
    %v3143 = vmul.f32 %v3139, 0.25
    %v3144 = vsel %vm623, %v3142, -1e+30
    %v3145 = vsel %vm624, %v3143, -1e+30
    %v3146 = vsel %vm1065, %v3144, -inf
    %3147 = vmax.xlane.f32.xlu0 %v3146
    %v3148 = vpop.xlane.xlu0 %3147
    %v3149 = vsel %vm1065, %v3145, -inf
    %3150 = vmax.xlane.f32.xlu0 %v3149
    %v3151 = vpop.xlane.xlu0 %3150
    %v3152 = vsub.f32 %v3144, %v3148
    %v3153 = vsub.f32 %v3145, %v3151
    %v3154 = vmul.f32 %v3152, 1.442695
    %v3155 = vpow.pop %v3154
    %v3156 = vmul.f32 %v3153, 1.442695
    %v3157 = vpow.pop %v3156
    %v3158 = vsel %vm1065, %v3155, 0.0
    %3159 = vadd.xlane.f32.xlu0 %v3158
    %v3160 = vpop.xlane.xlu0 %3159
    %v3161 = vsel %vm1065, %v3157, 0.0
    %3162 = vadd.xlane.f32.xlu0 %v3161
    %v3163 = vpop.xlane.xlu0 %3162
    %v3164 = vrcp.pop %v3160
    %v3165 = vrcp.pop %v3163
    %v3166 = vmul.f32 %v3155, %v3164
    %v3167 = vmul.f32 %v3157, %v3165
    %3168 = vrot.lane.b32.xlu0 %v1057, 80
    %v3169 = vpop.permute.xlu0 %3168
    %3170 = vrot.lane.b32.xlu0 %v1062, 80
    %v3171 = vpop.permute.xlu0 %3170
    %v3175 = vsel %vm1065, %v3166, 0
    %v3178 = vsel %vm1065, %v3167, 0
    %3180 = vmatprep.subr.mxu0 0.0
    %3181 = vmatpush1.msra.mxu0 0.0
    %3182 = vmatprep.subr.mxu0 0.0
    %3183 = vmatpush1.msra.mxu0 0.0
    %3184 = vmatprep.subr.mxu0 0.0
    %3185 = vmatpush1.msra.mxu0 0.0
    %3186 = vmatprep.subr.mxu0 0.0
    %3187 = vmatpush1.msra.mxu0 0.0
    %3188 = vmatprep.subr.mxu0 0.0
    %3189 = vmatpush1.msra.mxu0 0.0
    %3190 = vmatprep.subr.mxu0 0.0
    %3191 = vmatpush1.msra.mxu0 0.0
    %3192 = vmatprep.subr.mxu0 0.0
    %3193 = vmatpush1.msra.mxu0 0.0
    %3194 = vmatprep.subr.mxu0 0.0
    %3195 = vmatpush1.msra.mxu0 0.0
    %3196 = vmatprep.subr.mxu0 0.0
    %3197 = vmatpush1.msra.mxu0 0.0
    %3198 = vmatprep.subr.mxu0 0.0
    %3199 = vmatpush1.msra.mxu0 0.0
    %3200 = vmatprep.subr.mxu0 0.0
    %3201 = vmatpush1.msra.mxu0 0.0
    %3202 = vmatprep.subr.mxu0 0.0
    %3203 = vmatpush1.msra.mxu0 0.0
    %3204 = vmatprep.subr.mxu0 0.0
    %3205 = vmatpush1.msra.mxu0 0.0
    %3206 = vmatprep.subr.mxu0 0.0
    %3207 = vmatpush1.msra.mxu0 0.0
    %3208 = vmatprep.subr.mxu0 0.0
    %3209 = vmatpush1.msra.mxu0 %v3171
    %3210 = vmatprep.subr.mxu0 0.0
    %3211 = vmatpush1.msra.mxu0 %v3169
    %3212 = vmatprep.subr.mxu0 0.0
    %3213 = vmatpush2.msra.mxu0 0.0
    %3214 = vmatprep.subr.mxu0 0.0
    %3215 = vmatpush2.msra.mxu0 0.0
    %3216 = vmatprep.subr.mxu0 0.0
    %3217 = vmatpush2.msra.mxu0 0.0
    %3218 = vmatprep.subr.mxu0 0.0
    %3219 = vmatpush2.msra.mxu0 0.0
    %3220 = vmatprep.subr.mxu0 0.0
    %3221 = vmatpush2.msra.mxu0 0.0
    %3222 = vmatprep.subr.mxu0 0.0
    %3223 = vmatpush2.msra.mxu0 0.0
    %3224 = vmatprep.subr.mxu0 0.0
    %3225 = vmatpush2.msra.mxu0 0.0
    %3226 = vmatprep.subr.mxu0 0.0
    %3227 = vmatpush2.msra.mxu0 0.0
    %3228 = vmatprep.subr.mxu0 0.0
    %3229 = vmatpush2.msra.mxu0 0.0
    %3230 = vmatprep.subr.mxu0 0.0
    %3231 = vmatpush2.msra.mxu0 0.0
    %3232 = vmatprep.subr.mxu0 0.0
    %3233 = vmatpush2.msra.mxu0 0.0
    %3234 = vmatprep.subr.mxu0 0.0
    %3235 = vmatpush2.msra.mxu0 0.0
    %3236 = vmatprep.subr.mxu0 0.0
    %3237 = vmatpush2.msra.mxu0 0.0
    %3238 = vmatprep.subr.mxu0 0.0
    %3239 = vmatpush2.msra.mxu0 0.0
    %3240 = vmatprep.subr.mxu0 0.0
    %3241 = vmatpush2.msra.mxu0 0.0
    %3242 = vmatprep.subr.mxu0 0.0
    %3243 = vmatpush2.msra.mxu0 0.0
    %3244 = vmatprep.mubr.f32.mxu0 0.0
    %3245 = vmatmul.mubr.f32.gmra.mxu0 %v3175
    %v3246 = vpop.f32.mrf.mxu0
    %v3247 = vadd.f32 0.0, %v3246
    %v3248 = vpop.f32.mrf.mxu0
    %3249 = vmatprep.mubr.f32.mxu0 0.0
    %3250 = vmatmul.mubr.f32.gmra.mxu0 %v3178
    %v3251 = vpop.f32.mrf.mxu0
    %v3252 = vadd.f32 0.0, %v3251
    %v3253 = vpop.f32.mrf.mxu0
    %3254 = vdwg.mxu0
    %v3256 = vsel %vm1065, %v3247, 0
    %v3259 = vsel %vm1065, %v3252, 0
    %3261 = vmatprep.subr.mxu0 0.0
    %3262 = vmatpush1.msra.mxu0 0.0
    %3263 = vmatprep.subr.mxu0 0.0
    %3264 = vmatpush1.msra.mxu0 0.0
    %3265 = vmatprep.subr.mxu0 0.0
    %3266 = vmatpush1.msra.mxu0 0.0
    %3267 = vmatprep.subr.mxu0 0.0
    %3268 = vmatpush1.msra.mxu0 0.0
    %3269 = vmatprep.subr.mxu0 0.0
    %3270 = vmatpush1.msra.mxu0 0.0
    %3271 = vmatprep.subr.mxu0 0.0
    %3272 = vmatpush1.msra.mxu0 0.0
    %3273 = vmatprep.subr.mxu0 0.0
    %3274 = vmatpush1.msra.mxu0 0.0
    %3275 = vmatprep.subr.mxu0 0.0
    %3276 = vmatpush1.msra.mxu0 0.0
    %3277 = vmatprep.subr.mxu0 0.0
    %3278 = vmatpush1.msra.mxu0 0.0
    %3279 = vmatprep.subr.mxu0 0.0
    %3280 = vmatpush1.msra.mxu0 0.0
    %3281 = vmatprep.subr.mxu0 0.0
    %3282 = vmatpush1.msra.mxu0 0.0
    %3283 = vmatprep.subr.mxu0 0.0
    %3284 = vmatpush1.msra.mxu0 0.0
    %3285 = vmatprep.subr.mxu0 0.0
    %3286 = vmatpush1.msra.mxu0 0.0
    %3287 = vmatprep.subr.mxu0 0.0
    %3288 = vmatpush1.msra.mxu0 0.0
    %3289 = vmatprep.subr.mxu0 0.0
    %3290 = vmatpush1.msra.mxu0 %v656
    %3291 = vmatprep.subr.mxu0 0.0
    %3292 = vmatpush1.msra.mxu0 %v655
    %3293 = vmatprep.subr.mxu0 0.0
    %3294 = vmatpush2.msra.mxu0 0.0
    %3295 = vmatprep.subr.mxu0 0.0
    %3296 = vmatpush2.msra.mxu0 0.0
    %3297 = vmatprep.subr.mxu0 0.0
    %3298 = vmatpush2.msra.mxu0 0.0
    %3299 = vmatprep.subr.mxu0 0.0
    %3300 = vmatpush2.msra.mxu0 0.0
    %3301 = vmatprep.subr.mxu0 0.0
    %3302 = vmatpush2.msra.mxu0 0.0
    %3303 = vmatprep.subr.mxu0 0.0
    %3304 = vmatpush2.msra.mxu0 0.0
    %3305 = vmatprep.subr.mxu0 0.0
    %3306 = vmatpush2.msra.mxu0 0.0
    %3307 = vmatprep.subr.mxu0 0.0
    %3308 = vmatpush2.msra.mxu0 0.0
    %3309 = vmatprep.subr.mxu0 0.0
    %3310 = vmatpush2.msra.mxu0 0.0
    %3311 = vmatprep.subr.mxu0 0.0
    %3312 = vmatpush2.msra.mxu0 0.0
    %3313 = vmatprep.subr.mxu0 0.0
    %3314 = vmatpush2.msra.mxu0 0.0
    %3315 = vmatprep.subr.mxu0 0.0
    %3316 = vmatpush2.msra.mxu0 0.0
    %3317 = vmatprep.subr.mxu0 0.0
    %3318 = vmatpush2.msra.mxu0 0.0
    %3319 = vmatprep.subr.mxu0 0.0
    %3320 = vmatpush2.msra.mxu0 0.0
    %3321 = vmatprep.subr.mxu0 0.0
    %3322 = vmatpush2.msra.mxu0 0.0
    %3323 = vmatprep.subr.mxu0 0.0
    %3324 = vmatpush2.msra.mxu0 0.0
    %3325 = vmatprep.mubr.f32.mxu0 0.0
    %3326 = vmatmul.mubr.f32.gmra.mxu0 %v3256
    %v3327 = vpop.f32.mrf.mxu0
    %v3328 = vadd.f32 0.0, %v3327
    %v3329 = vpop.f32.mrf.mxu0
    %3330 = vmatprep.mubr.f32.mxu0 0.0
    %3331 = vmatmul.mubr.f32.gmra.mxu0 %v3259
    %v3332 = vpop.f32.mrf.mxu0
    %v3333 = vadd.f32 0.0, %v3332
    %v3334 = vpop.f32.mrf.mxu0
    %3335 = vdwg.mxu0
    %v3336 = vadd.f32 %v3049, %v3328
    %v3337 = vadd.f32 %v3050, %v3333
    %v3338 = vlaneseq
    %v3339 = vshrl.u32 %v3338, 7
    %v3340 = vsub.s32 0, %v3339
    %v3341 = vrot.slane %v696, %v3340
    %v3342 = vadd.f32 %v2200, %v3341
    %v3343 = vadd.f32 %v2201, %v3341
    %v3344 = vadd.f32 %v3336, %v3341
    %v3345 = vadd.f32 %v3337, %v3341
    %v3346 = vadd.f32 %v616, %v3342
    %v3347 = vadd.f32 %v617, %v3343
    %v3348 = vadd.f32 %v618, %v3344
    %v3349 = vadd.f32 %v619, %v3345
    %v3350 = vsel %vm716, %v3346, 0.0
    %3351 = vadd.xlane.f32.xlu0 %v3350
    %v3352 = vpop.xlane.xlu0 %3351
    %v3353 = vsel %vm716, %v3347, 0.0
    %3354 = vadd.xlane.f32.xlu0 %v3353
    %v3355 = vpop.xlane.xlu0 %3354
    %v3356 = vsel %vm716, %v3348, 0.0
    %3357 = vadd.xlane.f32.xlu0 %v3356
    %v3358 = vpop.xlane.xlu0 %3357
    %v3359 = vsel %vm716, %v3349, 0.0
    %3360 = vadd.xlane.f32.xlu0 %v3359
    %v3361 = vpop.xlane.xlu0 %3360
    %v3362 = vmul.f32 %v3352, %v729
    %v3363 = vmul.f32 %v3355, %v729
    %v3364 = vmul.f32 %v3358, %v729
    %v3365 = vmul.f32 %v3361, %v729
    %v3366 = vsub.f32 %v3346, %v3362
    %v3367 = vsub.f32 %v3347, %v3363
    %v3368 = vsub.f32 %v3348, %v3364
    %v3369 = vsub.f32 %v3349, %v3365
    %v3370 = vmul.f32 %v3366, %v3366
    %v3371 = vmul.f32 %v3367, %v3367
    %v3372 = vmul.f32 %v3368, %v3368
    %v3373 = vmul.f32 %v3369, %v3369
    %v3374 = vsel %vm716, %v3370, 0.0
    %3375 = vadd.xlane.f32.xlu0 %v3374
    %v3376 = vpop.xlane.xlu0 %3375
    %v3377 = vsel %vm716, %v3371, 0.0
    %3378 = vadd.xlane.f32.xlu0 %v3377
    %v3379 = vpop.xlane.xlu0 %3378
    %v3380 = vsel %vm716, %v3372, 0.0
    %3381 = vadd.xlane.f32.xlu0 %v3380
    %v3382 = vpop.xlane.xlu0 %3381
    %v3383 = vsel %vm716, %v3373, 0.0
    %3384 = vadd.xlane.f32.xlu0 %v3383
    %v3385 = vpop.xlane.xlu0 %3384
    %v3386 = vmul.f32 %v3376, %v729
    %v3387 = vmul.f32 %v3379, %v729
    %v3388 = vmul.f32 %v3382, %v729
    %v3389 = vmul.f32 %v3385, %v729
    %v3390 = vadd.f32 %v3386, 1e-05
    %v3391 = vadd.f32 %v3387, 1e-05
    %v3392 = vadd.f32 %v3388, 1e-05
    %v3393 = vadd.f32 %v3389, 1e-05
    %v3394 = vrsqrt.pop %v3390
    %v3395 = vrsqrt.pop %v3391
    %v3396 = vrsqrt.pop %v3392
    %v3397 = vrsqrt.pop %v3393
    %v3398 = vmul.f32 %v3366, %v3394
    %v3399 = vmul.f32 %v3367, %v3395
    %v3400 = vmul.f32 %v3368, %v3396
    %v3401 = vmul.f32 %v3369, %v3397
    %v3402 = vlaneseq
    %v3403 = vshrl.u32 %v3402, 7
    %v3404 = vsub.s32 0, %v3403
    %v3405 = vrot.slane %v691, %v3404
    %v3406 = vmul.f32 %v3398, %v3405
    %v3407 = vmul.f32 %v3399, %v3405
    %v3408 = vmul.f32 %v3400, %v3405
    %v3409 = vmul.f32 %v3401, %v3405
    %v3410 = vlaneseq
    %v3411 = vshrl.u32 %v3410, 7
    %v3412 = vsub.s32 0, %v3411
    %v3413 = vrot.slane %v692, %v3412
    %v3414 = vadd.f32 %v3406, %v3413
    %v3415 = vadd.f32 %v3407, %v3413
    %v3416 = vadd.f32 %v3408, %v3413
    %v3417 = vadd.f32 %v3409, %v3413
    %v3419 = vlaneseq
    %v3420 = vshrl.u32 %v3419, 7
    %v3421 = vsub.s32 0, %v3420
    %v3422 = vrot.slane %v715, %v3421
    %v3423 = vlaneseq
    %v3424 = vshrl.u32 %v3423, 7
    %v3425 = vsub.s32 1, %v3424
    %v3426 = vrot.slane %v715, %v3425
    %v3430 = vsel %vm716, %v3414, 0
    %v3433 = vsel %vm716, %v3415, 0
    %v3436 = vsel %vm716, %v3416, 0
    %v3439 = vsel %vm716, %v3417, 0
    %3441 = vmatprep.subr.mxu0 0.0
    %3442 = vmatpush1.msra.mxu0 0.0
    %3443 = vmatprep.subr.mxu0 0.0
    %3444 = vmatpush1.msra.mxu0 0.0
    %3445 = vmatprep.subr.mxu0 0.0
    %3446 = vmatpush1.msra.mxu0 0.0
    %3447 = vmatprep.subr.mxu0 0.0
    %3448 = vmatpush1.msra.mxu0 0.0
    %3449 = vmatprep.subr.mxu0 0.0
    %3450 = vmatpush1.msra.mxu0 0.0
    %3451 = vmatprep.subr.mxu0 0.0
    %3452 = vmatpush1.msra.mxu0 0.0
    %3453 = vmatprep.subr.mxu0 0.0
    %3454 = vmatpush1.msra.mxu0 0.0
    %3455 = vmatprep.subr.mxu0 0.0
    %3456 = vmatpush1.msra.mxu0 0.0
    %3457 = vmatprep.subr.mxu0 %v713
    %3458 = vmatpush1.msra.mxu0 %v712
    %3459 = vmatprep.subr.mxu0 %v711
    %3460 = vmatpush1.msra.mxu0 %v710
    %3461 = vmatprep.subr.mxu0 %v709
    %3462 = vmatpush1.msra.mxu0 %v708
    %3463 = vmatprep.subr.mxu0 %v707
    %3464 = vmatpush1.msra.mxu0 %v706
    %3465 = vmatprep.subr.mxu0 %v705
    %3466 = vmatpush1.msra.mxu0 %v704
    %3467 = vmatprep.subr.mxu0 %v703
    %3468 = vmatpush1.msra.mxu0 %v702
    %3469 = vmatprep.subr.mxu0 %v701
    %3470 = vmatpush1.msra.mxu0 %v700
    %3471 = vmatprep.subr.mxu0 %v699
    %3472 = vmatpush1.msra.mxu0 %v698
    %3473 = vmatprep.subr.mxu0 0.0
    %3474 = vmatpush2.msra.mxu0 0.0
    %3475 = vmatprep.subr.mxu0 0.0
    %3476 = vmatpush2.msra.mxu0 0.0
    %3477 = vmatprep.subr.mxu0 0.0
    %3478 = vmatpush2.msra.mxu0 0.0
    %3479 = vmatprep.subr.mxu0 0.0
    %3480 = vmatpush2.msra.mxu0 0.0
    %3481 = vmatprep.subr.mxu0 0.0
    %3482 = vmatpush2.msra.mxu0 0.0
    %3483 = vmatprep.subr.mxu0 0.0
    %3484 = vmatpush2.msra.mxu0 0.0
    %3485 = vmatprep.subr.mxu0 0.0
    %3486 = vmatpush2.msra.mxu0 0.0
    %3487 = vmatprep.subr.mxu0 0.0
    %3488 = vmatpush2.msra.mxu0 0.0
    %3489 = vmatprep.subr.mxu0 0.0
    %3490 = vmatpush2.msra.mxu0 0.0
    %3491 = vmatprep.subr.mxu0 0.0
    %3492 = vmatpush2.msra.mxu0 0.0
    %3493 = vmatprep.subr.mxu0 0.0
    %3494 = vmatpush2.msra.mxu0 0.0
    %3495 = vmatprep.subr.mxu0 0.0
    %3496 = vmatpush2.msra.mxu0 0.0
    %3497 = vmatprep.subr.mxu0 0.0
    %3498 = vmatpush2.msra.mxu0 0.0
    %3499 = vmatprep.subr.mxu0 0.0
    %3500 = vmatpush2.msra.mxu0 0.0
    %3501 = vmatprep.subr.mxu0 0.0
    %3502 = vmatpush2.msra.mxu0 0.0
    %3503 = vmatprep.subr.mxu0 0.0
    %3504 = vmatpush2.msra.mxu0 0.0
    %3505 = vmatprep.mubr.f32.mxu0 0.0
    %3506 = vmatmul.mubr.f32.gmra.mxu0 %v3430
    %v3507 = vpop.f32.mrf.mxu0
    %v3508 = vadd.f32 %v3422, %v3507
    %v3509 = vpop.f32.mrf.mxu0
    %v3510 = vadd.f32 %v3426, %v3509
    %3511 = vmatprep.mubr.f32.mxu0 0.0
    %3512 = vmatmul.mubr.f32.gmra.mxu0 %v3433
    %v3513 = vpop.f32.mrf.mxu0
    %v3514 = vadd.f32 %v3422, %v3513
    %v3515 = vpop.f32.mrf.mxu0
    %v3516 = vadd.f32 %v3426, %v3515
    %3517 = vmatprep.mubr.f32.mxu0 0.0
    %3518 = vmatmul.mubr.f32.gmra.mxu0 %v3436
    %v3519 = vpop.f32.mrf.mxu0
    %v3520 = vadd.f32 %v3422, %v3519
    %v3521 = vpop.f32.mrf.mxu0
    %v3522 = vadd.f32 %v3426, %v3521
    %3523 = vmatprep.mubr.f32.mxu0 0.0
    %3524 = vmatmul.mubr.f32.gmra.mxu0 %v3439
    %v3525 = vpop.f32.mrf.mxu0
    %v3526 = vadd.f32 %v3422, %v3525
    %v3527 = vpop.f32.mrf.mxu0
    %v3528 = vadd.f32 %v3426, %v3527
    %3529 = vdwg.mxu0
    %v3530 = vmul.f32 %v3508, 0.5
    %v3531 = vmul.f32 %v3510, 0.5
    %v3532 = vmul.f32 %v3514, 0.5
    %v3533 = vmul.f32 %v3516, 0.5
    %v3534 = vmul.f32 %v3520, 0.5
    %v3535 = vmul.f32 %v3522, 0.5
    %v3536 = vmul.f32 %v3526, 0.5
    %v3537 = vmul.f32 %v3528, 0.5
    %v3538 = vmul.f32 %v3508, 0.044715
    %v3539 = vmul.f32 %v3510, 0.044715
    %v3540 = vmul.f32 %v3514, 0.044715
    %v3541 = vmul.f32 %v3516, 0.044715
    %v3542 = vmul.f32 %v3520, 0.044715
    %v3543 = vmul.f32 %v3522, 0.044715
    %v3544 = vmul.f32 %v3526, 0.044715
    %v3545 = vmul.f32 %v3528, 0.044715
    %v3546 = vmul.f32 %v3538, %v3508
    %v3547 = vmul.f32 %v3539, %v3510
    %v3548 = vmul.f32 %v3540, %v3514
    %v3549 = vmul.f32 %v3541, %v3516
    %v3550 = vmul.f32 %v3542, %v3520
    %v3551 = vmul.f32 %v3543, %v3522
    %v3552 = vmul.f32 %v3544, %v3526
    %v3553 = vmul.f32 %v3545, %v3528
    %v3554 = vmul.f32 %v3546, %v3508
    %v3555 = vmul.f32 %v3547, %v3510
    %v3556 = vmul.f32 %v3548, %v3514
    %v3557 = vmul.f32 %v3549, %v3516
    %v3558 = vmul.f32 %v3550, %v3520
    %v3559 = vmul.f32 %v3551, %v3522
    %v3560 = vmul.f32 %v3552, %v3526
    %v3561 = vmul.f32 %v3553, %v3528
    %v3562 = vadd.f32 %v3508, %v3554
    %v3563 = vadd.f32 %v3510, %v3555
    %v3564 = vadd.f32 %v3514, %v3556
    %v3565 = vadd.f32 %v3516, %v3557
    %v3566 = vadd.f32 %v3520, %v3558
    %v3567 = vadd.f32 %v3522, %v3559
    %v3568 = vadd.f32 %v3526, %v3560
    %v3569 = vadd.f32 %v3528, %v3561
    %v3570 = vmul.f32 %v3562, 0.7978846
    %v3571 = vmul.f32 %v3563, 0.7978846
    %v3572 = vmul.f32 %v3564, 0.7978846
    %v3573 = vmul.f32 %v3565, 0.7978846
    %v3574 = vmul.f32 %v3566, 0.7978846
    %v3575 = vmul.f32 %v3567, 0.7978846
    %v3576 = vmul.f32 %v3568, 0.7978846
    %v3577 = vmul.f32 %v3569, 0.7978846
    %v3578 = vtanh.pop %v3570
    %v3579 = vtanh.pop %v3571
    %v3580 = vtanh.pop %v3572
    %v3581 = vtanh.pop %v3573
    %v3582 = vtanh.pop %v3574
    %v3583 = vtanh.pop %v3575
    %v3584 = vtanh.pop %v3576
    %v3585 = vtanh.pop %v3577
    %v3586 = vadd.f32 %v3578, 1.0
    %v3587 = vadd.f32 %v3579, 1.0
    %v3588 = vadd.f32 %v3580, 1.0
    %v3589 = vadd.f32 %v3581, 1.0
    %v3590 = vadd.f32 %v3582, 1.0
    %v3591 = vadd.f32 %v3583, 1.0
    %v3592 = vadd.f32 %v3584, 1.0
    %v3593 = vadd.f32 %v3585, 1.0
    %v3594 = vmul.f32 %v3530, %v3586
    %v3595 = vmul.f32 %v3531, %v3587
    %v3596 = vmul.f32 %v3532, %v3588
    %v3597 = vmul.f32 %v3533, %v3589
    %v3598 = vmul.f32 %v3534, %v3590
    %v3599 = vmul.f32 %v3535, %v3591
    %v3600 = vmul.f32 %v3536, %v3592
    %v3601 = vmul.f32 %v3537, %v3593
    %v3602 = vlaneseq
    %v3603 = vshrl.u32 %v3602, 7
    %v3604 = vsub.s32 0, %v3603
    %v3605 = vrot.slane %v697, %v3604
    %3606 = vmatprep.subr.mxu0 0.0
    %3607 = vmatpush1.msra.mxu0 %v672
    %3608 = vmatprep.subr.mxu0 0.0
    %3609 = vmatpush1.msra.mxu0 %v671
    %3610 = vmatprep.subr.mxu0 0.0
    %3611 = vmatpush1.msra.mxu0 %v670
    %3612 = vmatprep.subr.mxu0 0.0
    %3613 = vmatpush1.msra.mxu0 %v669
    %3614 = vmatprep.subr.mxu0 0.0
    %3615 = vmatpush1.msra.mxu0 %v668
    %3616 = vmatprep.subr.mxu0 0.0
    %3617 = vmatpush1.msra.mxu0 %v667
    %3618 = vmatprep.subr.mxu0 0.0
    %3619 = vmatpush1.msra.mxu0 %v666
    %3620 = vmatprep.subr.mxu0 0.0
    %3621 = vmatpush1.msra.mxu0 %v665
    %3622 = vmatprep.subr.mxu0 0.0
    %3623 = vmatpush1.msra.mxu0 %v664
    %3624 = vmatprep.subr.mxu0 0.0
    %3625 = vmatpush1.msra.mxu0 %v663
    %3626 = vmatprep.subr.mxu0 0.0
    %3627 = vmatpush1.msra.mxu0 %v662
    %3628 = vmatprep.subr.mxu0 0.0
    %3629 = vmatpush1.msra.mxu0 %v661
    %3630 = vmatprep.subr.mxu0 0.0
    %3631 = vmatpush1.msra.mxu0 %v660
    %3632 = vmatprep.subr.mxu0 0.0
    %3633 = vmatpush1.msra.mxu0 %v659
    %3634 = vmatprep.subr.mxu0 0.0
    %3635 = vmatpush1.msra.mxu0 %v658
    %3636 = vmatprep.subr.mxu0 0.0
    %3637 = vmatpush1.msra.mxu0 %v657
    %3638 = vmatprep.subr.mxu0 0.0
    %3639 = vmatpush2.msra.mxu0 %v688
    %3640 = vmatprep.subr.mxu0 0.0
    %3641 = vmatpush2.msra.mxu0 %v687
    %3642 = vmatprep.subr.mxu0 0.0
    %3643 = vmatpush2.msra.mxu0 %v686
    %3644 = vmatprep.subr.mxu0 0.0
    %3645 = vmatpush2.msra.mxu0 %v685
    %3646 = vmatprep.subr.mxu0 0.0
    %3647 = vmatpush2.msra.mxu0 %v684
    %3648 = vmatprep.subr.mxu0 0.0
    %3649 = vmatpush2.msra.mxu0 %v683
    %3650 = vmatprep.subr.mxu0 0.0
    %3651 = vmatpush2.msra.mxu0 %v682
    %3652 = vmatprep.subr.mxu0 0.0
    %3653 = vmatpush2.msra.mxu0 %v681
    %3654 = vmatprep.subr.mxu0 0.0
    %3655 = vmatpush2.msra.mxu0 %v680
    %3656 = vmatprep.subr.mxu0 0.0
    %3657 = vmatpush2.msra.mxu0 %v679
    %3658 = vmatprep.subr.mxu0 0.0
    %3659 = vmatpush2.msra.mxu0 %v678
    %3660 = vmatprep.subr.mxu0 0.0
    %3661 = vmatpush2.msra.mxu0 %v677
    %3662 = vmatprep.subr.mxu0 0.0
    %3663 = vmatpush2.msra.mxu0 %v676
    %3664 = vmatprep.subr.mxu0 0.0
    %3665 = vmatpush2.msra.mxu0 %v675
    %3666 = vmatprep.subr.mxu0 0.0
    %3667 = vmatpush2.msra.mxu0 %v674
    %3668 = vmatprep.subr.mxu0 0.0
    %3669 = vmatpush2.msra.mxu0 %v673
    %3670 = vmatprep.mubr.f32.mxu0 %v3595
    %3671 = vmatmul.mubr.f32.gmra.mxu0 %v3594
    %v3672 = vpop.f32.mrf.mxu0
    %v3673 = vadd.f32 %v3605, %v3672
    %v3674 = vpop.f32.mrf.mxu0
    %3675 = vmatprep.mubr.f32.mxu0 %v3597
    %3676 = vmatmul.mubr.f32.gmra.mxu0 %v3596
    %v3677 = vpop.f32.mrf.mxu0
    %v3678 = vadd.f32 %v3605, %v3677
    %v3679 = vpop.f32.mrf.mxu0
    %3680 = vmatprep.mubr.f32.mxu0 %v3599
    %3681 = vmatmul.mubr.f32.gmra.mxu0 %v3598
    %v3682 = vpop.f32.mrf.mxu0
    %v3683 = vadd.f32 %v3605, %v3682
    %v3684 = vpop.f32.mrf.mxu0
    %3685 = vmatprep.mubr.f32.mxu0 %v3601
    %3686 = vmatmul.mubr.f32.gmra.mxu0 %v3600
    %v3687 = vpop.f32.mrf.mxu0
    %v3688 = vadd.f32 %v3605, %v3687
    %v3689 = vpop.f32.mrf.mxu0
    %3690 = vdwg.mxu0
    %v3691 = vadd.f32 %v3346, %v3673
    %v3692 = vadd.f32 %v3347, %v3678
    %v3693 = vadd.f32 %v3348, %v3683
    %v3694 = vadd.f32 %v3349, %v3688
    %v3695 = vld [vmem:[%s6 + $0x210] sm:$0xff]
    %v3696 = vld [vmem:[%s6 + $0x218] sm:$0xff]
    %v3697 = vld [vmem:[%s6 + $0x220] sm:$0xff]
    %v3698 = vld [vmem:[%s6 + $0x228] sm:$0xff]
    %v3699 = vld [vmem:[%s6 + $0x230] sm:$0xff]
    %v3700 = vld [vmem:[%s6 + $0x238] sm:$0xff]
    %v3701 = vld [vmem:[%s6 + $0x240] sm:$0xff]
    %v3702 = vld [vmem:[%s6 + $0x248] sm:$0xff]
    %v3703 = vld [vmem:[%s6 + $0x250] sm:$0xff]
    %v3704 = vld [vmem:[%s6 + $0x258] sm:$0xff]
    %v3705 = vld [vmem:[%s6 + $0x260] sm:$0xff]
    %v3706 = vld [vmem:[%s6 + $0x268] sm:$0xff]
    %v3707 = vld [vmem:[%s6 + $0x270] sm:$0xff]
    %v3708 = vld [vmem:[%s6 + $0x278] sm:$0xff]
    %v3709 = vld [vmem:[%s6 + $0x280] sm:$0xff]
    %v3710 = vld [vmem:[%s6 + $0x288] sm:$0xff]
    %v3711 = vld [vmem:[%s6 + $0x290] sm:$0xff]
    %v3712 = vld [vmem:[%s6 + $0x298] sm:$0xff]
    %v3713 = vld [vmem:[%s6 + $0x2a0] sm:$0xff]
    %v3714 = vld [vmem:[%s6 + $0x2a8] sm:$0xff]
    %v3715 = vld [vmem:[%s6 + $0x2b0] sm:$0xff]
    %v3716 = vld [vmem:[%s6 + $0x2b8] sm:$0xff]
    %v3717 = vld [vmem:[%s6 + $0x2c0] sm:$0xff]
    %v3718 = vld [vmem:[%s6 + $0x2c8] sm:$0xff]
    %v3719 = vld [vmem:[%s6 + $0x2d0] sm:$0xff]
    %v3720 = vld [vmem:[%s6 + $0x2d8] sm:$0xff]
    %v3721 = vld [vmem:[%s6 + $0x2e0] sm:$0xff]
    %v3722 = vld [vmem:[%s6 + $0x2e8] sm:$0xff]
    %v3723 = vld [vmem:[%s6 + $0x2f0] sm:$0xff]
    %v3724 = vld [vmem:[%s6 + $0x2f8] sm:$0xff]
    %v3725 = vld [vmem:[%s6 + $0x300] sm:$0xff]
    %v3726 = vld [vmem:[%s6 + $0x308] sm:$0xff]
    %v3727 = vld [vmem:[%s6 + $0x310] sm:$0xff]
    %v3728 = vld [vmem:[%s6 + $0x318] sm:$0xff]
    %v3729 = vld [vmem:[%s6 + $0x320] sm:$0xff]
    %v3730 = vld [vmem:[%s6 + $0x328] sm:$0xff]
    %v3731 = vld [vmem:[%s6 + $0x330] sm:$0xff]
    %v3732 = vld [vmem:[%s6 + $0x338] sm:$0xff]
    %v3733 = vld [vmem:[%s6 + $0x340] sm:$0xff]
    %v3734 = vld [vmem:[%s6 + $0x348] sm:$0xff]
    %v3735 = vld [vmem:[%s6 + $0x350] sm:$0xff]
    %v3736 = vld [vmem:[%s6 + $0x358] sm:$0xff]
    %v3737 = vld [vmem:[%s6 + $0x360] sm:$0xff]
    %v3738 = vld [vmem:[%s6 + $0x368] sm:$0xff]
    %v3739 = vld [vmem:[%s6 + $0x370] sm:$0xff]
    %v3740 = vld [vmem:[%s6 + $0x378] sm:$0xff]
    %v3741 = vld [vmem:[%s6 + $0x380] sm:$0xff]
    %v3742 = vld [vmem:[%s6 + $0x388] sm:$0xff]
    %v3743 = vld [vmem:[%s6 + $0x390] sm:$0xff]
    %v3744 = vld [vmem:[%s6 + $0x398] sm:$0xff]
    %v3745 = vld [vmem:[%s6 + $0x3a0] sm:$0xff]
    %v3746 = vld [vmem:[%s6 + $0x3a8] sm:$0xff]
    %v3747 = vld [vmem:[%s6 + $0x3b0] sm:$0xff]
    %v3748 = vld [vmem:[%s6 + $0x3b8] sm:$0xff]
    %v3749 = vld [vmem:[%s6 + $0x3c0] sm:$0xff]
    %v3750 = vld [vmem:[%s6 + $0x3c8] sm:$0xff]
    %v3751 = vld [vmem:[%s6 + $0x3d0] sm:$0xff]
    %v3752 = vld [vmem:[%s6 + $0x3d8] sm:$0xff]
    %v3753 = vld [vmem:[%s6 + $0x3e0] sm:$0xff]
    %v3754 = vld [vmem:[%s6 + $0x3e8] sm:$0xff]
    %v3755 = vld [vmem:[%s6 + $0x3f0] sm:$0xff]
    %v3756 = vld [vmem:[%s6 + $0x3f8] sm:$0xff]
    %v3757 = vld [vmem:[%s6 + $0x400] sm:$0xff]
    %v3758 = vld [vmem:[%s6 + $0x408] sm:$0xff]
    %v3759 = vld [vmem:[%s6 + $0x410] sm:$0x1]
    %v3760 = vld [vmem:[%s6 + $0x411] sm:$0x1]
    %v3761 = vld [vmem:[%s6 + $0x412] sm:$0x1]
    %v3762 = vld [vmem:[%s6 + $0x413] sm:$0x1]
    %v3763 = vld [vmem:[%s6 + $0x414] sm:$0x1]
    %v3764 = vld [vmem:[%s6 + $0x415] sm:$0x1]
    %v3765 = vld [vmem:[%s6 + $0x416] sm:$0x1]
    %v3766 = vld [vmem:[%s6 + $0x417] sm:$0x1]
    %v3767 = vld [vmem:[%s6 + $0x418] sm:$0x1]
    %v3768 = vld [vmem:[%s7 + $0x90] sm:$0xff]
    %v3769 = vld [vmem:[%s7 + $0x98] sm:$0xff]
    %v3770 = vld [vmem:[%s7 + $0xa0] sm:$0xff]
    %v3771 = vld [vmem:[%s7 + $0xa8] sm:$0xff]
    %v3772 = vld [vmem:[%s7 + $0xb0] sm:$0xff]
    %v3773 = vld [vmem:[%s7 + $0xb8] sm:$0xff]
    %v3774 = vld [vmem:[%s7 + $0xc0] sm:$0xff]
    %v3775 = vld [vmem:[%s7 + $0xc8] sm:$0xff]
    %v3776 = vld [vmem:[%s7 + $0xd0] sm:$0xff]
    %v3777 = vld [vmem:[%s7 + $0xd8] sm:$0xff]
    %v3778 = vld [vmem:[%s7 + $0xe0] sm:$0xff]
    %v3779 = vld [vmem:[%s7 + $0xe8] sm:$0xff]
    %v3780 = vld [vmem:[%s7 + $0xf0] sm:$0xff]
    %v3781 = vld [vmem:[%s7 + $0xf8] sm:$0xff]
    %v3782 = vld [vmem:[%s7 + $0x100] sm:$0xff]
    %v3783 = vld [vmem:[%s7 + $0x108] sm:$0xff]
    %s3784 = scalar_lea.vmem %s7, 272
    %v3785 = vld [vmem:[%s3784] ss:$8 sm:$0x3]
    %v3786 = vsel %vm716, %v3691, 0.0
    %3787 = vadd.xlane.f32.xlu0 %v3786
    %v3788 = vpop.xlane.xlu0 %3787
    %v3789 = vsel %vm716, %v3692, 0.0
    %3790 = vadd.xlane.f32.xlu0 %v3789
    %v3791 = vpop.xlane.xlu0 %3790
    %v3792 = vsel %vm716, %v3693, 0.0
    %3793 = vadd.xlane.f32.xlu0 %v3792
    %v3794 = vpop.xlane.xlu0 %3793
    %v3795 = vsel %vm716, %v3694, 0.0
    %3796 = vadd.xlane.f32.xlu0 %v3795
    %v3797 = vpop.xlane.xlu0 %3796
    %v3798 = vmul.f32 %v3788, %v729
    %v3799 = vmul.f32 %v3791, %v729
    %v3800 = vmul.f32 %v3794, %v729
    %v3801 = vmul.f32 %v3797, %v729
    %v3802 = vsub.f32 %v3691, %v3798
    %v3803 = vsub.f32 %v3692, %v3799
    %v3804 = vsub.f32 %v3693, %v3800
    %v3805 = vsub.f32 %v3694, %v3801
    %v3806 = vmul.f32 %v3802, %v3802
    %v3807 = vmul.f32 %v3803, %v3803
    %v3808 = vmul.f32 %v3804, %v3804
    %v3809 = vmul.f32 %v3805, %v3805
    %v3810 = vsel %vm716, %v3806, 0.0
    %3811 = vadd.xlane.f32.xlu0 %v3810
    %v3812 = vpop.xlane.xlu0 %3811
    %v3813 = vsel %vm716, %v3807, 0.0
    %3814 = vadd.xlane.f32.xlu0 %v3813
    %v3815 = vpop.xlane.xlu0 %3814
    %v3816 = vsel %vm716, %v3808, 0.0
    %3817 = vadd.xlane.f32.xlu0 %v3816
    %v3818 = vpop.xlane.xlu0 %3817
    %v3819 = vsel %vm716, %v3809, 0.0
    %3820 = vadd.xlane.f32.xlu0 %v3819
    %v3821 = vpop.xlane.xlu0 %3820
    %v3822 = vmul.f32 %v3812, %v729
    %v3823 = vmul.f32 %v3815, %v729
    %v3824 = vmul.f32 %v3818, %v729
    %v3825 = vmul.f32 %v3821, %v729
    %v3826 = vadd.f32 %v3822, 1e-05
    %v3827 = vadd.f32 %v3823, 1e-05
    %v3828 = vadd.f32 %v3824, 1e-05
    %v3829 = vadd.f32 %v3825, 1e-05
    %v3830 = vrsqrt.pop %v3826
    %v3831 = vrsqrt.pop %v3827
    %v3832 = vrsqrt.pop %v3828
    %v3833 = vrsqrt.pop %v3829
    %v3834 = vmul.f32 %v3802, %v3830
    %v3835 = vmul.f32 %v3803, %v3831
    %v3836 = vmul.f32 %v3804, %v3832
    %v3837 = vmul.f32 %v3805, %v3833
    %v3838 = vlaneseq
    %v3839 = vshrl.u32 %v3838, 7
    %v3840 = vsub.s32 0, %v3839
    %v3841 = vrot.slane %v3759, %v3840
    %v3842 = vmul.f32 %v3834, %v3841
    %v3843 = vmul.f32 %v3835, %v3841
    %v3844 = vmul.f32 %v3836, %v3841
    %v3845 = vmul.f32 %v3837, %v3841
    %v3846 = vlaneseq
    %v3847 = vshrl.u32 %v3846, 7
    %v3848 = vsub.s32 0, %v3847
    %v3849 = vrot.slane %v3760, %v3848
    %v3850 = vadd.f32 %v3842, %v3849
    %v3851 = vadd.f32 %v3843, %v3849
    %v3852 = vadd.f32 %v3844, %v3849
    %v3853 = vadd.f32 %v3845, %v3849
    %v3854 = vlaneseq
    %v3855 = vshrl.u32 %v3854, 7
    %v3856 = vsub.s32 0, %v3855
    %v3857 = vrot.slane %v3763, %v3856
    %v3859 = vsel %vm716, %v3850, 0
    %v3862 = vsel %vm716, %v3851, 0
    %v3865 = vsel %vm716, %v3852, 0
    %v3868 = vsel %vm716, %v3853, 0
    %3870 = vmatprep.subr.mxu0 0.0
    %3871 = vmatpush1.msra.mxu0 0.0
    %3872 = vmatprep.subr.mxu0 0.0
    %3873 = vmatpush1.msra.mxu0 0.0
    %3874 = vmatprep.subr.mxu0 0.0
    %3875 = vmatpush1.msra.mxu0 0.0
    %3876 = vmatprep.subr.mxu0 0.0
    %3877 = vmatpush1.msra.mxu0 0.0
    %3878 = vmatprep.subr.mxu0 0.0
    %3879 = vmatpush1.msra.mxu0 0.0
    %3880 = vmatprep.subr.mxu0 0.0
    %3881 = vmatpush1.msra.mxu0 0.0
    %3882 = vmatprep.subr.mxu0 0.0
    %3883 = vmatpush1.msra.mxu0 0.0
    %3884 = vmatprep.subr.mxu0 0.0
    %3885 = vmatpush1.msra.mxu0 0.0
    %3886 = vmatprep.subr.mxu0 0.0
    %3887 = vmatpush1.msra.mxu0 %v3702
    %3888 = vmatprep.subr.mxu0 0.0
    %3889 = vmatpush1.msra.mxu0 %v3701
    %3890 = vmatprep.subr.mxu0 0.0
    %3891 = vmatpush1.msra.mxu0 %v3700
    %3892 = vmatprep.subr.mxu0 0.0
    %3893 = vmatpush1.msra.mxu0 %v3699
    %3894 = vmatprep.subr.mxu0 0.0
    %3895 = vmatpush1.msra.mxu0 %v3698
    %3896 = vmatprep.subr.mxu0 0.0
    %3897 = vmatpush1.msra.mxu0 %v3697
    %3898 = vmatprep.subr.mxu0 0.0
    %3899 = vmatpush1.msra.mxu0 %v3696
    %3900 = vmatprep.subr.mxu0 0.0
    %3901 = vmatpush1.msra.mxu0 %v3695
    %3902 = vmatprep.subr.mxu0 0.0
    %3903 = vmatpush2.msra.mxu0 0.0
    %3904 = vmatprep.subr.mxu0 0.0
    %3905 = vmatpush2.msra.mxu0 0.0
    %3906 = vmatprep.subr.mxu0 0.0
    %3907 = vmatpush2.msra.mxu0 0.0
    %3908 = vmatprep.subr.mxu0 0.0
    %3909 = vmatpush2.msra.mxu0 0.0
    %3910 = vmatprep.subr.mxu0 0.0
    %3911 = vmatpush2.msra.mxu0 0.0
    %3912 = vmatprep.subr.mxu0 0.0
    %3913 = vmatpush2.msra.mxu0 0.0
    %3914 = vmatprep.subr.mxu0 0.0
    %3915 = vmatpush2.msra.mxu0 0.0
    %3916 = vmatprep.subr.mxu0 0.0
    %3917 = vmatpush2.msra.mxu0 0.0
    %3918 = vmatprep.subr.mxu0 0.0
    %3919 = vmatpush2.msra.mxu0 0.0
    %3920 = vmatprep.subr.mxu0 0.0
    %3921 = vmatpush2.msra.mxu0 0.0
    %3922 = vmatprep.subr.mxu0 0.0
    %3923 = vmatpush2.msra.mxu0 0.0
    %3924 = vmatprep.subr.mxu0 0.0
    %3925 = vmatpush2.msra.mxu0 0.0
    %3926 = vmatprep.subr.mxu0 0.0
    %3927 = vmatpush2.msra.mxu0 0.0
    %3928 = vmatprep.subr.mxu0 0.0
    %3929 = vmatpush2.msra.mxu0 0.0
    %3930 = vmatprep.subr.mxu0 0.0
    %3931 = vmatpush2.msra.mxu0 0.0
    %3932 = vmatprep.subr.mxu0 0.0
    %3933 = vmatpush2.msra.mxu0 0.0
    %3934 = vmatprep.mubr.f32.mxu0 0.0
    %3935 = vmatmul.mubr.f32.gmra.mxu0 %v3859
    %v3936 = vpop.f32.mrf.mxu0
    %v3937 = vadd.f32 %v3857, %v3936
    %v3938 = vpop.f32.mrf.mxu0
    %3939 = vmatprep.mubr.f32.mxu0 0.0
    %3940 = vmatmul.mubr.f32.gmra.mxu0 %v3862
    %v3941 = vpop.f32.mrf.mxu0
    %v3942 = vadd.f32 %v3857, %v3941
    %v3943 = vpop.f32.mrf.mxu0
    %3944 = vmatprep.mubr.f32.mxu0 0.0
    %3945 = vmatmul.mubr.f32.gmra.mxu0 %v3865
    %v3946 = vpop.f32.mrf.mxu0
    %v3947 = vadd.f32 %v3857, %v3946
    %v3948 = vpop.f32.mrf.mxu0
    %3949 = vmatprep.mubr.f32.mxu0 0.0
    %3950 = vmatmul.mubr.f32.gmra.mxu0 %v3868
    %v3951 = vpop.f32.mrf.mxu0
    %v3952 = vadd.f32 %v3857, %v3951
    %v3953 = vpop.f32.mrf.mxu0
    %3954 = vdwg.mxu0
    %v3955 = vlaneseq
    %v3956 = vshrl.u32 %v3955, 7
    %v3957 = vsub.s32 0, %v3956
    %v3958 = vrot.slane %v3764, %v3957
    %3959 = vmatprep.subr.mxu0 0.0
    %3960 = vmatpush1.msra.mxu0 0.0
    %3961 = vmatprep.subr.mxu0 0.0
    %3962 = vmatpush1.msra.mxu0 0.0
    %3963 = vmatprep.subr.mxu0 0.0
    %3964 = vmatpush1.msra.mxu0 0.0
    %3965 = vmatprep.subr.mxu0 0.0
    %3966 = vmatpush1.msra.mxu0 0.0
    %3967 = vmatprep.subr.mxu0 0.0
    %3968 = vmatpush1.msra.mxu0 0.0
    %3969 = vmatprep.subr.mxu0 0.0
    %3970 = vmatpush1.msra.mxu0 0.0
    %3971 = vmatprep.subr.mxu0 0.0
    %3972 = vmatpush1.msra.mxu0 0.0
    %3973 = vmatprep.subr.mxu0 0.0
    %3974 = vmatpush1.msra.mxu0 0.0
    %3975 = vmatprep.subr.mxu0 0.0
    %3976 = vmatpush1.msra.mxu0 %v3710
    %3977 = vmatprep.subr.mxu0 0.0
    %3978 = vmatpush1.msra.mxu0 %v3709
    %3979 = vmatprep.subr.mxu0 0.0
    %3980 = vmatpush1.msra.mxu0 %v3708
    %3981 = vmatprep.subr.mxu0 0.0
    %3982 = vmatpush1.msra.mxu0 %v3707
    %3983 = vmatprep.subr.mxu0 0.0
    %3984 = vmatpush1.msra.mxu0 %v3706
    %3985 = vmatprep.subr.mxu0 0.0
    %3986 = vmatpush1.msra.mxu0 %v3705
    %3987 = vmatprep.subr.mxu0 0.0
    %3988 = vmatpush1.msra.mxu0 %v3704
    %3989 = vmatprep.subr.mxu0 0.0
    %3990 = vmatpush1.msra.mxu0 %v3703
    %3991 = vmatprep.subr.mxu0 0.0
    %3992 = vmatpush2.msra.mxu0 0.0
    %3993 = vmatprep.subr.mxu0 0.0
    %3994 = vmatpush2.msra.mxu0 0.0
    %3995 = vmatprep.subr.mxu0 0.0
    %3996 = vmatpush2.msra.mxu0 0.0
    %3997 = vmatprep.subr.mxu0 0.0
    %3998 = vmatpush2.msra.mxu0 0.0
    %3999 = vmatprep.subr.mxu0 0.0
    %4000 = vmatpush2.msra.mxu0 0.0
    %4001 = vmatprep.subr.mxu0 0.0
    %4002 = vmatpush2.msra.mxu0 0.0
    %4003 = vmatprep.subr.mxu0 0.0
    %4004 = vmatpush2.msra.mxu0 0.0
    %4005 = vmatprep.subr.mxu0 0.0
    %4006 = vmatpush2.msra.mxu0 0.0
    %4007 = vmatprep.subr.mxu0 0.0
    %4008 = vmatpush2.msra.mxu0 0.0
    %4009 = vmatprep.subr.mxu0 0.0
    %4010 = vmatpush2.msra.mxu0 0.0
    %4011 = vmatprep.subr.mxu0 0.0
    %4012 = vmatpush2.msra.mxu0 0.0
    %4013 = vmatprep.subr.mxu0 0.0
    %4014 = vmatpush2.msra.mxu0 0.0
    %4015 = vmatprep.subr.mxu0 0.0
    %4016 = vmatpush2.msra.mxu0 0.0
    %4017 = vmatprep.subr.mxu0 0.0
    %4018 = vmatpush2.msra.mxu0 0.0
    %4019 = vmatprep.subr.mxu0 0.0
    %4020 = vmatpush2.msra.mxu0 0.0
    %4021 = vmatprep.subr.mxu0 0.0
    %4022 = vmatpush2.msra.mxu0 0.0
    %4023 = vmatprep.mubr.f32.mxu0 0.0
    %4024 = vmatmul.mubr.f32.gmra.mxu0 %v3859
    %v4025 = vpop.f32.mrf.mxu0
    %v4026 = vadd.f32 %v3958, %v4025
    %v4027 = vpop.f32.mrf.mxu0
    %4028 = vmatprep.mubr.f32.mxu0 0.0
    %4029 = vmatmul.mubr.f32.gmra.mxu0 %v3862
    %v4030 = vpop.f32.mrf.mxu0
    %v4031 = vadd.f32 %v3958, %v4030
    %v4032 = vpop.f32.mrf.mxu0
    %4033 = vmatprep.mubr.f32.mxu0 0.0
    %4034 = vmatmul.mubr.f32.gmra.mxu0 %v3865
    %v4035 = vpop.f32.mrf.mxu0
    %v4036 = vadd.f32 %v3958, %v4035
    %v4037 = vpop.f32.mrf.mxu0
    %4038 = vmatprep.mubr.f32.mxu0 0.0
    %4039 = vmatmul.mubr.f32.gmra.mxu0 %v3868
    %v4040 = vpop.f32.mrf.mxu0
    %v4041 = vadd.f32 %v3958, %v4040
    %v4042 = vpop.f32.mrf.mxu0
    %4043 = vdwg.mxu0
    %v4044 = vlaneseq
    %v4045 = vshrl.u32 %v4044, 7
    %v4046 = vsub.s32 0, %v4045
    %v4047 = vrot.slane %v3765, %v4046
    %4048 = vmatprep.subr.mxu0 0.0
    %4049 = vmatpush1.msra.mxu0 0.0
    %4050 = vmatprep.subr.mxu0 0.0
    %4051 = vmatpush1.msra.mxu0 0.0
    %4052 = vmatprep.subr.mxu0 0.0
    %4053 = vmatpush1.msra.mxu0 0.0
    %4054 = vmatprep.subr.mxu0 0.0
    %4055 = vmatpush1.msra.mxu0 0.0
    %4056 = vmatprep.subr.mxu0 0.0
    %4057 = vmatpush1.msra.mxu0 0.0
    %4058 = vmatprep.subr.mxu0 0.0
    %4059 = vmatpush1.msra.mxu0 0.0
    %4060 = vmatprep.subr.mxu0 0.0
    %4061 = vmatpush1.msra.mxu0 0.0
    %4062 = vmatprep.subr.mxu0 0.0
    %4063 = vmatpush1.msra.mxu0 0.0
    %4064 = vmatprep.subr.mxu0 0.0
    %4065 = vmatpush1.msra.mxu0 %v3718
    %4066 = vmatprep.subr.mxu0 0.0
    %4067 = vmatpush1.msra.mxu0 %v3717
    %4068 = vmatprep.subr.mxu0 0.0
    %4069 = vmatpush1.msra.mxu0 %v3716
    %4070 = vmatprep.subr.mxu0 0.0
    %4071 = vmatpush1.msra.mxu0 %v3715
    %4072 = vmatprep.subr.mxu0 0.0
    %4073 = vmatpush1.msra.mxu0 %v3714
    %4074 = vmatprep.subr.mxu0 0.0
    %4075 = vmatpush1.msra.mxu0 %v3713
    %4076 = vmatprep.subr.mxu0 0.0
    %4077 = vmatpush1.msra.mxu0 %v3712
    %4078 = vmatprep.subr.mxu0 0.0
    %4079 = vmatpush1.msra.mxu0 %v3711
    %4080 = vmatprep.subr.mxu0 0.0
    %4081 = vmatpush2.msra.mxu0 0.0
    %4082 = vmatprep.subr.mxu0 0.0
    %4083 = vmatpush2.msra.mxu0 0.0
    %4084 = vmatprep.subr.mxu0 0.0
    %4085 = vmatpush2.msra.mxu0 0.0
    %4086 = vmatprep.subr.mxu0 0.0
    %4087 = vmatpush2.msra.mxu0 0.0
    %4088 = vmatprep.subr.mxu0 0.0
    %4089 = vmatpush2.msra.mxu0 0.0
    %4090 = vmatprep.subr.mxu0 0.0
    %4091 = vmatpush2.msra.mxu0 0.0
    %4092 = vmatprep.subr.mxu0 0.0
    %4093 = vmatpush2.msra.mxu0 0.0
    %4094 = vmatprep.subr.mxu0 0.0
    %4095 = vmatpush2.msra.mxu0 0.0
    %4096 = vmatprep.subr.mxu0 0.0
    %4097 = vmatpush2.msra.mxu0 0.0
    %4098 = vmatprep.subr.mxu0 0.0
    %4099 = vmatpush2.msra.mxu0 0.0
    %4100 = vmatprep.subr.mxu0 0.0
    %4101 = vmatpush2.msra.mxu0 0.0
    %4102 = vmatprep.subr.mxu0 0.0
    %4103 = vmatpush2.msra.mxu0 0.0
    %4104 = vmatprep.subr.mxu0 0.0
    %4105 = vmatpush2.msra.mxu0 0.0
    %4106 = vmatprep.subr.mxu0 0.0
    %4107 = vmatpush2.msra.mxu0 0.0
    %4108 = vmatprep.subr.mxu0 0.0
    %4109 = vmatpush2.msra.mxu0 0.0
    %4110 = vmatprep.subr.mxu0 0.0
    %4111 = vmatpush2.msra.mxu0 0.0
    %4112 = vmatprep.mubr.f32.mxu0 0.0
    %4113 = vmatmul.mubr.f32.gmra.mxu0 %v3859
    %v4114 = vpop.f32.mrf.mxu0
    %v4115 = vadd.f32 %v4047, %v4114
    %v4116 = vpop.f32.mrf.mxu0
    %4117 = vmatprep.mubr.f32.mxu0 0.0
    %4118 = vmatmul.mubr.f32.gmra.mxu0 %v3862
    %v4119 = vpop.f32.mrf.mxu0
    %v4120 = vadd.f32 %v4047, %v4119
    %v4121 = vpop.f32.mrf.mxu0
    %4122 = vmatprep.mubr.f32.mxu0 0.0
    %4123 = vmatmul.mubr.f32.gmra.mxu0 %v3865
    %v4124 = vpop.f32.mrf.mxu0
    %v4125 = vadd.f32 %v4047, %v4124
    %v4126 = vpop.f32.mrf.mxu0
    %4127 = vmatprep.mubr.f32.mxu0 0.0
    %4128 = vmatmul.mubr.f32.gmra.mxu0 %v3868
    %v4129 = vpop.f32.mrf.mxu0
    %v4130 = vadd.f32 %v4047, %v4129
    %v4131 = vpop.f32.mrf.mxu0
    %4132 = vdwg.mxu0
    %v4134 = vsel %vm1065, %v3937, 0
    %v4137 = vsel %vm1065, %v3942, 0
    %v4140 = vsel %vm1065, %v4026, 0
    %v4143 = vsel %vm1065, %v4031, 0
    %4145 = vmatprep.subr.mxu0 0.0
    %4146 = vmatpush1.xpose.msra.mxu0 0.0
    %4147 = vmatprep.subr.mxu0 0.0
    %4148 = vmatpush1.xpose.msra.mxu0 0.0
    %4149 = vmatprep.subr.mxu0 0.0
    %4150 = vmatpush1.xpose.msra.mxu0 0.0
    %4151 = vmatprep.subr.mxu0 0.0
    %4152 = vmatpush1.xpose.msra.mxu0 0.0
    %4153 = vmatprep.subr.mxu0 0.0
    %4154 = vmatpush1.xpose.msra.mxu0 0.0
    %4155 = vmatprep.subr.mxu0 0.0
    %4156 = vmatpush1.xpose.msra.mxu0 0.0
    %4157 = vmatprep.subr.mxu0 0.0
    %4158 = vmatpush1.xpose.msra.mxu0 0.0
    %4159 = vmatprep.subr.mxu0 0.0
    %4160 = vmatpush1.xpose.msra.mxu0 0.0
    %4161 = vmatprep.subr.mxu0 0.0
    %4162 = vmatpush1.xpose.msra.mxu0 0.0
    %4163 = vmatprep.subr.mxu0 0.0
    %4164 = vmatpush1.xpose.msra.mxu0 0.0
    %4165 = vmatprep.subr.mxu0 0.0
    %4166 = vmatpush1.xpose.msra.mxu0 0.0
    %4167 = vmatprep.subr.mxu0 0.0
    %4168 = vmatpush1.xpose.msra.mxu0 0.0
    %4169 = vmatprep.subr.mxu0 0.0
    %4170 = vmatpush1.xpose.msra.mxu0 0.0
    %4171 = vmatprep.subr.mxu0 0.0
    %4172 = vmatpush1.xpose.msra.mxu0 0.0
    %4173 = vmatprep.subr.mxu0 0.0
    %4174 = vmatpush1.xpose.msra.mxu0 %v4143
    %4175 = vmatprep.subr.mxu0 0.0
    %4176 = vmatpush1.xpose.msra.mxu0 %v4140
    %4177 = vmatprep.subr.mxu0 0.0
    %4178 = vmatpush2.xpose.msra.mxu0 0.0
    %4179 = vmatprep.subr.mxu0 0.0
    %4180 = vmatpush2.xpose.msra.mxu0 0.0
    %4181 = vmatprep.subr.mxu0 0.0
    %4182 = vmatpush2.xpose.msra.mxu0 0.0
    %4183 = vmatprep.subr.mxu0 0.0
    %4184 = vmatpush2.xpose.msra.mxu0 0.0
    %4185 = vmatprep.subr.mxu0 0.0
    %4186 = vmatpush2.xpose.msra.mxu0 0.0
    %4187 = vmatprep.subr.mxu0 0.0
    %4188 = vmatpush2.xpose.msra.mxu0 0.0
    %4189 = vmatprep.subr.mxu0 0.0
    %4190 = vmatpush2.xpose.msra.mxu0 0.0
    %4191 = vmatprep.subr.mxu0 0.0
    %4192 = vmatpush2.xpose.msra.mxu0 0.0
    %4193 = vmatprep.subr.mxu0 0.0
    %4194 = vmatpush2.xpose.msra.mxu0 0.0
    %4195 = vmatprep.subr.mxu0 0.0
    %4196 = vmatpush2.xpose.msra.mxu0 0.0
    %4197 = vmatprep.subr.mxu0 0.0
    %4198 = vmatpush2.xpose.msra.mxu0 0.0
    %4199 = vmatprep.subr.mxu0 0.0
    %4200 = vmatpush2.xpose.msra.mxu0 0.0
    %4201 = vmatprep.subr.mxu0 0.0
    %4202 = vmatpush2.xpose.msra.mxu0 0.0
    %4203 = vmatprep.subr.mxu0 0.0
    %4204 = vmatpush2.xpose.msra.mxu0 0.0
    %4205 = vmatprep.subr.mxu0 0.0
    %4206 = vmatpush2.xpose.msra.mxu0 0.0
    %4207 = vmatprep.subr.mxu0 0.0
    %4208 = vmatpush2.xpose.msra.mxu0 0.0
    %4209 = vmatprep.mubr.f32.mxu0 0.0
    %4210 = vmatmul.mubr.f32.gmra.mxu0 %v4134
    %v4211 = vpop.f32.mrf.mxu0
    %v4212 = vadd.f32 0.0, %v4211
    %v4213 = vpop.f32.mrf.mxu0
    %4214 = vmatprep.mubr.f32.mxu0 0.0
    %4215 = vmatmul.mubr.f32.gmra.mxu0 %v4137
    %v4216 = vpop.f32.mrf.mxu0
    %v4217 = vadd.f32 0.0, %v4216
    %v4218 = vpop.f32.mrf.mxu0
    %4219 = vdwg.mxu0
    %v4220 = vmul.f32 %v4212, 0.25
    %v4221 = vmul.f32 %v4217, 0.25
    %v4222 = vsel %vm623, %v4220, -1e+30
    %v4223 = vsel %vm624, %v4221, -1e+30
    %v4224 = vsel %vm1065, %v4222, -inf
    %4225 = vmax.xlane.f32.xlu0 %v4224
    %v4226 = vpop.xlane.xlu0 %4225
    %v4227 = vsel %vm1065, %v4223, -inf
    %4228 = vmax.xlane.f32.xlu0 %v4227
    %v4229 = vpop.xlane.xlu0 %4228
    %v4230 = vsub.f32 %v4222, %v4226
    %v4231 = vsub.f32 %v4223, %v4229
    %v4232 = vmul.f32 %v4230, 1.442695
    %v4233 = vpow.pop %v4232
    %v4234 = vmul.f32 %v4231, 1.442695
    %v4235 = vpow.pop %v4234
    %v4236 = vsel %vm1065, %v4233, 0.0
    %4237 = vadd.xlane.f32.xlu0 %v4236
    %v4238 = vpop.xlane.xlu0 %4237
    %v4239 = vsel %vm1065, %v4235, 0.0
    %4240 = vadd.xlane.f32.xlu0 %v4239
    %v4241 = vpop.xlane.xlu0 %4240
    %v4242 = vrcp.pop %v4238
    %v4243 = vrcp.pop %v4241
    %v4244 = vmul.f32 %v4233, %v4242
    %v4245 = vmul.f32 %v4235, %v4243
    %v4247 = vsel %vm1065, %v4244, 0
    %v4250 = vsel %vm1065, %v4245, 0
    %4252 = vmatprep.subr.mxu0 0.0
    %4253 = vmatpush1.msra.mxu0 0.0
    %4254 = vmatprep.subr.mxu0 0.0
    %4255 = vmatpush1.msra.mxu0 0.0
    %4256 = vmatprep.subr.mxu0 0.0
    %4257 = vmatpush1.msra.mxu0 0.0
    %4258 = vmatprep.subr.mxu0 0.0
    %4259 = vmatpush1.msra.mxu0 0.0
    %4260 = vmatprep.subr.mxu0 0.0
    %4261 = vmatpush1.msra.mxu0 0.0
    %4262 = vmatprep.subr.mxu0 0.0
    %4263 = vmatpush1.msra.mxu0 0.0
    %4264 = vmatprep.subr.mxu0 0.0
    %4265 = vmatpush1.msra.mxu0 0.0
    %4266 = vmatprep.subr.mxu0 0.0
    %4267 = vmatpush1.msra.mxu0 0.0
    %4268 = vmatprep.subr.mxu0 0.0
    %4269 = vmatpush1.msra.mxu0 0.0
    %4270 = vmatprep.subr.mxu0 0.0
    %4271 = vmatpush1.msra.mxu0 0.0
    %4272 = vmatprep.subr.mxu0 0.0
    %4273 = vmatpush1.msra.mxu0 0.0
    %4274 = vmatprep.subr.mxu0 0.0
    %4275 = vmatpush1.msra.mxu0 0.0
    %4276 = vmatprep.subr.mxu0 0.0
    %4277 = vmatpush1.msra.mxu0 0.0
    %4278 = vmatprep.subr.mxu0 0.0
    %4279 = vmatpush1.msra.mxu0 0.0
    %4280 = vmatprep.subr.mxu0 0.0
    %4281 = vmatpush1.msra.mxu0 %v4120
    %4282 = vmatprep.subr.mxu0 0.0
    %4283 = vmatpush1.msra.mxu0 %v4115
    %4284 = vmatprep.subr.mxu0 0.0
    %4285 = vmatpush2.msra.mxu0 0.0
    %4286 = vmatprep.subr.mxu0 0.0
    %4287 = vmatpush2.msra.mxu0 0.0
    %4288 = vmatprep.subr.mxu0 0.0
    %4289 = vmatpush2.msra.mxu0 0.0
    %4290 = vmatprep.subr.mxu0 0.0
    %4291 = vmatpush2.msra.mxu0 0.0
    %4292 = vmatprep.subr.mxu0 0.0
    %4293 = vmatpush2.msra.mxu0 0.0
    %4294 = vmatprep.subr.mxu0 0.0
    %4295 = vmatpush2.msra.mxu0 0.0
    %4296 = vmatprep.subr.mxu0 0.0
    %4297 = vmatpush2.msra.mxu0 0.0
    %4298 = vmatprep.subr.mxu0 0.0
    %4299 = vmatpush2.msra.mxu0 0.0
    %4300 = vmatprep.subr.mxu0 0.0
    %4301 = vmatpush2.msra.mxu0 0.0
    %4302 = vmatprep.subr.mxu0 0.0
    %4303 = vmatpush2.msra.mxu0 0.0
    %4304 = vmatprep.subr.mxu0 0.0
    %4305 = vmatpush2.msra.mxu0 0.0
    %4306 = vmatprep.subr.mxu0 0.0
    %4307 = vmatpush2.msra.mxu0 0.0
    %4308 = vmatprep.subr.mxu0 0.0
    %4309 = vmatpush2.msra.mxu0 0.0
    %4310 = vmatprep.subr.mxu0 0.0
    %4311 = vmatpush2.msra.mxu0 0.0
    %4312 = vmatprep.subr.mxu0 0.0
    %4313 = vmatpush2.msra.mxu0 0.0
    %4314 = vmatprep.subr.mxu0 0.0
    %4315 = vmatpush2.msra.mxu0 0.0
    %4316 = vmatprep.mubr.f32.mxu0 0.0
    %4317 = vmatmul.mubr.f32.gmra.mxu0 %v4247
    %v4318 = vpop.f32.mrf.mxu0
    %v4319 = vadd.f32 0.0, %v4318
    %v4320 = vpop.f32.mrf.mxu0
    %4321 = vmatprep.mubr.f32.mxu0 0.0
    %4322 = vmatmul.mubr.f32.gmra.mxu0 %v4250
    %v4323 = vpop.f32.mrf.mxu0
    %v4324 = vadd.f32 0.0, %v4323
    %v4325 = vpop.f32.mrf.mxu0
    %4326 = vdwg.mxu0
    %4327 = vrot.lane.b32.xlu0 %v3937, 112
    %v4328 = vpop.permute.xlu0 %4327
    %4329 = vrot.lane.b32.xlu0 %v3942, 112
    %v4330 = vpop.permute.xlu0 %4329
    %4331 = vrot.lane.b32.xlu0 %v4026, 112
    %v4332 = vpop.permute.xlu0 %4331
    %4333 = vrot.lane.b32.xlu0 %v4031, 112
    %v4334 = vpop.permute.xlu0 %4333
    %v4335 = vsel %vm1065, %v4328, 0
    %v4337 = vsel %vm1065, %v4330, 0
    %v4339 = vsel %vm1065, %v4332, 0
    %v4341 = vsel %vm1065, %v4334, 0
    %4343 = vmatprep.subr.mxu0 0.0
    %4344 = vmatpush1.xpose.msra.mxu0 0.0
    %4345 = vmatprep.subr.mxu0 0.0
    %4346 = vmatpush1.xpose.msra.mxu0 0.0
    %4347 = vmatprep.subr.mxu0 0.0
    %4348 = vmatpush1.xpose.msra.mxu0 0.0
    %4349 = vmatprep.subr.mxu0 0.0
    %4350 = vmatpush1.xpose.msra.mxu0 0.0
    %4351 = vmatprep.subr.mxu0 0.0
    %4352 = vmatpush1.xpose.msra.mxu0 0.0
    %4353 = vmatprep.subr.mxu0 0.0
    %4354 = vmatpush1.xpose.msra.mxu0 0.0
    %4355 = vmatprep.subr.mxu0 0.0
    %4356 = vmatpush1.xpose.msra.mxu0 0.0
    %4357 = vmatprep.subr.mxu0 0.0
    %4358 = vmatpush1.xpose.msra.mxu0 0.0
    %4359 = vmatprep.subr.mxu0 0.0
    %4360 = vmatpush1.xpose.msra.mxu0 0.0
    %4361 = vmatprep.subr.mxu0 0.0
    %4362 = vmatpush1.xpose.msra.mxu0 0.0
    %4363 = vmatprep.subr.mxu0 0.0
    %4364 = vmatpush1.xpose.msra.mxu0 0.0
    %4365 = vmatprep.subr.mxu0 0.0
    %4366 = vmatpush1.xpose.msra.mxu0 0.0
    %4367 = vmatprep.subr.mxu0 0.0
    %4368 = vmatpush1.xpose.msra.mxu0 0.0
    %4369 = vmatprep.subr.mxu0 0.0
    %4370 = vmatpush1.xpose.msra.mxu0 0.0
    %4371 = vmatprep.subr.mxu0 0.0
    %4372 = vmatpush1.xpose.msra.mxu0 %v4341
    %4373 = vmatprep.subr.mxu0 0.0
    %4374 = vmatpush1.xpose.msra.mxu0 %v4339
    %4375 = vmatprep.subr.mxu0 0.0
    %4376 = vmatpush2.xpose.msra.mxu0 0.0
    %4377 = vmatprep.subr.mxu0 0.0
    %4378 = vmatpush2.xpose.msra.mxu0 0.0
    %4379 = vmatprep.subr.mxu0 0.0
    %4380 = vmatpush2.xpose.msra.mxu0 0.0
    %4381 = vmatprep.subr.mxu0 0.0
    %4382 = vmatpush2.xpose.msra.mxu0 0.0
    %4383 = vmatprep.subr.mxu0 0.0
    %4384 = vmatpush2.xpose.msra.mxu0 0.0
    %4385 = vmatprep.subr.mxu0 0.0
    %4386 = vmatpush2.xpose.msra.mxu0 0.0
    %4387 = vmatprep.subr.mxu0 0.0
    %4388 = vmatpush2.xpose.msra.mxu0 0.0
    %4389 = vmatprep.subr.mxu0 0.0
    %4390 = vmatpush2.xpose.msra.mxu0 0.0
    %4391 = vmatprep.subr.mxu0 0.0
    %4392 = vmatpush2.xpose.msra.mxu0 0.0
    %4393 = vmatprep.subr.mxu0 0.0
    %4394 = vmatpush2.xpose.msra.mxu0 0.0
    %4395 = vmatprep.subr.mxu0 0.0
    %4396 = vmatpush2.xpose.msra.mxu0 0.0
    %4397 = vmatprep.subr.mxu0 0.0
    %4398 = vmatpush2.xpose.msra.mxu0 0.0
    %4399 = vmatprep.subr.mxu0 0.0
    %4400 = vmatpush2.xpose.msra.mxu0 0.0
    %4401 = vmatprep.subr.mxu0 0.0
    %4402 = vmatpush2.xpose.msra.mxu0 0.0
    %4403 = vmatprep.subr.mxu0 0.0
    %4404 = vmatpush2.xpose.msra.mxu0 0.0
    %4405 = vmatprep.subr.mxu0 0.0
    %4406 = vmatpush2.xpose.msra.mxu0 0.0
    %4407 = vmatprep.mubr.f32.mxu0 0.0
    %4408 = vmatmul.mubr.f32.gmra.mxu0 %v4335
    %v4409 = vpop.f32.mrf.mxu0
    %v4410 = vadd.f32 0.0, %v4409
    %v4411 = vpop.f32.mrf.mxu0
    %4412 = vmatprep.mubr.f32.mxu0 0.0
    %4413 = vmatmul.mubr.f32.gmra.mxu0 %v4337
    %v4414 = vpop.f32.mrf.mxu0
    %v4415 = vadd.f32 0.0, %v4414
    %v4416 = vpop.f32.mrf.mxu0
    %4417 = vdwg.mxu0
    %v4418 = vmul.f32 %v4410, 0.25
    %v4419 = vmul.f32 %v4415, 0.25
    %v4420 = vsel %vm623, %v4418, -1e+30
    %v4421 = vsel %vm624, %v4419, -1e+30
    %v4422 = vsel %vm1065, %v4420, -inf
    %4423 = vmax.xlane.f32.xlu0 %v4422
    %v4424 = vpop.xlane.xlu0 %4423
    %v4425 = vsel %vm1065, %v4421, -inf
    %4426 = vmax.xlane.f32.xlu0 %v4425
    %v4427 = vpop.xlane.xlu0 %4426
    %v4428 = vsub.f32 %v4420, %v4424
    %v4429 = vsub.f32 %v4421, %v4427
    %v4430 = vmul.f32 %v4428, 1.442695
    %v4431 = vpow.pop %v4430
    %v4432 = vmul.f32 %v4429, 1.442695
    %v4433 = vpow.pop %v4432
    %v4434 = vsel %vm1065, %v4431, 0.0
    %4435 = vadd.xlane.f32.xlu0 %v4434
    %v4436 = vpop.xlane.xlu0 %4435
    %v4437 = vsel %vm1065, %v4433, 0.0
    %4438 = vadd.xlane.f32.xlu0 %v4437
    %v4439 = vpop.xlane.xlu0 %4438
    %v4440 = vrcp.pop %v4436
    %v4441 = vrcp.pop %v4439
    %v4442 = vmul.f32 %v4431, %v4440
    %v4443 = vmul.f32 %v4433, %v4441
    %4446 = vrot.lane.b32.xlu0 %v4115, 112
    %v4447 = vpop.permute.xlu0 %4446
    %4448 = vrot.lane.b32.xlu0 %v4120, 112
    %v4449 = vpop.permute.xlu0 %4448
    %v4453 = vsel %vm1065, %v4442, 0
    %v4456 = vsel %vm1065, %v4443, 0
    %4458 = vmatprep.subr.mxu0 0.0
    %4459 = vmatpush1.msra.mxu0 0.0
    %4460 = vmatprep.subr.mxu0 0.0
    %4461 = vmatpush1.msra.mxu0 0.0
    %4462 = vmatprep.subr.mxu0 0.0
    %4463 = vmatpush1.msra.mxu0 0.0
    %4464 = vmatprep.subr.mxu0 0.0
    %4465 = vmatpush1.msra.mxu0 0.0
    %4466 = vmatprep.subr.mxu0 0.0
    %4467 = vmatpush1.msra.mxu0 0.0
    %4468 = vmatprep.subr.mxu0 0.0
    %4469 = vmatpush1.msra.mxu0 0.0
    %4470 = vmatprep.subr.mxu0 0.0
    %4471 = vmatpush1.msra.mxu0 0.0
    %4472 = vmatprep.subr.mxu0 0.0
    %4473 = vmatpush1.msra.mxu0 0.0
    %4474 = vmatprep.subr.mxu0 0.0
    %4475 = vmatpush1.msra.mxu0 0.0
    %4476 = vmatprep.subr.mxu0 0.0
    %4477 = vmatpush1.msra.mxu0 0.0
    %4478 = vmatprep.subr.mxu0 0.0
    %4479 = vmatpush1.msra.mxu0 0.0
    %4480 = vmatprep.subr.mxu0 0.0
    %4481 = vmatpush1.msra.mxu0 0.0
    %4482 = vmatprep.subr.mxu0 0.0
    %4483 = vmatpush1.msra.mxu0 0.0
    %4484 = vmatprep.subr.mxu0 0.0
    %4485 = vmatpush1.msra.mxu0 0.0
    %4486 = vmatprep.subr.mxu0 0.0
    %4487 = vmatpush1.msra.mxu0 %v4449
    %4488 = vmatprep.subr.mxu0 0.0
    %4489 = vmatpush1.msra.mxu0 %v4447
    %4490 = vmatprep.subr.mxu0 0.0
    %4491 = vmatpush2.msra.mxu0 0.0
    %4492 = vmatprep.subr.mxu0 0.0
    %4493 = vmatpush2.msra.mxu0 0.0
    %4494 = vmatprep.subr.mxu0 0.0
    %4495 = vmatpush2.msra.mxu0 0.0
    %4496 = vmatprep.subr.mxu0 0.0
    %4497 = vmatpush2.msra.mxu0 0.0
    %4498 = vmatprep.subr.mxu0 0.0
    %4499 = vmatpush2.msra.mxu0 0.0
    %4500 = vmatprep.subr.mxu0 0.0
    %4501 = vmatpush2.msra.mxu0 0.0
    %4502 = vmatprep.subr.mxu0 0.0
    %4503 = vmatpush2.msra.mxu0 0.0
    %4504 = vmatprep.subr.mxu0 0.0
    %4505 = vmatpush2.msra.mxu0 0.0
    %4506 = vmatprep.subr.mxu0 0.0
    %4507 = vmatpush2.msra.mxu0 0.0
    %4508 = vmatprep.subr.mxu0 0.0
    %4509 = vmatpush2.msra.mxu0 0.0
    %4510 = vmatprep.subr.mxu0 0.0
    %4511 = vmatpush2.msra.mxu0 0.0
    %4512 = vmatprep.subr.mxu0 0.0
    %4513 = vmatpush2.msra.mxu0 0.0
    %4514 = vmatprep.subr.mxu0 0.0
    %4515 = vmatpush2.msra.mxu0 0.0
    %4516 = vmatprep.subr.mxu0 0.0
    %4517 = vmatpush2.msra.mxu0 0.0
    %4518 = vmatprep.subr.mxu0 0.0
    %4519 = vmatpush2.msra.mxu0 0.0
    %4520 = vmatprep.subr.mxu0 0.0
    %4521 = vmatpush2.msra.mxu0 0.0
    %4522 = vmatprep.mubr.f32.mxu0 0.0
    %4523 = vmatmul.mubr.f32.gmra.mxu0 %v4453
    %v4524 = vpop.f32.mrf.mxu0
    %v4525 = vadd.f32 0.0, %v4524
    %v4526 = vpop.f32.mrf.mxu0
    %4527 = vmatprep.mubr.f32.mxu0 0.0
    %4528 = vmatmul.mubr.f32.gmra.mxu0 %v4456
    %v4529 = vpop.f32.mrf.mxu0
    %v4530 = vadd.f32 0.0, %v4529
    %v4531 = vpop.f32.mrf.mxu0
    %4532 = vdwg.mxu0
    %v4534 = vsel %vm1065, %v4525, 0
    %v4537 = vsel %vm1065, %v4530, 0
    %4539 = vmatprep.subr.mxu0 0.0
    %4540 = vmatpush1.msra.mxu0 0.0
    %4541 = vmatprep.subr.mxu0 0.0
    %4542 = vmatpush1.msra.mxu0 0.0
    %4543 = vmatprep.subr.mxu0 0.0
    %4544 = vmatpush1.msra.mxu0 0.0
    %4545 = vmatprep.subr.mxu0 0.0
    %4546 = vmatpush1.msra.mxu0 0.0
    %4547 = vmatprep.subr.mxu0 0.0
    %4548 = vmatpush1.msra.mxu0 0.0
    %4549 = vmatprep.subr.mxu0 0.0
    %4550 = vmatpush1.msra.mxu0 0.0
    %4551 = vmatprep.subr.mxu0 0.0
    %4552 = vmatpush1.msra.mxu0 0.0
    %4553 = vmatprep.subr.mxu0 0.0
    %4554 = vmatpush1.msra.mxu0 0.0
    %4555 = vmatprep.subr.mxu0 0.0
    %4556 = vmatpush1.msra.mxu0 0.0
    %4557 = vmatprep.subr.mxu0 0.0
    %4558 = vmatpush1.msra.mxu0 0.0
    %4559 = vmatprep.subr.mxu0 0.0
    %4560 = vmatpush1.msra.mxu0 0.0
    %4561 = vmatprep.subr.mxu0 0.0
    %4562 = vmatpush1.msra.mxu0 0.0
    %4563 = vmatprep.subr.mxu0 0.0
    %4564 = vmatpush1.msra.mxu0 0.0
    %4565 = vmatprep.subr.mxu0 0.0
    %4566 = vmatpush1.msra.mxu0 0.0
    %4567 = vmatprep.subr.mxu0 0.0
    %4568 = vmatpush1.msra.mxu0 %v3722
    %4569 = vmatprep.subr.mxu0 0.0
    %4570 = vmatpush1.msra.mxu0 %v3721
    %4571 = vmatprep.subr.mxu0 0.0
    %4572 = vmatpush2.msra.mxu0 0.0
    %4573 = vmatprep.subr.mxu0 0.0
    %4574 = vmatpush2.msra.mxu0 0.0
    %4575 = vmatprep.subr.mxu0 0.0
    %4576 = vmatpush2.msra.mxu0 0.0
    %4577 = vmatprep.subr.mxu0 0.0
    %4578 = vmatpush2.msra.mxu0 0.0
    %4579 = vmatprep.subr.mxu0 0.0
    %4580 = vmatpush2.msra.mxu0 0.0
    %4581 = vmatprep.subr.mxu0 0.0
    %4582 = vmatpush2.msra.mxu0 0.0
    %4583 = vmatprep.subr.mxu0 0.0
    %4584 = vmatpush2.msra.mxu0 0.0
    %4585 = vmatprep.subr.mxu0 0.0
    %4586 = vmatpush2.msra.mxu0 0.0
    %4587 = vmatprep.subr.mxu0 0.0
    %4588 = vmatpush2.msra.mxu0 0.0
    %4589 = vmatprep.subr.mxu0 0.0
    %4590 = vmatpush2.msra.mxu0 0.0
    %4591 = vmatprep.subr.mxu0 0.0
    %4592 = vmatpush2.msra.mxu0 0.0
    %4593 = vmatprep.subr.mxu0 0.0
    %4594 = vmatpush2.msra.mxu0 0.0
    %4595 = vmatprep.subr.mxu0 0.0
    %4596 = vmatpush2.msra.mxu0 0.0
    %4597 = vmatprep.subr.mxu0 0.0
    %4598 = vmatpush2.msra.mxu0 0.0
    %4599 = vmatprep.subr.mxu0 0.0
    %4600 = vmatpush2.msra.mxu0 0.0
    %4601 = vmatprep.subr.mxu0 0.0
    %4602 = vmatpush2.msra.mxu0 0.0
    %4603 = vmatprep.mubr.f32.mxu0 0.0
    %4604 = vmatmul.mubr.f32.gmra.mxu0 %v4534
    %v4605 = vpop.f32.mrf.mxu0
    %v4606 = vadd.f32 0.0, %v4605
    %v4607 = vpop.f32.mrf.mxu0
    %4608 = vmatprep.mubr.f32.mxu0 0.0
    %4609 = vmatmul.mubr.f32.gmra.mxu0 %v4537
    %v4610 = vpop.f32.mrf.mxu0
    %v4611 = vadd.f32 0.0, %v4610
    %v4612 = vpop.f32.mrf.mxu0
    %4613 = vdwg.mxu0
    %v4615 = vsel %vm1065, %v4319, 0
    %v4618 = vsel %vm1065, %v4324, 0
    %4620 = vmatprep.subr.mxu0 0.0
    %4621 = vmatpush1.msra.mxu0 0.0
    %4622 = vmatprep.subr.mxu0 0.0
    %4623 = vmatpush1.msra.mxu0 0.0
    %4624 = vmatprep.subr.mxu0 0.0
    %4625 = vmatpush1.msra.mxu0 0.0
    %4626 = vmatprep.subr.mxu0 0.0
    %4627 = vmatpush1.msra.mxu0 0.0
    %4628 = vmatprep.subr.mxu0 0.0
    %4629 = vmatpush1.msra.mxu0 0.0
    %4630 = vmatprep.subr.mxu0 0.0
    %4631 = vmatpush1.msra.mxu0 0.0
    %4632 = vmatprep.subr.mxu0 0.0
    %4633 = vmatpush1.msra.mxu0 0.0
    %4634 = vmatprep.subr.mxu0 0.0
    %4635 = vmatpush1.msra.mxu0 0.0
    %4636 = vmatprep.subr.mxu0 0.0
    %4637 = vmatpush1.msra.mxu0 0.0
    %4638 = vmatprep.subr.mxu0 0.0
    %4639 = vmatpush1.msra.mxu0 0.0
    %4640 = vmatprep.subr.mxu0 0.0
    %4641 = vmatpush1.msra.mxu0 0.0
    %4642 = vmatprep.subr.mxu0 0.0
    %4643 = vmatpush1.msra.mxu0 0.0
    %4644 = vmatprep.subr.mxu0 0.0
    %4645 = vmatpush1.msra.mxu0 0.0
    %4646 = vmatprep.subr.mxu0 0.0
    %4647 = vmatpush1.msra.mxu0 0.0
    %4648 = vmatprep.subr.mxu0 0.0
    %4649 = vmatpush1.msra.mxu0 %v3720
    %4650 = vmatprep.subr.mxu0 0.0
    %4651 = vmatpush1.msra.mxu0 %v3719
    %4652 = vmatprep.subr.mxu0 0.0
    %4653 = vmatpush2.msra.mxu0 0.0
    %4654 = vmatprep.subr.mxu0 0.0
    %4655 = vmatpush2.msra.mxu0 0.0
    %4656 = vmatprep.subr.mxu0 0.0
    %4657 = vmatpush2.msra.mxu0 0.0
    %4658 = vmatprep.subr.mxu0 0.0
    %4659 = vmatpush2.msra.mxu0 0.0
    %4660 = vmatprep.subr.mxu0 0.0
    %4661 = vmatpush2.msra.mxu0 0.0
    %4662 = vmatprep.subr.mxu0 0.0
    %4663 = vmatpush2.msra.mxu0 0.0
    %4664 = vmatprep.subr.mxu0 0.0
    %4665 = vmatpush2.msra.mxu0 0.0
    %4666 = vmatprep.subr.mxu0 0.0
    %4667 = vmatpush2.msra.mxu0 0.0
    %4668 = vmatprep.subr.mxu0 0.0
    %4669 = vmatpush2.msra.mxu0 0.0
    %4670 = vmatprep.subr.mxu0 0.0
    %4671 = vmatpush2.msra.mxu0 0.0
    %4672 = vmatprep.subr.mxu0 0.0
    %4673 = vmatpush2.msra.mxu0 0.0
    %4674 = vmatprep.subr.mxu0 0.0
    %4675 = vmatpush2.msra.mxu0 0.0
    %4676 = vmatprep.subr.mxu0 0.0
    %4677 = vmatpush2.msra.mxu0 0.0
    %4678 = vmatprep.subr.mxu0 0.0
    %4679 = vmatpush2.msra.mxu0 0.0
    %4680 = vmatprep.subr.mxu0 0.0
    %4681 = vmatpush2.msra.mxu0 0.0
    %4682 = vmatprep.subr.mxu0 0.0
    %4683 = vmatpush2.msra.mxu0 0.0
    %4684 = vmatprep.mubr.f32.mxu0 0.0
    %4685 = vmatmul.mubr.f32.gmra.mxu0 %v4615
    %v4686 = vpop.f32.mrf.mxu0
    %v4687 = vadd.f32 %v4606, %v4686
    %v4688 = vpop.f32.mrf.mxu0
    %4689 = vmatprep.mubr.f32.mxu0 0.0
    %4690 = vmatmul.mubr.f32.gmra.mxu0 %v4618
    %v4691 = vpop.f32.mrf.mxu0
    %v4692 = vadd.f32 %v4611, %v4691
    %v4693 = vpop.f32.mrf.mxu0
    %4694 = vdwg.mxu0
    %4695 = vrot.lane.b32.xlu0 %v3937, 96
    %v4696 = vpop.permute.xlu0 %4695
    %4697 = vrot.lane.b32.xlu0 %v3942, 96
    %v4698 = vpop.permute.xlu0 %4697
    %4699 = vrot.lane.b32.xlu0 %v4026, 96
    %v4700 = vpop.permute.xlu0 %4699
    %4701 = vrot.lane.b32.xlu0 %v4031, 96
    %v4702 = vpop.permute.xlu0 %4701
    %v4703 = vsel %vm1065, %v4696, 0
    %v4705 = vsel %vm1065, %v4698, 0
    %v4707 = vsel %vm1065, %v4700, 0
    %v4709 = vsel %vm1065, %v4702, 0
    %4711 = vmatprep.subr.mxu0 0.0
    %4712 = vmatpush1.xpose.msra.mxu0 0.0
    %4713 = vmatprep.subr.mxu0 0.0
    %4714 = vmatpush1.xpose.msra.mxu0 0.0
    %4715 = vmatprep.subr.mxu0 0.0
    %4716 = vmatpush1.xpose.msra.mxu0 0.0
    %4717 = vmatprep.subr.mxu0 0.0
    %4718 = vmatpush1.xpose.msra.mxu0 0.0
    %4719 = vmatprep.subr.mxu0 0.0
    %4720 = vmatpush1.xpose.msra.mxu0 0.0
    %4721 = vmatprep.subr.mxu0 0.0
    %4722 = vmatpush1.xpose.msra.mxu0 0.0
    %4723 = vmatprep.subr.mxu0 0.0
    %4724 = vmatpush1.xpose.msra.mxu0 0.0
    %4725 = vmatprep.subr.mxu0 0.0
    %4726 = vmatpush1.xpose.msra.mxu0 0.0
    %4727 = vmatprep.subr.mxu0 0.0
    %4728 = vmatpush1.xpose.msra.mxu0 0.0
    %4729 = vmatprep.subr.mxu0 0.0
    %4730 = vmatpush1.xpose.msra.mxu0 0.0
    %4731 = vmatprep.subr.mxu0 0.0
    %4732 = vmatpush1.xpose.msra.mxu0 0.0
    %4733 = vmatprep.subr.mxu0 0.0
    %4734 = vmatpush1.xpose.msra.mxu0 0.0
    %4735 = vmatprep.subr.mxu0 0.0
    %4736 = vmatpush1.xpose.msra.mxu0 0.0
    %4737 = vmatprep.subr.mxu0 0.0
    %4738 = vmatpush1.xpose.msra.mxu0 0.0
    %4739 = vmatprep.subr.mxu0 0.0
    %4740 = vmatpush1.xpose.msra.mxu0 %v4709
    %4741 = vmatprep.subr.mxu0 0.0
    %4742 = vmatpush1.xpose.msra.mxu0 %v4707
    %4743 = vmatprep.subr.mxu0 0.0
    %4744 = vmatpush2.xpose.msra.mxu0 0.0
    %4745 = vmatprep.subr.mxu0 0.0
    %4746 = vmatpush2.xpose.msra.mxu0 0.0
    %4747 = vmatprep.subr.mxu0 0.0
    %4748 = vmatpush2.xpose.msra.mxu0 0.0
    %4749 = vmatprep.subr.mxu0 0.0
    %4750 = vmatpush2.xpose.msra.mxu0 0.0
    %4751 = vmatprep.subr.mxu0 0.0
    %4752 = vmatpush2.xpose.msra.mxu0 0.0
    %4753 = vmatprep.subr.mxu0 0.0
    %4754 = vmatpush2.xpose.msra.mxu0 0.0
    %4755 = vmatprep.subr.mxu0 0.0
    %4756 = vmatpush2.xpose.msra.mxu0 0.0
    %4757 = vmatprep.subr.mxu0 0.0
    %4758 = vmatpush2.xpose.msra.mxu0 0.0
    %4759 = vmatprep.subr.mxu0 0.0
    %4760 = vmatpush2.xpose.msra.mxu0 0.0
    %4761 = vmatprep.subr.mxu0 0.0
    %4762 = vmatpush2.xpose.msra.mxu0 0.0
    %4763 = vmatprep.subr.mxu0 0.0
    %4764 = vmatpush2.xpose.msra.mxu0 0.0
    %4765 = vmatprep.subr.mxu0 0.0
    %4766 = vmatpush2.xpose.msra.mxu0 0.0
    %4767 = vmatprep.subr.mxu0 0.0
    %4768 = vmatpush2.xpose.msra.mxu0 0.0
    %4769 = vmatprep.subr.mxu0 0.0
    %4770 = vmatpush2.xpose.msra.mxu0 0.0
    %4771 = vmatprep.subr.mxu0 0.0
    %4772 = vmatpush2.xpose.msra.mxu0 0.0
    %4773 = vmatprep.subr.mxu0 0.0
    %4774 = vmatpush2.xpose.msra.mxu0 0.0
    %4775 = vmatprep.mubr.f32.mxu0 0.0
    %4776 = vmatmul.mubr.f32.gmra.mxu0 %v4703
    %v4777 = vpop.f32.mrf.mxu0
    %v4778 = vadd.f32 0.0, %v4777
    %v4779 = vpop.f32.mrf.mxu0
    %4780 = vmatprep.mubr.f32.mxu0 0.0
    %4781 = vmatmul.mubr.f32.gmra.mxu0 %v4705
    %v4782 = vpop.f32.mrf.mxu0
    %v4783 = vadd.f32 0.0, %v4782
    %v4784 = vpop.f32.mrf.mxu0
    %4785 = vdwg.mxu0
    %v4786 = vmul.f32 %v4778, 0.25
    %v4787 = vmul.f32 %v4783, 0.25
    %v4788 = vsel %vm623, %v4786, -1e+30
    %v4789 = vsel %vm624, %v4787, -1e+30
    %v4790 = vsel %vm1065, %v4788, -inf
    %4791 = vmax.xlane.f32.xlu0 %v4790
    %v4792 = vpop.xlane.xlu0 %4791
    %v4793 = vsel %vm1065, %v4789, -inf
    %4794 = vmax.xlane.f32.xlu0 %v4793
    %v4795 = vpop.xlane.xlu0 %4794
    %v4796 = vsub.f32 %v4788, %v4792
    %v4797 = vsub.f32 %v4789, %v4795
    %v4798 = vmul.f32 %v4796, 1.442695
    %v4799 = vpow.pop %v4798
    %v4800 = vmul.f32 %v4797, 1.442695
    %v4801 = vpow.pop %v4800
    %v4802 = vsel %vm1065, %v4799, 0.0
    %4803 = vadd.xlane.f32.xlu0 %v4802
    %v4804 = vpop.xlane.xlu0 %4803
    %v4805 = vsel %vm1065, %v4801, 0.0
    %4806 = vadd.xlane.f32.xlu0 %v4805
    %v4807 = vpop.xlane.xlu0 %4806
    %v4808 = vrcp.pop %v4804
    %v4809 = vrcp.pop %v4807
    %v4810 = vmul.f32 %v4799, %v4808
    %v4811 = vmul.f32 %v4801, %v4809
    %4812 = vrot.lane.b32.xlu0 %v4115, 96
    %v4813 = vpop.permute.xlu0 %4812
    %4814 = vrot.lane.b32.xlu0 %v4120, 96
    %v4815 = vpop.permute.xlu0 %4814
    %v4819 = vsel %vm1065, %v4810, 0
    %v4822 = vsel %vm1065, %v4811, 0
    %4824 = vmatprep.subr.mxu0 0.0
    %4825 = vmatpush1.msra.mxu0 0.0
    %4826 = vmatprep.subr.mxu0 0.0
    %4827 = vmatpush1.msra.mxu0 0.0
    %4828 = vmatprep.subr.mxu0 0.0
    %4829 = vmatpush1.msra.mxu0 0.0
    %4830 = vmatprep.subr.mxu0 0.0
    %4831 = vmatpush1.msra.mxu0 0.0
    %4832 = vmatprep.subr.mxu0 0.0
    %4833 = vmatpush1.msra.mxu0 0.0
    %4834 = vmatprep.subr.mxu0 0.0
    %4835 = vmatpush1.msra.mxu0 0.0
    %4836 = vmatprep.subr.mxu0 0.0
    %4837 = vmatpush1.msra.mxu0 0.0
    %4838 = vmatprep.subr.mxu0 0.0
    %4839 = vmatpush1.msra.mxu0 0.0
    %4840 = vmatprep.subr.mxu0 0.0
    %4841 = vmatpush1.msra.mxu0 0.0
    %4842 = vmatprep.subr.mxu0 0.0
    %4843 = vmatpush1.msra.mxu0 0.0
    %4844 = vmatprep.subr.mxu0 0.0
    %4845 = vmatpush1.msra.mxu0 0.0
    %4846 = vmatprep.subr.mxu0 0.0
    %4847 = vmatpush1.msra.mxu0 0.0
    %4848 = vmatprep.subr.mxu0 0.0
    %4849 = vmatpush1.msra.mxu0 0.0
    %4850 = vmatprep.subr.mxu0 0.0
    %4851 = vmatpush1.msra.mxu0 0.0
    %4852 = vmatprep.subr.mxu0 0.0
    %4853 = vmatpush1.msra.mxu0 %v4815
    %4854 = vmatprep.subr.mxu0 0.0
    %4855 = vmatpush1.msra.mxu0 %v4813
    %4856 = vmatprep.subr.mxu0 0.0
    %4857 = vmatpush2.msra.mxu0 0.0
    %4858 = vmatprep.subr.mxu0 0.0
    %4859 = vmatpush2.msra.mxu0 0.0
    %4860 = vmatprep.subr.mxu0 0.0
    %4861 = vmatpush2.msra.mxu0 0.0
    %4862 = vmatprep.subr.mxu0 0.0
    %4863 = vmatpush2.msra.mxu0 0.0
    %4864 = vmatprep.subr.mxu0 0.0
    %4865 = vmatpush2.msra.mxu0 0.0
    %4866 = vmatprep.subr.mxu0 0.0
    %4867 = vmatpush2.msra.mxu0 0.0
    %4868 = vmatprep.subr.mxu0 0.0
    %4869 = vmatpush2.msra.mxu0 0.0
    %4870 = vmatprep.subr.mxu0 0.0
    %4871 = vmatpush2.msra.mxu0 0.0
    %4872 = vmatprep.subr.mxu0 0.0
    %4873 = vmatpush2.msra.mxu0 0.0
    %4874 = vmatprep.subr.mxu0 0.0
    %4875 = vmatpush2.msra.mxu0 0.0
    %4876 = vmatprep.subr.mxu0 0.0
    %4877 = vmatpush2.msra.mxu0 0.0
    %4878 = vmatprep.subr.mxu0 0.0
    %4879 = vmatpush2.msra.mxu0 0.0
    %4880 = vmatprep.subr.mxu0 0.0
    %4881 = vmatpush2.msra.mxu0 0.0
    %4882 = vmatprep.subr.mxu0 0.0
    %4883 = vmatpush2.msra.mxu0 0.0
    %4884 = vmatprep.subr.mxu0 0.0
    %4885 = vmatpush2.msra.mxu0 0.0
    %4886 = vmatprep.subr.mxu0 0.0
    %4887 = vmatpush2.msra.mxu0 0.0
    %4888 = vmatprep.mubr.f32.mxu0 0.0
    %4889 = vmatmul.mubr.f32.gmra.mxu0 %v4819
    %v4890 = vpop.f32.mrf.mxu0
    %v4891 = vadd.f32 0.0, %v4890
    %v4892 = vpop.f32.mrf.mxu0
    %4893 = vmatprep.mubr.f32.mxu0 0.0
    %4894 = vmatmul.mubr.f32.gmra.mxu0 %v4822
    %v4895 = vpop.f32.mrf.mxu0
    %v4896 = vadd.f32 0.0, %v4895
    %v4897 = vpop.f32.mrf.mxu0
    %4898 = vdwg.mxu0
    %v4900 = vsel %vm1065, %v4891, 0
    %v4903 = vsel %vm1065, %v4896, 0
    %4905 = vmatprep.subr.mxu0 0.0
    %4906 = vmatpush1.msra.mxu0 0.0
    %4907 = vmatprep.subr.mxu0 0.0
    %4908 = vmatpush1.msra.mxu0 0.0
    %4909 = vmatprep.subr.mxu0 0.0
    %4910 = vmatpush1.msra.mxu0 0.0
    %4911 = vmatprep.subr.mxu0 0.0
    %4912 = vmatpush1.msra.mxu0 0.0
    %4913 = vmatprep.subr.mxu0 0.0
    %4914 = vmatpush1.msra.mxu0 0.0
    %4915 = vmatprep.subr.mxu0 0.0
    %4916 = vmatpush1.msra.mxu0 0.0
    %4917 = vmatprep.subr.mxu0 0.0
    %4918 = vmatpush1.msra.mxu0 0.0
    %4919 = vmatprep.subr.mxu0 0.0
    %4920 = vmatpush1.msra.mxu0 0.0
    %4921 = vmatprep.subr.mxu0 0.0
    %4922 = vmatpush1.msra.mxu0 0.0
    %4923 = vmatprep.subr.mxu0 0.0
    %4924 = vmatpush1.msra.mxu0 0.0
    %4925 = vmatprep.subr.mxu0 0.0
    %4926 = vmatpush1.msra.mxu0 0.0
    %4927 = vmatprep.subr.mxu0 0.0
    %4928 = vmatpush1.msra.mxu0 0.0
    %4929 = vmatprep.subr.mxu0 0.0
    %4930 = vmatpush1.msra.mxu0 0.0
    %4931 = vmatprep.subr.mxu0 0.0
    %4932 = vmatpush1.msra.mxu0 0.0
    %4933 = vmatprep.subr.mxu0 0.0
    %4934 = vmatpush1.msra.mxu0 %v3724
    %4935 = vmatprep.subr.mxu0 0.0
    %4936 = vmatpush1.msra.mxu0 %v3723
    %4937 = vmatprep.subr.mxu0 0.0
    %4938 = vmatpush2.msra.mxu0 0.0
    %4939 = vmatprep.subr.mxu0 0.0
    %4940 = vmatpush2.msra.mxu0 0.0
    %4941 = vmatprep.subr.mxu0 0.0
    %4942 = vmatpush2.msra.mxu0 0.0
    %4943 = vmatprep.subr.mxu0 0.0
    %4944 = vmatpush2.msra.mxu0 0.0
    %4945 = vmatprep.subr.mxu0 0.0
    %4946 = vmatpush2.msra.mxu0 0.0
    %4947 = vmatprep.subr.mxu0 0.0
    %4948 = vmatpush2.msra.mxu0 0.0
    %4949 = vmatprep.subr.mxu0 0.0
    %4950 = vmatpush2.msra.mxu0 0.0
    %4951 = vmatprep.subr.mxu0 0.0
    %4952 = vmatpush2.msra.mxu0 0.0
    %4953 = vmatprep.subr.mxu0 0.0
    %4954 = vmatpush2.msra.mxu0 0.0
    %4955 = vmatprep.subr.mxu0 0.0
    %4956 = vmatpush2.msra.mxu0 0.0
    %4957 = vmatprep.subr.mxu0 0.0
    %4958 = vmatpush2.msra.mxu0 0.0
    %4959 = vmatprep.subr.mxu0 0.0
    %4960 = vmatpush2.msra.mxu0 0.0
    %4961 = vmatprep.subr.mxu0 0.0
    %4962 = vmatpush2.msra.mxu0 0.0
    %4963 = vmatprep.subr.mxu0 0.0
    %4964 = vmatpush2.msra.mxu0 0.0
    %4965 = vmatprep.subr.mxu0 0.0
    %4966 = vmatpush2.msra.mxu0 0.0
    %4967 = vmatprep.subr.mxu0 0.0
    %4968 = vmatpush2.msra.mxu0 0.0
    %4969 = vmatprep.mubr.f32.mxu0 0.0
    %4970 = vmatmul.mubr.f32.gmra.mxu0 %v4900
    %v4971 = vpop.f32.mrf.mxu0
    %v4972 = vadd.f32 0.0, %v4971
    %v4973 = vpop.f32.mrf.mxu0
    %4974 = vmatprep.mubr.f32.mxu0 0.0
    %4975 = vmatmul.mubr.f32.gmra.mxu0 %v4903
    %v4976 = vpop.f32.mrf.mxu0
    %v4977 = vadd.f32 0.0, %v4976
    %v4978 = vpop.f32.mrf.mxu0
    %4979 = vdwg.mxu0
    %v4980 = vadd.f32 %v4687, %v4972
    %v4981 = vadd.f32 %v4692, %v4977
    %4982 = vrot.lane.b32.xlu0 %v3937, 80
    %v4983 = vpop.permute.xlu0 %4982
    %4984 = vrot.lane.b32.xlu0 %v3942, 80
    %v4985 = vpop.permute.xlu0 %4984
    %4986 = vrot.lane.b32.xlu0 %v4026, 80
    %v4987 = vpop.permute.xlu0 %4986
    %4988 = vrot.lane.b32.xlu0 %v4031, 80
    %v4989 = vpop.permute.xlu0 %4988
    %v4990 = vsel %vm1065, %v4983, 0
    %v4992 = vsel %vm1065, %v4985, 0
    %v4994 = vsel %vm1065, %v4987, 0
    %v4996 = vsel %vm1065, %v4989, 0
    %4998 = vmatprep.subr.mxu0 0.0
    %4999 = vmatpush1.xpose.msra.mxu0 0.0
    %5000 = vmatprep.subr.mxu0 0.0
    %5001 = vmatpush1.xpose.msra.mxu0 0.0
    %5002 = vmatprep.subr.mxu0 0.0
    %5003 = vmatpush1.xpose.msra.mxu0 0.0
    %5004 = vmatprep.subr.mxu0 0.0
    %5005 = vmatpush1.xpose.msra.mxu0 0.0
    %5006 = vmatprep.subr.mxu0 0.0
    %5007 = vmatpush1.xpose.msra.mxu0 0.0
    %5008 = vmatprep.subr.mxu0 0.0
    %5009 = vmatpush1.xpose.msra.mxu0 0.0
    %5010 = vmatprep.subr.mxu0 0.0
    %5011 = vmatpush1.xpose.msra.mxu0 0.0
    %5012 = vmatprep.subr.mxu0 0.0
    %5013 = vmatpush1.xpose.msra.mxu0 0.0
    %5014 = vmatprep.subr.mxu0 0.0
    %5015 = vmatpush1.xpose.msra.mxu0 0.0
    %5016 = vmatprep.subr.mxu0 0.0
    %5017 = vmatpush1.xpose.msra.mxu0 0.0
    %5018 = vmatprep.subr.mxu0 0.0
    %5019 = vmatpush1.xpose.msra.mxu0 0.0
    %5020 = vmatprep.subr.mxu0 0.0
    %5021 = vmatpush1.xpose.msra.mxu0 0.0
    %5022 = vmatprep.subr.mxu0 0.0
    %5023 = vmatpush1.xpose.msra.mxu0 0.0
    %5024 = vmatprep.subr.mxu0 0.0
    %5025 = vmatpush1.xpose.msra.mxu0 0.0
    %5026 = vmatprep.subr.mxu0 0.0
    %5027 = vmatpush1.xpose.msra.mxu0 %v4996
    %5028 = vmatprep.subr.mxu0 0.0
    %5029 = vmatpush1.xpose.msra.mxu0 %v4994
    %5030 = vmatprep.subr.mxu0 0.0
    %5031 = vmatpush2.xpose.msra.mxu0 0.0
    %5032 = vmatprep.subr.mxu0 0.0
    %5033 = vmatpush2.xpose.msra.mxu0 0.0
    %5034 = vmatprep.subr.mxu0 0.0
    %5035 = vmatpush2.xpose.msra.mxu0 0.0
    %5036 = vmatprep.subr.mxu0 0.0
    %5037 = vmatpush2.xpose.msra.mxu0 0.0
    %5038 = vmatprep.subr.mxu0 0.0
    %5039 = vmatpush2.xpose.msra.mxu0 0.0
    %5040 = vmatprep.subr.mxu0 0.0
    %5041 = vmatpush2.xpose.msra.mxu0 0.0
    %5042 = vmatprep.subr.mxu0 0.0
    %5043 = vmatpush2.xpose.msra.mxu0 0.0
    %5044 = vmatprep.subr.mxu0 0.0
    %5045 = vmatpush2.xpose.msra.mxu0 0.0
    %5046 = vmatprep.subr.mxu0 0.0
    %5047 = vmatpush2.xpose.msra.mxu0 0.0
    %5048 = vmatprep.subr.mxu0 0.0
    %5049 = vmatpush2.xpose.msra.mxu0 0.0
    %5050 = vmatprep.subr.mxu0 0.0
    %5051 = vmatpush2.xpose.msra.mxu0 0.0
    %5052 = vmatprep.subr.mxu0 0.0
    %5053 = vmatpush2.xpose.msra.mxu0 0.0
    %5054 = vmatprep.subr.mxu0 0.0
    %5055 = vmatpush2.xpose.msra.mxu0 0.0
    %5056 = vmatprep.subr.mxu0 0.0
    %5057 = vmatpush2.xpose.msra.mxu0 0.0
    %5058 = vmatprep.subr.mxu0 0.0
    %5059 = vmatpush2.xpose.msra.mxu0 0.0
    %5060 = vmatprep.subr.mxu0 0.0
    %5061 = vmatpush2.xpose.msra.mxu0 0.0
    %5062 = vmatprep.mubr.f32.mxu0 0.0
    %5063 = vmatmul.mubr.f32.gmra.mxu0 %v4990
    %v5064 = vpop.f32.mrf.mxu0
    %v5065 = vadd.f32 0.0, %v5064
    %v5066 = vpop.f32.mrf.mxu0
    %5067 = vmatprep.mubr.f32.mxu0 0.0
    %5068 = vmatmul.mubr.f32.gmra.mxu0 %v4992
    %v5069 = vpop.f32.mrf.mxu0
    %v5070 = vadd.f32 0.0, %v5069
    %v5071 = vpop.f32.mrf.mxu0
    %5072 = vdwg.mxu0
    %v5073 = vmul.f32 %v5065, 0.25
    %v5074 = vmul.f32 %v5070, 0.25
    %v5075 = vsel %vm623, %v5073, -1e+30
    %v5076 = vsel %vm624, %v5074, -1e+30
    %v5077 = vsel %vm1065, %v5075, -inf
    %5078 = vmax.xlane.f32.xlu0 %v5077
    %v5079 = vpop.xlane.xlu0 %5078
    %v5080 = vsel %vm1065, %v5076, -inf
    %5081 = vmax.xlane.f32.xlu0 %v5080
    %v5082 = vpop.xlane.xlu0 %5081
    %v5083 = vsub.f32 %v5075, %v5079
    %v5084 = vsub.f32 %v5076, %v5082
    %v5085 = vmul.f32 %v5083, 1.442695
    %v5086 = vpow.pop %v5085
    %v5087 = vmul.f32 %v5084, 1.442695
    %v5088 = vpow.pop %v5087
    %v5089 = vsel %vm1065, %v5086, 0.0
    %5090 = vadd.xlane.f32.xlu0 %v5089
    %v5091 = vpop.xlane.xlu0 %5090
    %v5092 = vsel %vm1065, %v5088, 0.0
    %5093 = vadd.xlane.f32.xlu0 %v5092
    %v5094 = vpop.xlane.xlu0 %5093
    %v5095 = vrcp.pop %v5091
    %v5096 = vrcp.pop %v5094
    %v5097 = vmul.f32 %v5086, %v5095
    %v5098 = vmul.f32 %v5088, %v5096
    %5099 = vrot.lane.b32.xlu0 %v4115, 80
    %v5100 = vpop.permute.xlu0 %5099
    %5101 = vrot.lane.b32.xlu0 %v4120, 80
    %v5102 = vpop.permute.xlu0 %5101
    %v5106 = vsel %vm1065, %v5097, 0
    %v5109 = vsel %vm1065, %v5098, 0
    %5111 = vmatprep.subr.mxu0 0.0
    %5112 = vmatpush1.msra.mxu0 0.0
    %5113 = vmatprep.subr.mxu0 0.0
    %5114 = vmatpush1.msra.mxu0 0.0
    %5115 = vmatprep.subr.mxu0 0.0
    %5116 = vmatpush1.msra.mxu0 0.0
    %5117 = vmatprep.subr.mxu0 0.0
    %5118 = vmatpush1.msra.mxu0 0.0
    %5119 = vmatprep.subr.mxu0 0.0
    %5120 = vmatpush1.msra.mxu0 0.0
    %5121 = vmatprep.subr.mxu0 0.0
    %5122 = vmatpush1.msra.mxu0 0.0
    %5123 = vmatprep.subr.mxu0 0.0
    %5124 = vmatpush1.msra.mxu0 0.0
    %5125 = vmatprep.subr.mxu0 0.0
    %5126 = vmatpush1.msra.mxu0 0.0
    %5127 = vmatprep.subr.mxu0 0.0
    %5128 = vmatpush1.msra.mxu0 0.0
    %5129 = vmatprep.subr.mxu0 0.0
    %5130 = vmatpush1.msra.mxu0 0.0
    %5131 = vmatprep.subr.mxu0 0.0
    %5132 = vmatpush1.msra.mxu0 0.0
    %5133 = vmatprep.subr.mxu0 0.0
    %5134 = vmatpush1.msra.mxu0 0.0
    %5135 = vmatprep.subr.mxu0 0.0
    %5136 = vmatpush1.msra.mxu0 0.0
    %5137 = vmatprep.subr.mxu0 0.0
    %5138 = vmatpush1.msra.mxu0 0.0
    %5139 = vmatprep.subr.mxu0 0.0
    %5140 = vmatpush1.msra.mxu0 %v5102
    %5141 = vmatprep.subr.mxu0 0.0
    %5142 = vmatpush1.msra.mxu0 %v5100
    %5143 = vmatprep.subr.mxu0 0.0
    %5144 = vmatpush2.msra.mxu0 0.0
    %5145 = vmatprep.subr.mxu0 0.0
    %5146 = vmatpush2.msra.mxu0 0.0
    %5147 = vmatprep.subr.mxu0 0.0
    %5148 = vmatpush2.msra.mxu0 0.0
    %5149 = vmatprep.subr.mxu0 0.0
    %5150 = vmatpush2.msra.mxu0 0.0
    %5151 = vmatprep.subr.mxu0 0.0
    %5152 = vmatpush2.msra.mxu0 0.0
    %5153 = vmatprep.subr.mxu0 0.0
    %5154 = vmatpush2.msra.mxu0 0.0
    %5155 = vmatprep.subr.mxu0 0.0
    %5156 = vmatpush2.msra.mxu0 0.0
    %5157 = vmatprep.subr.mxu0 0.0
    %5158 = vmatpush2.msra.mxu0 0.0
    %5159 = vmatprep.subr.mxu0 0.0
    %5160 = vmatpush2.msra.mxu0 0.0
    %5161 = vmatprep.subr.mxu0 0.0
    %5162 = vmatpush2.msra.mxu0 0.0
    %5163 = vmatprep.subr.mxu0 0.0
    %5164 = vmatpush2.msra.mxu0 0.0
    %5165 = vmatprep.subr.mxu0 0.0
    %5166 = vmatpush2.msra.mxu0 0.0
    %5167 = vmatprep.subr.mxu0 0.0
    %5168 = vmatpush2.msra.mxu0 0.0
    %5169 = vmatprep.subr.mxu0 0.0
    %5170 = vmatpush2.msra.mxu0 0.0
    %5171 = vmatprep.subr.mxu0 0.0
    %5172 = vmatpush2.msra.mxu0 0.0
    %5173 = vmatprep.subr.mxu0 0.0
    %5174 = vmatpush2.msra.mxu0 0.0
    %5175 = vmatprep.mubr.f32.mxu0 0.0
    %5176 = vmatmul.mubr.f32.gmra.mxu0 %v5106
    %v5177 = vpop.f32.mrf.mxu0
    %v5178 = vadd.f32 0.0, %v5177
    %v5179 = vpop.f32.mrf.mxu0
    %5180 = vmatprep.mubr.f32.mxu0 0.0
    %5181 = vmatmul.mubr.f32.gmra.mxu0 %v5109
    %v5182 = vpop.f32.mrf.mxu0
    %v5183 = vadd.f32 0.0, %v5182
    %v5184 = vpop.f32.mrf.mxu0
    %5185 = vdwg.mxu0
    %v5187 = vsel %vm1065, %v5178, 0
    %v5190 = vsel %vm1065, %v5183, 0
    %5192 = vmatprep.subr.mxu0 0.0
    %5193 = vmatpush1.msra.mxu0 0.0
    %5194 = vmatprep.subr.mxu0 0.0
    %5195 = vmatpush1.msra.mxu0 0.0
    %5196 = vmatprep.subr.mxu0 0.0
    %5197 = vmatpush1.msra.mxu0 0.0
    %5198 = vmatprep.subr.mxu0 0.0
    %5199 = vmatpush1.msra.mxu0 0.0
    %5200 = vmatprep.subr.mxu0 0.0
    %5201 = vmatpush1.msra.mxu0 0.0
    %5202 = vmatprep.subr.mxu0 0.0
    %5203 = vmatpush1.msra.mxu0 0.0
    %5204 = vmatprep.subr.mxu0 0.0
    %5205 = vmatpush1.msra.mxu0 0.0
    %5206 = vmatprep.subr.mxu0 0.0
    %5207 = vmatpush1.msra.mxu0 0.0
    %5208 = vmatprep.subr.mxu0 0.0
    %5209 = vmatpush1.msra.mxu0 0.0
    %5210 = vmatprep.subr.mxu0 0.0
    %5211 = vmatpush1.msra.mxu0 0.0
    %5212 = vmatprep.subr.mxu0 0.0
    %5213 = vmatpush1.msra.mxu0 0.0
    %5214 = vmatprep.subr.mxu0 0.0
    %5215 = vmatpush1.msra.mxu0 0.0
    %5216 = vmatprep.subr.mxu0 0.0
    %5217 = vmatpush1.msra.mxu0 0.0
    %5218 = vmatprep.subr.mxu0 0.0
    %5219 = vmatpush1.msra.mxu0 0.0
    %5220 = vmatprep.subr.mxu0 0.0
    %5221 = vmatpush1.msra.mxu0 %v3726
    %5222 = vmatprep.subr.mxu0 0.0
    %5223 = vmatpush1.msra.mxu0 %v3725
    %5224 = vmatprep.subr.mxu0 0.0
    %5225 = vmatpush2.msra.mxu0 0.0
    %5226 = vmatprep.subr.mxu0 0.0
    %5227 = vmatpush2.msra.mxu0 0.0
    %5228 = vmatprep.subr.mxu0 0.0
    %5229 = vmatpush2.msra.mxu0 0.0
    %5230 = vmatprep.subr.mxu0 0.0
    %5231 = vmatpush2.msra.mxu0 0.0
    %5232 = vmatprep.subr.mxu0 0.0
    %5233 = vmatpush2.msra.mxu0 0.0
    %5234 = vmatprep.subr.mxu0 0.0
    %5235 = vmatpush2.msra.mxu0 0.0
    %5236 = vmatprep.subr.mxu0 0.0
    %5237 = vmatpush2.msra.mxu0 0.0
    %5238 = vmatprep.subr.mxu0 0.0
    %5239 = vmatpush2.msra.mxu0 0.0
    %5240 = vmatprep.subr.mxu0 0.0
    %5241 = vmatpush2.msra.mxu0 0.0
    %5242 = vmatprep.subr.mxu0 0.0
    %5243 = vmatpush2.msra.mxu0 0.0
    %5244 = vmatprep.subr.mxu0 0.0
    %5245 = vmatpush2.msra.mxu0 0.0
    %5246 = vmatprep.subr.mxu0 0.0
    %5247 = vmatpush2.msra.mxu0 0.0
    %5248 = vmatprep.subr.mxu0 0.0
    %5249 = vmatpush2.msra.mxu0 0.0
    %5250 = vmatprep.subr.mxu0 0.0
    %5251 = vmatpush2.msra.mxu0 0.0
    %5252 = vmatprep.subr.mxu0 0.0
    %5253 = vmatpush2.msra.mxu0 0.0
    %5254 = vmatprep.subr.mxu0 0.0
    %5255 = vmatpush2.msra.mxu0 0.0
    %5256 = vmatprep.mubr.f32.mxu0 0.0
    %5257 = vmatmul.mubr.f32.gmra.mxu0 %v5187
    %v5258 = vpop.f32.mrf.mxu0
    %v5259 = vadd.f32 0.0, %v5258
    %v5260 = vpop.f32.mrf.mxu0
    %5261 = vmatprep.mubr.f32.mxu0 0.0
    %5262 = vmatmul.mubr.f32.gmra.mxu0 %v5190
    %v5263 = vpop.f32.mrf.mxu0
    %v5264 = vadd.f32 0.0, %v5263
    %v5265 = vpop.f32.mrf.mxu0
    %5266 = vdwg.mxu0
    %v5267 = vadd.f32 %v4980, %v5259
    %v5268 = vadd.f32 %v4981, %v5264
    %v5270 = vsel %vm1065, %v3947, 0
    %v5273 = vsel %vm1065, %v3952, 0
    %v5276 = vsel %vm1065, %v4036, 0
    %v5279 = vsel %vm1065, %v4041, 0
    %5281 = vmatprep.subr.mxu0 0.0
    %5282 = vmatpush1.xpose.msra.mxu0 0.0
    %5283 = vmatprep.subr.mxu0 0.0
    %5284 = vmatpush1.xpose.msra.mxu0 0.0
    %5285 = vmatprep.subr.mxu0 0.0
    %5286 = vmatpush1.xpose.msra.mxu0 0.0
    %5287 = vmatprep.subr.mxu0 0.0
    %5288 = vmatpush1.xpose.msra.mxu0 0.0
    %5289 = vmatprep.subr.mxu0 0.0
    %5290 = vmatpush1.xpose.msra.mxu0 0.0
    %5291 = vmatprep.subr.mxu0 0.0
    %5292 = vmatpush1.xpose.msra.mxu0 0.0
    %5293 = vmatprep.subr.mxu0 0.0
    %5294 = vmatpush1.xpose.msra.mxu0 0.0
    %5295 = vmatprep.subr.mxu0 0.0
    %5296 = vmatpush1.xpose.msra.mxu0 0.0
    %5297 = vmatprep.subr.mxu0 0.0
    %5298 = vmatpush1.xpose.msra.mxu0 0.0
    %5299 = vmatprep.subr.mxu0 0.0
    %5300 = vmatpush1.xpose.msra.mxu0 0.0
    %5301 = vmatprep.subr.mxu0 0.0
    %5302 = vmatpush1.xpose.msra.mxu0 0.0
    %5303 = vmatprep.subr.mxu0 0.0
    %5304 = vmatpush1.xpose.msra.mxu0 0.0
    %5305 = vmatprep.subr.mxu0 0.0
    %5306 = vmatpush1.xpose.msra.mxu0 0.0
    %5307 = vmatprep.subr.mxu0 0.0
    %5308 = vmatpush1.xpose.msra.mxu0 0.0
    %5309 = vmatprep.subr.mxu0 0.0
    %5310 = vmatpush1.xpose.msra.mxu0 %v5279
    %5311 = vmatprep.subr.mxu0 0.0
    %5312 = vmatpush1.xpose.msra.mxu0 %v5276
    %5313 = vmatprep.subr.mxu0 0.0
    %5314 = vmatpush2.xpose.msra.mxu0 0.0
    %5315 = vmatprep.subr.mxu0 0.0
    %5316 = vmatpush2.xpose.msra.mxu0 0.0
    %5317 = vmatprep.subr.mxu0 0.0
    %5318 = vmatpush2.xpose.msra.mxu0 0.0
    %5319 = vmatprep.subr.mxu0 0.0
    %5320 = vmatpush2.xpose.msra.mxu0 0.0
    %5321 = vmatprep.subr.mxu0 0.0
    %5322 = vmatpush2.xpose.msra.mxu0 0.0
    %5323 = vmatprep.subr.mxu0 0.0
    %5324 = vmatpush2.xpose.msra.mxu0 0.0
    %5325 = vmatprep.subr.mxu0 0.0
    %5326 = vmatpush2.xpose.msra.mxu0 0.0
    %5327 = vmatprep.subr.mxu0 0.0
    %5328 = vmatpush2.xpose.msra.mxu0 0.0
    %5329 = vmatprep.subr.mxu0 0.0
    %5330 = vmatpush2.xpose.msra.mxu0 0.0
    %5331 = vmatprep.subr.mxu0 0.0
    %5332 = vmatpush2.xpose.msra.mxu0 0.0
    %5333 = vmatprep.subr.mxu0 0.0
    %5334 = vmatpush2.xpose.msra.mxu0 0.0
    %5335 = vmatprep.subr.mxu0 0.0
    %5336 = vmatpush2.xpose.msra.mxu0 0.0
    %5337 = vmatprep.subr.mxu0 0.0
    %5338 = vmatpush2.xpose.msra.mxu0 0.0
    %5339 = vmatprep.subr.mxu0 0.0
    %5340 = vmatpush2.xpose.msra.mxu0 0.0
    %5341 = vmatprep.subr.mxu0 0.0
    %5342 = vmatpush2.xpose.msra.mxu0 0.0
    %5343 = vmatprep.subr.mxu0 0.0
    %5344 = vmatpush2.xpose.msra.mxu0 0.0
    %5345 = vmatprep.mubr.f32.mxu0 0.0
    %5346 = vmatmul.mubr.f32.gmra.mxu0 %v5270
    %v5347 = vpop.f32.mrf.mxu0
    %v5348 = vadd.f32 0.0, %v5347
    %v5349 = vpop.f32.mrf.mxu0
    %5350 = vmatprep.mubr.f32.mxu0 0.0
    %5351 = vmatmul.mubr.f32.gmra.mxu0 %v5273
    %v5352 = vpop.f32.mrf.mxu0
    %v5353 = vadd.f32 0.0, %v5352
    %v5354 = vpop.f32.mrf.mxu0
    %5355 = vdwg.mxu0
    %v5356 = vmul.f32 %v5348, 0.25
    %v5357 = vmul.f32 %v5353, 0.25
    %v5358 = vsel %vm623, %v5356, -1e+30
    %v5359 = vsel %vm624, %v5357, -1e+30
    %v5360 = vsel %vm1065, %v5358, -inf
    %5361 = vmax.xlane.f32.xlu0 %v5360
    %v5362 = vpop.xlane.xlu0 %5361
    %v5363 = vsel %vm1065, %v5359, -inf
    %5364 = vmax.xlane.f32.xlu0 %v5363
    %v5365 = vpop.xlane.xlu0 %5364
    %v5366 = vsub.f32 %v5358, %v5362
    %v5367 = vsub.f32 %v5359, %v5365
    %v5368 = vmul.f32 %v5366, 1.442695
    %v5369 = vpow.pop %v5368
    %v5370 = vmul.f32 %v5367, 1.442695
    %v5371 = vpow.pop %v5370
    %v5372 = vsel %vm1065, %v5369, 0.0
    %5373 = vadd.xlane.f32.xlu0 %v5372
    %v5374 = vpop.xlane.xlu0 %5373
    %v5375 = vsel %vm1065, %v5371, 0.0
    %5376 = vadd.xlane.f32.xlu0 %v5375
    %v5377 = vpop.xlane.xlu0 %5376
    %v5378 = vrcp.pop %v5374
    %v5379 = vrcp.pop %v5377
    %v5380 = vmul.f32 %v5369, %v5378
    %v5381 = vmul.f32 %v5371, %v5379
    %v5383 = vsel %vm1065, %v5380, 0
    %v5386 = vsel %vm1065, %v5381, 0
    %5388 = vmatprep.subr.mxu0 0.0
    %5389 = vmatpush1.msra.mxu0 0.0
    %5390 = vmatprep.subr.mxu0 0.0
    %5391 = vmatpush1.msra.mxu0 0.0
    %5392 = vmatprep.subr.mxu0 0.0
    %5393 = vmatpush1.msra.mxu0 0.0
    %5394 = vmatprep.subr.mxu0 0.0
    %5395 = vmatpush1.msra.mxu0 0.0
    %5396 = vmatprep.subr.mxu0 0.0
    %5397 = vmatpush1.msra.mxu0 0.0
    %5398 = vmatprep.subr.mxu0 0.0
    %5399 = vmatpush1.msra.mxu0 0.0
    %5400 = vmatprep.subr.mxu0 0.0
    %5401 = vmatpush1.msra.mxu0 0.0
    %5402 = vmatprep.subr.mxu0 0.0
    %5403 = vmatpush1.msra.mxu0 0.0
    %5404 = vmatprep.subr.mxu0 0.0
    %5405 = vmatpush1.msra.mxu0 0.0
    %5406 = vmatprep.subr.mxu0 0.0
    %5407 = vmatpush1.msra.mxu0 0.0
    %5408 = vmatprep.subr.mxu0 0.0
    %5409 = vmatpush1.msra.mxu0 0.0
    %5410 = vmatprep.subr.mxu0 0.0
    %5411 = vmatpush1.msra.mxu0 0.0
    %5412 = vmatprep.subr.mxu0 0.0
    %5413 = vmatpush1.msra.mxu0 0.0
    %5414 = vmatprep.subr.mxu0 0.0
    %5415 = vmatpush1.msra.mxu0 0.0
    %5416 = vmatprep.subr.mxu0 0.0
    %5417 = vmatpush1.msra.mxu0 %v4130
    %5418 = vmatprep.subr.mxu0 0.0
    %5419 = vmatpush1.msra.mxu0 %v4125
    %5420 = vmatprep.subr.mxu0 0.0
    %5421 = vmatpush2.msra.mxu0 0.0
    %5422 = vmatprep.subr.mxu0 0.0
    %5423 = vmatpush2.msra.mxu0 0.0
    %5424 = vmatprep.subr.mxu0 0.0
    %5425 = vmatpush2.msra.mxu0 0.0
    %5426 = vmatprep.subr.mxu0 0.0
    %5427 = vmatpush2.msra.mxu0 0.0
    %5428 = vmatprep.subr.mxu0 0.0
    %5429 = vmatpush2.msra.mxu0 0.0
    %5430 = vmatprep.subr.mxu0 0.0
    %5431 = vmatpush2.msra.mxu0 0.0
    %5432 = vmatprep.subr.mxu0 0.0
    %5433 = vmatpush2.msra.mxu0 0.0
    %5434 = vmatprep.subr.mxu0 0.0
    %5435 = vmatpush2.msra.mxu0 0.0
    %5436 = vmatprep.subr.mxu0 0.0
    %5437 = vmatpush2.msra.mxu0 0.0
    %5438 = vmatprep.subr.mxu0 0.0
    %5439 = vmatpush2.msra.mxu0 0.0
    %5440 = vmatprep.subr.mxu0 0.0
    %5441 = vmatpush2.msra.mxu0 0.0
    %5442 = vmatprep.subr.mxu0 0.0
    %5443 = vmatpush2.msra.mxu0 0.0
    %5444 = vmatprep.subr.mxu0 0.0
    %5445 = vmatpush2.msra.mxu0 0.0
    %5446 = vmatprep.subr.mxu0 0.0
    %5447 = vmatpush2.msra.mxu0 0.0
    %5448 = vmatprep.subr.mxu0 0.0
    %5449 = vmatpush2.msra.mxu0 0.0
    %5450 = vmatprep.subr.mxu0 0.0
    %5451 = vmatpush2.msra.mxu0 0.0
    %5452 = vmatprep.mubr.f32.mxu0 0.0
    %5453 = vmatmul.mubr.f32.gmra.mxu0 %v5383
    %v5454 = vpop.f32.mrf.mxu0
    %v5455 = vadd.f32 0.0, %v5454
    %v5456 = vpop.f32.mrf.mxu0
    %5457 = vmatprep.mubr.f32.mxu0 0.0
    %5458 = vmatmul.mubr.f32.gmra.mxu0 %v5386
    %v5459 = vpop.f32.mrf.mxu0
    %v5460 = vadd.f32 0.0, %v5459
    %v5461 = vpop.f32.mrf.mxu0
    %5462 = vdwg.mxu0
    %5463 = vrot.lane.b32.xlu0 %v3947, 112
    %v5464 = vpop.permute.xlu0 %5463
    %5465 = vrot.lane.b32.xlu0 %v3952, 112
    %v5466 = vpop.permute.xlu0 %5465
    %5467 = vrot.lane.b32.xlu0 %v4036, 112
    %v5468 = vpop.permute.xlu0 %5467
    %5469 = vrot.lane.b32.xlu0 %v4041, 112
    %v5470 = vpop.permute.xlu0 %5469
    %v5471 = vsel %vm1065, %v5464, 0
    %v5473 = vsel %vm1065, %v5466, 0
    %v5475 = vsel %vm1065, %v5468, 0
    %v5477 = vsel %vm1065, %v5470, 0
    %5479 = vmatprep.subr.mxu0 0.0
    %5480 = vmatpush1.xpose.msra.mxu0 0.0
    %5481 = vmatprep.subr.mxu0 0.0
    %5482 = vmatpush1.xpose.msra.mxu0 0.0
    %5483 = vmatprep.subr.mxu0 0.0
    %5484 = vmatpush1.xpose.msra.mxu0 0.0
    %5485 = vmatprep.subr.mxu0 0.0
    %5486 = vmatpush1.xpose.msra.mxu0 0.0
    %5487 = vmatprep.subr.mxu0 0.0
    %5488 = vmatpush1.xpose.msra.mxu0 0.0
    %5489 = vmatprep.subr.mxu0 0.0
    %5490 = vmatpush1.xpose.msra.mxu0 0.0
    %5491 = vmatprep.subr.mxu0 0.0
    %5492 = vmatpush1.xpose.msra.mxu0 0.0
    %5493 = vmatprep.subr.mxu0 0.0
    %5494 = vmatpush1.xpose.msra.mxu0 0.0
    %5495 = vmatprep.subr.mxu0 0.0
    %5496 = vmatpush1.xpose.msra.mxu0 0.0
    %5497 = vmatprep.subr.mxu0 0.0
    %5498 = vmatpush1.xpose.msra.mxu0 0.0
    %5499 = vmatprep.subr.mxu0 0.0
    %5500 = vmatpush1.xpose.msra.mxu0 0.0
    %5501 = vmatprep.subr.mxu0 0.0
    %5502 = vmatpush1.xpose.msra.mxu0 0.0
    %5503 = vmatprep.subr.mxu0 0.0
    %5504 = vmatpush1.xpose.msra.mxu0 0.0
    %5505 = vmatprep.subr.mxu0 0.0
    %5506 = vmatpush1.xpose.msra.mxu0 0.0
    %5507 = vmatprep.subr.mxu0 0.0
    %5508 = vmatpush1.xpose.msra.mxu0 %v5477
    %5509 = vmatprep.subr.mxu0 0.0
    %5510 = vmatpush1.xpose.msra.mxu0 %v5475
    %5511 = vmatprep.subr.mxu0 0.0
    %5512 = vmatpush2.xpose.msra.mxu0 0.0
    %5513 = vmatprep.subr.mxu0 0.0
    %5514 = vmatpush2.xpose.msra.mxu0 0.0
    %5515 = vmatprep.subr.mxu0 0.0
    %5516 = vmatpush2.xpose.msra.mxu0 0.0
    %5517 = vmatprep.subr.mxu0 0.0
    %5518 = vmatpush2.xpose.msra.mxu0 0.0
    %5519 = vmatprep.subr.mxu0 0.0
    %5520 = vmatpush2.xpose.msra.mxu0 0.0
    %5521 = vmatprep.subr.mxu0 0.0
    %5522 = vmatpush2.xpose.msra.mxu0 0.0
    %5523 = vmatprep.subr.mxu0 0.0
    %5524 = vmatpush2.xpose.msra.mxu0 0.0
    %5525 = vmatprep.subr.mxu0 0.0
    %5526 = vmatpush2.xpose.msra.mxu0 0.0
    %5527 = vmatprep.subr.mxu0 0.0
    %5528 = vmatpush2.xpose.msra.mxu0 0.0
    %5529 = vmatprep.subr.mxu0 0.0
    %5530 = vmatpush2.xpose.msra.mxu0 0.0
    %5531 = vmatprep.subr.mxu0 0.0
    %5532 = vmatpush2.xpose.msra.mxu0 0.0
    %5533 = vmatprep.subr.mxu0 0.0
    %5534 = vmatpush2.xpose.msra.mxu0 0.0
    %5535 = vmatprep.subr.mxu0 0.0
    %5536 = vmatpush2.xpose.msra.mxu0 0.0
    %5537 = vmatprep.subr.mxu0 0.0
    %5538 = vmatpush2.xpose.msra.mxu0 0.0
    %5539 = vmatprep.subr.mxu0 0.0
    %5540 = vmatpush2.xpose.msra.mxu0 0.0
    %5541 = vmatprep.subr.mxu0 0.0
    %5542 = vmatpush2.xpose.msra.mxu0 0.0
    %5543 = vmatprep.mubr.f32.mxu0 0.0
    %5544 = vmatmul.mubr.f32.gmra.mxu0 %v5471
    %v5545 = vpop.f32.mrf.mxu0
    %v5546 = vadd.f32 0.0, %v5545
    %v5547 = vpop.f32.mrf.mxu0
    %5548 = vmatprep.mubr.f32.mxu0 0.0
    %5549 = vmatmul.mubr.f32.gmra.mxu0 %v5473
    %v5550 = vpop.f32.mrf.mxu0
    %v5551 = vadd.f32 0.0, %v5550
    %v5552 = vpop.f32.mrf.mxu0
    %5553 = vdwg.mxu0
    %v5554 = vmul.f32 %v5546, 0.25
    %v5555 = vmul.f32 %v5551, 0.25
    %v5556 = vsel %vm623, %v5554, -1e+30
    %v5557 = vsel %vm624, %v5555, -1e+30
    %v5558 = vsel %vm1065, %v5556, -inf
    %5559 = vmax.xlane.f32.xlu0 %v5558
    %v5560 = vpop.xlane.xlu0 %5559
    %v5561 = vsel %vm1065, %v5557, -inf
    %5562 = vmax.xlane.f32.xlu0 %v5561
    %v5563 = vpop.xlane.xlu0 %5562
    %v5564 = vsub.f32 %v5556, %v5560
    %v5565 = vsub.f32 %v5557, %v5563
    %v5566 = vmul.f32 %v5564, 1.442695
    %v5567 = vpow.pop %v5566
    %v5568 = vmul.f32 %v5565, 1.442695
    %v5569 = vpow.pop %v5568
    %v5570 = vsel %vm1065, %v5567, 0.0
    %5571 = vadd.xlane.f32.xlu0 %v5570
    %v5572 = vpop.xlane.xlu0 %5571
    %v5573 = vsel %vm1065, %v5569, 0.0
    %5574 = vadd.xlane.f32.xlu0 %v5573
    %v5575 = vpop.xlane.xlu0 %5574
    %v5576 = vrcp.pop %v5572
    %v5577 = vrcp.pop %v5575
    %v5578 = vmul.f32 %v5567, %v5576
    %v5579 = vmul.f32 %v5569, %v5577
    %5582 = vrot.lane.b32.xlu0 %v4125, 112
    %v5583 = vpop.permute.xlu0 %5582
    %5584 = vrot.lane.b32.xlu0 %v4130, 112
    %v5585 = vpop.permute.xlu0 %5584
    %v5589 = vsel %vm1065, %v5578, 0
    %v5592 = vsel %vm1065, %v5579, 0
    %5594 = vmatprep.subr.mxu0 0.0
    %5595 = vmatpush1.msra.mxu0 0.0
    %5596 = vmatprep.subr.mxu0 0.0
    %5597 = vmatpush1.msra.mxu0 0.0
    %5598 = vmatprep.subr.mxu0 0.0
    %5599 = vmatpush1.msra.mxu0 0.0
    %5600 = vmatprep.subr.mxu0 0.0
    %5601 = vmatpush1.msra.mxu0 0.0
    %5602 = vmatprep.subr.mxu0 0.0
    %5603 = vmatpush1.msra.mxu0 0.0
    %5604 = vmatprep.subr.mxu0 0.0
    %5605 = vmatpush1.msra.mxu0 0.0
    %5606 = vmatprep.subr.mxu0 0.0
    %5607 = vmatpush1.msra.mxu0 0.0
    %5608 = vmatprep.subr.mxu0 0.0
    %5609 = vmatpush1.msra.mxu0 0.0
    %5610 = vmatprep.subr.mxu0 0.0
    %5611 = vmatpush1.msra.mxu0 0.0
    %5612 = vmatprep.subr.mxu0 0.0
    %5613 = vmatpush1.msra.mxu0 0.0
    %5614 = vmatprep.subr.mxu0 0.0
    %5615 = vmatpush1.msra.mxu0 0.0
    %5616 = vmatprep.subr.mxu0 0.0
    %5617 = vmatpush1.msra.mxu0 0.0
    %5618 = vmatprep.subr.mxu0 0.0
    %5619 = vmatpush1.msra.mxu0 0.0
    %5620 = vmatprep.subr.mxu0 0.0
    %5621 = vmatpush1.msra.mxu0 0.0
    %5622 = vmatprep.subr.mxu0 0.0
    %5623 = vmatpush1.msra.mxu0 %v5585
    %5624 = vmatprep.subr.mxu0 0.0
    %5625 = vmatpush1.msra.mxu0 %v5583
    %5626 = vmatprep.subr.mxu0 0.0
    %5627 = vmatpush2.msra.mxu0 0.0
    %5628 = vmatprep.subr.mxu0 0.0
    %5629 = vmatpush2.msra.mxu0 0.0
    %5630 = vmatprep.subr.mxu0 0.0
    %5631 = vmatpush2.msra.mxu0 0.0
    %5632 = vmatprep.subr.mxu0 0.0
    %5633 = vmatpush2.msra.mxu0 0.0
    %5634 = vmatprep.subr.mxu0 0.0
    %5635 = vmatpush2.msra.mxu0 0.0
    %5636 = vmatprep.subr.mxu0 0.0
    %5637 = vmatpush2.msra.mxu0 0.0
    %5638 = vmatprep.subr.mxu0 0.0
    %5639 = vmatpush2.msra.mxu0 0.0
    %5640 = vmatprep.subr.mxu0 0.0
    %5641 = vmatpush2.msra.mxu0 0.0
    %5642 = vmatprep.subr.mxu0 0.0
    %5643 = vmatpush2.msra.mxu0 0.0
    %5644 = vmatprep.subr.mxu0 0.0
    %5645 = vmatpush2.msra.mxu0 0.0
    %5646 = vmatprep.subr.mxu0 0.0
    %5647 = vmatpush2.msra.mxu0 0.0
    %5648 = vmatprep.subr.mxu0 0.0
    %5649 = vmatpush2.msra.mxu0 0.0
    %5650 = vmatprep.subr.mxu0 0.0
    %5651 = vmatpush2.msra.mxu0 0.0
    %5652 = vmatprep.subr.mxu0 0.0
    %5653 = vmatpush2.msra.mxu0 0.0
    %5654 = vmatprep.subr.mxu0 0.0
    %5655 = vmatpush2.msra.mxu0 0.0
    %5656 = vmatprep.subr.mxu0 0.0
    %5657 = vmatpush2.msra.mxu0 0.0
    %5658 = vmatprep.mubr.f32.mxu0 0.0
    %5659 = vmatmul.mubr.f32.gmra.mxu0 %v5589
    %v5660 = vpop.f32.mrf.mxu0
    %v5661 = vadd.f32 0.0, %v5660
    %v5662 = vpop.f32.mrf.mxu0
    %5663 = vmatprep.mubr.f32.mxu0 0.0
    %5664 = vmatmul.mubr.f32.gmra.mxu0 %v5592
    %v5665 = vpop.f32.mrf.mxu0
    %v5666 = vadd.f32 0.0, %v5665
    %v5667 = vpop.f32.mrf.mxu0
    %5668 = vdwg.mxu0
    %v5670 = vsel %vm1065, %v5661, 0
    %v5673 = vsel %vm1065, %v5666, 0
    %5675 = vmatprep.subr.mxu0 0.0
    %5676 = vmatpush1.msra.mxu0 0.0
    %5677 = vmatprep.subr.mxu0 0.0
    %5678 = vmatpush1.msra.mxu0 0.0
    %5679 = vmatprep.subr.mxu0 0.0
    %5680 = vmatpush1.msra.mxu0 0.0
    %5681 = vmatprep.subr.mxu0 0.0
    %5682 = vmatpush1.msra.mxu0 0.0
    %5683 = vmatprep.subr.mxu0 0.0
    %5684 = vmatpush1.msra.mxu0 0.0
    %5685 = vmatprep.subr.mxu0 0.0
    %5686 = vmatpush1.msra.mxu0 0.0
    %5687 = vmatprep.subr.mxu0 0.0
    %5688 = vmatpush1.msra.mxu0 0.0
    %5689 = vmatprep.subr.mxu0 0.0
    %5690 = vmatpush1.msra.mxu0 0.0
    %5691 = vmatprep.subr.mxu0 0.0
    %5692 = vmatpush1.msra.mxu0 0.0
    %5693 = vmatprep.subr.mxu0 0.0
    %5694 = vmatpush1.msra.mxu0 0.0
    %5695 = vmatprep.subr.mxu0 0.0
    %5696 = vmatpush1.msra.mxu0 0.0
    %5697 = vmatprep.subr.mxu0 0.0
    %5698 = vmatpush1.msra.mxu0 0.0
    %5699 = vmatprep.subr.mxu0 0.0
    %5700 = vmatpush1.msra.mxu0 0.0
    %5701 = vmatprep.subr.mxu0 0.0
    %5702 = vmatpush1.msra.mxu0 0.0
    %5703 = vmatprep.subr.mxu0 0.0
    %5704 = vmatpush1.msra.mxu0 %v3722
    %5705 = vmatprep.subr.mxu0 0.0
    %5706 = vmatpush1.msra.mxu0 %v3721
    %5707 = vmatprep.subr.mxu0 0.0
    %5708 = vmatpush2.msra.mxu0 0.0
    %5709 = vmatprep.subr.mxu0 0.0
    %5710 = vmatpush2.msra.mxu0 0.0
    %5711 = vmatprep.subr.mxu0 0.0
    %5712 = vmatpush2.msra.mxu0 0.0
    %5713 = vmatprep.subr.mxu0 0.0
    %5714 = vmatpush2.msra.mxu0 0.0
    %5715 = vmatprep.subr.mxu0 0.0
    %5716 = vmatpush2.msra.mxu0 0.0
    %5717 = vmatprep.subr.mxu0 0.0
    %5718 = vmatpush2.msra.mxu0 0.0
    %5719 = vmatprep.subr.mxu0 0.0
    %5720 = vmatpush2.msra.mxu0 0.0
    %5721 = vmatprep.subr.mxu0 0.0
    %5722 = vmatpush2.msra.mxu0 0.0
    %5723 = vmatprep.subr.mxu0 0.0
    %5724 = vmatpush2.msra.mxu0 0.0
    %5725 = vmatprep.subr.mxu0 0.0
    %5726 = vmatpush2.msra.mxu0 0.0
    %5727 = vmatprep.subr.mxu0 0.0
    %5728 = vmatpush2.msra.mxu0 0.0
    %5729 = vmatprep.subr.mxu0 0.0
    %5730 = vmatpush2.msra.mxu0 0.0
    %5731 = vmatprep.subr.mxu0 0.0
    %5732 = vmatpush2.msra.mxu0 0.0
    %5733 = vmatprep.subr.mxu0 0.0
    %5734 = vmatpush2.msra.mxu0 0.0
    %5735 = vmatprep.subr.mxu0 0.0
    %5736 = vmatpush2.msra.mxu0 0.0
    %5737 = vmatprep.subr.mxu0 0.0
    %5738 = vmatpush2.msra.mxu0 0.0
    %5739 = vmatprep.mubr.f32.mxu0 0.0
    %5740 = vmatmul.mubr.f32.gmra.mxu0 %v5670
    %v5741 = vpop.f32.mrf.mxu0
    %v5742 = vadd.f32 0.0, %v5741
    %v5743 = vpop.f32.mrf.mxu0
    %5744 = vmatprep.mubr.f32.mxu0 0.0
    %5745 = vmatmul.mubr.f32.gmra.mxu0 %v5673
    %v5746 = vpop.f32.mrf.mxu0
    %v5747 = vadd.f32 0.0, %v5746
    %v5748 = vpop.f32.mrf.mxu0
    %5749 = vdwg.mxu0
    %v5751 = vsel %vm1065, %v5455, 0
    %v5754 = vsel %vm1065, %v5460, 0
    %5756 = vmatprep.subr.mxu0 0.0
    %5757 = vmatpush1.msra.mxu0 0.0
    %5758 = vmatprep.subr.mxu0 0.0
    %5759 = vmatpush1.msra.mxu0 0.0
    %5760 = vmatprep.subr.mxu0 0.0
    %5761 = vmatpush1.msra.mxu0 0.0
    %5762 = vmatprep.subr.mxu0 0.0
    %5763 = vmatpush1.msra.mxu0 0.0
    %5764 = vmatprep.subr.mxu0 0.0
    %5765 = vmatpush1.msra.mxu0 0.0
    %5766 = vmatprep.subr.mxu0 0.0
    %5767 = vmatpush1.msra.mxu0 0.0
    %5768 = vmatprep.subr.mxu0 0.0
    %5769 = vmatpush1.msra.mxu0 0.0
    %5770 = vmatprep.subr.mxu0 0.0
    %5771 = vmatpush1.msra.mxu0 0.0
    %5772 = vmatprep.subr.mxu0 0.0
    %5773 = vmatpush1.msra.mxu0 0.0
    %5774 = vmatprep.subr.mxu0 0.0
    %5775 = vmatpush1.msra.mxu0 0.0
    %5776 = vmatprep.subr.mxu0 0.0
    %5777 = vmatpush1.msra.mxu0 0.0
    %5778 = vmatprep.subr.mxu0 0.0
    %5779 = vmatpush1.msra.mxu0 0.0
    %5780 = vmatprep.subr.mxu0 0.0
    %5781 = vmatpush1.msra.mxu0 0.0
    %5782 = vmatprep.subr.mxu0 0.0
    %5783 = vmatpush1.msra.mxu0 0.0
    %5784 = vmatprep.subr.mxu0 0.0
    %5785 = vmatpush1.msra.mxu0 %v3720
    %5786 = vmatprep.subr.mxu0 0.0
    %5787 = vmatpush1.msra.mxu0 %v3719
    %5788 = vmatprep.subr.mxu0 0.0
    %5789 = vmatpush2.msra.mxu0 0.0
    %5790 = vmatprep.subr.mxu0 0.0
    %5791 = vmatpush2.msra.mxu0 0.0
    %5792 = vmatprep.subr.mxu0 0.0
    %5793 = vmatpush2.msra.mxu0 0.0
    %5794 = vmatprep.subr.mxu0 0.0
    %5795 = vmatpush2.msra.mxu0 0.0
    %5796 = vmatprep.subr.mxu0 0.0
    %5797 = vmatpush2.msra.mxu0 0.0
    %5798 = vmatprep.subr.mxu0 0.0
    %5799 = vmatpush2.msra.mxu0 0.0
    %5800 = vmatprep.subr.mxu0 0.0
    %5801 = vmatpush2.msra.mxu0 0.0
    %5802 = vmatprep.subr.mxu0 0.0
    %5803 = vmatpush2.msra.mxu0 0.0
    %5804 = vmatprep.subr.mxu0 0.0
    %5805 = vmatpush2.msra.mxu0 0.0
    %5806 = vmatprep.subr.mxu0 0.0
    %5807 = vmatpush2.msra.mxu0 0.0
    %5808 = vmatprep.subr.mxu0 0.0
    %5809 = vmatpush2.msra.mxu0 0.0
    %5810 = vmatprep.subr.mxu0 0.0
    %5811 = vmatpush2.msra.mxu0 0.0
    %5812 = vmatprep.subr.mxu0 0.0
    %5813 = vmatpush2.msra.mxu0 0.0
    %5814 = vmatprep.subr.mxu0 0.0
    %5815 = vmatpush2.msra.mxu0 0.0
    %5816 = vmatprep.subr.mxu0 0.0
    %5817 = vmatpush2.msra.mxu0 0.0
    %5818 = vmatprep.subr.mxu0 0.0
    %5819 = vmatpush2.msra.mxu0 0.0
    %5820 = vmatprep.mubr.f32.mxu0 0.0
    %5821 = vmatmul.mubr.f32.gmra.mxu0 %v5751
    %v5822 = vpop.f32.mrf.mxu0
    %v5823 = vadd.f32 %v5742, %v5822
    %v5824 = vpop.f32.mrf.mxu0
    %5825 = vmatprep.mubr.f32.mxu0 0.0
    %5826 = vmatmul.mubr.f32.gmra.mxu0 %v5754
    %v5827 = vpop.f32.mrf.mxu0
    %v5828 = vadd.f32 %v5747, %v5827
    %v5829 = vpop.f32.mrf.mxu0
    %5830 = vdwg.mxu0
    %5831 = vrot.lane.b32.xlu0 %v3947, 96
    %v5832 = vpop.permute.xlu0 %5831
    %5833 = vrot.lane.b32.xlu0 %v3952, 96
    %v5834 = vpop.permute.xlu0 %5833
    %5835 = vrot.lane.b32.xlu0 %v4036, 96
    %v5836 = vpop.permute.xlu0 %5835
    %5837 = vrot.lane.b32.xlu0 %v4041, 96
    %v5838 = vpop.permute.xlu0 %5837
    %v5839 = vsel %vm1065, %v5832, 0
    %v5841 = vsel %vm1065, %v5834, 0
    %v5843 = vsel %vm1065, %v5836, 0
    %v5845 = vsel %vm1065, %v5838, 0
    %5847 = vmatprep.subr.mxu0 0.0
    %5848 = vmatpush1.xpose.msra.mxu0 0.0
    %5849 = vmatprep.subr.mxu0 0.0
    %5850 = vmatpush1.xpose.msra.mxu0 0.0
    %5851 = vmatprep.subr.mxu0 0.0
    %5852 = vmatpush1.xpose.msra.mxu0 0.0
    %5853 = vmatprep.subr.mxu0 0.0
    %5854 = vmatpush1.xpose.msra.mxu0 0.0
    %5855 = vmatprep.subr.mxu0 0.0
    %5856 = vmatpush1.xpose.msra.mxu0 0.0
    %5857 = vmatprep.subr.mxu0 0.0
    %5858 = vmatpush1.xpose.msra.mxu0 0.0
    %5859 = vmatprep.subr.mxu0 0.0
    %5860 = vmatpush1.xpose.msra.mxu0 0.0
    %5861 = vmatprep.subr.mxu0 0.0
    %5862 = vmatpush1.xpose.msra.mxu0 0.0
    %5863 = vmatprep.subr.mxu0 0.0
    %5864 = vmatpush1.xpose.msra.mxu0 0.0
    %5865 = vmatprep.subr.mxu0 0.0
    %5866 = vmatpush1.xpose.msra.mxu0 0.0
    %5867 = vmatprep.subr.mxu0 0.0
    %5868 = vmatpush1.xpose.msra.mxu0 0.0
    %5869 = vmatprep.subr.mxu0 0.0
    %5870 = vmatpush1.xpose.msra.mxu0 0.0
    %5871 = vmatprep.subr.mxu0 0.0
    %5872 = vmatpush1.xpose.msra.mxu0 0.0
    %5873 = vmatprep.subr.mxu0 0.0
    %5874 = vmatpush1.xpose.msra.mxu0 0.0
    %5875 = vmatprep.subr.mxu0 0.0
    %5876 = vmatpush1.xpose.msra.mxu0 %v5845
    %5877 = vmatprep.subr.mxu0 0.0
    %5878 = vmatpush1.xpose.msra.mxu0 %v5843
    %5879 = vmatprep.subr.mxu0 0.0
    %5880 = vmatpush2.xpose.msra.mxu0 0.0
    %5881 = vmatprep.subr.mxu0 0.0
    %5882 = vmatpush2.xpose.msra.mxu0 0.0
    %5883 = vmatprep.subr.mxu0 0.0
    %5884 = vmatpush2.xpose.msra.mxu0 0.0
    %5885 = vmatprep.subr.mxu0 0.0
    %5886 = vmatpush2.xpose.msra.mxu0 0.0
    %5887 = vmatprep.subr.mxu0 0.0
    %5888 = vmatpush2.xpose.msra.mxu0 0.0
    %5889 = vmatprep.subr.mxu0 0.0
    %5890 = vmatpush2.xpose.msra.mxu0 0.0
    %5891 = vmatprep.subr.mxu0 0.0
    %5892 = vmatpush2.xpose.msra.mxu0 0.0
    %5893 = vmatprep.subr.mxu0 0.0
    %5894 = vmatpush2.xpose.msra.mxu0 0.0
    %5895 = vmatprep.subr.mxu0 0.0
    %5896 = vmatpush2.xpose.msra.mxu0 0.0
    %5897 = vmatprep.subr.mxu0 0.0
    %5898 = vmatpush2.xpose.msra.mxu0 0.0
    %5899 = vmatprep.subr.mxu0 0.0
    %5900 = vmatpush2.xpose.msra.mxu0 0.0
    %5901 = vmatprep.subr.mxu0 0.0
    %5902 = vmatpush2.xpose.msra.mxu0 0.0
    %5903 = vmatprep.subr.mxu0 0.0
    %5904 = vmatpush2.xpose.msra.mxu0 0.0
    %5905 = vmatprep.subr.mxu0 0.0
    %5906 = vmatpush2.xpose.msra.mxu0 0.0
    %5907 = vmatprep.subr.mxu0 0.0
    %5908 = vmatpush2.xpose.msra.mxu0 0.0
    %5909 = vmatprep.subr.mxu0 0.0
    %5910 = vmatpush2.xpose.msra.mxu0 0.0
    %5911 = vmatprep.mubr.f32.mxu0 0.0
    %5912 = vmatmul.mubr.f32.gmra.mxu0 %v5839
    %v5913 = vpop.f32.mrf.mxu0
    %v5914 = vadd.f32 0.0, %v5913
    %v5915 = vpop.f32.mrf.mxu0
    %5916 = vmatprep.mubr.f32.mxu0 0.0
    %5917 = vmatmul.mubr.f32.gmra.mxu0 %v5841
    %v5918 = vpop.f32.mrf.mxu0
    %v5919 = vadd.f32 0.0, %v5918
    %v5920 = vpop.f32.mrf.mxu0
    %5921 = vdwg.mxu0
    %v5922 = vmul.f32 %v5914, 0.25
    %v5923 = vmul.f32 %v5919, 0.25
    %v5924 = vsel %vm623, %v5922, -1e+30
    %v5925 = vsel %vm624, %v5923, -1e+30
    %v5926 = vsel %vm1065, %v5924, -inf
    %5927 = vmax.xlane.f32.xlu0 %v5926
    %v5928 = vpop.xlane.xlu0 %5927
    %v5929 = vsel %vm1065, %v5925, -inf
    %5930 = vmax.xlane.f32.xlu0 %v5929
    %v5931 = vpop.xlane.xlu0 %5930
    %v5932 = vsub.f32 %v5924, %v5928
    %v5933 = vsub.f32 %v5925, %v5931
    %v5934 = vmul.f32 %v5932, 1.442695
    %v5935 = vpow.pop %v5934
    %v5936 = vmul.f32 %v5933, 1.442695
    %v5937 = vpow.pop %v5936
    %v5938 = vsel %vm1065, %v5935, 0.0
    %5939 = vadd.xlane.f32.xlu0 %v5938
    %v5940 = vpop.xlane.xlu0 %5939
    %v5941 = vsel %vm1065, %v5937, 0.0
    %5942 = vadd.xlane.f32.xlu0 %v5941
    %v5943 = vpop.xlane.xlu0 %5942
    %v5944 = vrcp.pop %v5940
    %v5945 = vrcp.pop %v5943
    %v5946 = vmul.f32 %v5935, %v5944
    %v5947 = vmul.f32 %v5937, %v5945
    %5948 = vrot.lane.b32.xlu0 %v4125, 96
    %v5949 = vpop.permute.xlu0 %5948
    %5950 = vrot.lane.b32.xlu0 %v4130, 96
    %v5951 = vpop.permute.xlu0 %5950
    %v5955 = vsel %vm1065, %v5946, 0
    %v5958 = vsel %vm1065, %v5947, 0
    %5960 = vmatprep.subr.mxu0 0.0
    %5961 = vmatpush1.msra.mxu0 0.0
    %5962 = vmatprep.subr.mxu0 0.0
    %5963 = vmatpush1.msra.mxu0 0.0
    %5964 = vmatprep.subr.mxu0 0.0
    %5965 = vmatpush1.msra.mxu0 0.0
    %5966 = vmatprep.subr.mxu0 0.0
    %5967 = vmatpush1.msra.mxu0 0.0
    %5968 = vmatprep.subr.mxu0 0.0
    %5969 = vmatpush1.msra.mxu0 0.0
    %5970 = vmatprep.subr.mxu0 0.0
    %5971 = vmatpush1.msra.mxu0 0.0
    %5972 = vmatprep.subr.mxu0 0.0
    %5973 = vmatpush1.msra.mxu0 0.0
    %5974 = vmatprep.subr.mxu0 0.0
    %5975 = vmatpush1.msra.mxu0 0.0
    %5976 = vmatprep.subr.mxu0 0.0
    %5977 = vmatpush1.msra.mxu0 0.0
    %5978 = vmatprep.subr.mxu0 0.0
    %5979 = vmatpush1.msra.mxu0 0.0
    %5980 = vmatprep.subr.mxu0 0.0
    %5981 = vmatpush1.msra.mxu0 0.0
    %5982 = vmatprep.subr.mxu0 0.0
    %5983 = vmatpush1.msra.mxu0 0.0
    %5984 = vmatprep.subr.mxu0 0.0
    %5985 = vmatpush1.msra.mxu0 0.0
    %5986 = vmatprep.subr.mxu0 0.0
    %5987 = vmatpush1.msra.mxu0 0.0
    %5988 = vmatprep.subr.mxu0 0.0
    %5989 = vmatpush1.msra.mxu0 %v5951
    %5990 = vmatprep.subr.mxu0 0.0
    %5991 = vmatpush1.msra.mxu0 %v5949
    %5992 = vmatprep.subr.mxu0 0.0
    %5993 = vmatpush2.msra.mxu0 0.0
    %5994 = vmatprep.subr.mxu0 0.0
    %5995 = vmatpush2.msra.mxu0 0.0
    %5996 = vmatprep.subr.mxu0 0.0
    %5997 = vmatpush2.msra.mxu0 0.0
    %5998 = vmatprep.subr.mxu0 0.0
    %5999 = vmatpush2.msra.mxu0 0.0
    %6000 = vmatprep.subr.mxu0 0.0
    %6001 = vmatpush2.msra.mxu0 0.0
    %6002 = vmatprep.subr.mxu0 0.0
    %6003 = vmatpush2.msra.mxu0 0.0
    %6004 = vmatprep.subr.mxu0 0.0
    %6005 = vmatpush2.msra.mxu0 0.0
    %6006 = vmatprep.subr.mxu0 0.0
    %6007 = vmatpush2.msra.mxu0 0.0
    %6008 = vmatprep.subr.mxu0 0.0
    %6009 = vmatpush2.msra.mxu0 0.0
    %6010 = vmatprep.subr.mxu0 0.0
    %6011 = vmatpush2.msra.mxu0 0.0
    %6012 = vmatprep.subr.mxu0 0.0
    %6013 = vmatpush2.msra.mxu0 0.0
    %6014 = vmatprep.subr.mxu0 0.0
    %6015 = vmatpush2.msra.mxu0 0.0
    %6016 = vmatprep.subr.mxu0 0.0
    %6017 = vmatpush2.msra.mxu0 0.0
    %6018 = vmatprep.subr.mxu0 0.0
    %6019 = vmatpush2.msra.mxu0 0.0
    %6020 = vmatprep.subr.mxu0 0.0
    %6021 = vmatpush2.msra.mxu0 0.0
    %6022 = vmatprep.subr.mxu0 0.0
    %6023 = vmatpush2.msra.mxu0 0.0
    %6024 = vmatprep.mubr.f32.mxu0 0.0
    %6025 = vmatmul.mubr.f32.gmra.mxu0 %v5955
    %v6026 = vpop.f32.mrf.mxu0
    %v6027 = vadd.f32 0.0, %v6026
    %v6028 = vpop.f32.mrf.mxu0
    %6029 = vmatprep.mubr.f32.mxu0 0.0
    %6030 = vmatmul.mubr.f32.gmra.mxu0 %v5958
    %v6031 = vpop.f32.mrf.mxu0
    %v6032 = vadd.f32 0.0, %v6031
    %v6033 = vpop.f32.mrf.mxu0
    %6034 = vdwg.mxu0
    %v6036 = vsel %vm1065, %v6027, 0
    %v6039 = vsel %vm1065, %v6032, 0
    %6041 = vmatprep.subr.mxu0 0.0
    %6042 = vmatpush1.msra.mxu0 0.0
    %6043 = vmatprep.subr.mxu0 0.0
    %6044 = vmatpush1.msra.mxu0 0.0
    %6045 = vmatprep.subr.mxu0 0.0
    %6046 = vmatpush1.msra.mxu0 0.0
    %6047 = vmatprep.subr.mxu0 0.0
    %6048 = vmatpush1.msra.mxu0 0.0
    %6049 = vmatprep.subr.mxu0 0.0
    %6050 = vmatpush1.msra.mxu0 0.0
    %6051 = vmatprep.subr.mxu0 0.0
    %6052 = vmatpush1.msra.mxu0 0.0
    %6053 = vmatprep.subr.mxu0 0.0
    %6054 = vmatpush1.msra.mxu0 0.0
    %6055 = vmatprep.subr.mxu0 0.0
    %6056 = vmatpush1.msra.mxu0 0.0
    %6057 = vmatprep.subr.mxu0 0.0
    %6058 = vmatpush1.msra.mxu0 0.0
    %6059 = vmatprep.subr.mxu0 0.0
    %6060 = vmatpush1.msra.mxu0 0.0
    %6061 = vmatprep.subr.mxu0 0.0
    %6062 = vmatpush1.msra.mxu0 0.0
    %6063 = vmatprep.subr.mxu0 0.0
    %6064 = vmatpush1.msra.mxu0 0.0
    %6065 = vmatprep.subr.mxu0 0.0
    %6066 = vmatpush1.msra.mxu0 0.0
    %6067 = vmatprep.subr.mxu0 0.0
    %6068 = vmatpush1.msra.mxu0 0.0
    %6069 = vmatprep.subr.mxu0 0.0
    %6070 = vmatpush1.msra.mxu0 %v3724
    %6071 = vmatprep.subr.mxu0 0.0
    %6072 = vmatpush1.msra.mxu0 %v3723
    %6073 = vmatprep.subr.mxu0 0.0
    %6074 = vmatpush2.msra.mxu0 0.0
    %6075 = vmatprep.subr.mxu0 0.0
    %6076 = vmatpush2.msra.mxu0 0.0
    %6077 = vmatprep.subr.mxu0 0.0
    %6078 = vmatpush2.msra.mxu0 0.0
    %6079 = vmatprep.subr.mxu0 0.0
    %6080 = vmatpush2.msra.mxu0 0.0
    %6081 = vmatprep.subr.mxu0 0.0
    %6082 = vmatpush2.msra.mxu0 0.0
    %6083 = vmatprep.subr.mxu0 0.0
    %6084 = vmatpush2.msra.mxu0 0.0
    %6085 = vmatprep.subr.mxu0 0.0
    %6086 = vmatpush2.msra.mxu0 0.0
    %6087 = vmatprep.subr.mxu0 0.0
    %6088 = vmatpush2.msra.mxu0 0.0
    %6089 = vmatprep.subr.mxu0 0.0
    %6090 = vmatpush2.msra.mxu0 0.0
    %6091 = vmatprep.subr.mxu0 0.0
    %6092 = vmatpush2.msra.mxu0 0.0
    %6093 = vmatprep.subr.mxu0 0.0
    %6094 = vmatpush2.msra.mxu0 0.0
    %6095 = vmatprep.subr.mxu0 0.0
    %6096 = vmatpush2.msra.mxu0 0.0
    %6097 = vmatprep.subr.mxu0 0.0
    %6098 = vmatpush2.msra.mxu0 0.0
    %6099 = vmatprep.subr.mxu0 0.0
    %6100 = vmatpush2.msra.mxu0 0.0
    %6101 = vmatprep.subr.mxu0 0.0
    %6102 = vmatpush2.msra.mxu0 0.0
    %6103 = vmatprep.subr.mxu0 0.0
    %6104 = vmatpush2.msra.mxu0 0.0
    %6105 = vmatprep.mubr.f32.mxu0 0.0
    %6106 = vmatmul.mubr.f32.gmra.mxu0 %v6036
    %v6107 = vpop.f32.mrf.mxu0
    %v6108 = vadd.f32 0.0, %v6107
    %v6109 = vpop.f32.mrf.mxu0
    %6110 = vmatprep.mubr.f32.mxu0 0.0
    %6111 = vmatmul.mubr.f32.gmra.mxu0 %v6039
    %v6112 = vpop.f32.mrf.mxu0
    %v6113 = vadd.f32 0.0, %v6112
    %v6114 = vpop.f32.mrf.mxu0
    %6115 = vdwg.mxu0
    %v6116 = vadd.f32 %v5823, %v6108
    %v6117 = vadd.f32 %v5828, %v6113
    %6118 = vrot.lane.b32.xlu0 %v3947, 80
    %v6119 = vpop.permute.xlu0 %6118
    %6120 = vrot.lane.b32.xlu0 %v3952, 80
    %v6121 = vpop.permute.xlu0 %6120
    %6122 = vrot.lane.b32.xlu0 %v4036, 80
    %v6123 = vpop.permute.xlu0 %6122
    %6124 = vrot.lane.b32.xlu0 %v4041, 80
    %v6125 = vpop.permute.xlu0 %6124
    %v6126 = vsel %vm1065, %v6119, 0
    %v6128 = vsel %vm1065, %v6121, 0
    %v6130 = vsel %vm1065, %v6123, 0
    %v6132 = vsel %vm1065, %v6125, 0
    %6134 = vmatprep.subr.mxu0 0.0
    %6135 = vmatpush1.xpose.msra.mxu0 0.0
    %6136 = vmatprep.subr.mxu0 0.0
    %6137 = vmatpush1.xpose.msra.mxu0 0.0
    %6138 = vmatprep.subr.mxu0 0.0
    %6139 = vmatpush1.xpose.msra.mxu0 0.0
    %6140 = vmatprep.subr.mxu0 0.0
    %6141 = vmatpush1.xpose.msra.mxu0 0.0
    %6142 = vmatprep.subr.mxu0 0.0
    %6143 = vmatpush1.xpose.msra.mxu0 0.0
    %6144 = vmatprep.subr.mxu0 0.0
    %6145 = vmatpush1.xpose.msra.mxu0 0.0
    %6146 = vmatprep.subr.mxu0 0.0
    %6147 = vmatpush1.xpose.msra.mxu0 0.0
    %6148 = vmatprep.subr.mxu0 0.0
    %6149 = vmatpush1.xpose.msra.mxu0 0.0
    %6150 = vmatprep.subr.mxu0 0.0
    %6151 = vmatpush1.xpose.msra.mxu0 0.0
    %6152 = vmatprep.subr.mxu0 0.0
    %6153 = vmatpush1.xpose.msra.mxu0 0.0
    %6154 = vmatprep.subr.mxu0 0.0
    %6155 = vmatpush1.xpose.msra.mxu0 0.0
    %6156 = vmatprep.subr.mxu0 0.0
    %6157 = vmatpush1.xpose.msra.mxu0 0.0
    %6158 = vmatprep.subr.mxu0 0.0
    %6159 = vmatpush1.xpose.msra.mxu0 0.0
    %6160 = vmatprep.subr.mxu0 0.0
    %6161 = vmatpush1.xpose.msra.mxu0 0.0
    %6162 = vmatprep.subr.mxu0 0.0
    %6163 = vmatpush1.xpose.msra.mxu0 %v6132
    %6164 = vmatprep.subr.mxu0 0.0
    %6165 = vmatpush1.xpose.msra.mxu0 %v6130
    %6166 = vmatprep.subr.mxu0 0.0
    %6167 = vmatpush2.xpose.msra.mxu0 0.0
    %6168 = vmatprep.subr.mxu0 0.0
    %6169 = vmatpush2.xpose.msra.mxu0 0.0
    %6170 = vmatprep.subr.mxu0 0.0
    %6171 = vmatpush2.xpose.msra.mxu0 0.0
    %6172 = vmatprep.subr.mxu0 0.0
    %6173 = vmatpush2.xpose.msra.mxu0 0.0
    %6174 = vmatprep.subr.mxu0 0.0
    %6175 = vmatpush2.xpose.msra.mxu0 0.0
    %6176 = vmatprep.subr.mxu0 0.0
    %6177 = vmatpush2.xpose.msra.mxu0 0.0
    %6178 = vmatprep.subr.mxu0 0.0
    %6179 = vmatpush2.xpose.msra.mxu0 0.0
    %6180 = vmatprep.subr.mxu0 0.0
    %6181 = vmatpush2.xpose.msra.mxu0 0.0
    %6182 = vmatprep.subr.mxu0 0.0
    %6183 = vmatpush2.xpose.msra.mxu0 0.0
    %6184 = vmatprep.subr.mxu0 0.0
    %6185 = vmatpush2.xpose.msra.mxu0 0.0
    %6186 = vmatprep.subr.mxu0 0.0
    %6187 = vmatpush2.xpose.msra.mxu0 0.0
    %6188 = vmatprep.subr.mxu0 0.0
    %6189 = vmatpush2.xpose.msra.mxu0 0.0
    %6190 = vmatprep.subr.mxu0 0.0
    %6191 = vmatpush2.xpose.msra.mxu0 0.0
    %6192 = vmatprep.subr.mxu0 0.0
    %6193 = vmatpush2.xpose.msra.mxu0 0.0
    %6194 = vmatprep.subr.mxu0 0.0
    %6195 = vmatpush2.xpose.msra.mxu0 0.0
    %6196 = vmatprep.subr.mxu0 0.0
    %6197 = vmatpush2.xpose.msra.mxu0 0.0
    %6198 = vmatprep.mubr.f32.mxu0 0.0
    %6199 = vmatmul.mubr.f32.gmra.mxu0 %v6126
    %v6200 = vpop.f32.mrf.mxu0
    %v6201 = vadd.f32 0.0, %v6200
    %v6202 = vpop.f32.mrf.mxu0
    %6203 = vmatprep.mubr.f32.mxu0 0.0
    %6204 = vmatmul.mubr.f32.gmra.mxu0 %v6128
    %v6205 = vpop.f32.mrf.mxu0
    %v6206 = vadd.f32 0.0, %v6205
    %v6207 = vpop.f32.mrf.mxu0
    %6208 = vdwg.mxu0
    %v6209 = vmul.f32 %v6201, 0.25
    %v6210 = vmul.f32 %v6206, 0.25
    %v6211 = vsel %vm623, %v6209, -1e+30
    %v6212 = vsel %vm624, %v6210, -1e+30
    %v6213 = vsel %vm1065, %v6211, -inf
    %6214 = vmax.xlane.f32.xlu0 %v6213
    %v6215 = vpop.xlane.xlu0 %6214
    %v6216 = vsel %vm1065, %v6212, -inf
    %6217 = vmax.xlane.f32.xlu0 %v6216
    %v6218 = vpop.xlane.xlu0 %6217
    %v6219 = vsub.f32 %v6211, %v6215
    %v6220 = vsub.f32 %v6212, %v6218
    %v6221 = vmul.f32 %v6219, 1.442695
    %v6222 = vpow.pop %v6221
    %v6223 = vmul.f32 %v6220, 1.442695
    %v6224 = vpow.pop %v6223
    %v6225 = vsel %vm1065, %v6222, 0.0
    %6226 = vadd.xlane.f32.xlu0 %v6225
    %v6227 = vpop.xlane.xlu0 %6226
    %v6228 = vsel %vm1065, %v6224, 0.0
    %6229 = vadd.xlane.f32.xlu0 %v6228
    %v6230 = vpop.xlane.xlu0 %6229
    %v6231 = vrcp.pop %v6227
    %v6232 = vrcp.pop %v6230
    %v6233 = vmul.f32 %v6222, %v6231
    %v6234 = vmul.f32 %v6224, %v6232
    %6235 = vrot.lane.b32.xlu0 %v4125, 80
    %v6236 = vpop.permute.xlu0 %6235
    %6237 = vrot.lane.b32.xlu0 %v4130, 80
    %v6238 = vpop.permute.xlu0 %6237
    %v6242 = vsel %vm1065, %v6233, 0
    %v6245 = vsel %vm1065, %v6234, 0
    %6247 = vmatprep.subr.mxu0 0.0
    %6248 = vmatpush1.msra.mxu0 0.0
    %6249 = vmatprep.subr.mxu0 0.0
    %6250 = vmatpush1.msra.mxu0 0.0
    %6251 = vmatprep.subr.mxu0 0.0
    %6252 = vmatpush1.msra.mxu0 0.0
    %6253 = vmatprep.subr.mxu0 0.0
    %6254 = vmatpush1.msra.mxu0 0.0
    %6255 = vmatprep.subr.mxu0 0.0
    %6256 = vmatpush1.msra.mxu0 0.0
    %6257 = vmatprep.subr.mxu0 0.0
    %6258 = vmatpush1.msra.mxu0 0.0
    %6259 = vmatprep.subr.mxu0 0.0
    %6260 = vmatpush1.msra.mxu0 0.0
    %6261 = vmatprep.subr.mxu0 0.0
    %6262 = vmatpush1.msra.mxu0 0.0
    %6263 = vmatprep.subr.mxu0 0.0
    %6264 = vmatpush1.msra.mxu0 0.0
    %6265 = vmatprep.subr.mxu0 0.0
    %6266 = vmatpush1.msra.mxu0 0.0
    %6267 = vmatprep.subr.mxu0 0.0
    %6268 = vmatpush1.msra.mxu0 0.0
    %6269 = vmatprep.subr.mxu0 0.0
    %6270 = vmatpush1.msra.mxu0 0.0
    %6271 = vmatprep.subr.mxu0 0.0
    %6272 = vmatpush1.msra.mxu0 0.0
    %6273 = vmatprep.subr.mxu0 0.0
    %6274 = vmatpush1.msra.mxu0 0.0
    %6275 = vmatprep.subr.mxu0 0.0
    %6276 = vmatpush1.msra.mxu0 %v6238
    %6277 = vmatprep.subr.mxu0 0.0
    %6278 = vmatpush1.msra.mxu0 %v6236
    %6279 = vmatprep.subr.mxu0 0.0
    %6280 = vmatpush2.msra.mxu0 0.0
    %6281 = vmatprep.subr.mxu0 0.0
    %6282 = vmatpush2.msra.mxu0 0.0
    %6283 = vmatprep.subr.mxu0 0.0
    %6284 = vmatpush2.msra.mxu0 0.0
    %6285 = vmatprep.subr.mxu0 0.0
    %6286 = vmatpush2.msra.mxu0 0.0
    %6287 = vmatprep.subr.mxu0 0.0
    %6288 = vmatpush2.msra.mxu0 0.0
    %6289 = vmatprep.subr.mxu0 0.0
    %6290 = vmatpush2.msra.mxu0 0.0
    %6291 = vmatprep.subr.mxu0 0.0
    %6292 = vmatpush2.msra.mxu0 0.0
    %6293 = vmatprep.subr.mxu0 0.0
    %6294 = vmatpush2.msra.mxu0 0.0
    %6295 = vmatprep.subr.mxu0 0.0
    %6296 = vmatpush2.msra.mxu0 0.0
    %6297 = vmatprep.subr.mxu0 0.0
    %6298 = vmatpush2.msra.mxu0 0.0
    %6299 = vmatprep.subr.mxu0 0.0
    %6300 = vmatpush2.msra.mxu0 0.0
    %6301 = vmatprep.subr.mxu0 0.0
    %6302 = vmatpush2.msra.mxu0 0.0
    %6303 = vmatprep.subr.mxu0 0.0
    %6304 = vmatpush2.msra.mxu0 0.0
    %6305 = vmatprep.subr.mxu0 0.0
    %6306 = vmatpush2.msra.mxu0 0.0
    %6307 = vmatprep.subr.mxu0 0.0
    %6308 = vmatpush2.msra.mxu0 0.0
    %6309 = vmatprep.subr.mxu0 0.0
    %6310 = vmatpush2.msra.mxu0 0.0
    %6311 = vmatprep.mubr.f32.mxu0 0.0
    %6312 = vmatmul.mubr.f32.gmra.mxu0 %v6242
    %v6313 = vpop.f32.mrf.mxu0
    %v6314 = vadd.f32 0.0, %v6313
    %v6315 = vpop.f32.mrf.mxu0
    %6316 = vmatprep.mubr.f32.mxu0 0.0
    %6317 = vmatmul.mubr.f32.gmra.mxu0 %v6245
    %v6318 = vpop.f32.mrf.mxu0
    %v6319 = vadd.f32 0.0, %v6318
    %v6320 = vpop.f32.mrf.mxu0
    %6321 = vdwg.mxu0
    %v6323 = vsel %vm1065, %v6314, 0
    %v6326 = vsel %vm1065, %v6319, 0
    %6328 = vmatprep.subr.mxu0 0.0
    %6329 = vmatpush1.msra.mxu0 0.0
    %6330 = vmatprep.subr.mxu0 0.0
    %6331 = vmatpush1.msra.mxu0 0.0
    %6332 = vmatprep.subr.mxu0 0.0
    %6333 = vmatpush1.msra.mxu0 0.0
    %6334 = vmatprep.subr.mxu0 0.0
    %6335 = vmatpush1.msra.mxu0 0.0
    %6336 = vmatprep.subr.mxu0 0.0
    %6337 = vmatpush1.msra.mxu0 0.0
    %6338 = vmatprep.subr.mxu0 0.0
    %6339 = vmatpush1.msra.mxu0 0.0
    %6340 = vmatprep.subr.mxu0 0.0
    %6341 = vmatpush1.msra.mxu0 0.0
    %6342 = vmatprep.subr.mxu0 0.0
    %6343 = vmatpush1.msra.mxu0 0.0
    %6344 = vmatprep.subr.mxu0 0.0
    %6345 = vmatpush1.msra.mxu0 0.0
    %6346 = vmatprep.subr.mxu0 0.0
    %6347 = vmatpush1.msra.mxu0 0.0
    %6348 = vmatprep.subr.mxu0 0.0
    %6349 = vmatpush1.msra.mxu0 0.0
    %6350 = vmatprep.subr.mxu0 0.0
    %6351 = vmatpush1.msra.mxu0 0.0
    %6352 = vmatprep.subr.mxu0 0.0
    %6353 = vmatpush1.msra.mxu0 0.0
    %6354 = vmatprep.subr.mxu0 0.0
    %6355 = vmatpush1.msra.mxu0 0.0
    %6356 = vmatprep.subr.mxu0 0.0
    %6357 = vmatpush1.msra.mxu0 %v3726
    %6358 = vmatprep.subr.mxu0 0.0
    %6359 = vmatpush1.msra.mxu0 %v3725
    %6360 = vmatprep.subr.mxu0 0.0
    %6361 = vmatpush2.msra.mxu0 0.0
    %6362 = vmatprep.subr.mxu0 0.0
    %6363 = vmatpush2.msra.mxu0 0.0
    %6364 = vmatprep.subr.mxu0 0.0
    %6365 = vmatpush2.msra.mxu0 0.0
    %6366 = vmatprep.subr.mxu0 0.0
    %6367 = vmatpush2.msra.mxu0 0.0
    %6368 = vmatprep.subr.mxu0 0.0
    %6369 = vmatpush2.msra.mxu0 0.0
    %6370 = vmatprep.subr.mxu0 0.0
    %6371 = vmatpush2.msra.mxu0 0.0
    %6372 = vmatprep.subr.mxu0 0.0
    %6373 = vmatpush2.msra.mxu0 0.0
    %6374 = vmatprep.subr.mxu0 0.0
    %6375 = vmatpush2.msra.mxu0 0.0
    %6376 = vmatprep.subr.mxu0 0.0
    %6377 = vmatpush2.msra.mxu0 0.0
    %6378 = vmatprep.subr.mxu0 0.0
    %6379 = vmatpush2.msra.mxu0 0.0
    %6380 = vmatprep.subr.mxu0 0.0
    %6381 = vmatpush2.msra.mxu0 0.0
    %6382 = vmatprep.subr.mxu0 0.0
    %6383 = vmatpush2.msra.mxu0 0.0
    %6384 = vmatprep.subr.mxu0 0.0
    %6385 = vmatpush2.msra.mxu0 0.0
    %6386 = vmatprep.subr.mxu0 0.0
    %6387 = vmatpush2.msra.mxu0 0.0
    %6388 = vmatprep.subr.mxu0 0.0
    %6389 = vmatpush2.msra.mxu0 0.0
    %6390 = vmatprep.subr.mxu0 0.0
    %6391 = vmatpush2.msra.mxu0 0.0
    %6392 = vmatprep.mubr.f32.mxu0 0.0
    %6393 = vmatmul.mubr.f32.gmra.mxu0 %v6323
    %v6394 = vpop.f32.mrf.mxu0
    %v6395 = vadd.f32 0.0, %v6394
    %v6396 = vpop.f32.mrf.mxu0
    %6397 = vmatprep.mubr.f32.mxu0 0.0
    %6398 = vmatmul.mubr.f32.gmra.mxu0 %v6326
    %v6399 = vpop.f32.mrf.mxu0
    %v6400 = vadd.f32 0.0, %v6399
    %v6401 = vpop.f32.mrf.mxu0
    %6402 = vdwg.mxu0
    %v6403 = vadd.f32 %v6116, %v6395
    %v6404 = vadd.f32 %v6117, %v6400
    %v6405 = vlaneseq
    %v6406 = vshrl.u32 %v6405, 7
    %v6407 = vsub.s32 0, %v6406
    %v6408 = vrot.slane %v3766, %v6407
    %v6409 = vadd.f32 %v5267, %v6408
    %v6410 = vadd.f32 %v5268, %v6408
    %v6411 = vadd.f32 %v6403, %v6408
    %v6412 = vadd.f32 %v6404, %v6408
    %v6413 = vadd.f32 %v3691, %v6409
    %v6414 = vadd.f32 %v3692, %v6410
    %v6415 = vadd.f32 %v3693, %v6411
    %v6416 = vadd.f32 %v3694, %v6412
    %v6417 = vsel %vm716, %v6413, 0.0
    %6418 = vadd.xlane.f32.xlu0 %v6417
    %v6419 = vpop.xlane.xlu0 %6418
    %v6420 = vsel %vm716, %v6414, 0.0
    %6421 = vadd.xlane.f32.xlu0 %v6420
    %v6422 = vpop.xlane.xlu0 %6421
    %v6423 = vsel %vm716, %v6415, 0.0
    %6424 = vadd.xlane.f32.xlu0 %v6423
    %v6425 = vpop.xlane.xlu0 %6424
    %v6426 = vsel %vm716, %v6416, 0.0
    %6427 = vadd.xlane.f32.xlu0 %v6426
    %v6428 = vpop.xlane.xlu0 %6427
    %v6429 = vmul.f32 %v6419, %v729
    %v6430 = vmul.f32 %v6422, %v729
    %v6431 = vmul.f32 %v6425, %v729
    %v6432 = vmul.f32 %v6428, %v729
    %v6433 = vsub.f32 %v6413, %v6429
    %v6434 = vsub.f32 %v6414, %v6430
    %v6435 = vsub.f32 %v6415, %v6431
    %v6436 = vsub.f32 %v6416, %v6432
    %v6437 = vmul.f32 %v6433, %v6433
    %v6438 = vmul.f32 %v6434, %v6434
    %v6439 = vmul.f32 %v6435, %v6435
    %v6440 = vmul.f32 %v6436, %v6436
    %v6441 = vsel %vm716, %v6437, 0.0
    %6442 = vadd.xlane.f32.xlu0 %v6441
    %v6443 = vpop.xlane.xlu0 %6442
    %v6444 = vsel %vm716, %v6438, 0.0
    %6445 = vadd.xlane.f32.xlu0 %v6444
    %v6446 = vpop.xlane.xlu0 %6445
    %v6447 = vsel %vm716, %v6439, 0.0
    %6448 = vadd.xlane.f32.xlu0 %v6447
    %v6449 = vpop.xlane.xlu0 %6448
    %v6450 = vsel %vm716, %v6440, 0.0
    %6451 = vadd.xlane.f32.xlu0 %v6450
    %v6452 = vpop.xlane.xlu0 %6451
    %v6453 = vmul.f32 %v6443, %v729
    %v6454 = vmul.f32 %v6446, %v729
    %v6455 = vmul.f32 %v6449, %v729
    %v6456 = vmul.f32 %v6452, %v729
    %v6457 = vadd.f32 %v6453, 1e-05
    %v6458 = vadd.f32 %v6454, 1e-05
    %v6459 = vadd.f32 %v6455, 1e-05
    %v6460 = vadd.f32 %v6456, 1e-05
    %v6461 = vrsqrt.pop %v6457
    %v6462 = vrsqrt.pop %v6458
    %v6463 = vrsqrt.pop %v6459
    %v6464 = vrsqrt.pop %v6460
    %v6465 = vmul.f32 %v6433, %v6461
    %v6466 = vmul.f32 %v6434, %v6462
    %v6467 = vmul.f32 %v6435, %v6463
    %v6468 = vmul.f32 %v6436, %v6464
    %v6469 = vlaneseq
    %v6470 = vshrl.u32 %v6469, 7
    %v6471 = vsub.s32 0, %v6470
    %v6472 = vrot.slane %v3761, %v6471
    %v6473 = vmul.f32 %v6465, %v6472
    %v6474 = vmul.f32 %v6466, %v6472
    %v6475 = vmul.f32 %v6467, %v6472
    %v6476 = vmul.f32 %v6468, %v6472
    %v6477 = vlaneseq
    %v6478 = vshrl.u32 %v6477, 7
    %v6479 = vsub.s32 0, %v6478
    %v6480 = vrot.slane %v3762, %v6479
    %v6481 = vadd.f32 %v6473, %v6480
    %v6482 = vadd.f32 %v6474, %v6480
    %v6483 = vadd.f32 %v6475, %v6480
    %v6484 = vadd.f32 %v6476, %v6480
    %v6486 = vlaneseq
    %v6487 = vshrl.u32 %v6486, 7
    %v6488 = vsub.s32 0, %v6487
    %v6489 = vrot.slane %v3785, %v6488
    %v6490 = vlaneseq
    %v6491 = vshrl.u32 %v6490, 7
    %v6492 = vsub.s32 1, %v6491
    %v6493 = vrot.slane %v3785, %v6492
    %v6497 = vsel %vm716, %v6481, 0
    %v6500 = vsel %vm716, %v6482, 0
    %v6503 = vsel %vm716, %v6483, 0
    %v6506 = vsel %vm716, %v6484, 0
    %6508 = vmatprep.subr.mxu0 0.0
    %6509 = vmatpush1.msra.mxu0 0.0
    %6510 = vmatprep.subr.mxu0 0.0
    %6511 = vmatpush1.msra.mxu0 0.0
    %6512 = vmatprep.subr.mxu0 0.0
    %6513 = vmatpush1.msra.mxu0 0.0
    %6514 = vmatprep.subr.mxu0 0.0
    %6515 = vmatpush1.msra.mxu0 0.0
    %6516 = vmatprep.subr.mxu0 0.0
    %6517 = vmatpush1.msra.mxu0 0.0
    %6518 = vmatprep.subr.mxu0 0.0
    %6519 = vmatpush1.msra.mxu0 0.0
    %6520 = vmatprep.subr.mxu0 0.0
    %6521 = vmatpush1.msra.mxu0 0.0
    %6522 = vmatprep.subr.mxu0 0.0
    %6523 = vmatpush1.msra.mxu0 0.0
    %6524 = vmatprep.subr.mxu0 %v3783
    %6525 = vmatpush1.msra.mxu0 %v3782
    %6526 = vmatprep.subr.mxu0 %v3781
    %6527 = vmatpush1.msra.mxu0 %v3780
    %6528 = vmatprep.subr.mxu0 %v3779
    %6529 = vmatpush1.msra.mxu0 %v3778
    %6530 = vmatprep.subr.mxu0 %v3777
    %6531 = vmatpush1.msra.mxu0 %v3776
    %6532 = vmatprep.subr.mxu0 %v3775
    %6533 = vmatpush1.msra.mxu0 %v3774
    %6534 = vmatprep.subr.mxu0 %v3773
    %6535 = vmatpush1.msra.mxu0 %v3772
    %6536 = vmatprep.subr.mxu0 %v3771
    %6537 = vmatpush1.msra.mxu0 %v3770
    %6538 = vmatprep.subr.mxu0 %v3769
    %6539 = vmatpush1.msra.mxu0 %v3768
    %6540 = vmatprep.subr.mxu0 0.0
    %6541 = vmatpush2.msra.mxu0 0.0
    %6542 = vmatprep.subr.mxu0 0.0
    %6543 = vmatpush2.msra.mxu0 0.0
    %6544 = vmatprep.subr.mxu0 0.0
    %6545 = vmatpush2.msra.mxu0 0.0
    %6546 = vmatprep.subr.mxu0 0.0
    %6547 = vmatpush2.msra.mxu0 0.0
    %6548 = vmatprep.subr.mxu0 0.0
    %6549 = vmatpush2.msra.mxu0 0.0
    %6550 = vmatprep.subr.mxu0 0.0
    %6551 = vmatpush2.msra.mxu0 0.0
    %6552 = vmatprep.subr.mxu0 0.0
    %6553 = vmatpush2.msra.mxu0 0.0
    %6554 = vmatprep.subr.mxu0 0.0
    %6555 = vmatpush2.msra.mxu0 0.0
    %6556 = vmatprep.subr.mxu0 0.0
    %6557 = vmatpush2.msra.mxu0 0.0
    %6558 = vmatprep.subr.mxu0 0.0
    %6559 = vmatpush2.msra.mxu0 0.0
    %6560 = vmatprep.subr.mxu0 0.0
    %6561 = vmatpush2.msra.mxu0 0.0
    %6562 = vmatprep.subr.mxu0 0.0
    %6563 = vmatpush2.msra.mxu0 0.0
    %6564 = vmatprep.subr.mxu0 0.0
    %6565 = vmatpush2.msra.mxu0 0.0
    %6566 = vmatprep.subr.mxu0 0.0
    %6567 = vmatpush2.msra.mxu0 0.0
    %6568 = vmatprep.subr.mxu0 0.0
    %6569 = vmatpush2.msra.mxu0 0.0
    %6570 = vmatprep.subr.mxu0 0.0
    %6571 = vmatpush2.msra.mxu0 0.0
    %6572 = vmatprep.mubr.f32.mxu0 0.0
    %6573 = vmatmul.mubr.f32.gmra.mxu0 %v6497
    %v6574 = vpop.f32.mrf.mxu0
    %v6575 = vadd.f32 %v6489, %v6574
    %v6576 = vpop.f32.mrf.mxu0
    %v6577 = vadd.f32 %v6493, %v6576
    %6578 = vmatprep.mubr.f32.mxu0 0.0
    %6579 = vmatmul.mubr.f32.gmra.mxu0 %v6500
    %v6580 = vpop.f32.mrf.mxu0
    %v6581 = vadd.f32 %v6489, %v6580
    %v6582 = vpop.f32.mrf.mxu0
    %v6583 = vadd.f32 %v6493, %v6582
    %6584 = vmatprep.mubr.f32.mxu0 0.0
    %6585 = vmatmul.mubr.f32.gmra.mxu0 %v6503
    %v6586 = vpop.f32.mrf.mxu0
    %v6587 = vadd.f32 %v6489, %v6586
    %v6588 = vpop.f32.mrf.mxu0
    %v6589 = vadd.f32 %v6493, %v6588
    %6590 = vmatprep.mubr.f32.mxu0 0.0
    %6591 = vmatmul.mubr.f32.gmra.mxu0 %v6506
    %v6592 = vpop.f32.mrf.mxu0
    %v6593 = vadd.f32 %v6489, %v6592
    %v6594 = vpop.f32.mrf.mxu0
    %v6595 = vadd.f32 %v6493, %v6594
    %6596 = vdwg.mxu0
    %v6597 = vmul.f32 %v6575, 0.5
    %v6598 = vmul.f32 %v6577, 0.5
    %v6599 = vmul.f32 %v6581, 0.5
    %v6600 = vmul.f32 %v6583, 0.5
    %v6601 = vmul.f32 %v6587, 0.5
    %v6602 = vmul.f32 %v6589, 0.5
    %v6603 = vmul.f32 %v6593, 0.5
    %v6604 = vmul.f32 %v6595, 0.5
    %v6605 = vmul.f32 %v6575, 0.044715
    %v6606 = vmul.f32 %v6577, 0.044715
    %v6607 = vmul.f32 %v6581, 0.044715
    %v6608 = vmul.f32 %v6583, 0.044715
    %v6609 = vmul.f32 %v6587, 0.044715
    %v6610 = vmul.f32 %v6589, 0.044715
    %v6611 = vmul.f32 %v6593, 0.044715
    %v6612 = vmul.f32 %v6595, 0.044715
    %v6613 = vmul.f32 %v6605, %v6575
    %v6614 = vmul.f32 %v6606, %v6577
    %v6615 = vmul.f32 %v6607, %v6581
    %v6616 = vmul.f32 %v6608, %v6583
    %v6617 = vmul.f32 %v6609, %v6587
    %v6618 = vmul.f32 %v6610, %v6589
    %v6619 = vmul.f32 %v6611, %v6593
    %v6620 = vmul.f32 %v6612, %v6595
    %v6621 = vmul.f32 %v6613, %v6575
    %v6622 = vmul.f32 %v6614, %v6577
    %v6623 = vmul.f32 %v6615, %v6581
    %v6624 = vmul.f32 %v6616, %v6583
    %v6625 = vmul.f32 %v6617, %v6587
    %v6626 = vmul.f32 %v6618, %v6589
    %v6627 = vmul.f32 %v6619, %v6593
    %v6628 = vmul.f32 %v6620, %v6595
    %v6629 = vadd.f32 %v6575, %v6621
    %v6630 = vadd.f32 %v6577, %v6622
    %v6631 = vadd.f32 %v6581, %v6623
    %v6632 = vadd.f32 %v6583, %v6624
    %v6633 = vadd.f32 %v6587, %v6625
    %v6634 = vadd.f32 %v6589, %v6626
    %v6635 = vadd.f32 %v6593, %v6627
    %v6636 = vadd.f32 %v6595, %v6628
    %v6637 = vmul.f32 %v6629, 0.7978846
    %v6638 = vmul.f32 %v6630, 0.7978846
    %v6639 = vmul.f32 %v6631, 0.7978846
    %v6640 = vmul.f32 %v6632, 0.7978846
    %v6641 = vmul.f32 %v6633, 0.7978846
    %v6642 = vmul.f32 %v6634, 0.7978846
    %v6643 = vmul.f32 %v6635, 0.7978846
    %v6644 = vmul.f32 %v6636, 0.7978846
    %v6645 = vtanh.pop %v6637
    %v6646 = vtanh.pop %v6638
    %v6647 = vtanh.pop %v6639
    %v6648 = vtanh.pop %v6640
    %v6649 = vtanh.pop %v6641
    %v6650 = vtanh.pop %v6642
    %v6651 = vtanh.pop %v6643
    %v6652 = vtanh.pop %v6644
    %v6653 = vadd.f32 %v6645, 1.0
    %v6654 = vadd.f32 %v6646, 1.0
    %v6655 = vadd.f32 %v6647, 1.0
    %v6656 = vadd.f32 %v6648, 1.0
    %v6657 = vadd.f32 %v6649, 1.0
    %v6658 = vadd.f32 %v6650, 1.0
    %v6659 = vadd.f32 %v6651, 1.0
    %v6660 = vadd.f32 %v6652, 1.0
    %v6661 = vmul.f32 %v6597, %v6653
    %v6662 = vmul.f32 %v6598, %v6654
    %v6663 = vmul.f32 %v6599, %v6655
    %v6664 = vmul.f32 %v6600, %v6656
    %v6665 = vmul.f32 %v6601, %v6657
    %v6666 = vmul.f32 %v6602, %v6658
    %v6667 = vmul.f32 %v6603, %v6659
    %v6668 = vmul.f32 %v6604, %v6660
    %v6669 = vlaneseq
    %v6670 = vshrl.u32 %v6669, 7
    %v6671 = vsub.s32 0, %v6670
    %v6672 = vrot.slane %v3767, %v6671
    %6673 = vmatprep.subr.mxu0 0.0
    %6674 = vmatpush1.msra.mxu0 %v3742
    %6675 = vmatprep.subr.mxu0 0.0
    %6676 = vmatpush1.msra.mxu0 %v3741
    %6677 = vmatprep.subr.mxu0 0.0
    %6678 = vmatpush1.msra.mxu0 %v3740
    %6679 = vmatprep.subr.mxu0 0.0
    %6680 = vmatpush1.msra.mxu0 %v3739
    %6681 = vmatprep.subr.mxu0 0.0
    %6682 = vmatpush1.msra.mxu0 %v3738
    %6683 = vmatprep.subr.mxu0 0.0
    %6684 = vmatpush1.msra.mxu0 %v3737
    %6685 = vmatprep.subr.mxu0 0.0
    %6686 = vmatpush1.msra.mxu0 %v3736
    %6687 = vmatprep.subr.mxu0 0.0
    %6688 = vmatpush1.msra.mxu0 %v3735
    %6689 = vmatprep.subr.mxu0 0.0
    %6690 = vmatpush1.msra.mxu0 %v3734
    %6691 = vmatprep.subr.mxu0 0.0
    %6692 = vmatpush1.msra.mxu0 %v3733
    %6693 = vmatprep.subr.mxu0 0.0
    %6694 = vmatpush1.msra.mxu0 %v3732
    %6695 = vmatprep.subr.mxu0 0.0
    %6696 = vmatpush1.msra.mxu0 %v3731
    %6697 = vmatprep.subr.mxu0 0.0
    %6698 = vmatpush1.msra.mxu0 %v3730
    %6699 = vmatprep.subr.mxu0 0.0
    %6700 = vmatpush1.msra.mxu0 %v3729
    %6701 = vmatprep.subr.mxu0 0.0
    %6702 = vmatpush1.msra.mxu0 %v3728
    %6703 = vmatprep.subr.mxu0 0.0
    %6704 = vmatpush1.msra.mxu0 %v3727
    %6705 = vmatprep.subr.mxu0 0.0
    %6706 = vmatpush2.msra.mxu0 %v3758
    %6707 = vmatprep.subr.mxu0 0.0
    %6708 = vmatpush2.msra.mxu0 %v3757
    %6709 = vmatprep.subr.mxu0 0.0
    %6710 = vmatpush2.msra.mxu0 %v3756
    %6711 = vmatprep.subr.mxu0 0.0
    %6712 = vmatpush2.msra.mxu0 %v3755
    %6713 = vmatprep.subr.mxu0 0.0
    %6714 = vmatpush2.msra.mxu0 %v3754
    %6715 = vmatprep.subr.mxu0 0.0
    %6716 = vmatpush2.msra.mxu0 %v3753
    %6717 = vmatprep.subr.mxu0 0.0
    %6718 = vmatpush2.msra.mxu0 %v3752
    %6719 = vmatprep.subr.mxu0 0.0
    %6720 = vmatpush2.msra.mxu0 %v3751
    %6721 = vmatprep.subr.mxu0 0.0
    %6722 = vmatpush2.msra.mxu0 %v3750
    %6723 = vmatprep.subr.mxu0 0.0
    %6724 = vmatpush2.msra.mxu0 %v3749
    %6725 = vmatprep.subr.mxu0 0.0
    %6726 = vmatpush2.msra.mxu0 %v3748
    %6727 = vmatprep.subr.mxu0 0.0
    %6728 = vmatpush2.msra.mxu0 %v3747
    %6729 = vmatprep.subr.mxu0 0.0
    %6730 = vmatpush2.msra.mxu0 %v3746
    %6731 = vmatprep.subr.mxu0 0.0
    %6732 = vmatpush2.msra.mxu0 %v3745
    %6733 = vmatprep.subr.mxu0 0.0
    %6734 = vmatpush2.msra.mxu0 %v3744
    %6735 = vmatprep.subr.mxu0 0.0
    %6736 = vmatpush2.msra.mxu0 %v3743
    %6737 = vmatprep.mubr.f32.mxu0 %v6662
    %6738 = vmatmul.mubr.f32.gmra.mxu0 %v6661
    %v6739 = vpop.f32.mrf.mxu0
    %v6740 = vadd.f32 %v6672, %v6739
    %v6741 = vpop.f32.mrf.mxu0
    %6742 = vmatprep.mubr.f32.mxu0 %v6664
    %6743 = vmatmul.mubr.f32.gmra.mxu0 %v6663
    %v6744 = vpop.f32.mrf.mxu0
    %v6745 = vadd.f32 %v6672, %v6744
    %v6746 = vpop.f32.mrf.mxu0
    %6747 = vmatprep.mubr.f32.mxu0 %v6666
    %6748 = vmatmul.mubr.f32.gmra.mxu0 %v6665
    %v6749 = vpop.f32.mrf.mxu0
    %v6750 = vadd.f32 %v6672, %v6749
    %v6751 = vpop.f32.mrf.mxu0
    %6752 = vmatprep.mubr.f32.mxu0 %v6668
    %6753 = vmatmul.mubr.f32.gmra.mxu0 %v6667
    %v6754 = vpop.f32.mrf.mxu0
    %v6755 = vadd.f32 %v6672, %v6754
    %v6756 = vpop.f32.mrf.mxu0
    %6757 = vdwg.mxu0
    %v6758 = vadd.f32 %v6413, %v6740
    %v6759 = vadd.f32 %v6414, %v6745
    %v6760 = vadd.f32 %v6415, %v6750
    %v6761 = vadd.f32 %v6416, %v6755
    %v6762 = vsel %vm716, %v6758, 0.0
    %6763 = vadd.xlane.f32.xlu0 %v6762
    %v6764 = vpop.xlane.xlu0 %6763
    %v6765 = vsel %vm716, %v6759, 0.0
    %6766 = vadd.xlane.f32.xlu0 %v6765
    %v6767 = vpop.xlane.xlu0 %6766
    %v6768 = vsel %vm716, %v6760, 0.0
    %6769 = vadd.xlane.f32.xlu0 %v6768
    %v6770 = vpop.xlane.xlu0 %6769
    %v6771 = vsel %vm716, %v6761, 0.0
    %6772 = vadd.xlane.f32.xlu0 %v6771
    %v6773 = vpop.xlane.xlu0 %6772
    %v6774 = vmul.f32 %v6764, %v729
    %v6775 = vmul.f32 %v6767, %v729
    %v6776 = vmul.f32 %v6770, %v729
    %v6777 = vmul.f32 %v6773, %v729
    %v6778 = vsub.f32 %v6758, %v6774
    %v6779 = vsub.f32 %v6759, %v6775
    %v6780 = vsub.f32 %v6760, %v6776
    %v6781 = vsub.f32 %v6761, %v6777
    %v6782 = vmul.f32 %v6778, %v6778
    %v6783 = vmul.f32 %v6779, %v6779
    %v6784 = vmul.f32 %v6780, %v6780
    %v6785 = vmul.f32 %v6781, %v6781
    %v6786 = vsel %vm716, %v6782, 0.0
    %6787 = vadd.xlane.f32.xlu0 %v6786
    %v6788 = vpop.xlane.xlu0 %6787
    %v6789 = vsel %vm716, %v6783, 0.0
    %6790 = vadd.xlane.f32.xlu0 %v6789
    %v6791 = vpop.xlane.xlu0 %6790
    %v6792 = vsel %vm716, %v6784, 0.0
    %6793 = vadd.xlane.f32.xlu0 %v6792
    %v6794 = vpop.xlane.xlu0 %6793
    %v6795 = vsel %vm716, %v6785, 0.0
    %6796 = vadd.xlane.f32.xlu0 %v6795
    %v6797 = vpop.xlane.xlu0 %6796
    %v6798 = vmul.f32 %v6788, %v729
    %v6799 = vmul.f32 %v6791, %v729
    %v6800 = vmul.f32 %v6794, %v729
    %v6801 = vmul.f32 %v6797, %v729
    %v6802 = vadd.f32 %v6798, 1e-05
    %v6803 = vadd.f32 %v6799, 1e-05
    %v6804 = vadd.f32 %v6800, 1e-05
    %v6805 = vadd.f32 %v6801, 1e-05
    %v6806 = vrsqrt.pop %v6802
    %v6807 = vrsqrt.pop %v6803
    %v6808 = vrsqrt.pop %v6804
    %v6809 = vrsqrt.pop %v6805
    %v6810 = vmul.f32 %v6778, %v6806
    %v6811 = vmul.f32 %v6779, %v6807
    %v6812 = vmul.f32 %v6780, %v6808
    %v6813 = vmul.f32 %v6781, %v6809
    %v6814 = vlaneseq
    %v6815 = vshrl.u32 %v6814, 7
    %v6816 = vsub.s32 0, %v6815
    %v6817 = vrot.slane %v50, %v6816
    %v6818 = vmul.f32 %v6810, %v6817
    %v6819 = vmul.f32 %v6811, %v6817
    %v6820 = vmul.f32 %v6812, %v6817
    %v6821 = vmul.f32 %v6813, %v6817
    %v6822 = vlaneseq
    %v6823 = vshrl.u32 %v6822, 7
    %v6824 = vsub.s32 0, %v6823
    %v6825 = vrot.slane %v51, %v6824
    %v6826 = vadd.f32 %v6818, %v6825
    %v6827 = vadd.f32 %v6819, %v6825
    %v6828 = vadd.f32 %v6820, %v6825
    %v6829 = vadd.f32 %v6821, %v6825
    %v6830 = vld [vmem:[%s5] sm:$0xff]
    %v6831 = vld [vmem:[%s5 + $0x8] sm:$0xff]
    %v6832 = vld [vmem:[%s5 + $0x10] sm:$0xff]
    %v6833 = vld [vmem:[%s5 + $0x18] sm:$0xff]
    %v6834 = vld [vmem:[%s5 + $0x20] sm:$0xff]
    %v6835 = vld [vmem:[%s5 + $0x28] sm:$0xff]
    %v6836 = vld [vmem:[%s5 + $0x30] sm:$0xff]
    %v6837 = vld [vmem:[%s5 + $0x38] sm:$0xff]
    %v6839 = vsel %vm716, %v6826, 0
    %v6842 = vsel %vm716, %v6827, 0
    %v6845 = vsel %vm716, %v6828, 0
    %v6848 = vsel %vm716, %v6829, 0
    %6850 = vmatprep.subr.mxu0 0.0
    %6851 = vmatpush1.msra.mxu0 0.0
    %6852 = vmatprep.subr.mxu0 0.0
    %6853 = vmatpush1.msra.mxu0 0.0
    %6854 = vmatprep.subr.mxu0 0.0
    %6855 = vmatpush1.msra.mxu0 0.0
    %6856 = vmatprep.subr.mxu0 0.0
    %6857 = vmatpush1.msra.mxu0 0.0
    %6858 = vmatprep.subr.mxu0 0.0
    %6859 = vmatpush1.msra.mxu0 0.0
    %6860 = vmatprep.subr.mxu0 0.0
    %6861 = vmatpush1.msra.mxu0 0.0
    %6862 = vmatprep.subr.mxu0 0.0
    %6863 = vmatpush1.msra.mxu0 0.0
    %6864 = vmatprep.subr.mxu0 0.0
    %6865 = vmatpush1.msra.mxu0 0.0
    %6866 = vmatprep.subr.mxu0 0.0
    %6867 = vmatpush1.msra.mxu0 %v6837
    %6868 = vmatprep.subr.mxu0 0.0
    %6869 = vmatpush1.msra.mxu0 %v6836
    %6870 = vmatprep.subr.mxu0 0.0
    %6871 = vmatpush1.msra.mxu0 %v6835
    %6872 = vmatprep.subr.mxu0 0.0
    %6873 = vmatpush1.msra.mxu0 %v6834
    %6874 = vmatprep.subr.mxu0 0.0
    %6875 = vmatpush1.msra.mxu0 %v6833
    %6876 = vmatprep.subr.mxu0 0.0
    %6877 = vmatpush1.msra.mxu0 %v6832
    %6878 = vmatprep.subr.mxu0 0.0
    %6879 = vmatpush1.msra.mxu0 %v6831
    %6880 = vmatprep.subr.mxu0 0.0
    %6881 = vmatpush1.msra.mxu0 %v6830
    %6882 = vmatprep.subr.mxu0 0.0
    %6883 = vmatpush2.msra.mxu0 0.0
    %6884 = vmatprep.subr.mxu0 0.0
    %6885 = vmatpush2.msra.mxu0 0.0
    %6886 = vmatprep.subr.mxu0 0.0
    %6887 = vmatpush2.msra.mxu0 0.0
    %6888 = vmatprep.subr.mxu0 0.0
    %6889 = vmatpush2.msra.mxu0 0.0
    %6890 = vmatprep.subr.mxu0 0.0
    %6891 = vmatpush2.msra.mxu0 0.0
    %6892 = vmatprep.subr.mxu0 0.0
    %6893 = vmatpush2.msra.mxu0 0.0
    %6894 = vmatprep.subr.mxu0 0.0
    %6895 = vmatpush2.msra.mxu0 0.0
    %6896 = vmatprep.subr.mxu0 0.0
    %6897 = vmatpush2.msra.mxu0 0.0
    %6898 = vmatprep.subr.mxu0 0.0
    %6899 = vmatpush2.msra.mxu0 0.0
    %6900 = vmatprep.subr.mxu0 0.0
    %6901 = vmatpush2.msra.mxu0 0.0
    %6902 = vmatprep.subr.mxu0 0.0
    %6903 = vmatpush2.msra.mxu0 0.0
    %6904 = vmatprep.subr.mxu0 0.0
    %6905 = vmatpush2.msra.mxu0 0.0
    %6906 = vmatprep.subr.mxu0 0.0
    %6907 = vmatpush2.msra.mxu0 0.0
    %6908 = vmatprep.subr.mxu0 0.0
    %6909 = vmatpush2.msra.mxu0 0.0
    %6910 = vmatprep.subr.mxu0 0.0
    %6911 = vmatpush2.msra.mxu0 0.0
    %6912 = vmatprep.subr.mxu0 0.0
    %6913 = vmatpush2.msra.mxu0 0.0
    %6914 = vmatprep.mubr.f32.mxu0 0.0
    %6915 = vmatmul.mubr.f32.gmra.mxu0 %v6839
    %v6916 = vpop.f32.mrf.mxu0
    %v6917 = vadd.f32 0.0, %v6916
    %v6918 = vpop.f32.mrf.mxu0
    %6919 = vmatprep.mubr.f32.mxu0 0.0
    %6920 = vmatmul.mubr.f32.gmra.mxu0 %v6842
    %v6921 = vpop.f32.mrf.mxu0
    %v6922 = vadd.f32 0.0, %v6921
    %v6923 = vpop.f32.mrf.mxu0
    %6924 = vmatprep.mubr.f32.mxu0 0.0
    %6925 = vmatmul.mubr.f32.gmra.mxu0 %v6845
    %v6926 = vpop.f32.mrf.mxu0
    %v6927 = vadd.f32 0.0, %v6926
    %v6928 = vpop.f32.mrf.mxu0
    %6929 = vmatprep.mubr.f32.mxu0 0.0
    %6930 = vmatmul.mubr.f32.gmra.mxu0 %v6848
    %v6931 = vpop.f32.mrf.mxu0
    %v6932 = vadd.f32 0.0, %v6931
    %v6933 = vpop.f32.mrf.mxu0
    %6934 = vdwg.mxu0
    %6935 = vst [vmem:[#allocation2] sm:$0xff] %v6917
    %6936 = vst [vmem:[#allocation2 + $0x8] sm:$0xff] %v6922
    %6937 = vst [vmem:[#allocation2 + $0x10] sm:$0xff] %v6927
    %6938 = vst [vmem:[#allocation2 + $0x18] sm:$0xff] %v6932
    // Predicated region
    $region34: #{clip_caption_forward.1} parent=1 // pred_check
      _
    $region35: #{clip_caption_forward.1} parent=1 // pred_check_branch
      %6940 = sbr.rel (0) target = $region37
    $region36: #{clip_caption_forward.1} parent=1 // pred_region
      %s6942 = ssub.s32 512, 512
      %6943 = vsyncadd [#allocation3], %s6942
      %s6944 = sshll.u32 [#allocation2], 4
      %s6945 = int_to_ptr.vmem [resolvable:$true] %s6944
      %6950 = dma.vmem_to_hbm [thread:$0]  %s6945, 512, %s8, [#allocation3], 128, 128, 8
    $region37: #{clip_caption_forward.1} parent=1 // pred_fallthru
      _
    // Predicated region
    $region38: #{clip_caption_forward.1} parent=1 // pred_check
      _
    $region39: #{clip_caption_forward.1} parent=1 // pred_check_branch
      %6952 = sbr.rel (0) target = $region41
    $region40: #{clip_caption_forward.1} parent=1 // pred_region
      %6953 = dma.done [#allocation3], 512
    $region41: #{clip_caption_forward.1} parent=1 // pred_fallthru
      _
    %6954 = vsyncpa [#allocation3], 1

</llo_original>
